<compile_context>
chip_gen: v7x
topology: tpu7x:2x2x1
jax: 0.10.0
libtpu: 0.0.40
codegen_flags: <defaults>
</compile_context>

<pallas_src>
import math

import numpy as np
import jax
import jax.numpy as jnp
from jax.experimental import pallas as pl
from jax.experimental.pallas import tpu as pltpu

C_FEAT = 2048      # resnet101 final feature channels
POOL_HW = 7        # AdaptiveAvgPool2d((7, 7)) target


# ---------------------------------------------------------------------------
# Helpers
# ---------------------------------------------------------------------------
def _adaptive_pool_matrix_np(in_h, in_w, out_h, out_w):
    """(in_h*in_w, out_h*out_w) f32 matrix reproducing nn.AdaptiveAvgPool2d((out_h, out_w)).

    Built with numpy so it is a compile-time constant (no traced ops in the wrapper).
    """
    def axis(n, o):
        m = np.zeros((n, o), np.float64)
        for i in range(o):
            s = (i * n) // o
            e = -((-(i + 1) * n) // o)          # ceil((i+1)*n/o)
            m[s:e, i] = 1.0 / (e - s)
        return m

    mh = axis(in_h, out_h)                      # (H, OH)
    mw = axis(in_w, out_w)                      # (W, OW)
    pm = mh[:, None, :, None] * mw[None, :, None, :]   # (H, W, OH, OW)
    return pm.reshape(in_h * in_w, out_h * out_w).astype(np.float32)


def _split_f32(v):
    """Split f32 tensor into bf16-exact hi part and f32 residual lo part."""
    hi = v.astype(jnp.bfloat16).astype(jnp.float32)
    return hi, v - hi


def _f32_matmul(a, b):
    """a @ b with ~float32 accuracy regardless of the backend matmul precision mode.

    TPU DEFAULT precision may round f32 operands to bf16 inside dots; splitting both
    operands into bf16-exact hi/lo parts and summing three f32-accumulated passes keeps
    the result at ~f32 accuracy in both compiled-Mosaic and interpret execution.  All the
    matmuls here are tiny vs. the HBM traffic, so the extra MXU passes are free.
    """
    a_hi, a_lo = _split_f32(a)
    b_hi, b_lo = _split_f32(b)
    d = lambda u, v: jnp.dot(u, v, preferred_element_type=jnp.float32)
    return d(a_hi, b_hi) + d(a_lo, b_hi) + d(a_hi, b_lo)


def _pick_c_chunk(c, target=512):
    for cand in (target, 256, 128, 64, 32, 16, 8):
        if cand <= c and c % cand == 0:
            return cand
    return c


def _pick_b_tile(b, target=4):
    for cand in (target, 2, 1):
        if b % cand == 0:
            return cand
    return 1


# ---------------------------------------------------------------------------
# Kernels
# ---------------------------------------------------------------------------
def _pool_global_kernel(x_ref, pmat_ref, wg_ref, bg_ref, enc_ref, glob_ref, acc_ref):
    """grid = (B, C//Ct): adaptive 7x7 pool of one channel chunk + fused global head."""
    c = pl.program_id(1)

    x = x_ref[0].astype(jnp.float32)                       # (Ct, H*W)
    pmat = pmat_ref[...].astype(jnp.float32)               # (H*W, 49)

    # adaptive_pool(7,7) as one matmul against the constant pooling matrix (row-parallel in C).
    pooled = _f32_matmul(x, pmat)                          # (Ct, 49)  f32
    enc_ref[0] = pooled.astype(enc_ref.dtype)              # channel-major, as PyTorch stores it

    # Global head partial:  W_g[:, chunk] @ mean_p(pooled_chunk)  (mean first -> 49x fewer MACs).
    mp = jnp.mean(pooled, axis=-1, keepdims=True)          # (Ct, 1)
    part = _f32_matmul(wg_ref[...].astype(jnp.float32), mp)  # (E, 1)

    @pl.when(c == 0)
    def _():
        acc_ref[...] = jnp.zeros_like(acc_ref)

    acc_ref[...] += part

    @pl.when(c == pl.num_programs(1) - 1)
    def _():
        glob_ref[0] = jnp.maximum(acc_ref[...] + bg_ref[...], 0.0).astype(glob_ref.dtype)


def _spatial_kernel(e_ref, w_ref, b_ref, o_ref):
    """grid = (B//Bt,): relu(enc_image @ W_s^T + b_s), Bt batch elements per step."""
    w = w_ref[...].astype(jnp.float32)                     # (C, hidden)
    bias = b_ref[...].astype(jnp.float32)                  # (1, hidden)
    for i in range(e_ref.shape[0]):                        # static unroll over the batch tile
        e = e_ref[i].astype(jnp.float32)                   # (49, C)
        y = _f32_matmul(e, w)                              # (49, hidden) f32
        o_ref[i] = jnp.maximum(y + bias, 0.0).astype(o_ref.dtype)


# ---------------------------------------------------------------------------
# Wrapper (forward pass of Encoder, post-backbone)
# ---------------------------------------------------------------------------
def encoder_forward(features, w_spatial, b_spatial, w_global, b_global):
    """features:  (B, 2048, H, W) — output of the (frozen) resnet101 backbone.
       w_spatial: (hidden, 2048), b_spatial: (hidden,)   (PyTorch nn.Linear layout)
       w_global:  (embed, 2048),  b_global:  (embed,)
       Returns (spatial_image (B,49,hidden), global_image (B,embed), enc_image (B,49,2048))."""
    B, C, H, W = features.shape
    P = POOL_HW * POOL_HW
    HW = H * W
    hidden = w_spatial.shape[0]
    embed = w_global.shape[0]
    out_dtype = features.dtype

    x2 = features.reshape(B, C, HW)                         # contiguous collapse (free)
    pmat = jnp.asarray(_adaptive_pool_matrix_np(H, W, POOL_HW, POOL_HW))
    wg = w_global.astype(jnp.float32)                       # (embed, C)
    bg = b_global.reshape(embed, 1).astype(jnp.float32)

    ct = _pick_c_chunk(C)
    n_c = C // ct

    enc_cmaj, glob = pl.pallas_call(
        _pool_global_kernel,
        out_shape=(jax.ShapeDtypeStruct((B, C, P), out_dtype),
                   jax.ShapeDtypeStruct((B, embed, 1), out_dtype)),
        grid=(B, n_c),
        in_specs=[
            pl.BlockSpec((1, ct, HW), lambda b, c: (b, c, 0)),
            pl.BlockSpec((HW, P), lambda b, c: (0, 0)),
            pl.BlockSpec((embed, ct), lambda b, c: (0, c)),
            pl.BlockSpec((embed, 1), lambda b, c: (0, 0)),
        ],
        out_specs=(
            pl.BlockSpec((1, ct, P), lambda b, c: (b, c, 0)),
            pl.BlockSpec((1, embed, 1), lambda b, c: (b, 0, 0)),
        ),
        scratch_shapes=[pltpu.VMEM((embed, 1), jnp.float32)],
        compiler_params=pltpu.CompilerParams(
            dimension_semantics=("parallel", "arbitrary")),
    )(x2, pmat, wg, bg)

    global_image = glob.reshape(B, embed)

    # PyTorch's .view(batch, num_pixels, features) on the NCHW-contiguous pooled tensor is a
    # raw memory reinterpretation (NOT a permute) — reproduced by this free row-major reshape.
    enc_image = enc_cmaj.reshape(B, P, C)

    ws_t = jnp.transpose(w_spatial).astype(jnp.float32)     # (C, hidden) — tiny one-time op
    bs = b_spatial.reshape(1, hidden).astype(jnp.float32)

    bt = _pick_b_tile(B)

    # Dropout(0.5) = identity (inference semantics).
    spatial_image = pl.pallas_call(
        _spatial_kernel,
        out_shape=jax.ShapeDtypeStruct((B, P, hidden), out_dtype),
        grid=(B // bt,),
        in_specs=[
            pl.BlockSpec((bt, P, C), lambda i: (i, 0, 0)),
            pl.BlockSpec((C, hidden), lambda i: (0, 0)),
            pl.BlockSpec((1, hidden), lambda i: (0, 0)),
        ],
        out_specs=pl.BlockSpec((bt, P, hidden), lambda i: (i, 0, 0)),
        compiler_params=pltpu.CompilerParams(
            dimension_semantics=("parallel",)),
    )(enc_image, ws_t, bs)

    return spatial_image, global_image, enc_image


# ---------------------------------------------------------------------------
# Pure-JAX reference (PyTorch-faithful semantics; H, W divisible by 7)
# ---------------------------------------------------------------------------
def _reference(features, w_spatial, b_spatial, w_global, b_global):
    B, C, H, W = features.shape
    kh, kw = H // POOL_HW, W // POOL_HW
    pooled = features.reshape(B, C, POOL_HW, kh, POOL_HW, kw).mean(axis=(3, 5))   # (B,C,7,7)
    glob = pooled.mean(axis=(2, 3))                                               # (B,C)
    enc = pooled.reshape(B, POOL_HW * POOL_HW, C)                                 # raw .view
    hp = jax.lax.Precision.HIGHEST
    spatial = jax.nn.relu(
        jnp.einsum("bpc,hc->bph", enc, w_spatial, precision=hp) + b_spatial)
    global_img = jax.nn.relu(jnp.matmul(glob, w_global.T, precision=hp) + b_global)
    return spatial, global_img, enc


def _assert_close(name, a, b, rtol=2e-2, atol=2e-2):
    ok = bool(jnp.allclose(a, b, rtol=rtol, atol=atol))
    max_diff = float(jnp.max(jnp.abs(a.astype(jnp.float32) - b.astype(jnp.float32))))
    assert ok, f"{name} mismatch: max_abs_diff={max_diff:.3e}"


if __name__ == "__main__":
    hidden_size, embed_size = 32, 64
    B, H, W = 2, 14, 14
    key = jax.random.PRNGKey(0)
    k_x, k_ws, k_wg = jax.random.split(key, 3)

    # Synthetic stand-in for the ResNet-101 feature map (B, 2048, 14, 14).
    features = jax.random.normal(k_x, (B, C_FEAT, H, W), dtype=jnp.float32)

    # Kaiming-uniform init (fan_in = 2048, gain = sqrt(2)); biases filled with 0 —
    # mirrors Encoder.init_weights().  PyTorch nn.Linear weight layout (out, in).
    bound = math.sqrt(6.0 / C_FEAT)
    w_spatial = jax.random.uniform(k_ws, (hidden_size, C_FEAT), jnp.float32, -bound, bound)
    w_global = jax.random.uniform(k_wg, (embed_size, C_FEAT), jnp.float32, -bound, bound)
    b_spatial = jnp.zeros((hidden_size,), jnp.float32)
    b_global = jnp.zeros((embed_size,), jnp.float32)

    fwd = jax.jit(encoder_forward)
    spatial_image, global_image, enc_image = jax.block_until_ready(
        fwd(features, w_spatial, b_spatial, w_global, b_global))

    assert spatial_image.shape == (B, 49, hidden_size)
    assert global_image.shape == (B, embed_size)
    assert enc_image.shape == (B, 49, C_FEAT)

    ref_spatial, ref_global, ref_enc = _reference(
        features, w_spatial, b_spatial, w_global, b_global)
    _assert_close("enc_image", enc_image, ref_enc)
    _assert_close("spatial_image", spatial_image, ref_spatial)
    _assert_close("global_image", global_image, ref_global)

    print("KERNEL_OK")
</pallas_src>

<mosaic_0001>
module attributes {stable_mosaic.version = 11 : i64} {
  func.func @_pool_global_kernel(%arg0: i32, %arg1: i32, %arg2: memref<1x512x196xf32, #tpu.memory_space<vmem>>, %arg3: memref<196x49xf32, #tpu.memory_space<vmem>>, %arg4: memref<64x512xf32, #tpu.memory_space<vmem>>, %arg5: memref<64x1xf32, #tpu.memory_space<vmem>>, %arg6: memref<1x512x49xf32, #tpu.memory_space<vmem>>, %arg7: memref<1x64x1xf32, #tpu.memory_space<vmem>>, %arg8: memref<64x1xf32, #tpu.memory_space<vmem>>) attributes {dimension_semantics = [#tpu.dimension_semantics<parallel>, #tpu.dimension_semantics<arbitrary>], iteration_bounds = array<i64: 2, 4>, scalar_prefetch = 0 : i64, scratch_operands = 1 : i64, tpu.core_type = #tpu.core_type<tc>, window_params = [{transform_indices = @transform_0, window_bounds = array<i64: 1, 512, 196>}, {pipeline_mode = #tpu.pipeline_mode<synchronous>, transform_indices = @transform_1, window_bounds = array<i64: 196, 49>}, {transform_indices = @transform_2, window_bounds = array<i64: 64, 512>}, {pipeline_mode = #tpu.pipeline_mode<synchronous>, transform_indices = @transform_3, window_bounds = array<i64: 64, 1>}, {transform_indices = @transform_4, window_bounds = array<i64: 1, 512, 49>}, {transform_indices = @transform_5, window_bounds = array<i64: 1, 64, 1>}]} {
    %c0 = arith.constant 0 : index
    %c0_0 = arith.constant 0 : index
    %c0_1 = arith.constant 0 : index
    %0 = vector.load %arg2[%c0, %c0_0, %c0_1] : memref<1x512x196xf32, #tpu.memory_space<vmem>>, vector<1x512x196xf32>
    %1 = vector.shape_cast %0 : vector<1x512x196xf32> to vector<512x196xf32>
    %c0_2 = arith.constant 0 : index
    %c0_3 = arith.constant 0 : index
    %2 = vector.load %arg3[%c0_2, %c0_3] : memref<196x49xf32, #tpu.memory_space<vmem>>, vector<196x49xf32>
    %3 = arith.truncf %1 : vector<512x196xf32> to vector<512x196xbf16>
    %4 = arith.extf %3 : vector<512x196xbf16> to vector<512x196xf32>
    %5 = arith.subf %1, %4 : vector<512x196xf32>
    %6 = arith.truncf %2 : vector<196x49xf32> to vector<196x49xbf16>
    %7 = arith.extf %6 : vector<196x49xbf16> to vector<196x49xf32>
    %8 = arith.subf %2, %7 : vector<196x49xf32>
    %cst = arith.constant dense<0.000000e+00> : vector<512x49xf32>
    %9 = tpu.matmul %4, %7, %cst {dimension_numbers = #tpu.dot_dimension_numbers<[1], [0], [0], [1], [0, 0, 1, 1], [], []>} : vector<512x196xf32>, vector<196x49xf32>, vector<512x49xf32> -> vector<512x49xf32>
    %cst_4 = arith.constant dense<0.000000e+00> : vector<512x49xf32>
    %10 = tpu.matmul %5, %7, %cst_4 {dimension_numbers = #tpu.dot_dimension_numbers<[1], [0], [0], [1], [0, 0, 1, 1], [], []>} : vector<512x196xf32>, vector<196x49xf32>, vector<512x49xf32> -> vector<512x49xf32>
    %11 = arith.addf %9, %10 : vector<512x49xf32>
    %cst_5 = arith.constant dense<0.000000e+00> : vector<512x49xf32>
    %12 = tpu.matmul %4, %8, %cst_5 {dimension_numbers = #tpu.dot_dimension_numbers<[1], [0], [0], [1], [0, 0, 1, 1], [], []>} : vector<512x196xf32>, vector<196x49xf32>, vector<512x49xf32> -> vector<512x49xf32>
    %13 = arith.addf %11, %12 : vector<512x49xf32>
    %c0_6 = arith.constant 0 : index
    %c0_7 = arith.constant 0 : index
    %c0_8 = arith.constant 0 : index
    %14 = vector.load %arg6[%c0_6, %c0_7, %c0_8] : memref<1x512x49xf32, #tpu.memory_space<vmem>>, vector<1x512x49xf32>
    %15 = vector.shape_cast %14 : vector<1x512x49xf32> to vector<512x49xf32>
    %16 = vector.shape_cast %13 : vector<512x49xf32> to vector<1x512x49xf32>
    tpu.vector_store %arg6[%c0_6, %c0_7, %c0_8], %16 {strides = array<i32>} : memref<1x512x49xf32, #tpu.memory_space<vmem>>, vector<1x512x49xf32>,
    %cst_9 = arith.constant dense<0.000000e+00> : vector<512xf32>
    %17 = vector.multi_reduction <add>, %13, %cst_9 [1] : vector<512x49xf32> to vector<512xf32>
    %18 = vector.shape_cast %17 : vector<512xf32> to vector<512x1xf32>
    %cst_10 = arith.constant 4.900000e+01 : f32
    %19 = vector.broadcast %cst_10 : f32 to vector<512x1xf32>
    %20 = arith.divf %18, %19 : vector<512x1xf32>
    %c0_11 = arith.constant 0 : index
    %c0_12 = arith.constant 0 : index
    %21 = vector.load %arg4[%c0_11, %c0_12] : memref<64x512xf32, #tpu.memory_space<vmem>>, vector<64x512xf32>
    %22 = arith.truncf %21 : vector<64x512xf32> to vector<64x512xbf16>
    %23 = arith.extf %22 : vector<64x512xbf16> to vector<64x512xf32>
    %24 = arith.subf %21, %23 : vector<64x512xf32>
    %25 = arith.truncf %20 : vector<512x1xf32> to vector<512x1xbf16>
    %26 = arith.extf %25 : vector<512x1xbf16> to vector<512x1xf32>
    %27 = arith.subf %20, %26 : vector<512x1xf32>
    %cst_13 = arith.constant dense<0.000000e+00> : vector<64x1xf32>
    %28 = tpu.matmul %23, %26, %cst_13 {dimension_numbers = #tpu.dot_dimension_numbers<[1], [0], [0], [1], [0, 0, 1, 1], [], []>} : vector<64x512xf32>, vector<512x1xf32>, vector<64x1xf32> -> vector<64x1xf32>
    %cst_14 = arith.constant dense<0.000000e+00> : vector<64x1xf32>
    %29 = tpu.matmul %24, %26, %cst_14 {dimension_numbers = #tpu.dot_dimension_numbers<[1], [0], [0], [1], [0, 0, 1, 1], [], []>} : vector<64x512xf32>, vector<512x1xf32>, vector<64x1xf32> -> vector<64x1xf32>
    %30 = arith.addf %28, %29 : vector<64x1xf32>
    %cst_15 = arith.constant dense<0.000000e+00> : vector<64x1xf32>
    %31 = tpu.matmul %23, %27, %cst_15 {dimension_numbers = #tpu.dot_dimension_numbers<[1], [0], [0], [1], [0, 0, 1, 1], [], []>} : vector<64x512xf32>, vector<512x1xf32>, vector<64x1xf32> -> vector<64x1xf32>
    %32 = arith.addf %30, %31 : vector<64x1xf32>
    %c0_i32 = arith.constant 0 : i32
    %33 = arith.cmpi eq, %arg1, %c0_i32 : i32
    %34 = arith.extui %33 : i1 to i32
    %c0_i32_16 = arith.constant 0 : i32
    %35 = arith.cmpi ne, %34, %c0_i32_16 : i32
    scf.if %35 {
      %cst_22 = arith.constant 0.000000e+00 : f32
      %42 = vector.broadcast %cst_22 : f32 to vector<64x1xf32>
      %c0_23 = arith.constant 0 : index
      %c0_24 = arith.constant 0 : index
      %43 = vector.load %arg8[%c0_23, %c0_24] : memref<64x1xf32, #tpu.memory_space<vmem>>, vector<64x1xf32>
      tpu.vector_store %arg8[%c0_23, %c0_24], %42 {strides = array<i32>} : memref<64x1xf32, #tpu.memory_space<vmem>>, vector<64x1xf32>,
    } else {
    }
    %c0_17 = arith.constant 0 : index
    %c0_18 = arith.constant 0 : index
    %36 = vector.load %arg8[%c0_17, %c0_18] : memref<64x1xf32, #tpu.memory_space<vmem>>, vector<64x1xf32>
    %37 = arith.addf %36, %32 : vector<64x1xf32>
    %c0_19 = arith.constant 0 : index
    %c0_20 = arith.constant 0 : index
    %38 = vector.load %arg8[%c0_19, %c0_20] : memref<64x1xf32, #tpu.memory_space<vmem>>, vector<64x1xf32>
    tpu.vector_store %arg8[%c0_19, %c0_20], %37 {strides = array<i32>} : memref<64x1xf32, #tpu.memory_space<vmem>>, vector<64x1xf32>,
    %c3_i32 = arith.constant 3 : i32
    %39 = arith.cmpi eq, %arg1, %c3_i32 : i32
    %40 = arith.extui %39 : i1 to i32
    %c0_i32_21 = arith.constant 0 : i32
    %41 = arith.cmpi ne, %40, %c0_i32_21 : i32
    scf.if %41 {
      %c0_22 = arith.constant 0 : index
      %c0_23 = arith.constant 0 : index
      %42 = vector.load %arg8[%c0_22, %c0_23] : memref<64x1xf32, #tpu.memory_space<vmem>>, vector<64x1xf32>
      %c0_24 = arith.constant 0 : index
      %c0_25 = arith.constant 0 : index
      %43 = vector.load %arg5[%c0_24, %c0_25] : memref<64x1xf32, #tpu.memory_space<vmem>>, vector<64x1xf32>
      %44 = arith.addf %42, %43 : vector<64x1xf32>
      %cst_26 = arith.constant 0.000000e+00 : f32
      %45 = vector.broadcast %cst_26 : f32 to vector<64x1xf32>
      %46 = arith.maximumf %44, %45 : vector<64x1xf32>
      %c0_27 = arith.constant 0 : index
      %c0_28 = arith.constant 0 : index
      %c0_29 = arith.constant 0 : index
      %47 = vector.load %arg7[%c0_27, %c0_28, %c0_29] : memref<1x64x1xf32, #tpu.memory_space<vmem>>, vector<1x64x1xf32>
      %48 = vector.shape_cast %47 : vector<1x64x1xf32> to vector<64x1xf32>
      %49 = vector.shape_cast %46 : vector<64x1xf32> to vector<1x64x1xf32>
      tpu.vector_store %arg7[%c0_27, %c0_28, %c0_29], %49 {strides = array<i32>} : memref<1x64x1xf32, #tpu.memory_space<vmem>>, vector<1x64x1xf32>,
    } else {
    }
    return
  }
  func.func @transform_0(%arg0: i32, %arg1: i32) -> (i32, i32, i32) {
    %c0_i32 = arith.constant 0 : i32
    %c0_i32_0 = arith.constant 0 : i32
    return %arg0, %arg1, %c0_i32 : i32, i32, i32
  }
  func.func @transform_1(%arg0: i32, %arg1: i32) -> (i32, i32) {
    %c0_i32 = arith.constant 0 : i32
    %c0_i32_0 = arith.constant 0 : i32
    %c0_i32_1 = arith.constant 0 : i32
    return %c0_i32, %c0_i32_0 : i32, i32
  }
  func.func @transform_2(%arg0: i32, %arg1: i32) -> (i32, i32) {
    %c0_i32 = arith.constant 0 : i32
    %c0_i32_0 = arith.constant 0 : i32
    return %c0_i32, %arg1 : i32, i32
  }
  func.func @transform_3(%arg0: i32, %arg1: i32) -> (i32, i32) {
    %c0_i32 = arith.constant 0 : i32
    %c0_i32_0 = arith.constant 0 : i32
    %c0_i32_1 = arith.constant 0 : i32
    return %c0_i32, %c0_i32_0 : i32, i32
  }
  func.func @transform_4(%arg0: i32, %arg1: i32) -> (i32, i32, i32) {
    %c0_i32 = arith.constant 0 : i32
    %c0_i32_0 = arith.constant 0 : i32
    return %arg0, %arg1, %c0_i32 : i32, i32, i32
  }
  func.func @transform_5(%arg0: i32, %arg1: i32) -> (i32, i32, i32) {
    %c0_i32 = arith.constant 0 : i32
    %c0_i32_0 = arith.constant 0 : i32
    %c0_i32_1 = arith.constant 0 : i32
    return %arg0, %c0_i32, %c0_i32_0 : i32, i32, i32
  }
}

module attributes {stable_mosaic.version = 11 : i64} {
  func.func @_spatial_kernel(%arg0: i32, %arg1: memref<2x49x2048xf32, #tpu.memory_space<vmem>>, %arg2: memref<2048x32xf32, #tpu.memory_space<vmem>>, %arg3: memref<1x32xf32, #tpu.memory_space<vmem>>, %arg4: memref<2x49x32xf32, #tpu.memory_space<vmem>>) attributes {dimension_semantics = [#tpu.dimension_semantics<parallel>], iteration_bounds = array<i64: 1>, scalar_prefetch = 0 : i64, scratch_operands = 0 : i64, tpu.core_type = #tpu.core_type<tc>, window_params = [{transform_indices = @transform_0, window_bounds = array<i64: 2, 49, 2048>}, {pipeline_mode = #tpu.pipeline_mode<synchronous>, transform_indices = @transform_1, window_bounds = array<i64: 2048, 32>}, {pipeline_mode = #tpu.pipeline_mode<synchronous>, transform_indices = @transform_2, window_bounds = array<i64: 1, 32>}, {transform_indices = @transform_3, window_bounds = array<i64: 2, 49, 32>}]} {
    %c0 = arith.constant 0 : index
    %c0_0 = arith.constant 0 : index
    %0 = vector.load %arg2[%c0, %c0_0] : memref<2048x32xf32, #tpu.memory_space<vmem>>, vector<2048x32xf32>
    %c0_1 = arith.constant 0 : index
    %c0_2 = arith.constant 0 : index
    %1 = vector.load %arg3[%c0_1, %c0_2] : memref<1x32xf32, #tpu.memory_space<vmem>>, vector<1x32xf32>
    %c0_3 = arith.constant 0 : index
    %c0_4 = arith.constant 0 : index
    %c0_5 = arith.constant 0 : index
    %2 = vector.load %arg1[%c0_3, %c0_4, %c0_5] : memref<2x49x2048xf32, #tpu.memory_space<vmem>>, vector<1x49x2048xf32>
    %3 = vector.shape_cast %2 : vector<1x49x2048xf32> to vector<49x2048xf32>
    %4 = arith.truncf %3 : vector<49x2048xf32> to vector<49x2048xbf16>
    %5 = arith.extf %4 : vector<49x2048xbf16> to vector<49x2048xf32>
    %6 = arith.subf %3, %5 : vector<49x2048xf32>
    %7 = arith.truncf %0 : vector<2048x32xf32> to vector<2048x32xbf16>
    %8 = arith.extf %7 : vector<2048x32xbf16> to vector<2048x32xf32>
    %9 = arith.subf %0, %8 : vector<2048x32xf32>
    %cst = arith.constant dense<0.000000e+00> : vector<49x32xf32>
    %10 = tpu.matmul %5, %8, %cst {dimension_numbers = #tpu.dot_dimension_numbers<[1], [0], [0], [1], [0, 0, 1, 1], [], []>} : vector<49x2048xf32>, vector<2048x32xf32>, vector<49x32xf32> -> vector<49x32xf32>
    %cst_6 = arith.constant dense<0.000000e+00> : vector<49x32xf32>
    %11 = tpu.matmul %6, %8, %cst_6 {dimension_numbers = #tpu.dot_dimension_numbers<[1], [0], [0], [1], [0, 0, 1, 1], [], []>} : vector<49x2048xf32>, vector<2048x32xf32>, vector<49x32xf32> -> vector<49x32xf32>
    %12 = arith.addf %10, %11 : vector<49x32xf32>
    %cst_7 = arith.constant dense<0.000000e+00> : vector<49x32xf32>
    %13 = tpu.matmul %5, %9, %cst_7 {dimension_numbers = #tpu.dot_dimension_numbers<[1], [0], [0], [1], [0, 0, 1, 1], [], []>} : vector<49x2048xf32>, vector<2048x32xf32>, vector<49x32xf32> -> vector<49x32xf32>
    %14 = arith.addf %12, %13 : vector<49x32xf32>
    %15 = vector.broadcast %1 : vector<1x32xf32> to vector<49x32xf32>
    %16 = arith.addf %14, %15 : vector<49x32xf32>
    %cst_8 = arith.constant 0.000000e+00 : f32
    %17 = vector.broadcast %cst_8 : f32 to vector<49x32xf32>
    %18 = arith.maximumf %16, %17 : vector<49x32xf32>
    %c0_9 = arith.constant 0 : index
    %c0_10 = arith.constant 0 : index
    %c0_11 = arith.constant 0 : index
    %19 = vector.load %arg4[%c0_9, %c0_10, %c0_11] : memref<2x49x32xf32, #tpu.memory_space<vmem>>, vector<1x49x32xf32>
    %20 = vector.shape_cast %19 : vector<1x49x32xf32> to vector<49x32xf32>
    %21 = vector.shape_cast %18 : vector<49x32xf32> to vector<1x49x32xf32>
    tpu.vector_store %arg4[%c0_9, %c0_10, %c0_11], %21 {strides = array<i32>} : memref<2x49x32xf32, #tpu.memory_space<vmem>>, vector<1x49x32xf32>,
    %c1 = arith.constant 1 : index
    %c0_12 = arith.constant 0 : index
    %c0_13 = arith.constant 0 : index
    %22 = vector.load %arg1[%c1, %c0_12, %c0_13] : memref<2x49x2048xf32, #tpu.memory_space<vmem>>, vector<1x49x2048xf32>
    %23 = vector.shape_cast %22 : vector<1x49x2048xf32> to vector<49x2048xf32>
    %24 = arith.truncf %23 : vector<49x2048xf32> to vector<49x2048xbf16>
    %25 = arith.extf %24 : vector<49x2048xbf16> to vector<49x2048xf32>
    %26 = arith.subf %23, %25 : vector<49x2048xf32>
    %27 = arith.truncf %0 : vector<2048x32xf32> to vector<2048x32xbf16>
    %28 = arith.extf %27 : vector<2048x32xbf16> to vector<2048x32xf32>
    %29 = arith.subf %0, %28 : vector<2048x32xf32>
    %cst_14 = arith.constant dense<0.000000e+00> : vector<49x32xf32>
    %30 = tpu.matmul %25, %28, %cst_14 {dimension_numbers = #tpu.dot_dimension_numbers<[1], [0], [0], [1], [0, 0, 1, 1], [], []>} : vector<49x2048xf32>, vector<2048x32xf32>, vector<49x32xf32> -> vector<49x32xf32>
    %cst_15 = arith.constant dense<0.000000e+00> : vector<49x32xf32>
    %31 = tpu.matmul %26, %28, %cst_15 {dimension_numbers = #tpu.dot_dimension_numbers<[1], [0], [0], [1], [0, 0, 1, 1], [], []>} : vector<49x2048xf32>, vector<2048x32xf32>, vector<49x32xf32> -> vector<49x32xf32>
    %32 = arith.addf %30, %31 : vector<49x32xf32>
    %cst_16 = arith.constant dense<0.000000e+00> : vector<49x32xf32>
    %33 = tpu.matmul %25, %29, %cst_16 {dimension_numbers = #tpu.dot_dimension_numbers<[1], [0], [0], [1], [0, 0, 1, 1], [], []>} : vector<49x2048xf32>, vector<2048x32xf32>, vector<49x32xf32> -> vector<49x32xf32>
    %34 = arith.addf %32, %33 : vector<49x32xf32>
    %35 = vector.broadcast %1 : vector<1x32xf32> to vector<49x32xf32>
    %36 = arith.addf %34, %35 : vector<49x32xf32>
    %cst_17 = arith.constant 0.000000e+00 : f32
    %37 = vector.broadcast %cst_17 : f32 to vector<49x32xf32>
    %38 = arith.maximumf %36, %37 : vector<49x32xf32>
    %c1_18 = arith.constant 1 : index
    %c0_19 = arith.constant 0 : index
    %c0_20 = arith.constant 0 : index
    %39 = vector.load %arg4[%c1_18, %c0_19, %c0_20] : memref<2x49x32xf32, #tpu.memory_space<vmem>>, vector<1x49x32xf32>
    %40 = vector.shape_cast %39 : vector<1x49x32xf32> to vector<49x32xf32>
    %41 = vector.shape_cast %38 : vector<49x32xf32> to vector<1x49x32xf32>
    tpu.vector_store %arg4[%c1_18, %c0_19, %c0_20], %41 {strides = array<i32>} : memref<2x49x32xf32, #tpu.memory_space<vmem>>, vector<1x49x32xf32>,
    return
  }
  func.func @transform_0(%arg0: i32) -> (i32, i32, i32) {
    %c0_i32 = arith.constant 0 : i32
    %c0_i32_0 = arith.constant 0 : i32
    %c0_i32_1 = arith.constant 0 : i32
    return %arg0, %c0_i32, %c0_i32_0 : i32, i32, i32
  }
  func.func @transform_1(%arg0: i32) -> (i32, i32) {
    %c0_i32 = arith.constant 0 : i32
    %c0_i32_0 = arith.constant 0 : i32
    %c0_i32_1 = arith.constant 0 : i32
    return %c0_i32, %c0_i32_0 : i32, i32
  }
  func.func @transform_2(%arg0: i32) -> (i32, i32) {
    %c0_i32 = arith.constant 0 : i32
    %c0_i32_0 = arith.constant 0 : i32
    %c0_i32_1 = arith.constant 0 : i32
    return %c0_i32, %c0_i32_0 : i32, i32
  }
  func.func @transform_3(%arg0: i32) -> (i32, i32, i32) {
    %c0_i32 = arith.constant 0 : i32
    %c0_i32_0 = arith.constant 0 : i32
    %c0_i32_1 = arith.constant 0 : i32
    return %arg0, %c0_i32, %c0_i32_0 : i32, i32, i32
  }
}

</mosaic_0001>

<llo_original>
// kernel: encoder_forward.2
$region0: #{encoder_forward.2}
  #allocation0 [shape = 'u32[]', space=smem, size = 0x4, offset = 0x4, fixed_abs, tag = 'smem constant byte address 0x4 - core index']
  #allocation1 [shape = 'u32[144,128]{1,0:T(1,128)}', space=vmem, size = 0x12000, scoped, tag = 'internal scratch']
  #allocation2 [shape = 'f32[64,1]{1,0:T(8,128)}', space=vmem, size = 0x8000, scoped, tag = 'scratch operand']
  %s0 = inlined_call_operand.vmem [shape: f32[2,2048,196], index: 0, kind: input, shape index: {}]
  %s1 = inlined_call_operand.vmem [shape: f32[196,49], index: 1, kind: input, shape index: {}]
  %s2 = inlined_call_operand.vmem [shape: f32[64,2048], index: 2, kind: input, shape index: {}]
  %s3 = inlined_call_operand.vmem [shape: f32[64,1], index: 3, kind: input, shape index: {}]
  %s4 = inlined_call_operand.vmem [shape: f32[2,2048,49], index: 4, kind: output, shape index: {0}]
  %s5 = inlined_call_operand.vmem [shape: f32[2,64,1], index: 5, kind: output, shape index: {1}]
  %6 = xla_tuple %s4, %s5
  %s7 = sld [smem:[#allocation0]]
  $region88: #{encoder_forward.2} parent=0
    _
  %s9 = ssub.s32 1, %s7
  %s10 = scalar_select 0, %s9, %s7
  $region1: #{encoder_forward.2} parent=0
    #allocation3 [shape = 'u8[262144]{0}', space=vmem, size = 0x40000, scoped, tag = 'input window, operand 2']
    loop: start=0, step=1, limit=10
    $region2: #{encoder_forward.2} parent=1 // loop_pre_header
      _
    $region3: #{encoder_forward.2} parent=1 // loop_header
      %s12 = sphi 0, %s16
      %p13 = scmp.ge.s32.totalorder %s12, 10
      %s19 = sphi 0, %s31
      %s20 = sphi 0, %s27
      %s21 = sphi 0, %s19
      %s22 = sphi 0, %s20
      %s23 = sphi 0, %s21
      %s24 = sphi 0, %s22
      %s36 = sphi 0, %s38
      %s39 = sphi 0, %s36
      %s40 = sphi 0, %s39
      %s56 = sphi 0, %s40
      %s60 = sphi 0, %s60
      %s62 = sphi 0, %s60
      %s63 = sphi 0, %s62
      %s77 = sphi 0, %s63
      %s83 = sphi 0, %s85
      %s86 = sphi 0, %s83
      %s87 = sphi 0, %s86
      %s103 = sphi 0, %s87
      %s107 = sphi 0, %s107
      %s109 = sphi 0, %s107
      %s110 = sphi 0, %s109
      %s124 = sphi 0, %s110
      %s132 = sphi 0, %s134
      %s135 = sphi 0, %s132
      %s136 = sphi 0, %s135
      %s152 = sphi 0, %s136
      %s158 = sphi 0, %s160
      %s161 = sphi 0, %s158
      %s162 = sphi 0, %s161
      %s178 = sphi 0, %s162
    $region4: #{encoder_forward.2} parent=1 // loop_header_branch
      %15 = sbr.rel (%p13) target = $region8
    $region5: #{encoder_forward.2} parent=1 // loop_body
      %s17 = ssub.s32 %s12, 1
      %s18 = ssub.s32 %s12, 2
      %s25 = sadd.s32 1, %s20
      %p26 = scmp.ge.s32.totalorder %s25, 4
      %s27 = scalar_select %p26, 0, %s25
      %s28 = sadd.s32 1, %s19
      %s29 = scalar_select %p26, %s28, %s19
      %p30 = scmp.ge.s32.totalorder %s29, 2
      %s31 = scalar_select %p30, 0, %s29
      %s32 = ssub.s32 %s19, %s31
      %s33 = ssub.s32 %s20, %s27
      %s34 = sor.u32 %s32, %s33
      %p35 = scmp.eq.s32.totalorder %s34, 0
      %s37 = sadd.s32 %s36, 1
      %s38 = scalar_select %p35, %s36, %s37
      %p41 = pneg %p35
      %p42 = scmp.eq.s32.totalorder %s12, 7
      %p43 = por %p41, %p42
      %p44 = scmp.ne.s32.totalorder %s36, %s39
      %p45 = scmp.eq.s32.totalorder %s12, 0
      %p46 = por %p44, %p45
      %p47 = scmp.ne.s32.totalorder %s36, %s39
      %p48 = scmp.eq.s32.totalorder %s17, 7
      %p49 = por %p47, %p48
      %p50 = scmp.ne.s32.totalorder %s39, %s40
      %p51 = scmp.eq.s32.totalorder %s17, 0
      %p52 = por %p50, %p51
      %p53 = scmp.ne.s32.totalorder %s39, %s40
      %p54 = scmp.eq.s32.totalorder %s18, 7
      %p55 = por %p53, %p54
      %p57 = scmp.ne.s32.totalorder %s40, %s56
      %p58 = scmp.eq.s32.totalorder %s18, 0
      %p59 = por %p57, %p58
      %s61 = sadd.s32 %s60, 1
      %p64 = scmp.eq.s32.totalorder %s12, 7
      %p65 = scmp.ne.s32.totalorder %s60, %s62
      %p66 = scmp.eq.s32.totalorder %s12, 0
      %p67 = por %p65, %p66
      %p68 = scmp.ne.s32.totalorder %s60, %s62
      %p69 = scmp.eq.s32.totalorder %s17, 7
      %p70 = por %p68, %p69
      %p71 = scmp.ne.s32.totalorder %s62, %s63
      %p72 = scmp.eq.s32.totalorder %s17, 0
      %p73 = por %p71, %p72
      %p74 = scmp.ne.s32.totalorder %s62, %s63
      %p75 = scmp.eq.s32.totalorder %s18, 7
      %p76 = por %p74, %p75
      %p78 = scmp.ne.s32.totalorder %s63, %s77
      %p79 = scmp.eq.s32.totalorder %s18, 0
      %p80 = por %p78, %p79
      %s81 = ssub.s32 %s20, %s27
      %p82 = scmp.eq.s32.totalorder %s81, 0
      %s84 = sadd.s32 %s83, 1
      %s85 = scalar_select %p82, %s83, %s84
      %p88 = pneg %p82
      %p89 = scmp.eq.s32.totalorder %s12, 7
      %p90 = por %p88, %p89
      %p91 = scmp.ne.s32.totalorder %s83, %s86
      %p92 = scmp.eq.s32.totalorder %s12, 0
      %p93 = por %p91, %p92
      %p94 = scmp.ne.s32.totalorder %s83, %s86
      %p95 = scmp.eq.s32.totalorder %s17, 7
      %p96 = por %p94, %p95
      %p97 = scmp.ne.s32.totalorder %s86, %s87
      %p98 = scmp.eq.s32.totalorder %s17, 0
      %p99 = por %p97, %p98
      %p100 = scmp.ne.s32.totalorder %s86, %s87
      %p101 = scmp.eq.s32.totalorder %s18, 7
      %p102 = por %p100, %p101
      %p104 = scmp.ne.s32.totalorder %s87, %s103
      %p105 = scmp.eq.s32.totalorder %s18, 0
      %p106 = por %p104, %p105
      %s108 = sadd.s32 %s107, 1
      %p111 = scmp.eq.s32.totalorder %s12, 7
      %p112 = scmp.ne.s32.totalorder %s107, %s109
      %p113 = scmp.eq.s32.totalorder %s12, 0
      %p114 = por %p112, %p113
      %p115 = scmp.ne.s32.totalorder %s107, %s109
      %p116 = scmp.eq.s32.totalorder %s17, 7
      %p117 = por %p115, %p116
      %p118 = scmp.ne.s32.totalorder %s109, %s110
      %p119 = scmp.eq.s32.totalorder %s17, 0
      %p120 = por %p118, %p119
      %p121 = scmp.ne.s32.totalorder %s109, %s110
      %p122 = scmp.eq.s32.totalorder %s18, 7
      %p123 = por %p121, %p122
      %p125 = scmp.ne.s32.totalorder %s110, %s124
      %p126 = scmp.eq.s32.totalorder %s18, 0
      %p127 = por %p125, %p126
      %s128 = ssub.s32 %s19, %s31
      %s129 = ssub.s32 %s20, %s27
      %s130 = sor.u32 %s128, %s129
      %p131 = scmp.eq.s32.totalorder %s130, 0
      %s133 = sadd.s32 %s132, 1
      %s134 = scalar_select %p131, %s132, %s133
      %p137 = pneg %p131
      %p138 = scmp.eq.s32.totalorder %s12, 7
      %p139 = por %p137, %p138
      %p140 = scmp.ne.s32.totalorder %s132, %s135
      %p141 = scmp.eq.s32.totalorder %s12, 0
      %p142 = por %p140, %p141
      %p143 = scmp.ne.s32.totalorder %s132, %s135
      %p144 = scmp.eq.s32.totalorder %s17, 7
      %p145 = por %p143, %p144
      %p146 = scmp.ne.s32.totalorder %s135, %s136
      %p147 = scmp.eq.s32.totalorder %s17, 0
      %p148 = por %p146, %p147
      %p149 = scmp.ne.s32.totalorder %s135, %s136
      %p150 = scmp.eq.s32.totalorder %s18, 7
      %p151 = por %p149, %p150
      %p153 = scmp.ne.s32.totalorder %s136, %s152
      %p154 = scmp.eq.s32.totalorder %s18, 0
      %p155 = por %p153, %p154
      %s156 = ssub.s32 %s19, %s31
      %p157 = scmp.eq.s32.totalorder %s156, 0
      %s159 = sadd.s32 %s158, 1
      %s160 = scalar_select %p157, %s158, %s159
      %p163 = pneg %p157
      %p164 = scmp.eq.s32.totalorder %s12, 7
      %p165 = por %p163, %p164
      %p166 = scmp.ne.s32.totalorder %s158, %s161
      %p167 = scmp.eq.s32.totalorder %s12, 0
      %p168 = por %p166, %p167
      %p169 = scmp.ne.s32.totalorder %s158, %s161
      %p170 = scmp.eq.s32.totalorder %s17, 7
      %p171 = por %p169, %p170
      %p172 = scmp.ne.s32.totalorder %s161, %s162
      %p173 = scmp.eq.s32.totalorder %s17, 0
      %p174 = por %p172, %p173
      %p175 = scmp.ne.s32.totalorder %s161, %s162
      %p176 = scmp.eq.s32.totalorder %s18, 7
      %p177 = por %p175, %p176
      %p179 = scmp.ne.s32.totalorder %s162, %s178
      %p180 = scmp.eq.s32.totalorder %s18, 0
      %p181 = por %p179, %p180
      %p182 = scmp.le.s32.totalorder 1, %s12
      %p183 = scmp.lt.s32.totalorder %s12, 9
      %p184 = pnand %p182, %p183
      %p185 = pneg %p184
      // Predicated region
      $region9: #{encoder_forward.2} parent=5 // pred_check
        _
      $region10: #{encoder_forward.2} parent=5 // pred_check_branch
        %187 = sbr.rel (%p184) target = $region12
      $region11: #{encoder_forward.2} parent=5 // pred_region
        %s188 = ssub.s32 %s12, 1
        // Predicated region
        $region13: #{encoder_forward.2} parent=11 // pred_check
          %p189 = pneg %p73
        $region14: #{encoder_forward.2} parent=11 // pred_check_branch
          %191 = sbr.rel (%p189) target = $region16
        $region15: #{encoder_forward.2} parent=11 // pred_region
          _
        $region16: #{encoder_forward.2} parent=11 // pred_fallthru
          _
        // Predicated region
        $region17: #{encoder_forward.2} parent=11 // pred_check
          %p192 = pneg %p120
        $region18: #{encoder_forward.2} parent=11 // pred_check_branch
          %194 = sbr.rel (%p192) target = $region20
        $region19: #{encoder_forward.2} parent=11 // pred_region
          _
        $region20: #{encoder_forward.2} parent=11 // pred_fallthru
          _
      $region12: #{encoder_forward.2} parent=5 // pred_fallthru
        _
      %p195 = scmp.lt.s32.totalorder %s12, 8
      // Predicated region
      $region21: #{encoder_forward.2} parent=5 // pred_check
        %p196 = pneg %p195
      $region22: #{encoder_forward.2} parent=5 // pred_check_branch
        %198 = sbr.rel (%p196) target = $region24
      $region23: #{encoder_forward.2} parent=5 // pred_region
        // Predicated region
        $region25: #{encoder_forward.2} parent=23 // pred_check
          %p199 = pneg %p46
        $region26: #{encoder_forward.2} parent=23 // pred_check_branch
          %201 = sbr.rel (%p199) target = $region28
        $region27: #{encoder_forward.2} parent=23 // pred_region
          %s202 = smul.u32 64, %s20
          %p203 = scmp.lt.s32.totalorder %s19, 1
          %s204 = scalar_select %p203, %s19, 1
          %p205 = scmp.lt.s32.totalorder %s202, 255
          %s206 = scalar_select %p205, %s202, 255
          %s207 = smul.addr %s206, 2
          %s208 = smul.addr %s204, 512
          %s209 = sadd.s32 %s207, %s208
          %s210 = smul.addr %s209, 8
          %s211 = scalar_lea.vmem %s0, %s210
          %s212 = smul.u32 64, %s20
        $region28: #{encoder_forward.2} parent=23 // pred_fallthru
          _
        // Predicated region
        $region29: #{encoder_forward.2} parent=23 // pred_check
          %p213 = pneg %p93
        $region30: #{encoder_forward.2} parent=23 // pred_check_branch
          %215 = sbr.rel (%p213) target = $region32
        $region31: #{encoder_forward.2} parent=23 // pred_region
          %s216 = sand.u32 %s83, 1
          %s217 = sand.u32 %s83, 1
          %s218 = smul.addr %s217, 256
          %s219 = scalar_lea.vmem [#allocation3], %s218
          %s220 = smul.u32 4, %s20
          %s221 = smul.addr %s220, 8
          %s222 = scalar_lea.vmem %s2, %s221
          // Predicated region
          $region33: #{encoder_forward.2} parent=31 // pred_check
            _
          $region34: #{encoder_forward.2} parent=31 // pred_check_branch
            %224 = sbr.rel (0) target = $region36
          $region35: #{encoder_forward.2} parent=31 // pred_region
            // Predicated region
            $region37: #{encoder_forward.2} parent=35 // pred_check
              _
            $region38: #{encoder_forward.2} parent=35 // pred_check_branch
              %226 = sbr.rel (0) target = $region40
            $region39: #{encoder_forward.2} parent=35 // pred_region
              loop: start=0, step=1, limit=1
              $region41: #{encoder_forward.2} parent=39 // loop_pre_header
                _
              $region42: #{encoder_forward.2} parent=39 // loop_header
                %s228 = sphi 0, %s232
                %p229 = scmp.ge.s32.totalorder %s228, 1
                %s233 = sphi %s222, %s222
                %s234 = sphi %s219, %s219
              $region43: #{encoder_forward.2} parent=39 // loop_header_branch
                %231 = sbr.rel (%p229) target = $region47
              $region44: #{encoder_forward.2} parent=39 // loop_body
                %v235 = vld [vmem:[%s233] sm:$0xff]
                %236 = vst [vmem:[%s234] sm:$0xff] %v235
                %v237 = vld [vmem:[%s233 + $0x8] sm:$0xff]
                %238 = vst [vmem:[%s234 + $0x8] sm:$0xff] %v237
                %v239 = vld [vmem:[%s233 + $0x10] sm:$0xff]
                %240 = vst [vmem:[%s234 + $0x10] sm:$0xff] %v239
                %v241 = vld [vmem:[%s233 + $0x18] sm:$0xff]
                %242 = vst [vmem:[%s234 + $0x18] sm:$0xff] %v241
                %v243 = vld [vmem:[%s233 + $0x80] sm:$0xff]
                %244 = vst [vmem:[%s234 + $0x20] sm:$0xff] %v243
                %v245 = vld [vmem:[%s233 + $0x88] sm:$0xff]
                %246 = vst [vmem:[%s234 + $0x28] sm:$0xff] %v245
                %v247 = vld [vmem:[%s233 + $0x90] sm:$0xff]
                %248 = vst [vmem:[%s234 + $0x30] sm:$0xff] %v247
                %v249 = vld [vmem:[%s233 + $0x98] sm:$0xff]
                %250 = vst [vmem:[%s234 + $0x38] sm:$0xff] %v249
                %v251 = vld [vmem:[%s233 + $0x100] sm:$0xff]
                %252 = vst [vmem:[%s234 + $0x40] sm:$0xff] %v251
                %v253 = vld [vmem:[%s233 + $0x108] sm:$0xff]
                %254 = vst [vmem:[%s234 + $0x48] sm:$0xff] %v253
                %v255 = vld [vmem:[%s233 + $0x110] sm:$0xff]
                %256 = vst [vmem:[%s234 + $0x50] sm:$0xff] %v255
                %v257 = vld [vmem:[%s233 + $0x118] sm:$0xff]
                %258 = vst [vmem:[%s234 + $0x58] sm:$0xff] %v257
                %v259 = vld [vmem:[%s233 + $0x180] sm:$0xff]
                %260 = vst [vmem:[%s234 + $0x60] sm:$0xff] %v259
                %v261 = vld [vmem:[%s233 + $0x188] sm:$0xff]
                %262 = vst [vmem:[%s234 + $0x68] sm:$0xff] %v261
                %v263 = vld [vmem:[%s233 + $0x190] sm:$0xff]
                %264 = vst [vmem:[%s234 + $0x70] sm:$0xff] %v263
                %v265 = vld [vmem:[%s233 + $0x198] sm:$0xff]
                %266 = vst [vmem:[%s234 + $0x78] sm:$0xff] %v265
                %v267 = vld [vmem:[%s233 + $0x200] sm:$0xff]
                %268 = vst [vmem:[%s234 + $0x80] sm:$0xff] %v267
                %v269 = vld [vmem:[%s233 + $0x208] sm:$0xff]
                %270 = vst [vmem:[%s234 + $0x88] sm:$0xff] %v269
                %v271 = vld [vmem:[%s233 + $0x210] sm:$0xff]
                %272 = vst [vmem:[%s234 + $0x90] sm:$0xff] %v271
                %v273 = vld [vmem:[%s233 + $0x218] sm:$0xff]
                %274 = vst [vmem:[%s234 + $0x98] sm:$0xff] %v273
                %v275 = vld [vmem:[%s233 + $0x280] sm:$0xff]
                %276 = vst [vmem:[%s234 + $0xa0] sm:$0xff] %v275
                %v277 = vld [vmem:[%s233 + $0x288] sm:$0xff]
                %278 = vst [vmem:[%s234 + $0xa8] sm:$0xff] %v277
                %v279 = vld [vmem:[%s233 + $0x290] sm:$0xff]
                %280 = vst [vmem:[%s234 + $0xb0] sm:$0xff] %v279
                %v281 = vld [vmem:[%s233 + $0x298] sm:$0xff]
                %282 = vst [vmem:[%s234 + $0xb8] sm:$0xff] %v281
                %v283 = vld [vmem:[%s233 + $0x300] sm:$0xff]
                %284 = vst [vmem:[%s234 + $0xc0] sm:$0xff] %v283
                %v285 = vld [vmem:[%s233 + $0x308] sm:$0xff]
                %286 = vst [vmem:[%s234 + $0xc8] sm:$0xff] %v285
                %v287 = vld [vmem:[%s233 + $0x310] sm:$0xff]
                %288 = vst [vmem:[%s234 + $0xd0] sm:$0xff] %v287
                %v289 = vld [vmem:[%s233 + $0x318] sm:$0xff]
                %290 = vst [vmem:[%s234 + $0xd8] sm:$0xff] %v289
                %v291 = vld [vmem:[%s233 + $0x380] sm:$0xff]
                %292 = vst [vmem:[%s234 + $0xe0] sm:$0xff] %v291
                %v293 = vld [vmem:[%s233 + $0x388] sm:$0xff]
                %294 = vst [vmem:[%s234 + $0xe8] sm:$0xff] %v293
                %v295 = vld [vmem:[%s233 + $0x390] sm:$0xff]
                %296 = vst [vmem:[%s234 + $0xf0] sm:$0xff] %v295
                %v297 = vld [vmem:[%s233 + $0x398] sm:$0xff]
                %298 = vst [vmem:[%s234 + $0xf8] sm:$0xff] %v297
              $region45: #{encoder_forward.2} parent=39 // loop_footer
                %s232 = sadd.s32 1, %s228
              $region46: #{encoder_forward.2} parent=39 // loop_footer_branch
                %227 = sbr.rel target = $region42
              $region47: #{encoder_forward.2} parent=39 // loop_exit
                _
            $region40: #{encoder_forward.2} parent=35 // pred_fallthru
              _
            // Predicated region
            $region48: #{encoder_forward.2} parent=35 // pred_check
              _
            $region49: #{encoder_forward.2} parent=35 // pred_check_branch
              %300 = sbr.rel target = $region51
            $region50: #{encoder_forward.2} parent=35 // pred_region
              _
            $region51: #{encoder_forward.2} parent=35 // pred_fallthru
              _
          $region36: #{encoder_forward.2} parent=31 // pred_fallthru
            _
          %301 = vnop
        $region32: #{encoder_forward.2} parent=23 // pred_fallthru
          _
      $region24: #{encoder_forward.2} parent=5 // pred_fallthru
        _
      %p302 = scmp.le.s32.totalorder 1, %s12
      %p303 = scmp.lt.s32.totalorder %s12, 9
      %p304 = pnand %p302, %p303
      %p305 = pneg %p304
      // Predicated region
      $region52: #{encoder_forward.2} parent=5 // pred_check
        _
      $region53: #{encoder_forward.2} parent=5 // pred_check_branch
        %307 = sbr.rel (%p304) target = $region55
      $region54: #{encoder_forward.2} parent=5 // pred_region
        %s308 = ssub.s32 %s12, 1
        %s309 = sand.u32 %s86, 1
        %s310 = sand.u32 %s86, 1
        %s311 = smul.addr %s310, 256
        %s312 = scalar_lea.vmem [#allocation3], %s311
        // Predicated region
        $region56: #{encoder_forward.2} parent=54 // pred_check
          %p313 = pneg %p99
        $region57: #{encoder_forward.2} parent=54 // pred_check_branch
          %315 = sbr.rel (%p313) target = $region59
        $region58: #{encoder_forward.2} parent=54 // pred_region
          _
        $region59: #{encoder_forward.2} parent=54 // pred_fallthru
          _
        %s316 = smul.u32 64, %s22
        %p317 = scmp.lt.s32.totalorder %s21, 1
        %s318 = scalar_select %p317, %s21, 1
        %p319 = scmp.lt.s32.totalorder %s316, 255
        %s320 = scalar_select %p319, %s316, 255
        %s321 = smul.addr %s320, 2
        %s322 = smul.addr %s318, 512
        %s323 = sadd.s32 %s321, %s322
        %s324 = smul.addr %s323, 8
        %s325 = scalar_lea.vmem %s0, %s324
        %p326 = pneg %p52
        %p327 = pneg %p49
        %p328 = pneg %p73
        %p329 = pneg %p70
        %s330 = sand.u32 %s86, 1
        %s331 = sand.u32 %s86, 1
        %s332 = smul.addr %s331, 256
        %s333 = scalar_lea.vmem [#allocation3], %s332
        %p334 = pneg %p99
        %p335 = pneg %p96
        %p336 = pneg %p120
        %p337 = pneg %p117
        %p338 = pneg %p148
        %p339 = pneg %p145
        %s340 = smul.u32 64, %s22
        %p341 = scmp.lt.s32.totalorder %s21, 1
        %s342 = scalar_select %p341, %s21, 1
        %p343 = scmp.lt.s32.totalorder %s340, 255
        %s344 = scalar_select %p343, %s340, 255
        %s345 = smul.addr %s342, 256
        %s346 = sadd.s32 %s344, %s345
        %s347 = smul.addr %s346, 8
        %s348 = scalar_lea.vmem %s4, %s347
        %p349 = pneg %p174
        %p350 = pneg %p171
        %p351 = scmp.lt.s32.totalorder %s21, 1
        %s352 = scalar_select %p351, %s21, 1
        %s353 = smul.addr %s352, 8
        %s354 = smul.addr %s353, 8
        %s355 = scalar_lea.vmem %s5, %s354
        %s356 = smul.u32 64, %s22
        %p357 = scmp.lt.s32.totalorder %s21, 1
        %s358 = scalar_select %p357, %s21, 1
        %p359 = scmp.lt.s32.totalorder %s356, 255
        %s360 = scalar_select %p359, %s356, 255
        %s361 = smul.addr %s360, 2
        %s362 = smul.addr %s358, 512
        %s363 = sadd.s32 %s361, %s362
        %s364 = smul.addr %s363, 8
        %s365 = scalar_lea.vmem %s0, %s364
        %s366 = smul.u32 64, %s22
        %s367 = smul.u32 4, %s22
        %s368 = smul.u32 64, %s22
        %p369 = scmp.lt.s32.totalorder %s21, 1
        %s370 = scalar_select %p369, %s21, 1
        %p371 = scmp.lt.s32.totalorder %s368, 255
        %s372 = scalar_select %p371, %s368, 255
        %s373 = smul.addr %s370, 256
        %s374 = sadd.s32 %s372, %s373
        %s375 = smul.addr %s374, 8
        %s376 = scalar_lea.vmem %s4, %s375
        %s377 = smul.u32 64, %s22
        %p378 = scmp.lt.s32.totalorder %s21, 1
        %s379 = scalar_select %p378, %s21, 1
        %s380 = smul.addr %s379, 8
        %s381 = smul.addr %s380, 8
        %s382 = scalar_lea.vmem %s5, %s381
        %v383 = vld [vmem:[%s365] sm:$0xff]
        %v384 = vld [vmem:[%s365 + $0x8] sm:$0xff]
        %v385 = vld [vmem:[%s365 + $0x10] sm:$0xff]
        %v386 = vld [vmem:[%s365 + $0x18] sm:$0xff]
        %v387 = vld [vmem:[%s365 + $0x20] sm:$0xff]
        %v388 = vld [vmem:[%s365 + $0x28] sm:$0xff]
        %v389 = vld [vmem:[%s365 + $0x30] sm:$0xff]
        %v390 = vld [vmem:[%s365 + $0x38] sm:$0xff]
        %v391 = vld [vmem:[%s365 + $0x40] sm:$0xff]
        %v392 = vld [vmem:[%s365 + $0x48] sm:$0xff]
        %v393 = vld [vmem:[%s365 + $0x50] sm:$0xff]
        %v394 = vld [vmem:[%s365 + $0x58] sm:$0xff]
        %v395 = vld [vmem:[%s365 + $0x60] sm:$0xff]
        %v396 = vld [vmem:[%s365 + $0x68] sm:$0xff]
        %v397 = vld [vmem:[%s365 + $0x70] sm:$0xff]
        %v398 = vld [vmem:[%s365 + $0x78] sm:$0xff]
        %v399 = vld [vmem:[%s365 + $0x80] sm:$0xff]
        %v400 = vld [vmem:[%s365 + $0x88] sm:$0xff]
        %v401 = vld [vmem:[%s365 + $0x90] sm:$0xff]
        %v402 = vld [vmem:[%s365 + $0x98] sm:$0xff]
        %v403 = vld [vmem:[%s365 + $0xa0] sm:$0xff]
        %v404 = vld [vmem:[%s365 + $0xa8] sm:$0xff]
        %v405 = vld [vmem:[%s365 + $0xb0] sm:$0xff]
        %v406 = vld [vmem:[%s365 + $0xb8] sm:$0xff]
        %v407 = vld [vmem:[%s365 + $0xc0] sm:$0xff]
        %v408 = vld [vmem:[%s365 + $0xc8] sm:$0xff]
        %v409 = vld [vmem:[%s365 + $0xd0] sm:$0xff]
        %v410 = vld [vmem:[%s365 + $0xd8] sm:$0xff]
        %v411 = vld [vmem:[%s365 + $0xe0] sm:$0xff]
        %v412 = vld [vmem:[%s365 + $0xe8] sm:$0xff]
        %v413 = vld [vmem:[%s365 + $0xf0] sm:$0xff]
        %v414 = vld [vmem:[%s365 + $0xf8] sm:$0xff]
        %v415 = vld [vmem:[%s365 + $0x100] sm:$0xff]
        %v416 = vld [vmem:[%s365 + $0x108] sm:$0xff]
        %v417 = vld [vmem:[%s365 + $0x110] sm:$0xff]
        %v418 = vld [vmem:[%s365 + $0x118] sm:$0xff]
        %v419 = vld [vmem:[%s365 + $0x120] sm:$0xff]
        %v420 = vld [vmem:[%s365 + $0x128] sm:$0xff]
        %v421 = vld [vmem:[%s365 + $0x130] sm:$0xff]
        %v422 = vld [vmem:[%s365 + $0x138] sm:$0xff]
        %v423 = vld [vmem:[%s365 + $0x140] sm:$0xff]
        %v424 = vld [vmem:[%s365 + $0x148] sm:$0xff]
        %v425 = vld [vmem:[%s365 + $0x150] sm:$0xff]
        %v426 = vld [vmem:[%s365 + $0x158] sm:$0xff]
        %v427 = vld [vmem:[%s365 + $0x160] sm:$0xff]
        %v428 = vld [vmem:[%s365 + $0x168] sm:$0xff]
        %v429 = vld [vmem:[%s365 + $0x170] sm:$0xff]
        %v430 = vld [vmem:[%s365 + $0x178] sm:$0xff]
        %v431 = vld [vmem:[%s365 + $0x180] sm:$0xff]
        %v432 = vld [vmem:[%s365 + $0x188] sm:$0xff]
        %v433 = vld [vmem:[%s365 + $0x190] sm:$0xff]
        %v434 = vld [vmem:[%s365 + $0x198] sm:$0xff]
        %v435 = vld [vmem:[%s365 + $0x1a0] sm:$0xff]
        %v436 = vld [vmem:[%s365 + $0x1a8] sm:$0xff]
        %v437 = vld [vmem:[%s365 + $0x1b0] sm:$0xff]
        %v438 = vld [vmem:[%s365 + $0x1b8] sm:$0xff]
        %v439 = vld [vmem:[%s365 + $0x1c0] sm:$0xff]
        %v440 = vld [vmem:[%s365 + $0x1c8] sm:$0xff]
        %v441 = vld [vmem:[%s365 + $0x1d0] sm:$0xff]
        %v442 = vld [vmem:[%s365 + $0x1d8] sm:$0xff]
        %v443 = vld [vmem:[%s365 + $0x1e0] sm:$0xff]
        %v444 = vld [vmem:[%s365 + $0x1e8] sm:$0xff]
        %v445 = vld [vmem:[%s365 + $0x1f0] sm:$0xff]
        %v446 = vld [vmem:[%s365 + $0x1f8] sm:$0xff]
        %v447 = vld [vmem:[%s365 + $0x200] sm:$0xff]
        %v448 = vld [vmem:[%s365 + $0x208] sm:$0xff]
        %v449 = vld [vmem:[%s365 + $0x210] sm:$0xff]
        %v450 = vld [vmem:[%s365 + $0x218] sm:$0xff]
        %v451 = vld [vmem:[%s365 + $0x220] sm:$0xff]
        %v452 = vld [vmem:[%s365 + $0x228] sm:$0xff]
        %v453 = vld [vmem:[%s365 + $0x230] sm:$0xff]
        %v454 = vld [vmem:[%s365 + $0x238] sm:$0xff]
        %v455 = vld [vmem:[%s365 + $0x240] sm:$0xff]
        %v456 = vld [vmem:[%s365 + $0x248] sm:$0xff]
        %v457 = vld [vmem:[%s365 + $0x250] sm:$0xff]
        %v458 = vld [vmem:[%s365 + $0x258] sm:$0xff]
        %v459 = vld [vmem:[%s365 + $0x260] sm:$0xff]
        %v460 = vld [vmem:[%s365 + $0x268] sm:$0xff]
        %v461 = vld [vmem:[%s365 + $0x270] sm:$0xff]
        %v462 = vld [vmem:[%s365 + $0x278] sm:$0xff]
        %v463 = vld [vmem:[%s365 + $0x280] sm:$0xff]
        %v464 = vld [vmem:[%s365 + $0x288] sm:$0xff]
        %v465 = vld [vmem:[%s365 + $0x290] sm:$0xff]
        %v466 = vld [vmem:[%s365 + $0x298] sm:$0xff]
        %v467 = vld [vmem:[%s365 + $0x2a0] sm:$0xff]
        %v468 = vld [vmem:[%s365 + $0x2a8] sm:$0xff]
        %v469 = vld [vmem:[%s365 + $0x2b0] sm:$0xff]
        %v470 = vld [vmem:[%s365 + $0x2b8] sm:$0xff]
        %v471 = vld [vmem:[%s365 + $0x2c0] sm:$0xff]
        %v472 = vld [vmem:[%s365 + $0x2c8] sm:$0xff]
        %v473 = vld [vmem:[%s365 + $0x2d0] sm:$0xff]
        %v474 = vld [vmem:[%s365 + $0x2d8] sm:$0xff]
        %v475 = vld [vmem:[%s365 + $0x2e0] sm:$0xff]
        %v476 = vld [vmem:[%s365 + $0x2e8] sm:$0xff]
        %v477 = vld [vmem:[%s365 + $0x2f0] sm:$0xff]
        %v478 = vld [vmem:[%s365 + $0x2f8] sm:$0xff]
        %v479 = vld [vmem:[%s365 + $0x300] sm:$0xff]
        %v480 = vld [vmem:[%s365 + $0x308] sm:$0xff]
        %v481 = vld [vmem:[%s365 + $0x310] sm:$0xff]
        %v482 = vld [vmem:[%s365 + $0x318] sm:$0xff]
        %v483 = vld [vmem:[%s365 + $0x320] sm:$0xff]
        %v484 = vld [vmem:[%s365 + $0x328] sm:$0xff]
        %v485 = vld [vmem:[%s365 + $0x330] sm:$0xff]
        %v486 = vld [vmem:[%s365 + $0x338] sm:$0xff]
        %v487 = vld [vmem:[%s365 + $0x340] sm:$0xff]
        %v488 = vld [vmem:[%s365 + $0x348] sm:$0xff]
        %v489 = vld [vmem:[%s365 + $0x350] sm:$0xff]
        %v490 = vld [vmem:[%s365 + $0x358] sm:$0xff]
        %v491 = vld [vmem:[%s365 + $0x360] sm:$0xff]
        %v492 = vld [vmem:[%s365 + $0x368] sm:$0xff]
        %v493 = vld [vmem:[%s365 + $0x370] sm:$0xff]
        %v494 = vld [vmem:[%s365 + $0x378] sm:$0xff]
        %v495 = vld [vmem:[%s365 + $0x380] sm:$0xff]
        %v496 = vld [vmem:[%s365 + $0x388] sm:$0xff]
        %v497 = vld [vmem:[%s365 + $0x390] sm:$0xff]
        %v498 = vld [vmem:[%s365 + $0x398] sm:$0xff]
        %v499 = vld [vmem:[%s365 + $0x3a0] sm:$0xff]
        %v500 = vld [vmem:[%s365 + $0x3a8] sm:$0xff]
        %v501 = vld [vmem:[%s365 + $0x3b0] sm:$0xff]
        %v502 = vld [vmem:[%s365 + $0x3b8] sm:$0xff]
        %v503 = vld [vmem:[%s365 + $0x3c0] sm:$0xff]
        %v504 = vld [vmem:[%s365 + $0x3c8] sm:$0xff]
        %v505 = vld [vmem:[%s365 + $0x3d0] sm:$0xff]
        %v506 = vld [vmem:[%s365 + $0x3d8] sm:$0xff]
        %v507 = vld [vmem:[%s365 + $0x3e0] sm:$0xff]
        %v508 = vld [vmem:[%s365 + $0x3e8] sm:$0xff]
        %v509 = vld [vmem:[%s365 + $0x3f0] sm:$0xff]
        %v510 = vld [vmem:[%s365 + $0x3f8] sm:$0xff]
        %v511 = vld [vmem:[%s1] sm:$0xff]
        %v512 = vld [vmem:[%s1 + $0x8] sm:$0xff]
        %v513 = vld [vmem:[%s1 + $0x10] sm:$0xff]
        %v514 = vld [vmem:[%s1 + $0x18] sm:$0xff]
        %v515 = vld [vmem:[%s1 + $0x20] sm:$0xff]
        %v516 = vld [vmem:[%s1 + $0x28] sm:$0xff]
        %v517 = vld [vmem:[%s1 + $0x30] sm:$0xff]
        %v518 = vld [vmem:[%s1 + $0x38] sm:$0xff]
        %v519 = vld [vmem:[%s1 + $0x40] sm:$0xff]
        %v520 = vld [vmem:[%s1 + $0x48] sm:$0xff]
        %v521 = vld [vmem:[%s1 + $0x50] sm:$0xff]
        %v522 = vld [vmem:[%s1 + $0x58] sm:$0xff]
        %v523 = vld [vmem:[%s1 + $0x60] sm:$0xff]
        %v524 = vld [vmem:[%s1 + $0x68] sm:$0xff]
        %v525 = vld [vmem:[%s1 + $0x70] sm:$0xff]
        %v526 = vld [vmem:[%s1 + $0x78] sm:$0xff]
        %v527 = vld [vmem:[%s1 + $0x80] sm:$0xff]
        %v528 = vld [vmem:[%s1 + $0x88] sm:$0xff]
        %v529 = vld [vmem:[%s1 + $0x90] sm:$0xff]
        %v530 = vld [vmem:[%s1 + $0x98] sm:$0xff]
        %v531 = vld [vmem:[%s1 + $0xa0] sm:$0xff]
        %v532 = vld [vmem:[%s1 + $0xa8] sm:$0xff]
        %v533 = vld [vmem:[%s1 + $0xb0] sm:$0xff]
        %v534 = vld [vmem:[%s1 + $0xb8] sm:$0xff]
        %v535 = vld [vmem:[%s1 + $0xc0] sm:$0xf]
        %v536 = vpack.c.bf16 %v385, %v383
        %v537 = vpack.c.bf16 %v386, %v384
        %v538 = vpack.c.bf16 %v389, %v387
        %v539 = vpack.c.bf16 %v390, %v388
        %v540 = vpack.c.bf16 %v393, %v391
        %v541 = vpack.c.bf16 %v394, %v392
        %v542 = vpack.c.bf16 %v397, %v395
        %v543 = vpack.c.bf16 %v398, %v396
        %v544 = vpack.c.bf16 %v401, %v399
        %v545 = vpack.c.bf16 %v402, %v400
        %v546 = vpack.c.bf16 %v405, %v403
        %v547 = vpack.c.bf16 %v406, %v404
        %v548 = vpack.c.bf16 %v409, %v407
        %v549 = vpack.c.bf16 %v410, %v408
        %v550 = vpack.c.bf16 %v413, %v411
        %v551 = vpack.c.bf16 %v414, %v412
        %v552 = vpack.c.bf16 %v417, %v415
        %v553 = vpack.c.bf16 %v418, %v416
        %v554 = vpack.c.bf16 %v421, %v419
        %v555 = vpack.c.bf16 %v422, %v420
        %v556 = vpack.c.bf16 %v425, %v423
        %v557 = vpack.c.bf16 %v426, %v424
        %v558 = vpack.c.bf16 %v429, %v427
        %v559 = vpack.c.bf16 %v430, %v428
        %v560 = vpack.c.bf16 %v433, %v431
        %v561 = vpack.c.bf16 %v434, %v432
        %v562 = vpack.c.bf16 %v437, %v435
        %v563 = vpack.c.bf16 %v438, %v436
        %v564 = vpack.c.bf16 %v441, %v439
        %v565 = vpack.c.bf16 %v442, %v440
        %v566 = vpack.c.bf16 %v445, %v443
        %v567 = vpack.c.bf16 %v446, %v444
        %v568 = vpack.c.bf16 %v449, %v447
        %v569 = vpack.c.bf16 %v450, %v448
        %v570 = vpack.c.bf16 %v453, %v451
        %v571 = vpack.c.bf16 %v454, %v452
        %v572 = vpack.c.bf16 %v457, %v455
        %v573 = vpack.c.bf16 %v458, %v456
        %v574 = vpack.c.bf16 %v461, %v459
        %v575 = vpack.c.bf16 %v462, %v460
        %v576 = vpack.c.bf16 %v465, %v463
        %v577 = vpack.c.bf16 %v466, %v464
        %v578 = vpack.c.bf16 %v469, %v467
        %v579 = vpack.c.bf16 %v470, %v468
        %v580 = vpack.c.bf16 %v473, %v471
        %v581 = vpack.c.bf16 %v474, %v472
        %v582 = vpack.c.bf16 %v477, %v475
        %v583 = vpack.c.bf16 %v478, %v476
        %v584 = vpack.c.bf16 %v481, %v479
        %v585 = vpack.c.bf16 %v482, %v480
        %v586 = vpack.c.bf16 %v485, %v483
        %v587 = vpack.c.bf16 %v486, %v484
        %v588 = vpack.c.bf16 %v489, %v487
        %v589 = vpack.c.bf16 %v490, %v488
        %v590 = vpack.c.bf16 %v493, %v491
        %v591 = vpack.c.bf16 %v494, %v492
        %v592 = vpack.c.bf16 %v497, %v495
        %v593 = vpack.c.bf16 %v498, %v496
        %v594 = vpack.c.bf16 %v501, %v499
        %v595 = vpack.c.bf16 %v502, %v500
        %v596 = vpack.c.bf16 %v505, %v503
        %v597 = vpack.c.bf16 %v506, %v504
        %v598 = vpack.c.bf16 %v509, %v507
        %v599 = vpack.c.bf16 %v510, %v508
        %v600 = vunpack.c.l.bf16 %v536
        %v601 = vunpack.c.l.bf16 %v537
        %v602 = vunpack.c.h.bf16 %v536
        %v603 = vunpack.c.h.bf16 %v537
        %v604 = vunpack.c.l.bf16 %v538
        %v605 = vunpack.c.l.bf16 %v539
        %v606 = vunpack.c.h.bf16 %v538
        %v607 = vunpack.c.h.bf16 %v539
        %v608 = vunpack.c.l.bf16 %v540
        %v609 = vunpack.c.l.bf16 %v541
        %v610 = vunpack.c.h.bf16 %v540
        %v611 = vunpack.c.h.bf16 %v541
        %v612 = vunpack.c.l.bf16 %v542
        %v613 = vunpack.c.l.bf16 %v543
        %v614 = vunpack.c.h.bf16 %v542
        %v615 = vunpack.c.h.bf16 %v543
        %v616 = vunpack.c.l.bf16 %v544
        %v617 = vunpack.c.l.bf16 %v545
        %v618 = vunpack.c.h.bf16 %v544
        %v619 = vunpack.c.h.bf16 %v545
        %v620 = vunpack.c.l.bf16 %v546
        %v621 = vunpack.c.l.bf16 %v547
        %v622 = vunpack.c.h.bf16 %v546
        %v623 = vunpack.c.h.bf16 %v547
        %v624 = vunpack.c.l.bf16 %v548
        %v625 = vunpack.c.l.bf16 %v549
        %v626 = vunpack.c.h.bf16 %v548
        %v627 = vunpack.c.h.bf16 %v549
        %v628 = vunpack.c.l.bf16 %v550
        %v629 = vunpack.c.l.bf16 %v551
        %v630 = vunpack.c.h.bf16 %v550
        %v631 = vunpack.c.h.bf16 %v551
        %v632 = vunpack.c.l.bf16 %v552
        %v633 = vunpack.c.l.bf16 %v553
        %v634 = vunpack.c.h.bf16 %v552
        %v635 = vunpack.c.h.bf16 %v553
        %v636 = vunpack.c.l.bf16 %v554
        %v637 = vunpack.c.l.bf16 %v555
        %v638 = vunpack.c.h.bf16 %v554
        %v639 = vunpack.c.h.bf16 %v555
        %v640 = vunpack.c.l.bf16 %v556
        %v641 = vunpack.c.l.bf16 %v557
        %v642 = vunpack.c.h.bf16 %v556
        %v643 = vunpack.c.h.bf16 %v557
        %v644 = vunpack.c.l.bf16 %v558
        %v645 = vunpack.c.l.bf16 %v559
        %v646 = vunpack.c.h.bf16 %v558
        %v647 = vunpack.c.h.bf16 %v559
        %v648 = vunpack.c.l.bf16 %v560
        %v649 = vunpack.c.l.bf16 %v561
        %v650 = vunpack.c.h.bf16 %v560
        %v651 = vunpack.c.h.bf16 %v561
        %v652 = vunpack.c.l.bf16 %v562
        %v653 = vunpack.c.l.bf16 %v563
        %v654 = vunpack.c.h.bf16 %v562
        %v655 = vunpack.c.h.bf16 %v563
        %v656 = vunpack.c.l.bf16 %v564
        %v657 = vunpack.c.l.bf16 %v565
        %v658 = vunpack.c.h.bf16 %v564
        %v659 = vunpack.c.h.bf16 %v565
        %v660 = vunpack.c.l.bf16 %v566
        %v661 = vunpack.c.l.bf16 %v567
        %v662 = vunpack.c.h.bf16 %v566
        %v663 = vunpack.c.h.bf16 %v567
        %v664 = vunpack.c.l.bf16 %v568
        %v665 = vunpack.c.l.bf16 %v569
        %v666 = vunpack.c.h.bf16 %v568
        %v667 = vunpack.c.h.bf16 %v569
        %v668 = vunpack.c.l.bf16 %v570
        %v669 = vunpack.c.l.bf16 %v571
        %v670 = vunpack.c.h.bf16 %v570
        %v671 = vunpack.c.h.bf16 %v571
        %v672 = vunpack.c.l.bf16 %v572
        %v673 = vunpack.c.l.bf16 %v573
        %v674 = vunpack.c.h.bf16 %v572
        %v675 = vunpack.c.h.bf16 %v573
        %v676 = vunpack.c.l.bf16 %v574
        %v677 = vunpack.c.l.bf16 %v575
        %v678 = vunpack.c.h.bf16 %v574
        %v679 = vunpack.c.h.bf16 %v575
        %v680 = vunpack.c.l.bf16 %v576
        %v681 = vunpack.c.l.bf16 %v577
        %v682 = vunpack.c.h.bf16 %v576
        %v683 = vunpack.c.h.bf16 %v577
        %v684 = vunpack.c.l.bf16 %v578
        %v685 = vunpack.c.l.bf16 %v579
        %v686 = vunpack.c.h.bf16 %v578
        %v687 = vunpack.c.h.bf16 %v579
        %v688 = vunpack.c.l.bf16 %v580
        %v689 = vunpack.c.l.bf16 %v581
        %v690 = vunpack.c.h.bf16 %v580
        %v691 = vunpack.c.h.bf16 %v581
        %v692 = vunpack.c.l.bf16 %v582
        %v693 = vunpack.c.l.bf16 %v583
        %v694 = vunpack.c.h.bf16 %v582
        %v695 = vunpack.c.h.bf16 %v583
        %v696 = vunpack.c.l.bf16 %v584
        %v697 = vunpack.c.l.bf16 %v585
        %v698 = vunpack.c.h.bf16 %v584
        %v699 = vunpack.c.h.bf16 %v585
        %v700 = vunpack.c.l.bf16 %v586
        %v701 = vunpack.c.l.bf16 %v587
        %v702 = vunpack.c.h.bf16 %v586
        %v703 = vunpack.c.h.bf16 %v587
        %v704 = vunpack.c.l.bf16 %v588
        %v705 = vunpack.c.l.bf16 %v589
        %v706 = vunpack.c.h.bf16 %v588
        %v707 = vunpack.c.h.bf16 %v589
        %v708 = vunpack.c.l.bf16 %v590
        %v709 = vunpack.c.l.bf16 %v591
        %v710 = vunpack.c.h.bf16 %v590
        %v711 = vunpack.c.h.bf16 %v591
        %v712 = vunpack.c.l.bf16 %v592
        %v713 = vunpack.c.l.bf16 %v593
        %v714 = vunpack.c.h.bf16 %v592
        %v715 = vunpack.c.h.bf16 %v593
        %v716 = vunpack.c.l.bf16 %v594
        %v717 = vunpack.c.l.bf16 %v595
        %v718 = vunpack.c.h.bf16 %v594
        %v719 = vunpack.c.h.bf16 %v595
        %v720 = vunpack.c.l.bf16 %v596
        %v721 = vunpack.c.l.bf16 %v597
        %v722 = vunpack.c.h.bf16 %v596
        %v723 = vunpack.c.h.bf16 %v597
        %v724 = vunpack.c.l.bf16 %v598
        %v725 = vunpack.c.l.bf16 %v599
        %v726 = vunpack.c.h.bf16 %v598
        %v727 = vunpack.c.h.bf16 %v599
        %v728 = vsub.f32 %v383, %v600
        %v729 = vsub.f32 %v384, %v601
        %v730 = vsub.f32 %v385, %v602
        %v731 = vsub.f32 %v386, %v603
        %v732 = vsub.f32 %v387, %v604
        %v733 = vsub.f32 %v388, %v605
        %v734 = vsub.f32 %v389, %v606
        %v735 = vsub.f32 %v390, %v607
        %v736 = vsub.f32 %v391, %v608
        %v737 = vsub.f32 %v392, %v609
        %v738 = vsub.f32 %v393, %v610
        %v739 = vsub.f32 %v394, %v611
        %v740 = vsub.f32 %v395, %v612
        %v741 = vsub.f32 %v396, %v613
        %v742 = vsub.f32 %v397, %v614
        %v743 = vsub.f32 %v398, %v615
        %v744 = vsub.f32 %v399, %v616
        %v745 = vsub.f32 %v400, %v617
        %v746 = vsub.f32 %v401, %v618
        %v747 = vsub.f32 %v402, %v619
        %v748 = vsub.f32 %v403, %v620
        %v749 = vsub.f32 %v404, %v621
        %v750 = vsub.f32 %v405, %v622
        %v751 = vsub.f32 %v406, %v623
        %v752 = vsub.f32 %v407, %v624
        %v753 = vsub.f32 %v408, %v625
        %v754 = vsub.f32 %v409, %v626
        %v755 = vsub.f32 %v410, %v627
        %v756 = vsub.f32 %v411, %v628
        %v757 = vsub.f32 %v412, %v629
        %v758 = vsub.f32 %v413, %v630
        %v759 = vsub.f32 %v414, %v631
        %v760 = vsub.f32 %v415, %v632
        %v761 = vsub.f32 %v416, %v633
        %v762 = vsub.f32 %v417, %v634
        %v763 = vsub.f32 %v418, %v635
        %v764 = vsub.f32 %v419, %v636
        %v765 = vsub.f32 %v420, %v637
        %v766 = vsub.f32 %v421, %v638
        %v767 = vsub.f32 %v422, %v639
        %v768 = vsub.f32 %v423, %v640
        %v769 = vsub.f32 %v424, %v641
        %v770 = vsub.f32 %v425, %v642
        %v771 = vsub.f32 %v426, %v643
        %v772 = vsub.f32 %v427, %v644
        %v773 = vsub.f32 %v428, %v645
        %v774 = vsub.f32 %v429, %v646
        %v775 = vsub.f32 %v430, %v647
        %v776 = vsub.f32 %v431, %v648
        %v777 = vsub.f32 %v432, %v649
        %v778 = vsub.f32 %v433, %v650
        %v779 = vsub.f32 %v434, %v651
        %v780 = vsub.f32 %v435, %v652
        %v781 = vsub.f32 %v436, %v653
        %v782 = vsub.f32 %v437, %v654
        %v783 = vsub.f32 %v438, %v655
        %v784 = vsub.f32 %v439, %v656
        %v785 = vsub.f32 %v440, %v657
        %v786 = vsub.f32 %v441, %v658
        %v787 = vsub.f32 %v442, %v659
        %v788 = vsub.f32 %v443, %v660
        %v789 = vsub.f32 %v444, %v661
        %v790 = vsub.f32 %v445, %v662
        %v791 = vsub.f32 %v446, %v663
        %v792 = vsub.f32 %v447, %v664
        %v793 = vsub.f32 %v448, %v665
        %v794 = vsub.f32 %v449, %v666
        %v795 = vsub.f32 %v450, %v667
        %v796 = vsub.f32 %v451, %v668
        %v797 = vsub.f32 %v452, %v669
        %v798 = vsub.f32 %v453, %v670
        %v799 = vsub.f32 %v454, %v671
        %v800 = vsub.f32 %v455, %v672
        %v801 = vsub.f32 %v456, %v673
        %v802 = vsub.f32 %v457, %v674
        %v803 = vsub.f32 %v458, %v675
        %v804 = vsub.f32 %v459, %v676
        %v805 = vsub.f32 %v460, %v677
        %v806 = vsub.f32 %v461, %v678
        %v807 = vsub.f32 %v462, %v679
        %v808 = vsub.f32 %v463, %v680
        %v809 = vsub.f32 %v464, %v681
        %v810 = vsub.f32 %v465, %v682
        %v811 = vsub.f32 %v466, %v683
        %v812 = vsub.f32 %v467, %v684
        %v813 = vsub.f32 %v468, %v685
        %v814 = vsub.f32 %v469, %v686
        %v815 = vsub.f32 %v470, %v687
        %v816 = vsub.f32 %v471, %v688
        %v817 = vsub.f32 %v472, %v689
        %v818 = vsub.f32 %v473, %v690
        %v819 = vsub.f32 %v474, %v691
        %v820 = vsub.f32 %v475, %v692
        %v821 = vsub.f32 %v476, %v693
        %v822 = vsub.f32 %v477, %v694
        %v823 = vsub.f32 %v478, %v695
        %v824 = vsub.f32 %v479, %v696
        %v825 = vsub.f32 %v480, %v697
        %v826 = vsub.f32 %v481, %v698
        %v827 = vsub.f32 %v482, %v699
        %v828 = vsub.f32 %v483, %v700
        %v829 = vsub.f32 %v484, %v701
        %v830 = vsub.f32 %v485, %v702
        %v831 = vsub.f32 %v486, %v703
        %v832 = vsub.f32 %v487, %v704
        %v833 = vsub.f32 %v488, %v705
        %v834 = vsub.f32 %v489, %v706
        %v835 = vsub.f32 %v490, %v707
        %v836 = vsub.f32 %v491, %v708
        %v837 = vsub.f32 %v492, %v709
        %v838 = vsub.f32 %v493, %v710
        %v839 = vsub.f32 %v494, %v711
        %v840 = vsub.f32 %v495, %v712
        %v841 = vsub.f32 %v496, %v713
        %v842 = vsub.f32 %v497, %v714
        %v843 = vsub.f32 %v498, %v715
        %v844 = vsub.f32 %v499, %v716
        %v845 = vsub.f32 %v500, %v717
        %v846 = vsub.f32 %v501, %v718
        %v847 = vsub.f32 %v502, %v719
        %v848 = vsub.f32 %v503, %v720
        %v849 = vsub.f32 %v504, %v721
        %v850 = vsub.f32 %v505, %v722
        %v851 = vsub.f32 %v506, %v723
        %v852 = vsub.f32 %v507, %v724
        %v853 = vsub.f32 %v508, %v725
        %v854 = vsub.f32 %v509, %v726
        %v855 = vsub.f32 %v510, %v727
        %v856 = vpack.c.bf16 %v512, %v511
        %v857 = vpack.c.bf16 %v514, %v513
        %v858 = vpack.c.bf16 %v516, %v515
        %v859 = vpack.c.bf16 %v518, %v517
        %v860 = vpack.c.bf16 %v520, %v519
        %v861 = vpack.c.bf16 %v522, %v521
        %v862 = vpack.c.bf16 %v524, %v523
        %v863 = vpack.c.bf16 %v526, %v525
        %v864 = vpack.c.bf16 %v528, %v527
        %v865 = vpack.c.bf16 %v530, %v529
        %v866 = vpack.c.bf16 %v532, %v531
        %v867 = vpack.c.bf16 %v534, %v533
        %v868 = vpack.c.bf16 %v535, %v535
        %v869 = vunpack.c.l.bf16 %v856
        %v870 = vunpack.c.h.bf16 %v856
        %v871 = vunpack.c.l.bf16 %v857
        %v872 = vunpack.c.h.bf16 %v857
        %v873 = vunpack.c.l.bf16 %v858
        %v874 = vunpack.c.h.bf16 %v858
        %v875 = vunpack.c.l.bf16 %v859
        %v876 = vunpack.c.h.bf16 %v859
        %v877 = vunpack.c.l.bf16 %v860
        %v878 = vunpack.c.h.bf16 %v860
        %v879 = vunpack.c.l.bf16 %v861
        %v880 = vunpack.c.h.bf16 %v861
        %v881 = vunpack.c.l.bf16 %v862
        %v882 = vunpack.c.h.bf16 %v862
        %v883 = vunpack.c.l.bf16 %v863
        %v884 = vunpack.c.h.bf16 %v863
        %v885 = vunpack.c.l.bf16 %v864
        %v886 = vunpack.c.h.bf16 %v864
        %v887 = vunpack.c.l.bf16 %v865
        %v888 = vunpack.c.h.bf16 %v865
        %v889 = vunpack.c.l.bf16 %v866
        %v890 = vunpack.c.h.bf16 %v866
        %v891 = vunpack.c.l.bf16 %v867
        %v892 = vunpack.c.h.bf16 %v867
        %v893 = vunpack.c.l.bf16 %v868
        %v894 = vsub.f32 %v511, %v869
        %v895 = vsub.f32 %v512, %v870
        %v896 = vsub.f32 %v513, %v871
        %v897 = vsub.f32 %v514, %v872
        %v898 = vsub.f32 %v515, %v873
        %v899 = vsub.f32 %v516, %v874
        %v900 = vsub.f32 %v517, %v875
        %v901 = vsub.f32 %v518, %v876
        %v902 = vsub.f32 %v519, %v877
        %v903 = vsub.f32 %v520, %v878
        %v904 = vsub.f32 %v521, %v879
        %v905 = vsub.f32 %v522, %v880
        %v906 = vsub.f32 %v523, %v881
        %v907 = vsub.f32 %v524, %v882
        %v908 = vsub.f32 %v525, %v883
        %v909 = vsub.f32 %v526, %v884
        %v910 = vsub.f32 %v527, %v885
        %v911 = vsub.f32 %v528, %v886
        %v912 = vsub.f32 %v529, %v887
        %v913 = vsub.f32 %v530, %v888
        %v914 = vsub.f32 %v531, %v889
        %v915 = vsub.f32 %v532, %v890
        %v916 = vsub.f32 %v533, %v891
        %v917 = vsub.f32 %v534, %v892
        %v918 = vsub.f32 %v535, %v893
        %vm919 = vcmask 556032
        %v921 = vsel %vm919, %v729, 0
        %v924 = vsel %vm919, %v731, 0
        %v927 = vsel %vm919, %v733, 0
        %v930 = vsel %vm919, %v735, 0
        %v933 = vsel %vm919, %v737, 0
        %v936 = vsel %vm919, %v739, 0
        %v939 = vsel %vm919, %v741, 0
        %v942 = vsel %vm919, %v743, 0
        %v945 = vsel %vm919, %v745, 0
        %v948 = vsel %vm919, %v747, 0
        %v951 = vsel %vm919, %v749, 0
        %v954 = vsel %vm919, %v751, 0
        %v957 = vsel %vm919, %v753, 0
        %v960 = vsel %vm919, %v755, 0
        %v963 = vsel %vm919, %v757, 0
        %v966 = vsel %vm919, %v759, 0
        %v969 = vsel %vm919, %v761, 0
        %v972 = vsel %vm919, %v763, 0
        %v975 = vsel %vm919, %v765, 0
        %v978 = vsel %vm919, %v767, 0
        %v981 = vsel %vm919, %v769, 0
        %v984 = vsel %vm919, %v771, 0
        %v987 = vsel %vm919, %v773, 0
        %v990 = vsel %vm919, %v775, 0
        %v993 = vsel %vm919, %v777, 0
        %v996 = vsel %vm919, %v779, 0
        %v999 = vsel %vm919, %v781, 0
        %v1002 = vsel %vm919, %v783, 0
        %v1005 = vsel %vm919, %v785, 0
        %v1008 = vsel %vm919, %v787, 0
        %v1011 = vsel %vm919, %v789, 0
        %v1014 = vsel %vm919, %v791, 0
        %v1017 = vsel %vm919, %v793, 0
        %v1020 = vsel %vm919, %v795, 0
        %v1023 = vsel %vm919, %v797, 0
        %v1026 = vsel %vm919, %v799, 0
        %v1029 = vsel %vm919, %v801, 0
        %v1032 = vsel %vm919, %v803, 0
        %v1035 = vsel %vm919, %v805, 0
        %v1038 = vsel %vm919, %v807, 0
        %v1041 = vsel %vm919, %v809, 0
        %v1044 = vsel %vm919, %v811, 0
        %v1047 = vsel %vm919, %v813, 0
        %v1050 = vsel %vm919, %v815, 0
        %v1053 = vsel %vm919, %v817, 0
        %v1056 = vsel %vm919, %v819, 0
        %v1059 = vsel %vm919, %v821, 0
        %v1062 = vsel %vm919, %v823, 0
        %v1065 = vsel %vm919, %v825, 0
        %v1068 = vsel %vm919, %v827, 0
        %v1071 = vsel %vm919, %v829, 0
        %v1074 = vsel %vm919, %v831, 0
        %v1077 = vsel %vm919, %v833, 0
        %v1080 = vsel %vm919, %v835, 0
        %v1083 = vsel %vm919, %v837, 0
        %v1086 = vsel %vm919, %v839, 0
        %v1089 = vsel %vm919, %v841, 0
        %v1092 = vsel %vm919, %v843, 0
        %v1095 = vsel %vm919, %v845, 0
        %v1098 = vsel %vm919, %v847, 0
        %v1101 = vsel %vm919, %v849, 0
        %v1104 = vsel %vm919, %v851, 0
        %v1107 = vsel %vm919, %v853, 0
        %v1110 = vsel %vm919, %v855, 0
        %vm1112 = vcmask 1043456
        %v1114 = vsel %vm1112, %v893, 0
        %1116 = vmatprep.subr.mxu0 0.0
        %1117 = vmatpush1.msra.mxu0 %v869
        %1118 = vmatprep.subr.mxu0 0.0
        %1119 = vmatpush1.msra.mxu0 %v870
        %1120 = vmatprep.subr.mxu0 0.0
        %1121 = vmatpush1.msra.mxu0 %v871
        %1122 = vmatprep.subr.mxu0 0.0
        %1123 = vmatpush1.msra.mxu0 %v872
        %1124 = vmatprep.subr.mxu0 0.0
        %1125 = vmatpush1.msra.mxu0 %v873
        %1126 = vmatprep.subr.mxu0 0.0
        %1127 = vmatpush1.msra.mxu0 %v874
        %1128 = vmatprep.subr.mxu0 0.0
        %1129 = vmatpush1.msra.mxu0 %v875
        %1130 = vmatprep.subr.mxu0 0.0
        %1131 = vmatpush1.msra.mxu0 %v876
        %1132 = vmatprep.subr.mxu0 0.0
        %1133 = vmatpush1.msra.mxu0 %v877
        %1134 = vmatprep.subr.mxu0 0.0
        %1135 = vmatpush1.msra.mxu0 %v878
        %1136 = vmatprep.subr.mxu0 0.0
        %1137 = vmatpush1.msra.mxu0 %v879
        %1138 = vmatprep.subr.mxu0 0.0
        %1139 = vmatpush1.msra.mxu0 %v880
        %1140 = vmatprep.subr.mxu0 0.0
        %1141 = vmatpush1.msra.mxu0 %v881
        %1142 = vmatprep.subr.mxu0 0.0
        %1143 = vmatpush1.msra.mxu0 %v882
        %1144 = vmatprep.subr.mxu0 0.0
        %1145 = vmatpush1.msra.mxu0 %v883
        %1146 = vmatprep.subr.mxu0 0.0
        %1147 = vmatpush1.msra.mxu0 %v884
        %1148 = vmatprep.subr.mxu0 0.0
        %1149 = vmatpush1.msra.mxu0 %v885
        %1150 = vmatprep.subr.mxu0 0.0
        %1151 = vmatpush1.msra.mxu0 %v886
        %1152 = vmatprep.subr.mxu0 0.0
        %1153 = vmatpush1.msra.mxu0 %v887
        %1154 = vmatprep.subr.mxu0 0.0
        %1155 = vmatpush1.msra.mxu0 %v888
        %1156 = vmatprep.subr.mxu0 0.0
        %1157 = vmatpush1.msra.mxu0 %v889
        %1158 = vmatprep.subr.mxu0 0.0
        %1159 = vmatpush1.msra.mxu0 %v890
        %1160 = vmatprep.subr.mxu0 0.0
        %1161 = vmatpush1.msra.mxu0 %v891
        %1162 = vmatprep.subr.mxu0 0.0
        %1163 = vmatpush1.msra.mxu0 %v892
        %1164 = vmatprep.subr.mxu0 0.0
        %1165 = vmatpush1.msra.mxu0 %v1114
        %1166 = vmatprep.subr.mxu0 0.0
        %1167 = vmatpush1.msra.mxu0 0.0
        %1168 = vmatprep.subr.mxu0 0.0
        %1169 = vmatpush1.msra.mxu0 0.0
        %1170 = vmatprep.subr.mxu0 0.0
        %1171 = vmatpush1.msra.mxu0 0.0
        %1172 = vmatprep.subr.mxu0 0.0
        %1173 = vmatpush1.msra.mxu0 0.0
        %1174 = vmatprep.subr.mxu0 0.0
        %1175 = vmatpush1.msra.mxu0 0.0
        %1176 = vmatprep.subr.mxu0 0.0
        %1177 = vmatpush1.msra.mxu0 0.0
        %1178 = vmatprep.subr.mxu0 0.0
        %1179 = vmatpush1.msra.mxu0 0.0
        %1180 = vmatprep.mubr.f32.mxu0 %v921
        %1181 = vmatmul.mubr.f32.gmra.mrb[0].mxu0 %v728
        %v1182 = vpop.f32.mrb[0].mxu0
        %v1183 = vadd.f32 0.0, %v1182
        %v1184 = vpop.f32.mrb[0].mxu0
        %1185 = vmatprep.mubr.f32.mxu0 %v924
        %1186 = vmatmul.mubr.f32.gmra.mrb[0].mxu0 %v730
        %v1187 = vpop.f32.mrb[0].mxu0
        %v1188 = vadd.f32 0.0, %v1187
        %v1189 = vpop.f32.mrb[0].mxu0
        %1190 = vmatprep.mubr.f32.mxu0 %v927
        %1191 = vmatmul.mubr.f32.gmra.mrb[0].mxu0 %v732
        %v1192 = vpop.f32.mrb[0].mxu0
        %v1193 = vadd.f32 0.0, %v1192
        %v1194 = vpop.f32.mrb[0].mxu0
        %1195 = vmatprep.mubr.f32.mxu0 %v930
        %1196 = vmatmul.mubr.f32.gmra.mrb[0].mxu0 %v734
        %v1197 = vpop.f32.mrb[0].mxu0
        %v1198 = vadd.f32 0.0, %v1197
        %v1199 = vpop.f32.mrb[0].mxu0
        %1200 = vmatprep.mubr.f32.mxu0 %v933
        %1201 = vmatmul.mubr.f32.gmra.mrb[0].mxu0 %v736
        %v1202 = vpop.f32.mrb[0].mxu0
        %v1203 = vadd.f32 0.0, %v1202
        %v1204 = vpop.f32.mrb[0].mxu0
        %1205 = vmatprep.mubr.f32.mxu0 %v936
        %1206 = vmatmul.mubr.f32.gmra.mrb[0].mxu0 %v738
        %v1207 = vpop.f32.mrb[0].mxu0
        %v1208 = vadd.f32 0.0, %v1207
        %v1209 = vpop.f32.mrb[0].mxu0
        %1210 = vmatprep.mubr.f32.mxu0 %v939
        %1211 = vmatmul.mubr.f32.gmra.mrb[0].mxu0 %v740
        %v1212 = vpop.f32.mrb[0].mxu0
        %v1213 = vadd.f32 0.0, %v1212
        %v1214 = vpop.f32.mrb[0].mxu0
        %1215 = vmatprep.mubr.f32.mxu0 %v942
        %1216 = vmatmul.mubr.f32.gmra.mrb[0].mxu0 %v742
        %v1217 = vpop.f32.mrb[0].mxu0
        %v1218 = vadd.f32 0.0, %v1217
        %v1219 = vpop.f32.mrb[0].mxu0
        %1220 = vmatprep.mubr.f32.mxu0 %v945
        %1221 = vmatmul.mubr.f32.gmra.mrb[0].mxu0 %v744
        %v1222 = vpop.f32.mrb[0].mxu0
        %v1223 = vadd.f32 0.0, %v1222
        %v1224 = vpop.f32.mrb[0].mxu0
        %1225 = vmatprep.mubr.f32.mxu0 %v948
        %1226 = vmatmul.mubr.f32.gmra.mrb[0].mxu0 %v746
        %v1227 = vpop.f32.mrb[0].mxu0
        %v1228 = vadd.f32 0.0, %v1227
        %v1229 = vpop.f32.mrb[0].mxu0
        %1230 = vmatprep.mubr.f32.mxu0 %v951
        %1231 = vmatmul.mubr.f32.gmra.mrb[0].mxu0 %v748
        %v1232 = vpop.f32.mrb[0].mxu0
        %v1233 = vadd.f32 0.0, %v1232
        %v1234 = vpop.f32.mrb[0].mxu0
        %1235 = vmatprep.mubr.f32.mxu0 %v954
        %1236 = vmatmul.mubr.f32.gmra.mrb[0].mxu0 %v750
        %v1237 = vpop.f32.mrb[0].mxu0
        %v1238 = vadd.f32 0.0, %v1237
        %v1239 = vpop.f32.mrb[0].mxu0
        %1240 = vmatprep.mubr.f32.mxu0 %v957
        %1241 = vmatmul.mubr.f32.gmra.mrb[0].mxu0 %v752
        %v1242 = vpop.f32.mrb[0].mxu0
        %v1243 = vadd.f32 0.0, %v1242
        %v1244 = vpop.f32.mrb[0].mxu0
        %1245 = vmatprep.mubr.f32.mxu0 %v960
        %1246 = vmatmul.mubr.f32.gmra.mrb[0].mxu0 %v754
        %v1247 = vpop.f32.mrb[0].mxu0
        %v1248 = vadd.f32 0.0, %v1247
        %v1249 = vpop.f32.mrb[0].mxu0
        %1250 = vmatprep.mubr.f32.mxu0 %v963
        %1251 = vmatmul.mubr.f32.gmra.mrb[0].mxu0 %v756
        %v1252 = vpop.f32.mrb[0].mxu0
        %v1253 = vadd.f32 0.0, %v1252
        %v1254 = vpop.f32.mrb[0].mxu0
        %1255 = vmatprep.mubr.f32.mxu0 %v966
        %1256 = vmatmul.mubr.f32.gmra.mrb[0].mxu0 %v758
        %v1257 = vpop.f32.mrb[0].mxu0
        %v1258 = vadd.f32 0.0, %v1257
        %v1259 = vpop.f32.mrb[0].mxu0
        %1260 = vmatprep.mubr.f32.mxu0 %v969
        %1261 = vmatmul.mubr.f32.gmra.mrb[0].mxu0 %v760
        %v1262 = vpop.f32.mrb[0].mxu0
        %v1263 = vadd.f32 0.0, %v1262
        %v1264 = vpop.f32.mrb[0].mxu0
        %1265 = vmatprep.mubr.f32.mxu0 %v972
        %1266 = vmatmul.mubr.f32.gmra.mrb[0].mxu0 %v762
        %v1267 = vpop.f32.mrb[0].mxu0
        %v1268 = vadd.f32 0.0, %v1267
        %v1269 = vpop.f32.mrb[0].mxu0
        %1270 = vmatprep.mubr.f32.mxu0 %v975
        %1271 = vmatmul.mubr.f32.gmra.mrb[0].mxu0 %v764
        %v1272 = vpop.f32.mrb[0].mxu0
        %v1273 = vadd.f32 0.0, %v1272
        %v1274 = vpop.f32.mrb[0].mxu0
        %1275 = vmatprep.mubr.f32.mxu0 %v978
        %1276 = vmatmul.mubr.f32.gmra.mrb[0].mxu0 %v766
        %v1277 = vpop.f32.mrb[0].mxu0
        %v1278 = vadd.f32 0.0, %v1277
        %v1279 = vpop.f32.mrb[0].mxu0
        %1280 = vmatprep.mubr.f32.mxu0 %v981
        %1281 = vmatmul.mubr.f32.gmra.mrb[0].mxu0 %v768
        %v1282 = vpop.f32.mrb[0].mxu0
        %v1283 = vadd.f32 0.0, %v1282
        %v1284 = vpop.f32.mrb[0].mxu0
        %1285 = vmatprep.mubr.f32.mxu0 %v984
        %1286 = vmatmul.mubr.f32.gmra.mrb[0].mxu0 %v770
        %v1287 = vpop.f32.mrb[0].mxu0
        %v1288 = vadd.f32 0.0, %v1287
        %v1289 = vpop.f32.mrb[0].mxu0
        %1290 = vmatprep.mubr.f32.mxu0 %v987
        %1291 = vmatmul.mubr.f32.gmra.mrb[0].mxu0 %v772
        %v1292 = vpop.f32.mrb[0].mxu0
        %v1293 = vadd.f32 0.0, %v1292
        %v1294 = vpop.f32.mrb[0].mxu0
        %1295 = vmatprep.mubr.f32.mxu0 %v990
        %1296 = vmatmul.mubr.f32.gmra.mrb[0].mxu0 %v774
        %v1297 = vpop.f32.mrb[0].mxu0
        %v1298 = vadd.f32 0.0, %v1297
        %v1299 = vpop.f32.mrb[0].mxu0
        %1300 = vmatprep.mubr.f32.mxu0 %v993
        %1301 = vmatmul.mubr.f32.gmra.mrb[0].mxu0 %v776
        %v1302 = vpop.f32.mrb[0].mxu0
        %v1303 = vadd.f32 0.0, %v1302
        %v1304 = vpop.f32.mrb[0].mxu0
        %1305 = vmatprep.mubr.f32.mxu0 %v996
        %1306 = vmatmul.mubr.f32.gmra.mrb[0].mxu0 %v778
        %v1307 = vpop.f32.mrb[0].mxu0
        %v1308 = vadd.f32 0.0, %v1307
        %v1309 = vpop.f32.mrb[0].mxu0
        %1310 = vmatprep.mubr.f32.mxu0 %v999
        %1311 = vmatmul.mubr.f32.gmra.mrb[0].mxu0 %v780
        %v1312 = vpop.f32.mrb[0].mxu0
        %v1313 = vadd.f32 0.0, %v1312
        %v1314 = vpop.f32.mrb[0].mxu0
        %1315 = vmatprep.mubr.f32.mxu0 %v1002
        %1316 = vmatmul.mubr.f32.gmra.mrb[0].mxu0 %v782
        %v1317 = vpop.f32.mrb[0].mxu0
        %v1318 = vadd.f32 0.0, %v1317
        %v1319 = vpop.f32.mrb[0].mxu0
        %1320 = vmatprep.mubr.f32.mxu0 %v1005
        %1321 = vmatmul.mubr.f32.gmra.mrb[0].mxu0 %v784
        %v1322 = vpop.f32.mrb[0].mxu0
        %v1323 = vadd.f32 0.0, %v1322
        %v1324 = vpop.f32.mrb[0].mxu0
        %1325 = vmatprep.mubr.f32.mxu0 %v1008
        %1326 = vmatmul.mubr.f32.gmra.mrb[0].mxu0 %v786
        %v1327 = vpop.f32.mrb[0].mxu0
        %v1328 = vadd.f32 0.0, %v1327
        %v1329 = vpop.f32.mrb[0].mxu0
        %1330 = vmatprep.mubr.f32.mxu0 %v1011
        %1331 = vmatmul.mubr.f32.gmra.mrb[0].mxu0 %v788
        %v1332 = vpop.f32.mrb[0].mxu0
        %v1333 = vadd.f32 0.0, %v1332
        %v1334 = vpop.f32.mrb[0].mxu0
        %1335 = vmatprep.mubr.f32.mxu0 %v1014
        %1336 = vmatmul.mubr.f32.gmra.mrb[0].mxu0 %v790
        %v1337 = vpop.f32.mrb[0].mxu0
        %v1338 = vadd.f32 0.0, %v1337
        %v1339 = vpop.f32.mrb[0].mxu0
        %1340 = vmatprep.mubr.f32.mxu0 %v1017
        %1341 = vmatmul.mubr.f32.gmra.mrb[0].mxu0 %v792
        %v1342 = vpop.f32.mrb[0].mxu0
        %v1343 = vadd.f32 0.0, %v1342
        %v1344 = vpop.f32.mrb[0].mxu0
        %1345 = vmatprep.mubr.f32.mxu0 %v1020
        %1346 = vmatmul.mubr.f32.gmra.mrb[0].mxu0 %v794
        %v1347 = vpop.f32.mrb[0].mxu0
        %v1348 = vadd.f32 0.0, %v1347
        %v1349 = vpop.f32.mrb[0].mxu0
        %1350 = vmatprep.mubr.f32.mxu0 %v1023
        %1351 = vmatmul.mubr.f32.gmra.mrb[0].mxu0 %v796
        %v1352 = vpop.f32.mrb[0].mxu0
        %v1353 = vadd.f32 0.0, %v1352
        %v1354 = vpop.f32.mrb[0].mxu0
        %1355 = vmatprep.mubr.f32.mxu0 %v1026
        %1356 = vmatmul.mubr.f32.gmra.mrb[0].mxu0 %v798
        %v1357 = vpop.f32.mrb[0].mxu0
        %v1358 = vadd.f32 0.0, %v1357
        %v1359 = vpop.f32.mrb[0].mxu0
        %1360 = vmatprep.mubr.f32.mxu0 %v1029
        %1361 = vmatmul.mubr.f32.gmra.mrb[0].mxu0 %v800
        %v1362 = vpop.f32.mrb[0].mxu0
        %v1363 = vadd.f32 0.0, %v1362
        %v1364 = vpop.f32.mrb[0].mxu0
        %1365 = vmatprep.mubr.f32.mxu0 %v1032
        %1366 = vmatmul.mubr.f32.gmra.mrb[0].mxu0 %v802
        %v1367 = vpop.f32.mrb[0].mxu0
        %v1368 = vadd.f32 0.0, %v1367
        %v1369 = vpop.f32.mrb[0].mxu0
        %1370 = vmatprep.mubr.f32.mxu0 %v1035
        %1371 = vmatmul.mubr.f32.gmra.mrb[0].mxu0 %v804
        %v1372 = vpop.f32.mrb[0].mxu0
        %v1373 = vadd.f32 0.0, %v1372
        %v1374 = vpop.f32.mrb[0].mxu0
        %1375 = vmatprep.mubr.f32.mxu0 %v1038
        %1376 = vmatmul.mubr.f32.gmra.mrb[0].mxu0 %v806
        %v1377 = vpop.f32.mrb[0].mxu0
        %v1378 = vadd.f32 0.0, %v1377
        %v1379 = vpop.f32.mrb[0].mxu0
        %1380 = vmatprep.mubr.f32.mxu0 %v1041
        %1381 = vmatmul.mubr.f32.gmra.mrb[0].mxu0 %v808
        %v1382 = vpop.f32.mrb[0].mxu0
        %v1383 = vadd.f32 0.0, %v1382
        %v1384 = vpop.f32.mrb[0].mxu0
        %1385 = vmatprep.mubr.f32.mxu0 %v1044
        %1386 = vmatmul.mubr.f32.gmra.mrb[0].mxu0 %v810
        %v1387 = vpop.f32.mrb[0].mxu0
        %v1388 = vadd.f32 0.0, %v1387
        %v1389 = vpop.f32.mrb[0].mxu0
        %1390 = vmatprep.mubr.f32.mxu0 %v1047
        %1391 = vmatmul.mubr.f32.gmra.mrb[0].mxu0 %v812
        %v1392 = vpop.f32.mrb[0].mxu0
        %v1393 = vadd.f32 0.0, %v1392
        %v1394 = vpop.f32.mrb[0].mxu0
        %1395 = vmatprep.mubr.f32.mxu0 %v1050
        %1396 = vmatmul.mubr.f32.gmra.mrb[0].mxu0 %v814
        %v1397 = vpop.f32.mrb[0].mxu0
        %v1398 = vadd.f32 0.0, %v1397
        %v1399 = vpop.f32.mrb[0].mxu0
        %1400 = vmatprep.mubr.f32.mxu0 %v1053
        %1401 = vmatmul.mubr.f32.gmra.mrb[0].mxu0 %v816
        %v1402 = vpop.f32.mrb[0].mxu0
        %v1403 = vadd.f32 0.0, %v1402
        %v1404 = vpop.f32.mrb[0].mxu0
        %1405 = vmatprep.mubr.f32.mxu0 %v1056
        %1406 = vmatmul.mubr.f32.gmra.mrb[0].mxu0 %v818
        %v1407 = vpop.f32.mrb[0].mxu0
        %v1408 = vadd.f32 0.0, %v1407
        %v1409 = vpop.f32.mrb[0].mxu0
        %1410 = vmatprep.mubr.f32.mxu0 %v1059
        %1411 = vmatmul.mubr.f32.gmra.mrb[0].mxu0 %v820
        %v1412 = vpop.f32.mrb[0].mxu0
        %v1413 = vadd.f32 0.0, %v1412
        %v1414 = vpop.f32.mrb[0].mxu0
        %1415 = vmatprep.mubr.f32.mxu0 %v1062
        %1416 = vmatmul.mubr.f32.gmra.mrb[0].mxu0 %v822
        %v1417 = vpop.f32.mrb[0].mxu0
        %v1418 = vadd.f32 0.0, %v1417
        %v1419 = vpop.f32.mrb[0].mxu0
        %1420 = vmatprep.mubr.f32.mxu0 %v1065
        %1421 = vmatmul.mubr.f32.gmra.mrb[0].mxu0 %v824
        %v1422 = vpop.f32.mrb[0].mxu0
        %v1423 = vadd.f32 0.0, %v1422
        %v1424 = vpop.f32.mrb[0].mxu0
        %1425 = vmatprep.mubr.f32.mxu0 %v1068
        %1426 = vmatmul.mubr.f32.gmra.mrb[0].mxu0 %v826
        %v1427 = vpop.f32.mrb[0].mxu0
        %v1428 = vadd.f32 0.0, %v1427
        %v1429 = vpop.f32.mrb[0].mxu0
        %1430 = vmatprep.mubr.f32.mxu0 %v1071
        %1431 = vmatmul.mubr.f32.gmra.mrb[0].mxu0 %v828
        %v1432 = vpop.f32.mrb[0].mxu0
        %v1433 = vadd.f32 0.0, %v1432
        %v1434 = vpop.f32.mrb[0].mxu0
        %1435 = vmatprep.mubr.f32.mxu0 %v1074
        %1436 = vmatmul.mubr.f32.gmra.mrb[0].mxu0 %v830
        %v1437 = vpop.f32.mrb[0].mxu0
        %v1438 = vadd.f32 0.0, %v1437
        %v1439 = vpop.f32.mrb[0].mxu0
        %1440 = vmatprep.mubr.f32.mxu0 %v1077
        %1441 = vmatmul.mubr.f32.gmra.mrb[0].mxu0 %v832
        %v1442 = vpop.f32.mrb[0].mxu0
        %v1443 = vadd.f32 0.0, %v1442
        %v1444 = vpop.f32.mrb[0].mxu0
        %1445 = vmatprep.mubr.f32.mxu0 %v1080
        %1446 = vmatmul.mubr.f32.gmra.mrb[0].mxu0 %v834
        %v1447 = vpop.f32.mrb[0].mxu0
        %v1448 = vadd.f32 0.0, %v1447
        %v1449 = vpop.f32.mrb[0].mxu0
        %1450 = vmatprep.mubr.f32.mxu0 %v1083
        %1451 = vmatmul.mubr.f32.gmra.mrb[0].mxu0 %v836
        %v1452 = vpop.f32.mrb[0].mxu0
        %v1453 = vadd.f32 0.0, %v1452
        %v1454 = vpop.f32.mrb[0].mxu0
        %1455 = vmatprep.mubr.f32.mxu0 %v1086
        %1456 = vmatmul.mubr.f32.gmra.mrb[0].mxu0 %v838
        %v1457 = vpop.f32.mrb[0].mxu0
        %v1458 = vadd.f32 0.0, %v1457
        %v1459 = vpop.f32.mrb[0].mxu0
        %1460 = vmatprep.mubr.f32.mxu0 %v1089
        %1461 = vmatmul.mubr.f32.gmra.mrb[0].mxu0 %v840
        %v1462 = vpop.f32.mrb[0].mxu0
        %v1463 = vadd.f32 0.0, %v1462
        %v1464 = vpop.f32.mrb[0].mxu0
        %1465 = vmatprep.mubr.f32.mxu0 %v1092
        %1466 = vmatmul.mubr.f32.gmra.mrb[0].mxu0 %v842
        %v1467 = vpop.f32.mrb[0].mxu0
        %v1468 = vadd.f32 0.0, %v1467
        %v1469 = vpop.f32.mrb[0].mxu0
        %1470 = vmatprep.mubr.f32.mxu0 %v1095
        %1471 = vmatmul.mubr.f32.gmra.mrb[0].mxu0 %v844
        %v1472 = vpop.f32.mrb[0].mxu0
        %v1473 = vadd.f32 0.0, %v1472
        %v1474 = vpop.f32.mrb[0].mxu0
        %1475 = vmatprep.mubr.f32.mxu0 %v1098
        %1476 = vmatmul.mubr.f32.gmra.mrb[0].mxu0 %v846
        %v1477 = vpop.f32.mrb[0].mxu0
        %v1478 = vadd.f32 0.0, %v1477
        %v1479 = vpop.f32.mrb[0].mxu0
        %1480 = vmatprep.mubr.f32.mxu0 %v1101
        %1481 = vmatmul.mubr.f32.gmra.mrb[0].mxu0 %v848
        %v1482 = vpop.f32.mrb[0].mxu0
        %v1483 = vadd.f32 0.0, %v1482
        %v1484 = vpop.f32.mrb[0].mxu0
        %1485 = vmatprep.mubr.f32.mxu0 %v1104
        %1486 = vmatmul.mubr.f32.gmra.mrb[0].mxu0 %v850
        %v1487 = vpop.f32.mrb[0].mxu0
        %v1488 = vadd.f32 0.0, %v1487
        %v1489 = vpop.f32.mrb[0].mxu0
        %1490 = vmatprep.mubr.f32.mxu0 %v1107
        %1491 = vmatmul.mubr.f32.gmra.mrb[0].mxu0 %v852
        %v1492 = vpop.f32.mrb[0].mxu0
        %v1493 = vadd.f32 0.0, %v1492
        %v1494 = vpop.f32.mrb[0].mxu0
        %1495 = vmatprep.mubr.f32.mxu0 %v1110
        %1496 = vmatmul.mubr.f32.gmra.mrb[0].mxu0 %v854
        %v1497 = vpop.f32.mrb[0].mxu0
        %v1498 = vadd.f32 0.0, %v1497
        %v1499 = vpop.f32.mrb[0].mxu0
        %1500 = vdwg.mxu0
        %v1502 = vsel %vm919, %v601, 0
        %v1505 = vsel %vm919, %v603, 0
        %v1508 = vsel %vm919, %v605, 0
        %v1511 = vsel %vm919, %v607, 0
        %v1514 = vsel %vm919, %v609, 0
        %v1517 = vsel %vm919, %v611, 0
        %v1520 = vsel %vm919, %v613, 0
        %v1523 = vsel %vm919, %v615, 0
        %v1526 = vsel %vm919, %v617, 0
        %v1529 = vsel %vm919, %v619, 0
        %v1532 = vsel %vm919, %v621, 0
        %v1535 = vsel %vm919, %v623, 0
        %v1538 = vsel %vm919, %v625, 0
        %v1541 = vsel %vm919, %v627, 0
        %v1544 = vsel %vm919, %v629, 0
        %v1547 = vsel %vm919, %v631, 0
        %v1550 = vsel %vm919, %v633, 0
        %v1553 = vsel %vm919, %v635, 0
        %v1556 = vsel %vm919, %v637, 0
        %v1559 = vsel %vm919, %v639, 0
        %v1562 = vsel %vm919, %v641, 0
        %v1565 = vsel %vm919, %v643, 0
        %v1568 = vsel %vm919, %v645, 0
        %v1571 = vsel %vm919, %v647, 0
        %v1574 = vsel %vm919, %v649, 0
        %v1577 = vsel %vm919, %v651, 0
        %v1580 = vsel %vm919, %v653, 0
        %v1583 = vsel %vm919, %v655, 0
        %v1586 = vsel %vm919, %v657, 0
        %v1589 = vsel %vm919, %v659, 0
        %v1592 = vsel %vm919, %v661, 0
        %v1595 = vsel %vm919, %v663, 0
        %v1598 = vsel %vm919, %v665, 0
        %v1601 = vsel %vm919, %v667, 0
        %v1604 = vsel %vm919, %v669, 0
        %v1607 = vsel %vm919, %v671, 0
        %v1610 = vsel %vm919, %v673, 0
        %v1613 = vsel %vm919, %v675, 0
        %v1616 = vsel %vm919, %v677, 0
        %v1619 = vsel %vm919, %v679, 0
        %v1622 = vsel %vm919, %v681, 0
        %v1625 = vsel %vm919, %v683, 0
        %v1628 = vsel %vm919, %v685, 0
        %v1631 = vsel %vm919, %v687, 0
        %v1634 = vsel %vm919, %v689, 0
        %v1637 = vsel %vm919, %v691, 0
        %v1640 = vsel %vm919, %v693, 0
        %v1643 = vsel %vm919, %v695, 0
        %v1646 = vsel %vm919, %v697, 0
        %v1649 = vsel %vm919, %v699, 0
        %v1652 = vsel %vm919, %v701, 0
        %v1655 = vsel %vm919, %v703, 0
        %v1658 = vsel %vm919, %v705, 0
        %v1661 = vsel %vm919, %v707, 0
        %v1664 = vsel %vm919, %v709, 0
        %v1667 = vsel %vm919, %v711, 0
        %v1670 = vsel %vm919, %v713, 0
        %v1673 = vsel %vm919, %v715, 0
        %v1676 = vsel %vm919, %v717, 0
        %v1679 = vsel %vm919, %v719, 0
        %v1682 = vsel %vm919, %v721, 0
        %v1685 = vsel %vm919, %v723, 0
        %v1688 = vsel %vm919, %v725, 0
        %v1691 = vsel %vm919, %v727, 0
        %1693 = vmatprep.subr.mxu0 0.0
        %1694 = vmatpush1.msra.mxu0 %v869
        %1695 = vmatprep.subr.mxu0 0.0
        %1696 = vmatpush1.msra.mxu0 %v870
        %1697 = vmatprep.subr.mxu0 0.0
        %1698 = vmatpush1.msra.mxu0 %v871
        %1699 = vmatprep.subr.mxu0 0.0
        %1700 = vmatpush1.msra.mxu0 %v872
        %1701 = vmatprep.subr.mxu0 0.0
        %1702 = vmatpush1.msra.mxu0 %v873
        %1703 = vmatprep.subr.mxu0 0.0
        %1704 = vmatpush1.msra.mxu0 %v874
        %1705 = vmatprep.subr.mxu0 0.0
        %1706 = vmatpush1.msra.mxu0 %v875
        %1707 = vmatprep.subr.mxu0 0.0
        %1708 = vmatpush1.msra.mxu0 %v876
        %1709 = vmatprep.subr.mxu0 0.0
        %1710 = vmatpush1.msra.mxu0 %v877
        %1711 = vmatprep.subr.mxu0 0.0
        %1712 = vmatpush1.msra.mxu0 %v878
        %1713 = vmatprep.subr.mxu0 0.0
        %1714 = vmatpush1.msra.mxu0 %v879
        %1715 = vmatprep.subr.mxu0 0.0
        %1716 = vmatpush1.msra.mxu0 %v880
        %1717 = vmatprep.subr.mxu0 0.0
        %1718 = vmatpush1.msra.mxu0 %v881
        %1719 = vmatprep.subr.mxu0 0.0
        %1720 = vmatpush1.msra.mxu0 %v882
        %1721 = vmatprep.subr.mxu0 0.0
        %1722 = vmatpush1.msra.mxu0 %v883
        %1723 = vmatprep.subr.mxu0 0.0
        %1724 = vmatpush1.msra.mxu0 %v884
        %1725 = vmatprep.subr.mxu0 0.0
        %1726 = vmatpush1.msra.mxu0 %v885
        %1727 = vmatprep.subr.mxu0 0.0
        %1728 = vmatpush1.msra.mxu0 %v886
        %1729 = vmatprep.subr.mxu0 0.0
        %1730 = vmatpush1.msra.mxu0 %v887
        %1731 = vmatprep.subr.mxu0 0.0
        %1732 = vmatpush1.msra.mxu0 %v888
        %1733 = vmatprep.subr.mxu0 0.0
        %1734 = vmatpush1.msra.mxu0 %v889
        %1735 = vmatprep.subr.mxu0 0.0
        %1736 = vmatpush1.msra.mxu0 %v890
        %1737 = vmatprep.subr.mxu0 0.0
        %1738 = vmatpush1.msra.mxu0 %v891
        %1739 = vmatprep.subr.mxu0 0.0
        %1740 = vmatpush1.msra.mxu0 %v892
        %1741 = vmatprep.subr.mxu0 0.0
        %1742 = vmatpush1.msra.mxu0 %v1114
        %1743 = vmatprep.subr.mxu0 0.0
        %1744 = vmatpush1.msra.mxu0 0.0
        %1745 = vmatprep.subr.mxu0 0.0
        %1746 = vmatpush1.msra.mxu0 0.0
        %1747 = vmatprep.subr.mxu0 0.0
        %1748 = vmatpush1.msra.mxu0 0.0
        %1749 = vmatprep.subr.mxu0 0.0
        %1750 = vmatpush1.msra.mxu0 0.0
        %1751 = vmatprep.subr.mxu0 0.0
        %1752 = vmatpush1.msra.mxu0 0.0
        %1753 = vmatprep.subr.mxu0 0.0
        %1754 = vmatpush1.msra.mxu0 0.0
        %1755 = vmatprep.subr.mxu0 0.0
        %1756 = vmatpush1.msra.mxu0 0.0
        %1757 = vmatprep.mubr.f32.mxu0 %v1502
        %1758 = vmatmul.mubr.f32.gmra.mrb[0].mxu0 %v600
        %v1759 = vpop.f32.mrb[0].mxu0
        %v1760 = vadd.f32 %v1183, %v1759
        %v1761 = vpop.f32.mrb[0].mxu0
        %1762 = vmatprep.mubr.f32.mxu0 %v1505
        %1763 = vmatmul.mubr.f32.gmra.mrb[0].mxu0 %v602
        %v1764 = vpop.f32.mrb[0].mxu0
        %v1765 = vadd.f32 %v1188, %v1764
        %v1766 = vpop.f32.mrb[0].mxu0
        %1767 = vmatprep.mubr.f32.mxu0 %v1508
        %1768 = vmatmul.mubr.f32.gmra.mrb[0].mxu0 %v604
        %v1769 = vpop.f32.mrb[0].mxu0
        %v1770 = vadd.f32 %v1193, %v1769
        %v1771 = vpop.f32.mrb[0].mxu0
        %1772 = vmatprep.mubr.f32.mxu0 %v1511
        %1773 = vmatmul.mubr.f32.gmra.mrb[0].mxu0 %v606
        %v1774 = vpop.f32.mrb[0].mxu0
        %v1775 = vadd.f32 %v1198, %v1774
        %v1776 = vpop.f32.mrb[0].mxu0
        %1777 = vmatprep.mubr.f32.mxu0 %v1514
        %1778 = vmatmul.mubr.f32.gmra.mrb[0].mxu0 %v608
        %v1779 = vpop.f32.mrb[0].mxu0
        %v1780 = vadd.f32 %v1203, %v1779
        %v1781 = vpop.f32.mrb[0].mxu0
        %1782 = vmatprep.mubr.f32.mxu0 %v1517
        %1783 = vmatmul.mubr.f32.gmra.mrb[0].mxu0 %v610
        %v1784 = vpop.f32.mrb[0].mxu0
        %v1785 = vadd.f32 %v1208, %v1784
        %v1786 = vpop.f32.mrb[0].mxu0
        %1787 = vmatprep.mubr.f32.mxu0 %v1520
        %1788 = vmatmul.mubr.f32.gmra.mrb[0].mxu0 %v612
        %v1789 = vpop.f32.mrb[0].mxu0
        %v1790 = vadd.f32 %v1213, %v1789
        %v1791 = vpop.f32.mrb[0].mxu0
        %1792 = vmatprep.mubr.f32.mxu0 %v1523
        %1793 = vmatmul.mubr.f32.gmra.mrb[0].mxu0 %v614
        %v1794 = vpop.f32.mrb[0].mxu0
        %v1795 = vadd.f32 %v1218, %v1794
        %v1796 = vpop.f32.mrb[0].mxu0
        %1797 = vmatprep.mubr.f32.mxu0 %v1526
        %1798 = vmatmul.mubr.f32.gmra.mrb[0].mxu0 %v616
        %v1799 = vpop.f32.mrb[0].mxu0
        %v1800 = vadd.f32 %v1223, %v1799
        %v1801 = vpop.f32.mrb[0].mxu0
        %1802 = vmatprep.mubr.f32.mxu0 %v1529
        %1803 = vmatmul.mubr.f32.gmra.mrb[0].mxu0 %v618
        %v1804 = vpop.f32.mrb[0].mxu0
        %v1805 = vadd.f32 %v1228, %v1804
        %v1806 = vpop.f32.mrb[0].mxu0
        %1807 = vmatprep.mubr.f32.mxu0 %v1532
        %1808 = vmatmul.mubr.f32.gmra.mrb[0].mxu0 %v620
        %v1809 = vpop.f32.mrb[0].mxu0
        %v1810 = vadd.f32 %v1233, %v1809
        %v1811 = vpop.f32.mrb[0].mxu0
        %1812 = vmatprep.mubr.f32.mxu0 %v1535
        %1813 = vmatmul.mubr.f32.gmra.mrb[0].mxu0 %v622
        %v1814 = vpop.f32.mrb[0].mxu0
        %v1815 = vadd.f32 %v1238, %v1814
        %v1816 = vpop.f32.mrb[0].mxu0
        %1817 = vmatprep.mubr.f32.mxu0 %v1538
        %1818 = vmatmul.mubr.f32.gmra.mrb[0].mxu0 %v624
        %v1819 = vpop.f32.mrb[0].mxu0
        %v1820 = vadd.f32 %v1243, %v1819
        %v1821 = vpop.f32.mrb[0].mxu0
        %1822 = vmatprep.mubr.f32.mxu0 %v1541
        %1823 = vmatmul.mubr.f32.gmra.mrb[0].mxu0 %v626
        %v1824 = vpop.f32.mrb[0].mxu0
        %v1825 = vadd.f32 %v1248, %v1824
        %v1826 = vpop.f32.mrb[0].mxu0
        %1827 = vmatprep.mubr.f32.mxu0 %v1544
        %1828 = vmatmul.mubr.f32.gmra.mrb[0].mxu0 %v628
        %v1829 = vpop.f32.mrb[0].mxu0
        %v1830 = vadd.f32 %v1253, %v1829
        %v1831 = vpop.f32.mrb[0].mxu0
        %1832 = vmatprep.mubr.f32.mxu0 %v1547
        %1833 = vmatmul.mubr.f32.gmra.mrb[0].mxu0 %v630
        %v1834 = vpop.f32.mrb[0].mxu0
        %v1835 = vadd.f32 %v1258, %v1834
        %v1836 = vpop.f32.mrb[0].mxu0
        %1837 = vmatprep.mubr.f32.mxu0 %v1550
        %1838 = vmatmul.mubr.f32.gmra.mrb[0].mxu0 %v632
        %v1839 = vpop.f32.mrb[0].mxu0
        %v1840 = vadd.f32 %v1263, %v1839
        %v1841 = vpop.f32.mrb[0].mxu0
        %1842 = vmatprep.mubr.f32.mxu0 %v1553
        %1843 = vmatmul.mubr.f32.gmra.mrb[0].mxu0 %v634
        %v1844 = vpop.f32.mrb[0].mxu0
        %v1845 = vadd.f32 %v1268, %v1844
        %v1846 = vpop.f32.mrb[0].mxu0
        %1847 = vmatprep.mubr.f32.mxu0 %v1556
        %1848 = vmatmul.mubr.f32.gmra.mrb[0].mxu0 %v636
        %v1849 = vpop.f32.mrb[0].mxu0
        %v1850 = vadd.f32 %v1273, %v1849
        %v1851 = vpop.f32.mrb[0].mxu0
        %1852 = vmatprep.mubr.f32.mxu0 %v1559
        %1853 = vmatmul.mubr.f32.gmra.mrb[0].mxu0 %v638
        %v1854 = vpop.f32.mrb[0].mxu0
        %v1855 = vadd.f32 %v1278, %v1854
        %v1856 = vpop.f32.mrb[0].mxu0
        %1857 = vmatprep.mubr.f32.mxu0 %v1562
        %1858 = vmatmul.mubr.f32.gmra.mrb[0].mxu0 %v640
        %v1859 = vpop.f32.mrb[0].mxu0
        %v1860 = vadd.f32 %v1283, %v1859
        %v1861 = vpop.f32.mrb[0].mxu0
        %1862 = vmatprep.mubr.f32.mxu0 %v1565
        %1863 = vmatmul.mubr.f32.gmra.mrb[0].mxu0 %v642
        %v1864 = vpop.f32.mrb[0].mxu0
        %v1865 = vadd.f32 %v1288, %v1864
        %v1866 = vpop.f32.mrb[0].mxu0
        %1867 = vmatprep.mubr.f32.mxu0 %v1568
        %1868 = vmatmul.mubr.f32.gmra.mrb[0].mxu0 %v644
        %v1869 = vpop.f32.mrb[0].mxu0
        %v1870 = vadd.f32 %v1293, %v1869
        %v1871 = vpop.f32.mrb[0].mxu0
        %1872 = vmatprep.mubr.f32.mxu0 %v1571
        %1873 = vmatmul.mubr.f32.gmra.mrb[0].mxu0 %v646
        %v1874 = vpop.f32.mrb[0].mxu0
        %v1875 = vadd.f32 %v1298, %v1874
        %v1876 = vpop.f32.mrb[0].mxu0
        %1877 = vmatprep.mubr.f32.mxu0 %v1574
        %1878 = vmatmul.mubr.f32.gmra.mrb[0].mxu0 %v648
        %v1879 = vpop.f32.mrb[0].mxu0
        %v1880 = vadd.f32 %v1303, %v1879
        %v1881 = vpop.f32.mrb[0].mxu0
        %1882 = vmatprep.mubr.f32.mxu0 %v1577
        %1883 = vmatmul.mubr.f32.gmra.mrb[0].mxu0 %v650
        %v1884 = vpop.f32.mrb[0].mxu0
        %v1885 = vadd.f32 %v1308, %v1884
        %v1886 = vpop.f32.mrb[0].mxu0
        %1887 = vmatprep.mubr.f32.mxu0 %v1580
        %1888 = vmatmul.mubr.f32.gmra.mrb[0].mxu0 %v652
        %v1889 = vpop.f32.mrb[0].mxu0
        %v1890 = vadd.f32 %v1313, %v1889
        %v1891 = vpop.f32.mrb[0].mxu0
        %1892 = vmatprep.mubr.f32.mxu0 %v1583
        %1893 = vmatmul.mubr.f32.gmra.mrb[0].mxu0 %v654
        %v1894 = vpop.f32.mrb[0].mxu0
        %v1895 = vadd.f32 %v1318, %v1894
        %v1896 = vpop.f32.mrb[0].mxu0
        %1897 = vmatprep.mubr.f32.mxu0 %v1586
        %1898 = vmatmul.mubr.f32.gmra.mrb[0].mxu0 %v656
        %v1899 = vpop.f32.mrb[0].mxu0
        %v1900 = vadd.f32 %v1323, %v1899
        %v1901 = vpop.f32.mrb[0].mxu0
        %1902 = vmatprep.mubr.f32.mxu0 %v1589
        %1903 = vmatmul.mubr.f32.gmra.mrb[0].mxu0 %v658
        %v1904 = vpop.f32.mrb[0].mxu0
        %v1905 = vadd.f32 %v1328, %v1904
        %v1906 = vpop.f32.mrb[0].mxu0
        %1907 = vmatprep.mubr.f32.mxu0 %v1592
        %1908 = vmatmul.mubr.f32.gmra.mrb[0].mxu0 %v660
        %v1909 = vpop.f32.mrb[0].mxu0
        %v1910 = vadd.f32 %v1333, %v1909
        %v1911 = vpop.f32.mrb[0].mxu0
        %1912 = vmatprep.mubr.f32.mxu0 %v1595
        %1913 = vmatmul.mubr.f32.gmra.mrb[0].mxu0 %v662
        %v1914 = vpop.f32.mrb[0].mxu0
        %v1915 = vadd.f32 %v1338, %v1914
        %v1916 = vpop.f32.mrb[0].mxu0
        %1917 = vmatprep.mubr.f32.mxu0 %v1598
        %1918 = vmatmul.mubr.f32.gmra.mrb[0].mxu0 %v664
        %v1919 = vpop.f32.mrb[0].mxu0
        %v1920 = vadd.f32 %v1343, %v1919
        %v1921 = vpop.f32.mrb[0].mxu0
        %1922 = vmatprep.mubr.f32.mxu0 %v1601
        %1923 = vmatmul.mubr.f32.gmra.mrb[0].mxu0 %v666
        %v1924 = vpop.f32.mrb[0].mxu0
        %v1925 = vadd.f32 %v1348, %v1924
        %v1926 = vpop.f32.mrb[0].mxu0
        %1927 = vmatprep.mubr.f32.mxu0 %v1604
        %1928 = vmatmul.mubr.f32.gmra.mrb[0].mxu0 %v668
        %v1929 = vpop.f32.mrb[0].mxu0
        %v1930 = vadd.f32 %v1353, %v1929
        %v1931 = vpop.f32.mrb[0].mxu0
        %1932 = vmatprep.mubr.f32.mxu0 %v1607
        %1933 = vmatmul.mubr.f32.gmra.mrb[0].mxu0 %v670
        %v1934 = vpop.f32.mrb[0].mxu0
        %v1935 = vadd.f32 %v1358, %v1934
        %v1936 = vpop.f32.mrb[0].mxu0
        %1937 = vmatprep.mubr.f32.mxu0 %v1610
        %1938 = vmatmul.mubr.f32.gmra.mrb[0].mxu0 %v672
        %v1939 = vpop.f32.mrb[0].mxu0
        %v1940 = vadd.f32 %v1363, %v1939
        %v1941 = vpop.f32.mrb[0].mxu0
        %1942 = vmatprep.mubr.f32.mxu0 %v1613
        %1943 = vmatmul.mubr.f32.gmra.mrb[0].mxu0 %v674
        %v1944 = vpop.f32.mrb[0].mxu0
        %v1945 = vadd.f32 %v1368, %v1944
        %v1946 = vpop.f32.mrb[0].mxu0
        %1947 = vmatprep.mubr.f32.mxu0 %v1616
        %1948 = vmatmul.mubr.f32.gmra.mrb[0].mxu0 %v676
        %v1949 = vpop.f32.mrb[0].mxu0
        %v1950 = vadd.f32 %v1373, %v1949
        %v1951 = vpop.f32.mrb[0].mxu0
        %1952 = vmatprep.mubr.f32.mxu0 %v1619
        %1953 = vmatmul.mubr.f32.gmra.mrb[0].mxu0 %v678
        %v1954 = vpop.f32.mrb[0].mxu0
        %v1955 = vadd.f32 %v1378, %v1954
        %v1956 = vpop.f32.mrb[0].mxu0
        %1957 = vmatprep.mubr.f32.mxu0 %v1622
        %1958 = vmatmul.mubr.f32.gmra.mrb[0].mxu0 %v680
        %v1959 = vpop.f32.mrb[0].mxu0
        %v1960 = vadd.f32 %v1383, %v1959
        %v1961 = vpop.f32.mrb[0].mxu0
        %1962 = vmatprep.mubr.f32.mxu0 %v1625
        %1963 = vmatmul.mubr.f32.gmra.mrb[0].mxu0 %v682
        %v1964 = vpop.f32.mrb[0].mxu0
        %v1965 = vadd.f32 %v1388, %v1964
        %v1966 = vpop.f32.mrb[0].mxu0
        %1967 = vmatprep.mubr.f32.mxu0 %v1628
        %1968 = vmatmul.mubr.f32.gmra.mrb[0].mxu0 %v684
        %v1969 = vpop.f32.mrb[0].mxu0
        %v1970 = vadd.f32 %v1393, %v1969
        %v1971 = vpop.f32.mrb[0].mxu0
        %1972 = vmatprep.mubr.f32.mxu0 %v1631
        %1973 = vmatmul.mubr.f32.gmra.mrb[0].mxu0 %v686
        %v1974 = vpop.f32.mrb[0].mxu0
        %v1975 = vadd.f32 %v1398, %v1974
        %v1976 = vpop.f32.mrb[0].mxu0
        %1977 = vmatprep.mubr.f32.mxu0 %v1634
        %1978 = vmatmul.mubr.f32.gmra.mrb[0].mxu0 %v688
        %v1979 = vpop.f32.mrb[0].mxu0
        %v1980 = vadd.f32 %v1403, %v1979
        %v1981 = vpop.f32.mrb[0].mxu0
        %1982 = vmatprep.mubr.f32.mxu0 %v1637
        %1983 = vmatmul.mubr.f32.gmra.mrb[0].mxu0 %v690
        %v1984 = vpop.f32.mrb[0].mxu0
        %v1985 = vadd.f32 %v1408, %v1984
        %v1986 = vpop.f32.mrb[0].mxu0
        %1987 = vmatprep.mubr.f32.mxu0 %v1640
        %1988 = vmatmul.mubr.f32.gmra.mrb[0].mxu0 %v692
        %v1989 = vpop.f32.mrb[0].mxu0
        %v1990 = vadd.f32 %v1413, %v1989
        %v1991 = vpop.f32.mrb[0].mxu0
        %1992 = vmatprep.mubr.f32.mxu0 %v1643
        %1993 = vmatmul.mubr.f32.gmra.mrb[0].mxu0 %v694
        %v1994 = vpop.f32.mrb[0].mxu0
        %v1995 = vadd.f32 %v1418, %v1994
        %v1996 = vpop.f32.mrb[0].mxu0
        %1997 = vmatprep.mubr.f32.mxu0 %v1646
        %1998 = vmatmul.mubr.f32.gmra.mrb[0].mxu0 %v696
        %v1999 = vpop.f32.mrb[0].mxu0
        %v2000 = vadd.f32 %v1423, %v1999
        %v2001 = vpop.f32.mrb[0].mxu0
        %2002 = vmatprep.mubr.f32.mxu0 %v1649
        %2003 = vmatmul.mubr.f32.gmra.mrb[0].mxu0 %v698
        %v2004 = vpop.f32.mrb[0].mxu0
        %v2005 = vadd.f32 %v1428, %v2004
        %v2006 = vpop.f32.mrb[0].mxu0
        %2007 = vmatprep.mubr.f32.mxu0 %v1652
        %2008 = vmatmul.mubr.f32.gmra.mrb[0].mxu0 %v700
        %v2009 = vpop.f32.mrb[0].mxu0
        %v2010 = vadd.f32 %v1433, %v2009
        %v2011 = vpop.f32.mrb[0].mxu0
        %2012 = vmatprep.mubr.f32.mxu0 %v1655
        %2013 = vmatmul.mubr.f32.gmra.mrb[0].mxu0 %v702
        %v2014 = vpop.f32.mrb[0].mxu0
        %v2015 = vadd.f32 %v1438, %v2014
        %v2016 = vpop.f32.mrb[0].mxu0
        %2017 = vmatprep.mubr.f32.mxu0 %v1658
        %2018 = vmatmul.mubr.f32.gmra.mrb[0].mxu0 %v704
        %v2019 = vpop.f32.mrb[0].mxu0
        %v2020 = vadd.f32 %v1443, %v2019
        %v2021 = vpop.f32.mrb[0].mxu0
        %2022 = vmatprep.mubr.f32.mxu0 %v1661
        %2023 = vmatmul.mubr.f32.gmra.mrb[0].mxu0 %v706
        %v2024 = vpop.f32.mrb[0].mxu0
        %v2025 = vadd.f32 %v1448, %v2024
        %v2026 = vpop.f32.mrb[0].mxu0
        %2027 = vmatprep.mubr.f32.mxu0 %v1664
        %2028 = vmatmul.mubr.f32.gmra.mrb[0].mxu0 %v708
        %v2029 = vpop.f32.mrb[0].mxu0
        %v2030 = vadd.f32 %v1453, %v2029
        %v2031 = vpop.f32.mrb[0].mxu0
        %2032 = vmatprep.mubr.f32.mxu0 %v1667
        %2033 = vmatmul.mubr.f32.gmra.mrb[0].mxu0 %v710
        %v2034 = vpop.f32.mrb[0].mxu0
        %v2035 = vadd.f32 %v1458, %v2034
        %v2036 = vpop.f32.mrb[0].mxu0
        %2037 = vmatprep.mubr.f32.mxu0 %v1670
        %2038 = vmatmul.mubr.f32.gmra.mrb[0].mxu0 %v712
        %v2039 = vpop.f32.mrb[0].mxu0
        %v2040 = vadd.f32 %v1463, %v2039
        %v2041 = vpop.f32.mrb[0].mxu0
        %2042 = vmatprep.mubr.f32.mxu0 %v1673
        %2043 = vmatmul.mubr.f32.gmra.mrb[0].mxu0 %v714
        %v2044 = vpop.f32.mrb[0].mxu0
        %v2045 = vadd.f32 %v1468, %v2044
        %v2046 = vpop.f32.mrb[0].mxu0
        %2047 = vmatprep.mubr.f32.mxu0 %v1676
        %2048 = vmatmul.mubr.f32.gmra.mrb[0].mxu0 %v716
        %v2049 = vpop.f32.mrb[0].mxu0
        %v2050 = vadd.f32 %v1473, %v2049
        %v2051 = vpop.f32.mrb[0].mxu0
        %2052 = vmatprep.mubr.f32.mxu0 %v1679
        %2053 = vmatmul.mubr.f32.gmra.mrb[0].mxu0 %v718
        %v2054 = vpop.f32.mrb[0].mxu0
        %v2055 = vadd.f32 %v1478, %v2054
        %v2056 = vpop.f32.mrb[0].mxu0
        %2057 = vmatprep.mubr.f32.mxu0 %v1682
        %2058 = vmatmul.mubr.f32.gmra.mrb[0].mxu0 %v720
        %v2059 = vpop.f32.mrb[0].mxu0
        %v2060 = vadd.f32 %v1483, %v2059
        %v2061 = vpop.f32.mrb[0].mxu0
        %2062 = vmatprep.mubr.f32.mxu0 %v1685
        %2063 = vmatmul.mubr.f32.gmra.mrb[0].mxu0 %v722
        %v2064 = vpop.f32.mrb[0].mxu0
        %v2065 = vadd.f32 %v1488, %v2064
        %v2066 = vpop.f32.mrb[0].mxu0
        %2067 = vmatprep.mubr.f32.mxu0 %v1688
        %2068 = vmatmul.mubr.f32.gmra.mrb[0].mxu0 %v724
        %v2069 = vpop.f32.mrb[0].mxu0
        %v2070 = vadd.f32 %v1493, %v2069
        %v2071 = vpop.f32.mrb[0].mxu0
        %2072 = vmatprep.mubr.f32.mxu0 %v1691
        %2073 = vmatmul.mubr.f32.gmra.mrb[0].mxu0 %v726
        %v2074 = vpop.f32.mrb[0].mxu0
        %v2075 = vadd.f32 %v1498, %v2074
        %v2076 = vpop.f32.mrb[0].mxu0
        %2077 = vdwg.mxu0
        %v2079 = vsel %vm1112, %v918, 0
        %2081 = vmatprep.subr.mxu0 0.0
        %2082 = vmatpush1.msra.mxu0 %v894
        %2083 = vmatprep.subr.mxu0 0.0
        %2084 = vmatpush1.msra.mxu0 %v895
        %2085 = vmatprep.subr.mxu0 0.0
        %2086 = vmatpush1.msra.mxu0 %v896
        %2087 = vmatprep.subr.mxu0 0.0
        %2088 = vmatpush1.msra.mxu0 %v897
        %2089 = vmatprep.subr.mxu0 0.0
        %2090 = vmatpush1.msra.mxu0 %v898
        %2091 = vmatprep.subr.mxu0 0.0
        %2092 = vmatpush1.msra.mxu0 %v899
        %2093 = vmatprep.subr.mxu0 0.0
        %2094 = vmatpush1.msra.mxu0 %v900
        %2095 = vmatprep.subr.mxu0 0.0
        %2096 = vmatpush1.msra.mxu0 %v901
        %2097 = vmatprep.subr.mxu0 0.0
        %2098 = vmatpush1.msra.mxu0 %v902
        %2099 = vmatprep.subr.mxu0 0.0
        %2100 = vmatpush1.msra.mxu0 %v903
        %2101 = vmatprep.subr.mxu0 0.0
        %2102 = vmatpush1.msra.mxu0 %v904
        %2103 = vmatprep.subr.mxu0 0.0
        %2104 = vmatpush1.msra.mxu0 %v905
        %2105 = vmatprep.subr.mxu0 0.0
        %2106 = vmatpush1.msra.mxu0 %v906
        %2107 = vmatprep.subr.mxu0 0.0
        %2108 = vmatpush1.msra.mxu0 %v907
        %2109 = vmatprep.subr.mxu0 0.0
        %2110 = vmatpush1.msra.mxu0 %v908
        %2111 = vmatprep.subr.mxu0 0.0
        %2112 = vmatpush1.msra.mxu0 %v909
        %2113 = vmatprep.subr.mxu0 0.0
        %2114 = vmatpush1.msra.mxu0 %v910
        %2115 = vmatprep.subr.mxu0 0.0
        %2116 = vmatpush1.msra.mxu0 %v911
        %2117 = vmatprep.subr.mxu0 0.0
        %2118 = vmatpush1.msra.mxu0 %v912
        %2119 = vmatprep.subr.mxu0 0.0
        %2120 = vmatpush1.msra.mxu0 %v913
        %2121 = vmatprep.subr.mxu0 0.0
        %2122 = vmatpush1.msra.mxu0 %v914
        %2123 = vmatprep.subr.mxu0 0.0
        %2124 = vmatpush1.msra.mxu0 %v915
        %2125 = vmatprep.subr.mxu0 0.0
        %2126 = vmatpush1.msra.mxu0 %v916
        %2127 = vmatprep.subr.mxu0 0.0
        %2128 = vmatpush1.msra.mxu0 %v917
        %2129 = vmatprep.subr.mxu0 0.0
        %2130 = vmatpush1.msra.mxu0 %v2079
        %2131 = vmatprep.subr.mxu0 0.0
        %2132 = vmatpush1.msra.mxu0 0.0
        %2133 = vmatprep.subr.mxu0 0.0
        %2134 = vmatpush1.msra.mxu0 0.0
        %2135 = vmatprep.subr.mxu0 0.0
        %2136 = vmatpush1.msra.mxu0 0.0
        %2137 = vmatprep.subr.mxu0 0.0
        %2138 = vmatpush1.msra.mxu0 0.0
        %2139 = vmatprep.subr.mxu0 0.0
        %2140 = vmatpush1.msra.mxu0 0.0
        %2141 = vmatprep.subr.mxu0 0.0
        %2142 = vmatpush1.msra.mxu0 0.0
        %2143 = vmatprep.subr.mxu0 0.0
        %2144 = vmatpush1.msra.mxu0 0.0
        %2145 = vmatprep.mubr.f32.mxu0 %v1502
        %2146 = vmatmul.mubr.f32.gmra.mrb[0].mxu0 %v600
        %v2147 = vpop.f32.mrb[0].mxu0
        %v2148 = vadd.f32 0.0, %v2147
        %v2149 = vpop.f32.mrb[0].mxu0
        %2150 = vmatprep.mubr.f32.mxu0 %v1505
        %2151 = vmatmul.mubr.f32.gmra.mrb[0].mxu0 %v602
        %v2152 = vpop.f32.mrb[0].mxu0
        %v2153 = vadd.f32 0.0, %v2152
        %v2154 = vpop.f32.mrb[0].mxu0
        %2155 = vmatprep.mubr.f32.mxu0 %v1508
        %2156 = vmatmul.mubr.f32.gmra.mrb[0].mxu0 %v604
        %v2157 = vpop.f32.mrb[0].mxu0
        %v2158 = vadd.f32 0.0, %v2157
        %v2159 = vpop.f32.mrb[0].mxu0
        %2160 = vmatprep.mubr.f32.mxu0 %v1511
        %2161 = vmatmul.mubr.f32.gmra.mrb[0].mxu0 %v606
        %v2162 = vpop.f32.mrb[0].mxu0
        %v2163 = vadd.f32 0.0, %v2162
        %v2164 = vpop.f32.mrb[0].mxu0
        %2165 = vmatprep.mubr.f32.mxu0 %v1514
        %2166 = vmatmul.mubr.f32.gmra.mrb[0].mxu0 %v608
        %v2167 = vpop.f32.mrb[0].mxu0
        %v2168 = vadd.f32 0.0, %v2167
        %v2169 = vpop.f32.mrb[0].mxu0
        %2170 = vmatprep.mubr.f32.mxu0 %v1517
        %2171 = vmatmul.mubr.f32.gmra.mrb[0].mxu0 %v610
        %v2172 = vpop.f32.mrb[0].mxu0
        %v2173 = vadd.f32 0.0, %v2172
        %v2174 = vpop.f32.mrb[0].mxu0
        %2175 = vmatprep.mubr.f32.mxu0 %v1520
        %2176 = vmatmul.mubr.f32.gmra.mrb[0].mxu0 %v612
        %v2177 = vpop.f32.mrb[0].mxu0
        %v2178 = vadd.f32 0.0, %v2177
        %v2179 = vpop.f32.mrb[0].mxu0
        %2180 = vmatprep.mubr.f32.mxu0 %v1523
        %2181 = vmatmul.mubr.f32.gmra.mrb[0].mxu0 %v614
        %v2182 = vpop.f32.mrb[0].mxu0
        %v2183 = vadd.f32 0.0, %v2182
        %v2184 = vpop.f32.mrb[0].mxu0
        %2185 = vmatprep.mubr.f32.mxu0 %v1526
        %2186 = vmatmul.mubr.f32.gmra.mrb[0].mxu0 %v616
        %v2187 = vpop.f32.mrb[0].mxu0
        %v2188 = vadd.f32 0.0, %v2187
        %v2189 = vpop.f32.mrb[0].mxu0
        %2190 = vmatprep.mubr.f32.mxu0 %v1529
        %2191 = vmatmul.mubr.f32.gmra.mrb[0].mxu0 %v618
        %v2192 = vpop.f32.mrb[0].mxu0
        %v2193 = vadd.f32 0.0, %v2192
        %v2194 = vpop.f32.mrb[0].mxu0
        %2195 = vmatprep.mubr.f32.mxu0 %v1532
        %2196 = vmatmul.mubr.f32.gmra.mrb[0].mxu0 %v620
        %v2197 = vpop.f32.mrb[0].mxu0
        %v2198 = vadd.f32 0.0, %v2197
        %v2199 = vpop.f32.mrb[0].mxu0
        %2200 = vmatprep.mubr.f32.mxu0 %v1535
        %2201 = vmatmul.mubr.f32.gmra.mrb[0].mxu0 %v622
        %v2202 = vpop.f32.mrb[0].mxu0
        %v2203 = vadd.f32 0.0, %v2202
        %v2204 = vpop.f32.mrb[0].mxu0
        %2205 = vmatprep.mubr.f32.mxu0 %v1538
        %2206 = vmatmul.mubr.f32.gmra.mrb[0].mxu0 %v624
        %v2207 = vpop.f32.mrb[0].mxu0
        %v2208 = vadd.f32 0.0, %v2207
        %v2209 = vpop.f32.mrb[0].mxu0
        %2210 = vmatprep.mubr.f32.mxu0 %v1541
        %2211 = vmatmul.mubr.f32.gmra.mrb[0].mxu0 %v626
        %v2212 = vpop.f32.mrb[0].mxu0
        %v2213 = vadd.f32 0.0, %v2212
        %v2214 = vpop.f32.mrb[0].mxu0
        %2215 = vmatprep.mubr.f32.mxu0 %v1544
        %2216 = vmatmul.mubr.f32.gmra.mrb[0].mxu0 %v628
        %v2217 = vpop.f32.mrb[0].mxu0
        %v2218 = vadd.f32 0.0, %v2217
        %v2219 = vpop.f32.mrb[0].mxu0
        %2220 = vmatprep.mubr.f32.mxu0 %v1547
        %2221 = vmatmul.mubr.f32.gmra.mrb[0].mxu0 %v630
        %v2222 = vpop.f32.mrb[0].mxu0
        %v2223 = vadd.f32 0.0, %v2222
        %v2224 = vpop.f32.mrb[0].mxu0
        %2225 = vmatprep.mubr.f32.mxu0 %v1550
        %2226 = vmatmul.mubr.f32.gmra.mrb[0].mxu0 %v632
        %v2227 = vpop.f32.mrb[0].mxu0
        %v2228 = vadd.f32 0.0, %v2227
        %v2229 = vpop.f32.mrb[0].mxu0
        %2230 = vmatprep.mubr.f32.mxu0 %v1553
        %2231 = vmatmul.mubr.f32.gmra.mrb[0].mxu0 %v634
        %v2232 = vpop.f32.mrb[0].mxu0
        %v2233 = vadd.f32 0.0, %v2232
        %v2234 = vpop.f32.mrb[0].mxu0
        %2235 = vmatprep.mubr.f32.mxu0 %v1556
        %2236 = vmatmul.mubr.f32.gmra.mrb[0].mxu0 %v636
        %v2237 = vpop.f32.mrb[0].mxu0
        %v2238 = vadd.f32 0.0, %v2237
        %v2239 = vpop.f32.mrb[0].mxu0
        %2240 = vmatprep.mubr.f32.mxu0 %v1559
        %2241 = vmatmul.mubr.f32.gmra.mrb[0].mxu0 %v638
        %v2242 = vpop.f32.mrb[0].mxu0
        %v2243 = vadd.f32 0.0, %v2242
        %v2244 = vpop.f32.mrb[0].mxu0
        %2245 = vmatprep.mubr.f32.mxu0 %v1562
        %2246 = vmatmul.mubr.f32.gmra.mrb[0].mxu0 %v640
        %v2247 = vpop.f32.mrb[0].mxu0
        %v2248 = vadd.f32 0.0, %v2247
        %v2249 = vpop.f32.mrb[0].mxu0
        %2250 = vmatprep.mubr.f32.mxu0 %v1565
        %2251 = vmatmul.mubr.f32.gmra.mrb[0].mxu0 %v642
        %v2252 = vpop.f32.mrb[0].mxu0
        %v2253 = vadd.f32 0.0, %v2252
        %v2254 = vpop.f32.mrb[0].mxu0
        %2255 = vmatprep.mubr.f32.mxu0 %v1568
        %2256 = vmatmul.mubr.f32.gmra.mrb[0].mxu0 %v644
        %v2257 = vpop.f32.mrb[0].mxu0
        %v2258 = vadd.f32 0.0, %v2257
        %v2259 = vpop.f32.mrb[0].mxu0
        %2260 = vmatprep.mubr.f32.mxu0 %v1571
        %2261 = vmatmul.mubr.f32.gmra.mrb[0].mxu0 %v646
        %v2262 = vpop.f32.mrb[0].mxu0
        %v2263 = vadd.f32 0.0, %v2262
        %v2264 = vpop.f32.mrb[0].mxu0
        %2265 = vmatprep.mubr.f32.mxu0 %v1574
        %2266 = vmatmul.mubr.f32.gmra.mrb[0].mxu0 %v648
        %v2267 = vpop.f32.mrb[0].mxu0
        %v2268 = vadd.f32 0.0, %v2267
        %v2269 = vpop.f32.mrb[0].mxu0
        %2270 = vmatprep.mubr.f32.mxu0 %v1577
        %2271 = vmatmul.mubr.f32.gmra.mrb[0].mxu0 %v650
        %v2272 = vpop.f32.mrb[0].mxu0
        %v2273 = vadd.f32 0.0, %v2272
        %v2274 = vpop.f32.mrb[0].mxu0
        %2275 = vmatprep.mubr.f32.mxu0 %v1580
        %2276 = vmatmul.mubr.f32.gmra.mrb[0].mxu0 %v652
        %v2277 = vpop.f32.mrb[0].mxu0
        %v2278 = vadd.f32 0.0, %v2277
        %v2279 = vpop.f32.mrb[0].mxu0
        %2280 = vmatprep.mubr.f32.mxu0 %v1583
        %2281 = vmatmul.mubr.f32.gmra.mrb[0].mxu0 %v654
        %v2282 = vpop.f32.mrb[0].mxu0
        %v2283 = vadd.f32 0.0, %v2282
        %v2284 = vpop.f32.mrb[0].mxu0
        %2285 = vmatprep.mubr.f32.mxu0 %v1586
        %2286 = vmatmul.mubr.f32.gmra.mrb[0].mxu0 %v656
        %v2287 = vpop.f32.mrb[0].mxu0
        %v2288 = vadd.f32 0.0, %v2287
        %v2289 = vpop.f32.mrb[0].mxu0
        %2290 = vmatprep.mubr.f32.mxu0 %v1589
        %2291 = vmatmul.mubr.f32.gmra.mrb[0].mxu0 %v658
        %v2292 = vpop.f32.mrb[0].mxu0
        %v2293 = vadd.f32 0.0, %v2292
        %v2294 = vpop.f32.mrb[0].mxu0
        %2295 = vmatprep.mubr.f32.mxu0 %v1592
        %2296 = vmatmul.mubr.f32.gmra.mrb[0].mxu0 %v660
        %v2297 = vpop.f32.mrb[0].mxu0
        %v2298 = vadd.f32 0.0, %v2297
        %v2299 = vpop.f32.mrb[0].mxu0
        %2300 = vmatprep.mubr.f32.mxu0 %v1595
        %2301 = vmatmul.mubr.f32.gmra.mrb[0].mxu0 %v662
        %v2302 = vpop.f32.mrb[0].mxu0
        %v2303 = vadd.f32 0.0, %v2302
        %v2304 = vpop.f32.mrb[0].mxu0
        %2305 = vmatprep.mubr.f32.mxu0 %v1598
        %2306 = vmatmul.mubr.f32.gmra.mrb[0].mxu0 %v664
        %v2307 = vpop.f32.mrb[0].mxu0
        %v2308 = vadd.f32 0.0, %v2307
        %v2309 = vpop.f32.mrb[0].mxu0
        %2310 = vmatprep.mubr.f32.mxu0 %v1601
        %2311 = vmatmul.mubr.f32.gmra.mrb[0].mxu0 %v666
        %v2312 = vpop.f32.mrb[0].mxu0
        %v2313 = vadd.f32 0.0, %v2312
        %v2314 = vpop.f32.mrb[0].mxu0
        %2315 = vmatprep.mubr.f32.mxu0 %v1604
        %2316 = vmatmul.mubr.f32.gmra.mrb[0].mxu0 %v668
        %v2317 = vpop.f32.mrb[0].mxu0
        %v2318 = vadd.f32 0.0, %v2317
        %v2319 = vpop.f32.mrb[0].mxu0
        %2320 = vmatprep.mubr.f32.mxu0 %v1607
        %2321 = vmatmul.mubr.f32.gmra.mrb[0].mxu0 %v670
        %v2322 = vpop.f32.mrb[0].mxu0
        %v2323 = vadd.f32 0.0, %v2322
        %v2324 = vpop.f32.mrb[0].mxu0
        %2325 = vmatprep.mubr.f32.mxu0 %v1610
        %2326 = vmatmul.mubr.f32.gmra.mrb[0].mxu0 %v672
        %v2327 = vpop.f32.mrb[0].mxu0
        %v2328 = vadd.f32 0.0, %v2327
        %v2329 = vpop.f32.mrb[0].mxu0
        %2330 = vmatprep.mubr.f32.mxu0 %v1613
        %2331 = vmatmul.mubr.f32.gmra.mrb[0].mxu0 %v674
        %v2332 = vpop.f32.mrb[0].mxu0
        %v2333 = vadd.f32 0.0, %v2332
        %v2334 = vpop.f32.mrb[0].mxu0
        %2335 = vmatprep.mubr.f32.mxu0 %v1616
        %2336 = vmatmul.mubr.f32.gmra.mrb[0].mxu0 %v676
        %v2337 = vpop.f32.mrb[0].mxu0
        %v2338 = vadd.f32 0.0, %v2337
        %v2339 = vpop.f32.mrb[0].mxu0
        %2340 = vmatprep.mubr.f32.mxu0 %v1619
        %2341 = vmatmul.mubr.f32.gmra.mrb[0].mxu0 %v678
        %v2342 = vpop.f32.mrb[0].mxu0
        %v2343 = vadd.f32 0.0, %v2342
        %v2344 = vpop.f32.mrb[0].mxu0
        %2345 = vmatprep.mubr.f32.mxu0 %v1622
        %2346 = vmatmul.mubr.f32.gmra.mrb[0].mxu0 %v680
        %v2347 = vpop.f32.mrb[0].mxu0
        %v2348 = vadd.f32 0.0, %v2347
        %v2349 = vpop.f32.mrb[0].mxu0
        %2350 = vmatprep.mubr.f32.mxu0 %v1625
        %2351 = vmatmul.mubr.f32.gmra.mrb[0].mxu0 %v682
        %v2352 = vpop.f32.mrb[0].mxu0
        %v2353 = vadd.f32 0.0, %v2352
        %v2354 = vpop.f32.mrb[0].mxu0
        %2355 = vmatprep.mubr.f32.mxu0 %v1628
        %2356 = vmatmul.mubr.f32.gmra.mrb[0].mxu0 %v684
        %v2357 = vpop.f32.mrb[0].mxu0
        %v2358 = vadd.f32 0.0, %v2357
        %v2359 = vpop.f32.mrb[0].mxu0
        %2360 = vmatprep.mubr.f32.mxu0 %v1631
        %2361 = vmatmul.mubr.f32.gmra.mrb[0].mxu0 %v686
        %v2362 = vpop.f32.mrb[0].mxu0
        %v2363 = vadd.f32 0.0, %v2362
        %v2364 = vpop.f32.mrb[0].mxu0
        %2365 = vmatprep.mubr.f32.mxu0 %v1634
        %2366 = vmatmul.mubr.f32.gmra.mrb[0].mxu0 %v688
        %v2367 = vpop.f32.mrb[0].mxu0
        %v2368 = vadd.f32 0.0, %v2367
        %v2369 = vpop.f32.mrb[0].mxu0
        %2370 = vmatprep.mubr.f32.mxu0 %v1637
        %2371 = vmatmul.mubr.f32.gmra.mrb[0].mxu0 %v690
        %v2372 = vpop.f32.mrb[0].mxu0
        %v2373 = vadd.f32 0.0, %v2372
        %v2374 = vpop.f32.mrb[0].mxu0
        %2375 = vmatprep.mubr.f32.mxu0 %v1640
        %2376 = vmatmul.mubr.f32.gmra.mrb[0].mxu0 %v692
        %v2377 = vpop.f32.mrb[0].mxu0
        %v2378 = vadd.f32 0.0, %v2377
        %v2379 = vpop.f32.mrb[0].mxu0
        %2380 = vmatprep.mubr.f32.mxu0 %v1643
        %2381 = vmatmul.mubr.f32.gmra.mrb[0].mxu0 %v694
        %v2382 = vpop.f32.mrb[0].mxu0
        %v2383 = vadd.f32 0.0, %v2382
        %v2384 = vpop.f32.mrb[0].mxu0
        %2385 = vmatprep.mubr.f32.mxu0 %v1646
        %2386 = vmatmul.mubr.f32.gmra.mrb[0].mxu0 %v696
        %v2387 = vpop.f32.mrb[0].mxu0
        %v2388 = vadd.f32 0.0, %v2387
        %v2389 = vpop.f32.mrb[0].mxu0
        %2390 = vmatprep.mubr.f32.mxu0 %v1649
        %2391 = vmatmul.mubr.f32.gmra.mrb[0].mxu0 %v698
        %v2392 = vpop.f32.mrb[0].mxu0
        %v2393 = vadd.f32 0.0, %v2392
        %v2394 = vpop.f32.mrb[0].mxu0
        %2395 = vmatprep.mubr.f32.mxu0 %v1652
        %2396 = vmatmul.mubr.f32.gmra.mrb[0].mxu0 %v700
        %v2397 = vpop.f32.mrb[0].mxu0
        %v2398 = vadd.f32 0.0, %v2397
        %v2399 = vpop.f32.mrb[0].mxu0
        %2400 = vmatprep.mubr.f32.mxu0 %v1655
        %2401 = vmatmul.mubr.f32.gmra.mrb[0].mxu0 %v702
        %v2402 = vpop.f32.mrb[0].mxu0
        %v2403 = vadd.f32 0.0, %v2402
        %v2404 = vpop.f32.mrb[0].mxu0
        %2405 = vmatprep.mubr.f32.mxu0 %v1658
        %2406 = vmatmul.mubr.f32.gmra.mrb[0].mxu0 %v704
        %v2407 = vpop.f32.mrb[0].mxu0
        %v2408 = vadd.f32 0.0, %v2407
        %v2409 = vpop.f32.mrb[0].mxu0
        %2410 = vmatprep.mubr.f32.mxu0 %v1661
        %2411 = vmatmul.mubr.f32.gmra.mrb[0].mxu0 %v706
        %v2412 = vpop.f32.mrb[0].mxu0
        %v2413 = vadd.f32 0.0, %v2412
        %v2414 = vpop.f32.mrb[0].mxu0
        %2415 = vmatprep.mubr.f32.mxu0 %v1664
        %2416 = vmatmul.mubr.f32.gmra.mrb[0].mxu0 %v708
        %v2417 = vpop.f32.mrb[0].mxu0
        %v2418 = vadd.f32 0.0, %v2417
        %v2419 = vpop.f32.mrb[0].mxu0
        %2420 = vmatprep.mubr.f32.mxu0 %v1667
        %2421 = vmatmul.mubr.f32.gmra.mrb[0].mxu0 %v710
        %v2422 = vpop.f32.mrb[0].mxu0
        %v2423 = vadd.f32 0.0, %v2422
        %v2424 = vpop.f32.mrb[0].mxu0
        %2425 = vmatprep.mubr.f32.mxu0 %v1670
        %2426 = vmatmul.mubr.f32.gmra.mrb[0].mxu0 %v712
        %v2427 = vpop.f32.mrb[0].mxu0
        %v2428 = vadd.f32 0.0, %v2427
        %v2429 = vpop.f32.mrb[0].mxu0
        %2430 = vmatprep.mubr.f32.mxu0 %v1673
        %2431 = vmatmul.mubr.f32.gmra.mrb[0].mxu0 %v714
        %v2432 = vpop.f32.mrb[0].mxu0
        %v2433 = vadd.f32 0.0, %v2432
        %v2434 = vpop.f32.mrb[0].mxu0
        %2435 = vmatprep.mubr.f32.mxu0 %v1676
        %2436 = vmatmul.mubr.f32.gmra.mrb[0].mxu0 %v716
        %v2437 = vpop.f32.mrb[0].mxu0
        %v2438 = vadd.f32 0.0, %v2437
        %v2439 = vpop.f32.mrb[0].mxu0
        %2440 = vmatprep.mubr.f32.mxu0 %v1679
        %2441 = vmatmul.mubr.f32.gmra.mrb[0].mxu0 %v718
        %v2442 = vpop.f32.mrb[0].mxu0
        %v2443 = vadd.f32 0.0, %v2442
        %v2444 = vpop.f32.mrb[0].mxu0
        %2445 = vmatprep.mubr.f32.mxu0 %v1682
        %2446 = vmatmul.mubr.f32.gmra.mrb[0].mxu0 %v720
        %v2447 = vpop.f32.mrb[0].mxu0
        %v2448 = vadd.f32 0.0, %v2447
        %v2449 = vpop.f32.mrb[0].mxu0
        %2450 = vmatprep.mubr.f32.mxu0 %v1685
        %2451 = vmatmul.mubr.f32.gmra.mrb[0].mxu0 %v722
        %v2452 = vpop.f32.mrb[0].mxu0
        %v2453 = vadd.f32 0.0, %v2452
        %v2454 = vpop.f32.mrb[0].mxu0
        %2455 = vmatprep.mubr.f32.mxu0 %v1688
        %2456 = vmatmul.mubr.f32.gmra.mrb[0].mxu0 %v724
        %v2457 = vpop.f32.mrb[0].mxu0
        %v2458 = vadd.f32 0.0, %v2457
        %v2459 = vpop.f32.mrb[0].mxu0
        %2460 = vmatprep.mubr.f32.mxu0 %v1691
        %2461 = vmatmul.mubr.f32.gmra.mrb[0].mxu0 %v726
        %v2462 = vpop.f32.mrb[0].mxu0
        %v2463 = vadd.f32 0.0, %v2462
        %v2464 = vpop.f32.mrb[0].mxu0
        %2465 = vdwg.mxu0
        %v2466 = vadd.f32 %v1760, %v2148
        %v2467 = vadd.f32 %v1765, %v2153
        %v2468 = vadd.f32 %v1770, %v2158
        %v2469 = vadd.f32 %v1775, %v2163
        %v2470 = vadd.f32 %v1780, %v2168
        %v2471 = vadd.f32 %v1785, %v2173
        %v2472 = vadd.f32 %v1790, %v2178
        %v2473 = vadd.f32 %v1795, %v2183
        %v2474 = vadd.f32 %v1800, %v2188
        %v2475 = vadd.f32 %v1805, %v2193
        %v2476 = vadd.f32 %v1810, %v2198
        %v2477 = vadd.f32 %v1815, %v2203
        %v2478 = vadd.f32 %v1820, %v2208
        %v2479 = vadd.f32 %v1825, %v2213
        %v2480 = vadd.f32 %v1830, %v2218
        %v2481 = vadd.f32 %v1835, %v2223
        %v2482 = vadd.f32 %v1840, %v2228
        %v2483 = vadd.f32 %v1845, %v2233
        %v2484 = vadd.f32 %v1850, %v2238
        %v2485 = vadd.f32 %v1855, %v2243
        %v2486 = vadd.f32 %v1860, %v2248
        %v2487 = vadd.f32 %v1865, %v2253
        %v2488 = vadd.f32 %v1870, %v2258
        %v2489 = vadd.f32 %v1875, %v2263
        %v2490 = vadd.f32 %v1880, %v2268
        %v2491 = vadd.f32 %v1885, %v2273
        %v2492 = vadd.f32 %v1890, %v2278
        %v2493 = vadd.f32 %v1895, %v2283
        %v2494 = vadd.f32 %v1900, %v2288
        %v2495 = vadd.f32 %v1905, %v2293
        %v2496 = vadd.f32 %v1910, %v2298
        %v2497 = vadd.f32 %v1915, %v2303
        %v2498 = vadd.f32 %v1920, %v2308
        %v2499 = vadd.f32 %v1925, %v2313
        %v2500 = vadd.f32 %v1930, %v2318
        %v2501 = vadd.f32 %v1935, %v2323
        %v2502 = vadd.f32 %v1940, %v2328
        %v2503 = vadd.f32 %v1945, %v2333
        %v2504 = vadd.f32 %v1950, %v2338
        %v2505 = vadd.f32 %v1955, %v2343
        %v2506 = vadd.f32 %v1960, %v2348
        %v2507 = vadd.f32 %v1965, %v2353
        %v2508 = vadd.f32 %v1970, %v2358
        %v2509 = vadd.f32 %v1975, %v2363
        %v2510 = vadd.f32 %v1980, %v2368
        %v2511 = vadd.f32 %v1985, %v2373
        %v2512 = vadd.f32 %v1990, %v2378
        %v2513 = vadd.f32 %v1995, %v2383
        %v2514 = vadd.f32 %v2000, %v2388
        %v2515 = vadd.f32 %v2005, %v2393
        %v2516 = vadd.f32 %v2010, %v2398
        %v2517 = vadd.f32 %v2015, %v2403
        %v2518 = vadd.f32 %v2020, %v2408
        %v2519 = vadd.f32 %v2025, %v2413
        %v2520 = vadd.f32 %v2030, %v2418
        %v2521 = vadd.f32 %v2035, %v2423
        %v2522 = vadd.f32 %v2040, %v2428
        %v2523 = vadd.f32 %v2045, %v2433
        %v2524 = vadd.f32 %v2050, %v2438
        %v2525 = vadd.f32 %v2055, %v2443
        %v2526 = vadd.f32 %v2060, %v2448
        %v2527 = vadd.f32 %v2065, %v2453
        %v2528 = vadd.f32 %v2070, %v2458
        %v2529 = vadd.f32 %v2075, %v2463
        %vm2530 = vcmask 400384
        %2531 = vst.msk [vmem:[%s376] sm:$0xff] %vm2530, %v2466
        %2532 = vst.msk [vmem:[%s376 + $0x8] sm:$0xff] %vm2530, %v2467
        %2533 = vst.msk [vmem:[%s376 + $0x10] sm:$0xff] %vm2530, %v2468
        %2534 = vst.msk [vmem:[%s376 + $0x18] sm:$0xff] %vm2530, %v2469
        %2535 = vst.msk [vmem:[%s376 + $0x20] sm:$0xff] %vm2530, %v2470
        %2536 = vst.msk [vmem:[%s376 + $0x28] sm:$0xff] %vm2530, %v2471
        %2537 = vst.msk [vmem:[%s376 + $0x30] sm:$0xff] %vm2530, %v2472
        %2538 = vst.msk [vmem:[%s376 + $0x38] sm:$0xff] %vm2530, %v2473
        %2539 = vst.msk [vmem:[%s376 + $0x40] sm:$0xff] %vm2530, %v2474
        %2540 = vst.msk [vmem:[%s376 + $0x48] sm:$0xff] %vm2530, %v2475
        %2541 = vst.msk [vmem:[%s376 + $0x50] sm:$0xff] %vm2530, %v2476
        %2542 = vst.msk [vmem:[%s376 + $0x58] sm:$0xff] %vm2530, %v2477
        %2543 = vst.msk [vmem:[%s376 + $0x60] sm:$0xff] %vm2530, %v2478
        %2544 = vst.msk [vmem:[%s376 + $0x68] sm:$0xff] %vm2530, %v2479
        %2545 = vst.msk [vmem:[%s376 + $0x70] sm:$0xff] %vm2530, %v2480
        %2546 = vst.msk [vmem:[%s376 + $0x78] sm:$0xff] %vm2530, %v2481
        %2547 = vst.msk [vmem:[%s376 + $0x80] sm:$0xff] %vm2530, %v2482
        %2548 = vst.msk [vmem:[%s376 + $0x88] sm:$0xff] %vm2530, %v2483
        %2549 = vst.msk [vmem:[%s376 + $0x90] sm:$0xff] %vm2530, %v2484
        %2550 = vst.msk [vmem:[%s376 + $0x98] sm:$0xff] %vm2530, %v2485
        %2551 = vst.msk [vmem:[%s376 + $0xa0] sm:$0xff] %vm2530, %v2486
        %2552 = vst.msk [vmem:[%s376 + $0xa8] sm:$0xff] %vm2530, %v2487
        %2553 = vst.msk [vmem:[%s376 + $0xb0] sm:$0xff] %vm2530, %v2488
        %2554 = vst.msk [vmem:[%s376 + $0xb8] sm:$0xff] %vm2530, %v2489
        %2555 = vst.msk [vmem:[%s376 + $0xc0] sm:$0xff] %vm2530, %v2490
        %2556 = vst.msk [vmem:[%s376 + $0xc8] sm:$0xff] %vm2530, %v2491
        %2557 = vst.msk [vmem:[%s376 + $0xd0] sm:$0xff] %vm2530, %v2492
        %2558 = vst.msk [vmem:[%s376 + $0xd8] sm:$0xff] %vm2530, %v2493
        %2559 = vst.msk [vmem:[%s376 + $0xe0] sm:$0xff] %vm2530, %v2494
        %2560 = vst.msk [vmem:[%s376 + $0xe8] sm:$0xff] %vm2530, %v2495
        %2561 = vst.msk [vmem:[%s376 + $0xf0] sm:$0xff] %vm2530, %v2496
        %2562 = vst.msk [vmem:[%s376 + $0xf8] sm:$0xff] %vm2530, %v2497
        %2563 = vst.msk [vmem:[%s376 + $0x100] sm:$0xff] %vm2530, %v2498
        %2564 = vst.msk [vmem:[%s376 + $0x108] sm:$0xff] %vm2530, %v2499
        %2565 = vst.msk [vmem:[%s376 + $0x110] sm:$0xff] %vm2530, %v2500
        %2566 = vst.msk [vmem:[%s376 + $0x118] sm:$0xff] %vm2530, %v2501
        %2567 = vst.msk [vmem:[%s376 + $0x120] sm:$0xff] %vm2530, %v2502
        %2568 = vst.msk [vmem:[%s376 + $0x128] sm:$0xff] %vm2530, %v2503
        %2569 = vst.msk [vmem:[%s376 + $0x130] sm:$0xff] %vm2530, %v2504
        %2570 = vst.msk [vmem:[%s376 + $0x138] sm:$0xff] %vm2530, %v2505
        %2571 = vst.msk [vmem:[%s376 + $0x140] sm:$0xff] %vm2530, %v2506
        %2572 = vst.msk [vmem:[%s376 + $0x148] sm:$0xff] %vm2530, %v2507
        %2573 = vst.msk [vmem:[%s376 + $0x150] sm:$0xff] %vm2530, %v2508
        %2574 = vst.msk [vmem:[%s376 + $0x158] sm:$0xff] %vm2530, %v2509
        %2575 = vst.msk [vmem:[%s376 + $0x160] sm:$0xff] %vm2530, %v2510
        %2576 = vst.msk [vmem:[%s376 + $0x168] sm:$0xff] %vm2530, %v2511
        %2577 = vst.msk [vmem:[%s376 + $0x170] sm:$0xff] %vm2530, %v2512
        %2578 = vst.msk [vmem:[%s376 + $0x178] sm:$0xff] %vm2530, %v2513
        %2579 = vst.msk [vmem:[%s376 + $0x180] sm:$0xff] %vm2530, %v2514
        %2580 = vst.msk [vmem:[%s376 + $0x188] sm:$0xff] %vm2530, %v2515
        %2581 = vst.msk [vmem:[%s376 + $0x190] sm:$0xff] %vm2530, %v2516
        %2582 = vst.msk [vmem:[%s376 + $0x198] sm:$0xff] %vm2530, %v2517
        %2583 = vst.msk [vmem:[%s376 + $0x1a0] sm:$0xff] %vm2530, %v2518
        %2584 = vst.msk [vmem:[%s376 + $0x1a8] sm:$0xff] %vm2530, %v2519
        %2585 = vst.msk [vmem:[%s376 + $0x1b0] sm:$0xff] %vm2530, %v2520
        %2586 = vst.msk [vmem:[%s376 + $0x1b8] sm:$0xff] %vm2530, %v2521
        %2587 = vst.msk [vmem:[%s376 + $0x1c0] sm:$0xff] %vm2530, %v2522
        %2588 = vst.msk [vmem:[%s376 + $0x1c8] sm:$0xff] %vm2530, %v2523
        %2589 = vst.msk [vmem:[%s376 + $0x1d0] sm:$0xff] %vm2530, %v2524
        %2590 = vst.msk [vmem:[%s376 + $0x1d8] sm:$0xff] %vm2530, %v2525
        %2591 = vst.msk [vmem:[%s376 + $0x1e0] sm:$0xff] %vm2530, %v2526
        %2592 = vst.msk [vmem:[%s376 + $0x1e8] sm:$0xff] %vm2530, %v2527
        %2593 = vst.msk [vmem:[%s376 + $0x1f0] sm:$0xff] %vm2530, %v2528
        %2594 = vst.msk [vmem:[%s376 + $0x1f8] sm:$0xff] %vm2530, %v2529
        %v2595 = vsel %vm2530, %v2466, 0.0
        %2596 = vadd.xlane.f32.xlu0 %v2595
        %v2597 = vpop.xlane.xlu0 %2596
        %v2598 = vsel %vm2530, %v2467, 0.0
        %2599 = vadd.xlane.f32.xlu0 %v2598
        %v2600 = vpop.xlane.xlu0 %2599
        %v2601 = vsel %vm2530, %v2468, 0.0
        %2602 = vadd.xlane.f32.xlu0 %v2601
        %v2603 = vpop.xlane.xlu0 %2602
        %v2604 = vsel %vm2530, %v2469, 0.0
        %2605 = vadd.xlane.f32.xlu0 %v2604
        %v2606 = vpop.xlane.xlu0 %2605
        %v2607 = vsel %vm2530, %v2470, 0.0
        %2608 = vadd.xlane.f32.xlu0 %v2607
        %v2609 = vpop.xlane.xlu0 %2608
        %v2610 = vsel %vm2530, %v2471, 0.0
        %2611 = vadd.xlane.f32.xlu0 %v2610
        %v2612 = vpop.xlane.xlu0 %2611
        %v2613 = vsel %vm2530, %v2472, 0.0
        %2614 = vadd.xlane.f32.xlu0 %v2613
        %v2615 = vpop.xlane.xlu0 %2614
        %v2616 = vsel %vm2530, %v2473, 0.0
        %2617 = vadd.xlane.f32.xlu0 %v2616
        %v2618 = vpop.xlane.xlu0 %2617
        %v2619 = vsel %vm2530, %v2474, 0.0
        %2620 = vadd.xlane.f32.xlu0 %v2619
        %v2621 = vpop.xlane.xlu0 %2620
        %v2622 = vsel %vm2530, %v2475, 0.0
        %2623 = vadd.xlane.f32.xlu0 %v2622
        %v2624 = vpop.xlane.xlu0 %2623
        %v2625 = vsel %vm2530, %v2476, 0.0
        %2626 = vadd.xlane.f32.xlu0 %v2625
        %v2627 = vpop.xlane.xlu0 %2626
        %v2628 = vsel %vm2530, %v2477, 0.0
        %2629 = vadd.xlane.f32.xlu0 %v2628
        %v2630 = vpop.xlane.xlu0 %2629
        %v2631 = vsel %vm2530, %v2478, 0.0
        %2632 = vadd.xlane.f32.xlu0 %v2631
        %v2633 = vpop.xlane.xlu0 %2632
        %v2634 = vsel %vm2530, %v2479, 0.0
        %2635 = vadd.xlane.f32.xlu0 %v2634
        %v2636 = vpop.xlane.xlu0 %2635
        %v2637 = vsel %vm2530, %v2480, 0.0
        %2638 = vadd.xlane.f32.xlu0 %v2637
        %v2639 = vpop.xlane.xlu0 %2638
        %v2640 = vsel %vm2530, %v2481, 0.0
        %2641 = vadd.xlane.f32.xlu0 %v2640
        %v2642 = vpop.xlane.xlu0 %2641
        %v2643 = vsel %vm2530, %v2482, 0.0
        %2644 = vadd.xlane.f32.xlu0 %v2643
        %v2645 = vpop.xlane.xlu0 %2644
        %v2646 = vsel %vm2530, %v2483, 0.0
        %2647 = vadd.xlane.f32.xlu0 %v2646
        %v2648 = vpop.xlane.xlu0 %2647
        %v2649 = vsel %vm2530, %v2484, 0.0
        %2650 = vadd.xlane.f32.xlu0 %v2649
        %v2651 = vpop.xlane.xlu0 %2650
        %v2652 = vsel %vm2530, %v2485, 0.0
        %2653 = vadd.xlane.f32.xlu0 %v2652
        %v2654 = vpop.xlane.xlu0 %2653
        %v2655 = vsel %vm2530, %v2486, 0.0
        %2656 = vadd.xlane.f32.xlu0 %v2655
        %v2657 = vpop.xlane.xlu0 %2656
        %v2658 = vsel %vm2530, %v2487, 0.0
        %2659 = vadd.xlane.f32.xlu0 %v2658
        %v2660 = vpop.xlane.xlu0 %2659
        %v2661 = vsel %vm2530, %v2488, 0.0
        %2662 = vadd.xlane.f32.xlu0 %v2661
        %v2663 = vpop.xlane.xlu0 %2662
        %v2664 = vsel %vm2530, %v2489, 0.0
        %2665 = vadd.xlane.f32.xlu0 %v2664
        %v2666 = vpop.xlane.xlu0 %2665
        %v2667 = vsel %vm2530, %v2490, 0.0
        %2668 = vadd.xlane.f32.xlu0 %v2667
        %v2669 = vpop.xlane.xlu0 %2668
        %v2670 = vsel %vm2530, %v2491, 0.0
        %2671 = vadd.xlane.f32.xlu0 %v2670
        %v2672 = vpop.xlane.xlu0 %2671
        %v2673 = vsel %vm2530, %v2492, 0.0
        %2674 = vadd.xlane.f32.xlu0 %v2673
        %v2675 = vpop.xlane.xlu0 %2674
        %v2676 = vsel %vm2530, %v2493, 0.0
        %2677 = vadd.xlane.f32.xlu0 %v2676
        %v2678 = vpop.xlane.xlu0 %2677
        %v2679 = vsel %vm2530, %v2494, 0.0
        %2680 = vadd.xlane.f32.xlu0 %v2679
        %v2681 = vpop.xlane.xlu0 %2680
        %v2682 = vsel %vm2530, %v2495, 0.0
        %2683 = vadd.xlane.f32.xlu0 %v2682
        %v2684 = vpop.xlane.xlu0 %2683
        %v2685 = vsel %vm2530, %v2496, 0.0
        %2686 = vadd.xlane.f32.xlu0 %v2685
        %v2687 = vpop.xlane.xlu0 %2686
        %v2688 = vsel %vm2530, %v2497, 0.0
        %2689 = vadd.xlane.f32.xlu0 %v2688
        %v2690 = vpop.xlane.xlu0 %2689
        %v2691 = vsel %vm2530, %v2498, 0.0
        %2692 = vadd.xlane.f32.xlu0 %v2691
        %v2693 = vpop.xlane.xlu0 %2692
        %v2694 = vsel %vm2530, %v2499, 0.0
        %2695 = vadd.xlane.f32.xlu0 %v2694
        %v2696 = vpop.xlane.xlu0 %2695
        %v2697 = vsel %vm2530, %v2500, 0.0
        %2698 = vadd.xlane.f32.xlu0 %v2697
        %v2699 = vpop.xlane.xlu0 %2698
        %v2700 = vsel %vm2530, %v2501, 0.0
        %2701 = vadd.xlane.f32.xlu0 %v2700
        %v2702 = vpop.xlane.xlu0 %2701
        %v2703 = vsel %vm2530, %v2502, 0.0
        %2704 = vadd.xlane.f32.xlu0 %v2703
        %v2705 = vpop.xlane.xlu0 %2704
        %v2706 = vsel %vm2530, %v2503, 0.0
        %2707 = vadd.xlane.f32.xlu0 %v2706
        %v2708 = vpop.xlane.xlu0 %2707
        %v2709 = vsel %vm2530, %v2504, 0.0
        %2710 = vadd.xlane.f32.xlu0 %v2709
        %v2711 = vpop.xlane.xlu0 %2710
        %v2712 = vsel %vm2530, %v2505, 0.0
        %2713 = vadd.xlane.f32.xlu0 %v2712
        %v2714 = vpop.xlane.xlu0 %2713
        %v2715 = vsel %vm2530, %v2506, 0.0
        %2716 = vadd.xlane.f32.xlu0 %v2715
        %v2717 = vpop.xlane.xlu0 %2716
        %v2718 = vsel %vm2530, %v2507, 0.0
        %2719 = vadd.xlane.f32.xlu0 %v2718
        %v2720 = vpop.xlane.xlu0 %2719
        %v2721 = vsel %vm2530, %v2508, 0.0
        %2722 = vadd.xlane.f32.xlu0 %v2721
        %v2723 = vpop.xlane.xlu0 %2722
        %v2724 = vsel %vm2530, %v2509, 0.0
        %2725 = vadd.xlane.f32.xlu0 %v2724
        %v2726 = vpop.xlane.xlu0 %2725
        %v2727 = vsel %vm2530, %v2510, 0.0
        %2728 = vadd.xlane.f32.xlu0 %v2727
        %v2729 = vpop.xlane.xlu0 %2728
        %v2730 = vsel %vm2530, %v2511, 0.0
        %2731 = vadd.xlane.f32.xlu0 %v2730
        %v2732 = vpop.xlane.xlu0 %2731
        %v2733 = vsel %vm2530, %v2512, 0.0
        %2734 = vadd.xlane.f32.xlu0 %v2733
        %v2735 = vpop.xlane.xlu0 %2734
        %v2736 = vsel %vm2530, %v2513, 0.0
        %2737 = vadd.xlane.f32.xlu0 %v2736
        %v2738 = vpop.xlane.xlu0 %2737
        %v2739 = vsel %vm2530, %v2514, 0.0
        %2740 = vadd.xlane.f32.xlu0 %v2739
        %v2741 = vpop.xlane.xlu0 %2740
        %v2742 = vsel %vm2530, %v2515, 0.0
        %2743 = vadd.xlane.f32.xlu0 %v2742
        %v2744 = vpop.xlane.xlu0 %2743
        %v2745 = vsel %vm2530, %v2516, 0.0
        %2746 = vadd.xlane.f32.xlu0 %v2745
        %v2747 = vpop.xlane.xlu0 %2746
        %v2748 = vsel %vm2530, %v2517, 0.0
        %2749 = vadd.xlane.f32.xlu0 %v2748
        %v2750 = vpop.xlane.xlu0 %2749
        %v2751 = vsel %vm2530, %v2518, 0.0
        %2752 = vadd.xlane.f32.xlu0 %v2751
        %v2753 = vpop.xlane.xlu0 %2752
        %v2754 = vsel %vm2530, %v2519, 0.0
        %2755 = vadd.xlane.f32.xlu0 %v2754
        %v2756 = vpop.xlane.xlu0 %2755
        %v2757 = vsel %vm2530, %v2520, 0.0
        %2758 = vadd.xlane.f32.xlu0 %v2757
        %v2759 = vpop.xlane.xlu0 %2758
        %v2760 = vsel %vm2530, %v2521, 0.0
        %2761 = vadd.xlane.f32.xlu0 %v2760
        %v2762 = vpop.xlane.xlu0 %2761
        %v2763 = vsel %vm2530, %v2522, 0.0
        %2764 = vadd.xlane.f32.xlu0 %v2763
        %v2765 = vpop.xlane.xlu0 %2764
        %v2766 = vsel %vm2530, %v2523, 0.0
        %2767 = vadd.xlane.f32.xlu0 %v2766
        %v2768 = vpop.xlane.xlu0 %2767
        %v2769 = vsel %vm2530, %v2524, 0.0
        %2770 = vadd.xlane.f32.xlu0 %v2769
        %v2771 = vpop.xlane.xlu0 %2770
        %v2772 = vsel %vm2530, %v2525, 0.0
        %2773 = vadd.xlane.f32.xlu0 %v2772
        %v2774 = vpop.xlane.xlu0 %2773
        %v2775 = vsel %vm2530, %v2526, 0.0
        %2776 = vadd.xlane.f32.xlu0 %v2775
        %v2777 = vpop.xlane.xlu0 %2776
        %v2778 = vsel %vm2530, %v2527, 0.0
        %2779 = vadd.xlane.f32.xlu0 %v2778
        %v2780 = vpop.xlane.xlu0 %2779
        %v2781 = vsel %vm2530, %v2528, 0.0
        %2782 = vadd.xlane.f32.xlu0 %v2781
        %v2783 = vpop.xlane.xlu0 %2782
        %v2784 = vsel %vm2530, %v2529, 0.0
        %2785 = vadd.xlane.f32.xlu0 %v2784
        %v2786 = vpop.xlane.xlu0 %2785
        %v2787 = vrcp.pop 49.0
        %v2788 = vmul.f32 %v2597, %v2787
        %v2789 = vmul.f32 %v2600, %v2787
        %v2790 = vmul.f32 %v2603, %v2787
        %v2791 = vmul.f32 %v2606, %v2787
        %v2792 = vmul.f32 %v2609, %v2787
        %v2793 = vmul.f32 %v2612, %v2787
        %v2794 = vmul.f32 %v2615, %v2787
        %v2795 = vmul.f32 %v2618, %v2787
        %v2796 = vmul.f32 %v2621, %v2787
        %v2797 = vmul.f32 %v2624, %v2787
        %v2798 = vmul.f32 %v2627, %v2787
        %v2799 = vmul.f32 %v2630, %v2787
        %v2800 = vmul.f32 %v2633, %v2787
        %v2801 = vmul.f32 %v2636, %v2787
        %v2802 = vmul.f32 %v2639, %v2787
        %v2803 = vmul.f32 %v2642, %v2787
        %v2804 = vmul.f32 %v2645, %v2787
        %v2805 = vmul.f32 %v2648, %v2787
        %v2806 = vmul.f32 %v2651, %v2787
        %v2807 = vmul.f32 %v2654, %v2787
        %v2808 = vmul.f32 %v2657, %v2787
        %v2809 = vmul.f32 %v2660, %v2787
        %v2810 = vmul.f32 %v2663, %v2787
        %v2811 = vmul.f32 %v2666, %v2787
        %v2812 = vmul.f32 %v2669, %v2787
        %v2813 = vmul.f32 %v2672, %v2787
        %v2814 = vmul.f32 %v2675, %v2787
        %v2815 = vmul.f32 %v2678, %v2787
        %v2816 = vmul.f32 %v2681, %v2787
        %v2817 = vmul.f32 %v2684, %v2787
        %v2818 = vmul.f32 %v2687, %v2787
        %v2819 = vmul.f32 %v2690, %v2787
        %v2820 = vmul.f32 %v2693, %v2787
        %v2821 = vmul.f32 %v2696, %v2787
        %v2822 = vmul.f32 %v2699, %v2787
        %v2823 = vmul.f32 %v2702, %v2787
        %v2824 = vmul.f32 %v2705, %v2787
        %v2825 = vmul.f32 %v2708, %v2787
        %v2826 = vmul.f32 %v2711, %v2787
        %v2827 = vmul.f32 %v2714, %v2787
        %v2828 = vmul.f32 %v2717, %v2787
        %v2829 = vmul.f32 %v2720, %v2787
        %v2830 = vmul.f32 %v2723, %v2787
        %v2831 = vmul.f32 %v2726, %v2787
        %v2832 = vmul.f32 %v2729, %v2787
        %v2833 = vmul.f32 %v2732, %v2787
        %v2834 = vmul.f32 %v2735, %v2787
        %v2835 = vmul.f32 %v2738, %v2787
        %v2836 = vmul.f32 %v2741, %v2787
        %v2837 = vmul.f32 %v2744, %v2787
        %v2838 = vmul.f32 %v2747, %v2787
        %v2839 = vmul.f32 %v2750, %v2787
        %v2840 = vmul.f32 %v2753, %v2787
        %v2841 = vmul.f32 %v2756, %v2787
        %v2842 = vmul.f32 %v2759, %v2787
        %v2843 = vmul.f32 %v2762, %v2787
        %v2844 = vmul.f32 %v2765, %v2787
        %v2845 = vmul.f32 %v2768, %v2787
        %v2846 = vmul.f32 %v2771, %v2787
        %v2847 = vmul.f32 %v2774, %v2787
        %v2848 = vmul.f32 %v2777, %v2787
        %v2849 = vmul.f32 %v2780, %v2787
        %v2850 = vmul.f32 %v2783, %v2787
        %v2851 = vmul.f32 %v2786, %v2787
        %v2852 = vld [vmem:[%s312] sm:$0xff]
        %v2853 = vld [vmem:[%s312 + $0x8] sm:$0xff]
        %v2854 = vld [vmem:[%s312 + $0x10] sm:$0xff]
        %v2855 = vld [vmem:[%s312 + $0x18] sm:$0xff]
        %v2856 = vld [vmem:[%s312 + $0x20] sm:$0xff]
        %v2857 = vld [vmem:[%s312 + $0x28] sm:$0xff]
        %v2858 = vld [vmem:[%s312 + $0x30] sm:$0xff]
        %v2859 = vld [vmem:[%s312 + $0x38] sm:$0xff]
        %v2860 = vld [vmem:[%s312 + $0x40] sm:$0xff]
        %v2861 = vld [vmem:[%s312 + $0x48] sm:$0xff]
        %v2862 = vld [vmem:[%s312 + $0x50] sm:$0xff]
        %v2863 = vld [vmem:[%s312 + $0x58] sm:$0xff]
        %v2864 = vld [vmem:[%s312 + $0x60] sm:$0xff]
        %v2865 = vld [vmem:[%s312 + $0x68] sm:$0xff]
        %v2866 = vld [vmem:[%s312 + $0x70] sm:$0xff]
        %v2867 = vld [vmem:[%s312 + $0x78] sm:$0xff]
        %v2868 = vld [vmem:[%s312 + $0x80] sm:$0xff]
        %v2869 = vld [vmem:[%s312 + $0x88] sm:$0xff]
        %v2870 = vld [vmem:[%s312 + $0x90] sm:$0xff]
        %v2871 = vld [vmem:[%s312 + $0x98] sm:$0xff]
        %v2872 = vld [vmem:[%s312 + $0xa0] sm:$0xff]
        %v2873 = vld [vmem:[%s312 + $0xa8] sm:$0xff]
        %v2874 = vld [vmem:[%s312 + $0xb0] sm:$0xff]
        %v2875 = vld [vmem:[%s312 + $0xb8] sm:$0xff]
        %v2876 = vld [vmem:[%s312 + $0xc0] sm:$0xff]
        %v2877 = vld [vmem:[%s312 + $0xc8] sm:$0xff]
        %v2878 = vld [vmem:[%s312 + $0xd0] sm:$0xff]
        %v2879 = vld [vmem:[%s312 + $0xd8] sm:$0xff]
        %v2880 = vld [vmem:[%s312 + $0xe0] sm:$0xff]
        %v2881 = vld [vmem:[%s312 + $0xe8] sm:$0xff]
        %v2882 = vld [vmem:[%s312 + $0xf0] sm:$0xff]
        %v2883 = vld [vmem:[%s312 + $0xf8] sm:$0xff]
        %v2884 = vpack.c.bf16 %v2856, %v2852
        %v2885 = vpack.c.bf16 %v2857, %v2853
        %v2886 = vpack.c.bf16 %v2858, %v2854
        %v2887 = vpack.c.bf16 %v2859, %v2855
        %v2888 = vpack.c.bf16 %v2864, %v2860
        %v2889 = vpack.c.bf16 %v2865, %v2861
        %v2890 = vpack.c.bf16 %v2866, %v2862
        %v2891 = vpack.c.bf16 %v2867, %v2863
        %v2892 = vpack.c.bf16 %v2872, %v2868
        %v2893 = vpack.c.bf16 %v2873, %v2869
        %v2894 = vpack.c.bf16 %v2874, %v2870
        %v2895 = vpack.c.bf16 %v2875, %v2871
        %v2896 = vpack.c.bf16 %v2880, %v2876
        %v2897 = vpack.c.bf16 %v2881, %v2877
        %v2898 = vpack.c.bf16 %v2882, %v2878
        %v2899 = vpack.c.bf16 %v2883, %v2879
        %v2900 = vunpack.c.l.bf16 %v2884
        %v2901 = vunpack.c.l.bf16 %v2885
        %v2902 = vunpack.c.l.bf16 %v2886
        %v2903 = vunpack.c.l.bf16 %v2887
        %v2904 = vunpack.c.h.bf16 %v2884
        %v2905 = vunpack.c.h.bf16 %v2885
        %v2906 = vunpack.c.h.bf16 %v2886
        %v2907 = vunpack.c.h.bf16 %v2887
        %v2908 = vunpack.c.l.bf16 %v2888
        %v2909 = vunpack.c.l.bf16 %v2889
        %v2910 = vunpack.c.l.bf16 %v2890
        %v2911 = vunpack.c.l.bf16 %v2891
        %v2912 = vunpack.c.h.bf16 %v2888
        %v2913 = vunpack.c.h.bf16 %v2889
        %v2914 = vunpack.c.h.bf16 %v2890
        %v2915 = vunpack.c.h.bf16 %v2891
        %v2916 = vunpack.c.l.bf16 %v2892
        %v2917 = vunpack.c.l.bf16 %v2893
        %v2918 = vunpack.c.l.bf16 %v2894
        %v2919 = vunpack.c.l.bf16 %v2895
        %v2920 = vunpack.c.h.bf16 %v2892
        %v2921 = vunpack.c.h.bf16 %v2893
        %v2922 = vunpack.c.h.bf16 %v2894
        %v2923 = vunpack.c.h.bf16 %v2895
        %v2924 = vunpack.c.l.bf16 %v2896
        %v2925 = vunpack.c.l.bf16 %v2897
        %v2926 = vunpack.c.l.bf16 %v2898
        %v2927 = vunpack.c.l.bf16 %v2899
        %v2928 = vunpack.c.h.bf16 %v2896
        %v2929 = vunpack.c.h.bf16 %v2897
        %v2930 = vunpack.c.h.bf16 %v2898
        %v2931 = vunpack.c.h.bf16 %v2899
        %v2932 = vsub.f32 %v2852, %v2900
        %v2933 = vsub.f32 %v2853, %v2901
        %v2934 = vsub.f32 %v2854, %v2902
        %v2935 = vsub.f32 %v2855, %v2903
        %v2936 = vsub.f32 %v2856, %v2904
        %v2937 = vsub.f32 %v2857, %v2905
        %v2938 = vsub.f32 %v2858, %v2906
        %v2939 = vsub.f32 %v2859, %v2907
        %v2940 = vsub.f32 %v2860, %v2908
        %v2941 = vsub.f32 %v2861, %v2909
        %v2942 = vsub.f32 %v2862, %v2910
        %v2943 = vsub.f32 %v2863, %v2911
        %v2944 = vsub.f32 %v2864, %v2912
        %v2945 = vsub.f32 %v2865, %v2913
        %v2946 = vsub.f32 %v2866, %v2914
        %v2947 = vsub.f32 %v2867, %v2915
        %v2948 = vsub.f32 %v2868, %v2916
        %v2949 = vsub.f32 %v2869, %v2917
        %v2950 = vsub.f32 %v2870, %v2918
        %v2951 = vsub.f32 %v2871, %v2919
        %v2952 = vsub.f32 %v2872, %v2920
        %v2953 = vsub.f32 %v2873, %v2921
        %v2954 = vsub.f32 %v2874, %v2922
        %v2955 = vsub.f32 %v2875, %v2923
        %v2956 = vsub.f32 %v2876, %v2924
        %v2957 = vsub.f32 %v2877, %v2925
        %v2958 = vsub.f32 %v2878, %v2926
        %v2959 = vsub.f32 %v2879, %v2927
        %v2960 = vsub.f32 %v2880, %v2928
        %v2961 = vsub.f32 %v2881, %v2929
        %v2962 = vsub.f32 %v2882, %v2930
        %v2963 = vsub.f32 %v2883, %v2931
        %v2964 = vpack.c.bf16 %v2789, %v2788
        %v2965 = vpack.c.bf16 %v2791, %v2790
        %v2966 = vpack.c.bf16 %v2793, %v2792
        %v2967 = vpack.c.bf16 %v2795, %v2794
        %v2968 = vpack.c.bf16 %v2797, %v2796
        %v2969 = vpack.c.bf16 %v2799, %v2798
        %v2970 = vpack.c.bf16 %v2801, %v2800
        %v2971 = vpack.c.bf16 %v2803, %v2802
        %v2972 = vpack.c.bf16 %v2805, %v2804
        %v2973 = vpack.c.bf16 %v2807, %v2806
        %v2974 = vpack.c.bf16 %v2809, %v2808
        %v2975 = vpack.c.bf16 %v2811, %v2810
        %v2976 = vpack.c.bf16 %v2813, %v2812
        %v2977 = vpack.c.bf16 %v2815, %v2814
        %v2978 = vpack.c.bf16 %v2817, %v2816
        %v2979 = vpack.c.bf16 %v2819, %v2818
        %v2980 = vpack.c.bf16 %v2821, %v2820
        %v2981 = vpack.c.bf16 %v2823, %v2822
        %v2982 = vpack.c.bf16 %v2825, %v2824
        %v2983 = vpack.c.bf16 %v2827, %v2826
        %v2984 = vpack.c.bf16 %v2829, %v2828
        %v2985 = vpack.c.bf16 %v2831, %v2830
        %v2986 = vpack.c.bf16 %v2833, %v2832
        %v2987 = vpack.c.bf16 %v2835, %v2834
        %v2988 = vpack.c.bf16 %v2837, %v2836
        %v2989 = vpack.c.bf16 %v2839, %v2838
        %v2990 = vpack.c.bf16 %v2841, %v2840
        %v2991 = vpack.c.bf16 %v2843, %v2842
        %v2992 = vpack.c.bf16 %v2845, %v2844
        %v2993 = vpack.c.bf16 %v2847, %v2846
        %v2994 = vpack.c.bf16 %v2849, %v2848
        %v2995 = vpack.c.bf16 %v2851, %v2850
        %v2996 = vunpack.c.l.bf16 %v2964
        %v2997 = vunpack.c.h.bf16 %v2964
        %v2998 = vunpack.c.l.bf16 %v2965
        %v2999 = vunpack.c.h.bf16 %v2965
        %v3000 = vunpack.c.l.bf16 %v2966
        %v3001 = vunpack.c.h.bf16 %v2966
        %v3002 = vunpack.c.l.bf16 %v2967
        %v3003 = vunpack.c.h.bf16 %v2967
        %v3004 = vunpack.c.l.bf16 %v2968
        %v3005 = vunpack.c.h.bf16 %v2968
        %v3006 = vunpack.c.l.bf16 %v2969
        %v3007 = vunpack.c.h.bf16 %v2969
        %v3008 = vunpack.c.l.bf16 %v2970
        %v3009 = vunpack.c.h.bf16 %v2970
        %v3010 = vunpack.c.l.bf16 %v2971
        %v3011 = vunpack.c.h.bf16 %v2971
        %v3012 = vunpack.c.l.bf16 %v2972
        %v3013 = vunpack.c.h.bf16 %v2972
        %v3014 = vunpack.c.l.bf16 %v2973
        %v3015 = vunpack.c.h.bf16 %v2973
        %v3016 = vunpack.c.l.bf16 %v2974
        %v3017 = vunpack.c.h.bf16 %v2974
        %v3018 = vunpack.c.l.bf16 %v2975
        %v3019 = vunpack.c.h.bf16 %v2975
        %v3020 = vunpack.c.l.bf16 %v2976
        %v3021 = vunpack.c.h.bf16 %v2976
        %v3022 = vunpack.c.l.bf16 %v2977
        %v3023 = vunpack.c.h.bf16 %v2977
        %v3024 = vunpack.c.l.bf16 %v2978
        %v3025 = vunpack.c.h.bf16 %v2978
        %v3026 = vunpack.c.l.bf16 %v2979
        %v3027 = vunpack.c.h.bf16 %v2979
        %v3028 = vunpack.c.l.bf16 %v2980
        %v3029 = vunpack.c.h.bf16 %v2980
        %v3030 = vunpack.c.l.bf16 %v2981
        %v3031 = vunpack.c.h.bf16 %v2981
        %v3032 = vunpack.c.l.bf16 %v2982
        %v3033 = vunpack.c.h.bf16 %v2982
        %v3034 = vunpack.c.l.bf16 %v2983
        %v3035 = vunpack.c.h.bf16 %v2983
        %v3036 = vunpack.c.l.bf16 %v2984
        %v3037 = vunpack.c.h.bf16 %v2984
        %v3038 = vunpack.c.l.bf16 %v2985
        %v3039 = vunpack.c.h.bf16 %v2985
        %v3040 = vunpack.c.l.bf16 %v2986
        %v3041 = vunpack.c.h.bf16 %v2986
        %v3042 = vunpack.c.l.bf16 %v2987
        %v3043 = vunpack.c.h.bf16 %v2987
        %v3044 = vunpack.c.l.bf16 %v2988
        %v3045 = vunpack.c.h.bf16 %v2988
        %v3046 = vunpack.c.l.bf16 %v2989
        %v3047 = vunpack.c.h.bf16 %v2989
        %v3048 = vunpack.c.l.bf16 %v2990
        %v3049 = vunpack.c.h.bf16 %v2990
        %v3050 = vunpack.c.l.bf16 %v2991
        %v3051 = vunpack.c.h.bf16 %v2991
        %v3052 = vunpack.c.l.bf16 %v2992
        %v3053 = vunpack.c.h.bf16 %v2992
        %v3054 = vunpack.c.l.bf16 %v2993
        %v3055 = vunpack.c.h.bf16 %v2993
        %v3056 = vunpack.c.l.bf16 %v2994
        %v3057 = vunpack.c.h.bf16 %v2994
        %v3058 = vunpack.c.l.bf16 %v2995
        %v3059 = vunpack.c.h.bf16 %v2995
        %v3060 = vsub.f32 %v2788, %v2996
        %v3061 = vsub.f32 %v2789, %v2997
        %v3062 = vsub.f32 %v2790, %v2998
        %v3063 = vsub.f32 %v2791, %v2999
        %v3064 = vsub.f32 %v2792, %v3000
        %v3065 = vsub.f32 %v2793, %v3001
        %v3066 = vsub.f32 %v2794, %v3002
        %v3067 = vsub.f32 %v2795, %v3003
        %v3068 = vsub.f32 %v2796, %v3004
        %v3069 = vsub.f32 %v2797, %v3005
        %v3070 = vsub.f32 %v2798, %v3006
        %v3071 = vsub.f32 %v2799, %v3007
        %v3072 = vsub.f32 %v2800, %v3008
        %v3073 = vsub.f32 %v2801, %v3009
        %v3074 = vsub.f32 %v2802, %v3010
        %v3075 = vsub.f32 %v2803, %v3011
        %v3076 = vsub.f32 %v2804, %v3012
        %v3077 = vsub.f32 %v2805, %v3013
        %v3078 = vsub.f32 %v2806, %v3014
        %v3079 = vsub.f32 %v2807, %v3015
        %v3080 = vsub.f32 %v2808, %v3016
        %v3081 = vsub.f32 %v2809, %v3017
        %v3082 = vsub.f32 %v2810, %v3018
        %v3083 = vsub.f32 %v2811, %v3019
        %v3084 = vsub.f32 %v2812, %v3020
        %v3085 = vsub.f32 %v2813, %v3021
        %v3086 = vsub.f32 %v2814, %v3022
        %v3087 = vsub.f32 %v2815, %v3023
        %v3088 = vsub.f32 %v2816, %v3024
        %v3089 = vsub.f32 %v2817, %v3025
        %v3090 = vsub.f32 %v2818, %v3026
        %v3091 = vsub.f32 %v2819, %v3027
        %v3092 = vsub.f32 %v2820, %v3028
        %v3093 = vsub.f32 %v2821, %v3029
        %v3094 = vsub.f32 %v2822, %v3030
        %v3095 = vsub.f32 %v2823, %v3031
        %v3096 = vsub.f32 %v2824, %v3032
        %v3097 = vsub.f32 %v2825, %v3033
        %v3098 = vsub.f32 %v2826, %v3034
        %v3099 = vsub.f32 %v2827, %v3035
        %v3100 = vsub.f32 %v2828, %v3036
        %v3101 = vsub.f32 %v2829, %v3037
        %v3102 = vsub.f32 %v2830, %v3038
        %v3103 = vsub.f32 %v2831, %v3039
        %v3104 = vsub.f32 %v2832, %v3040
        %v3105 = vsub.f32 %v2833, %v3041
        %v3106 = vsub.f32 %v2834, %v3042
        %v3107 = vsub.f32 %v2835, %v3043
        %v3108 = vsub.f32 %v2836, %v3044
        %v3109 = vsub.f32 %v2837, %v3045
        %v3110 = vsub.f32 %v2838, %v3046
        %v3111 = vsub.f32 %v2839, %v3047
        %v3112 = vsub.f32 %v2840, %v3048
        %v3113 = vsub.f32 %v2841, %v3049
        %v3114 = vsub.f32 %v2842, %v3050
        %v3115 = vsub.f32 %v2843, %v3051
        %v3116 = vsub.f32 %v2844, %v3052
        %v3117 = vsub.f32 %v2845, %v3053
        %v3118 = vsub.f32 %v2846, %v3054
        %v3119 = vsub.f32 %v2847, %v3055
        %v3120 = vsub.f32 %v2848, %v3056
        %v3121 = vsub.f32 %v2849, %v3057
        %v3122 = vsub.f32 %v2850, %v3058
        %v3123 = vsub.f32 %v2851, %v3059
        %3124 = vmatprep.subr.mxu0 0.0
        %3125 = vmatpush1.msra.mxu0 %v2996
        %3126 = vmatprep.subr.mxu0 0.0
        %3127 = vmatpush1.msra.mxu0 %v2997
        %3128 = vmatprep.subr.mxu0 0.0
        %3129 = vmatpush1.msra.mxu0 %v2998
        %3130 = vmatprep.subr.mxu0 0.0
        %3131 = vmatpush1.msra.mxu0 %v2999
        %3132 = vmatprep.subr.mxu0 0.0
        %3133 = vmatpush1.msra.mxu0 %v3000
        %3134 = vmatprep.subr.mxu0 0.0
        %3135 = vmatpush1.msra.mxu0 %v3001
        %3136 = vmatprep.subr.mxu0 0.0
        %3137 = vmatpush1.msra.mxu0 %v3002
        %3138 = vmatprep.subr.mxu0 0.0
        %3139 = vmatpush1.msra.mxu0 %v3003
        %3140 = vmatprep.subr.mxu0 0.0
        %3141 = vmatpush1.msra.mxu0 %v3004
        %3142 = vmatprep.subr.mxu0 0.0
        %3143 = vmatpush1.msra.mxu0 %v3005
        %3144 = vmatprep.subr.mxu0 0.0
        %3145 = vmatpush1.msra.mxu0 %v3006
        %3146 = vmatprep.subr.mxu0 0.0
        %3147 = vmatpush1.msra.mxu0 %v3007
        %3148 = vmatprep.subr.mxu0 0.0
        %3149 = vmatpush1.msra.mxu0 %v3008
        %3150 = vmatprep.subr.mxu0 0.0
        %3151 = vmatpush1.msra.mxu0 %v3009
        %3152 = vmatprep.subr.mxu0 0.0
        %3153 = vmatpush1.msra.mxu0 %v3010
        %3154 = vmatprep.subr.mxu0 0.0
        %3155 = vmatpush1.msra.mxu0 %v3011
        %3156 = vmatprep.subr.mxu0 0.0
        %3157 = vmatpush1.msra.mxu0 %v3012
        %3158 = vmatprep.subr.mxu0 0.0
        %3159 = vmatpush1.msra.mxu0 %v3013
        %3160 = vmatprep.subr.mxu0 0.0
        %3161 = vmatpush1.msra.mxu0 %v3014
        %3162 = vmatprep.subr.mxu0 0.0
        %3163 = vmatpush1.msra.mxu0 %v3015
        %3164 = vmatprep.subr.mxu0 0.0
        %3165 = vmatpush1.msra.mxu0 %v3016
        %3166 = vmatprep.subr.mxu0 0.0
        %3167 = vmatpush1.msra.mxu0 %v3017
        %3168 = vmatprep.subr.mxu0 0.0
        %3169 = vmatpush1.msra.mxu0 %v3018
        %3170 = vmatprep.subr.mxu0 0.0
        %3171 = vmatpush1.msra.mxu0 %v3019
        %3172 = vmatprep.subr.mxu0 0.0
        %3173 = vmatpush1.msra.mxu0 %v3020
        %3174 = vmatprep.subr.mxu0 0.0
        %3175 = vmatpush1.msra.mxu0 %v3021
        %3176 = vmatprep.subr.mxu0 0.0
        %3177 = vmatpush1.msra.mxu0 %v3022
        %3178 = vmatprep.subr.mxu0 0.0
        %3179 = vmatpush1.msra.mxu0 %v3023
        %3180 = vmatprep.subr.mxu0 0.0
        %3181 = vmatpush1.msra.mxu0 %v3024
        %3182 = vmatprep.subr.mxu0 0.0
        %3183 = vmatpush1.msra.mxu0 %v3025
        %3184 = vmatprep.subr.mxu0 0.0
        %3185 = vmatpush1.msra.mxu0 %v3026
        %3186 = vmatprep.subr.mxu0 0.0
        %3187 = vmatpush1.msra.mxu0 %v3027
        %3188 = vmatprep.mubr.f32.mxu0 %v2933
        %3189 = vmatmul.mubr.f32.gmra.mrb[0].mxu0 %v2932
        %v3190 = vpop.f32.mrb[0].mxu0
        %v3191 = vadd.f32 0.0, %v3190
        %v3192 = vpop.f32.mrb[0].mxu0
        %3193 = vmatprep.mubr.f32.mxu0 %v2937
        %3194 = vmatmul.mubr.f32.gmra.mrb[0].mxu0 %v2936
        %v3195 = vpop.f32.mrb[0].mxu0
        %v3196 = vadd.f32 0.0, %v3195
        %v3197 = vpop.f32.mrb[0].mxu0
        %3198 = vmatprep.mubr.f32.mxu0 %v2941
        %3199 = vmatmul.mubr.f32.gmra.mrb[0].mxu0 %v2940
        %v3200 = vpop.f32.mrb[0].mxu0
        %v3201 = vadd.f32 0.0, %v3200
        %v3202 = vpop.f32.mrb[0].mxu0
        %3203 = vmatprep.mubr.f32.mxu0 %v2945
        %3204 = vmatmul.mubr.f32.gmra.mrb[0].mxu0 %v2944
        %v3205 = vpop.f32.mrb[0].mxu0
        %v3206 = vadd.f32 0.0, %v3205
        %v3207 = vpop.f32.mrb[0].mxu0
        %3208 = vmatprep.mubr.f32.mxu0 %v2949
        %3209 = vmatmul.mubr.f32.gmra.mrb[0].mxu0 %v2948
        %v3210 = vpop.f32.mrb[0].mxu0
        %v3211 = vadd.f32 0.0, %v3210
        %v3212 = vpop.f32.mrb[0].mxu0
        %3213 = vmatprep.mubr.f32.mxu0 %v2953
        %3214 = vmatmul.mubr.f32.gmra.mrb[0].mxu0 %v2952
        %v3215 = vpop.f32.mrb[0].mxu0
        %v3216 = vadd.f32 0.0, %v3215
        %v3217 = vpop.f32.mrb[0].mxu0
        %3218 = vmatprep.mubr.f32.mxu0 %v2957
        %3219 = vmatmul.mubr.f32.gmra.mrb[0].mxu0 %v2956
        %v3220 = vpop.f32.mrb[0].mxu0
        %v3221 = vadd.f32 0.0, %v3220
        %v3222 = vpop.f32.mrb[0].mxu0
        %3223 = vmatprep.mubr.f32.mxu0 %v2961
        %3224 = vmatmul.mubr.f32.gmra.mrb[0].mxu0 %v2960
        %v3225 = vpop.f32.mrb[0].mxu0
        %v3226 = vadd.f32 0.0, %v3225
        %v3227 = vpop.f32.mrb[0].mxu0
        %3228 = vdwg.mxu0
        %3229 = vmatprep.subr.mxu0 0.0
        %3230 = vmatpush1.msra.mxu0 %v3028
        %3231 = vmatprep.subr.mxu0 0.0
        %3232 = vmatpush1.msra.mxu0 %v3029
        %3233 = vmatprep.subr.mxu0 0.0
        %3234 = vmatpush1.msra.mxu0 %v3030
        %3235 = vmatprep.subr.mxu0 0.0
        %3236 = vmatpush1.msra.mxu0 %v3031
        %3237 = vmatprep.subr.mxu0 0.0
        %3238 = vmatpush1.msra.mxu0 %v3032
        %3239 = vmatprep.subr.mxu0 0.0
        %3240 = vmatpush1.msra.mxu0 %v3033
        %3241 = vmatprep.subr.mxu0 0.0
        %3242 = vmatpush1.msra.mxu0 %v3034
        %3243 = vmatprep.subr.mxu0 0.0
        %3244 = vmatpush1.msra.mxu0 %v3035
        %3245 = vmatprep.subr.mxu0 0.0
        %3246 = vmatpush1.msra.mxu0 %v3036
        %3247 = vmatprep.subr.mxu0 0.0
        %3248 = vmatpush1.msra.mxu0 %v3037
        %3249 = vmatprep.subr.mxu0 0.0
        %3250 = vmatpush1.msra.mxu0 %v3038
        %3251 = vmatprep.subr.mxu0 0.0
        %3252 = vmatpush1.msra.mxu0 %v3039
        %3253 = vmatprep.subr.mxu0 0.0
        %3254 = vmatpush1.msra.mxu0 %v3040
        %3255 = vmatprep.subr.mxu0 0.0
        %3256 = vmatpush1.msra.mxu0 %v3041
        %3257 = vmatprep.subr.mxu0 0.0
        %3258 = vmatpush1.msra.mxu0 %v3042
        %3259 = vmatprep.subr.mxu0 0.0
        %3260 = vmatpush1.msra.mxu0 %v3043
        %3261 = vmatprep.subr.mxu0 0.0
        %3262 = vmatpush1.msra.mxu0 %v3044
        %3263 = vmatprep.subr.mxu0 0.0
        %3264 = vmatpush1.msra.mxu0 %v3045
        %3265 = vmatprep.subr.mxu0 0.0
        %3266 = vmatpush1.msra.mxu0 %v3046
        %3267 = vmatprep.subr.mxu0 0.0
        %3268 = vmatpush1.msra.mxu0 %v3047
        %3269 = vmatprep.subr.mxu0 0.0
        %3270 = vmatpush1.msra.mxu0 %v3048
        %3271 = vmatprep.subr.mxu0 0.0
        %3272 = vmatpush1.msra.mxu0 %v3049
        %3273 = vmatprep.subr.mxu0 0.0
        %3274 = vmatpush1.msra.mxu0 %v3050
        %3275 = vmatprep.subr.mxu0 0.0
        %3276 = vmatpush1.msra.mxu0 %v3051
        %3277 = vmatprep.subr.mxu0 0.0
        %3278 = vmatpush1.msra.mxu0 %v3052
        %3279 = vmatprep.subr.mxu0 0.0
        %3280 = vmatpush1.msra.mxu0 %v3053
        %3281 = vmatprep.subr.mxu0 0.0
        %3282 = vmatpush1.msra.mxu0 %v3054
        %3283 = vmatprep.subr.mxu0 0.0
        %3284 = vmatpush1.msra.mxu0 %v3055
        %3285 = vmatprep.subr.mxu0 0.0
        %3286 = vmatpush1.msra.mxu0 %v3056
        %3287 = vmatprep.subr.mxu0 0.0
        %3288 = vmatpush1.msra.mxu0 %v3057
        %3289 = vmatprep.subr.mxu0 0.0
        %3290 = vmatpush1.msra.mxu0 %v3058
        %3291 = vmatprep.subr.mxu0 0.0
        %3292 = vmatpush1.msra.mxu0 %v3059
        %3293 = vmatprep.mubr.f32.mxu0 %v2935
        %3294 = vmatmul.mubr.f32.gmra.mrb[0].mxu0 %v2934
        %v3295 = vpop.f32.mrb[0].mxu0
        %v3296 = vadd.f32 %v3191, %v3295
        %v3297 = vpop.f32.mrb[0].mxu0
        %3298 = vmatprep.mubr.f32.mxu0 %v2939
        %3299 = vmatmul.mubr.f32.gmra.mrb[0].mxu0 %v2938
        %v3300 = vpop.f32.mrb[0].mxu0
        %v3301 = vadd.f32 %v3196, %v3300
        %v3302 = vpop.f32.mrb[0].mxu0
        %3303 = vmatprep.mubr.f32.mxu0 %v2943
        %3304 = vmatmul.mubr.f32.gmra.mrb[0].mxu0 %v2942
        %v3305 = vpop.f32.mrb[0].mxu0
        %v3306 = vadd.f32 %v3201, %v3305
        %v3307 = vpop.f32.mrb[0].mxu0
        %3308 = vmatprep.mubr.f32.mxu0 %v2947
        %3309 = vmatmul.mubr.f32.gmra.mrb[0].mxu0 %v2946
        %v3310 = vpop.f32.mrb[0].mxu0
        %v3311 = vadd.f32 %v3206, %v3310
        %v3312 = vpop.f32.mrb[0].mxu0
        %3313 = vmatprep.mubr.f32.mxu0 %v2951
        %3314 = vmatmul.mubr.f32.gmra.mrb[0].mxu0 %v2950
        %v3315 = vpop.f32.mrb[0].mxu0
        %v3316 = vadd.f32 %v3211, %v3315
        %v3317 = vpop.f32.mrb[0].mxu0
        %3318 = vmatprep.mubr.f32.mxu0 %v2955
        %3319 = vmatmul.mubr.f32.gmra.mrb[0].mxu0 %v2954
        %v3320 = vpop.f32.mrb[0].mxu0
        %v3321 = vadd.f32 %v3216, %v3320
        %v3322 = vpop.f32.mrb[0].mxu0
        %3323 = vmatprep.mubr.f32.mxu0 %v2959
        %3324 = vmatmul.mubr.f32.gmra.mrb[0].mxu0 %v2958
        %v3325 = vpop.f32.mrb[0].mxu0
        %v3326 = vadd.f32 %v3221, %v3325
        %v3327 = vpop.f32.mrb[0].mxu0
        %3328 = vmatprep.mubr.f32.mxu0 %v2963
        %3329 = vmatmul.mubr.f32.gmra.mrb[0].mxu0 %v2962
        %v3330 = vpop.f32.mrb[0].mxu0
        %v3331 = vadd.f32 %v3226, %v3330
        %v3332 = vpop.f32.mrb[0].mxu0
        %3333 = vdwg.mxu0
        %3334 = vmatprep.subr.mxu0 0.0
        %3335 = vmatpush1.msra.mxu0 %v2996
        %3336 = vmatprep.subr.mxu0 0.0
        %3337 = vmatpush1.msra.mxu0 %v2997
        %3338 = vmatprep.subr.mxu0 0.0
        %3339 = vmatpush1.msra.mxu0 %v2998
        %3340 = vmatprep.subr.mxu0 0.0
        %3341 = vmatpush1.msra.mxu0 %v2999
        %3342 = vmatprep.subr.mxu0 0.0
        %3343 = vmatpush1.msra.mxu0 %v3000
        %3344 = vmatprep.subr.mxu0 0.0
        %3345 = vmatpush1.msra.mxu0 %v3001
        %3346 = vmatprep.subr.mxu0 0.0
        %3347 = vmatpush1.msra.mxu0 %v3002
        %3348 = vmatprep.subr.mxu0 0.0
        %3349 = vmatpush1.msra.mxu0 %v3003
        %3350 = vmatprep.subr.mxu0 0.0
        %3351 = vmatpush1.msra.mxu0 %v3004
        %3352 = vmatprep.subr.mxu0 0.0
        %3353 = vmatpush1.msra.mxu0 %v3005
        %3354 = vmatprep.subr.mxu0 0.0
        %3355 = vmatpush1.msra.mxu0 %v3006
        %3356 = vmatprep.subr.mxu0 0.0
        %3357 = vmatpush1.msra.mxu0 %v3007
        %3358 = vmatprep.subr.mxu0 0.0
        %3359 = vmatpush1.msra.mxu0 %v3008
        %3360 = vmatprep.subr.mxu0 0.0
        %3361 = vmatpush1.msra.mxu0 %v3009
        %3362 = vmatprep.subr.mxu0 0.0
        %3363 = vmatpush1.msra.mxu0 %v3010
        %3364 = vmatprep.subr.mxu0 0.0
        %3365 = vmatpush1.msra.mxu0 %v3011
        %3366 = vmatprep.subr.mxu0 0.0
        %3367 = vmatpush1.msra.mxu0 %v3012
        %3368 = vmatprep.subr.mxu0 0.0
        %3369 = vmatpush1.msra.mxu0 %v3013
        %3370 = vmatprep.subr.mxu0 0.0
        %3371 = vmatpush1.msra.mxu0 %v3014
        %3372 = vmatprep.subr.mxu0 0.0
        %3373 = vmatpush1.msra.mxu0 %v3015
        %3374 = vmatprep.subr.mxu0 0.0
        %3375 = vmatpush1.msra.mxu0 %v3016
        %3376 = vmatprep.subr.mxu0 0.0
        %3377 = vmatpush1.msra.mxu0 %v3017
        %3378 = vmatprep.subr.mxu0 0.0
        %3379 = vmatpush1.msra.mxu0 %v3018
        %3380 = vmatprep.subr.mxu0 0.0
        %3381 = vmatpush1.msra.mxu0 %v3019
        %3382 = vmatprep.subr.mxu0 0.0
        %3383 = vmatpush1.msra.mxu0 %v3020
        %3384 = vmatprep.subr.mxu0 0.0
        %3385 = vmatpush1.msra.mxu0 %v3021
        %3386 = vmatprep.subr.mxu0 0.0
        %3387 = vmatpush1.msra.mxu0 %v3022
        %3388 = vmatprep.subr.mxu0 0.0
        %3389 = vmatpush1.msra.mxu0 %v3023
        %3390 = vmatprep.subr.mxu0 0.0
        %3391 = vmatpush1.msra.mxu0 %v3024
        %3392 = vmatprep.subr.mxu0 0.0
        %3393 = vmatpush1.msra.mxu0 %v3025
        %3394 = vmatprep.subr.mxu0 0.0
        %3395 = vmatpush1.msra.mxu0 %v3026
        %3396 = vmatprep.subr.mxu0 0.0
        %3397 = vmatpush1.msra.mxu0 %v3027
        %3398 = vmatprep.mubr.f32.mxu0 %v2901
        %3399 = vmatmul.mubr.f32.gmra.mrb[0].mxu0 %v2900
        %v3400 = vpop.f32.mrb[0].mxu0
        %v3401 = vadd.f32 %v3296, %v3400
        %v3402 = vpop.f32.mrb[0].mxu0
        %3403 = vmatprep.mubr.f32.mxu0 %v2905
        %3404 = vmatmul.mubr.f32.gmra.mrb[0].mxu0 %v2904
        %v3405 = vpop.f32.mrb[0].mxu0
        %v3406 = vadd.f32 %v3301, %v3405
        %v3407 = vpop.f32.mrb[0].mxu0
        %3408 = vmatprep.mubr.f32.mxu0 %v2909
        %3409 = vmatmul.mubr.f32.gmra.mrb[0].mxu0 %v2908
        %v3410 = vpop.f32.mrb[0].mxu0
        %v3411 = vadd.f32 %v3306, %v3410
        %v3412 = vpop.f32.mrb[0].mxu0
        %3413 = vmatprep.mubr.f32.mxu0 %v2913
        %3414 = vmatmul.mubr.f32.gmra.mrb[0].mxu0 %v2912
        %v3415 = vpop.f32.mrb[0].mxu0
        %v3416 = vadd.f32 %v3311, %v3415
        %v3417 = vpop.f32.mrb[0].mxu0
        %3418 = vmatprep.mubr.f32.mxu0 %v2917
        %3419 = vmatmul.mubr.f32.gmra.mrb[0].mxu0 %v2916
        %v3420 = vpop.f32.mrb[0].mxu0
        %v3421 = vadd.f32 %v3316, %v3420
        %v3422 = vpop.f32.mrb[0].mxu0
        %3423 = vmatprep.mubr.f32.mxu0 %v2921
        %3424 = vmatmul.mubr.f32.gmra.mrb[0].mxu0 %v2920
        %v3425 = vpop.f32.mrb[0].mxu0
        %v3426 = vadd.f32 %v3321, %v3425
        %v3427 = vpop.f32.mrb[0].mxu0
        %3428 = vmatprep.mubr.f32.mxu0 %v2925
        %3429 = vmatmul.mubr.f32.gmra.mrb[0].mxu0 %v2924
        %v3430 = vpop.f32.mrb[0].mxu0
        %v3431 = vadd.f32 %v3326, %v3430
        %v3432 = vpop.f32.mrb[0].mxu0
        %3433 = vmatprep.mubr.f32.mxu0 %v2929
        %3434 = vmatmul.mubr.f32.gmra.mrb[0].mxu0 %v2928
        %v3435 = vpop.f32.mrb[0].mxu0
        %v3436 = vadd.f32 %v3331, %v3435
        %v3437 = vpop.f32.mrb[0].mxu0
        %3438 = vdwg.mxu0
        %3439 = vmatprep.subr.mxu0 0.0
        %3440 = vmatpush1.msra.mxu0 %v3028
        %3441 = vmatprep.subr.mxu0 0.0
        %3442 = vmatpush1.msra.mxu0 %v3029
        %3443 = vmatprep.subr.mxu0 0.0
        %3444 = vmatpush1.msra.mxu0 %v3030
        %3445 = vmatprep.subr.mxu0 0.0
        %3446 = vmatpush1.msra.mxu0 %v3031
        %3447 = vmatprep.subr.mxu0 0.0
        %3448 = vmatpush1.msra.mxu0 %v3032
        %3449 = vmatprep.subr.mxu0 0.0
        %3450 = vmatpush1.msra.mxu0 %v3033
        %3451 = vmatprep.subr.mxu0 0.0
        %3452 = vmatpush1.msra.mxu0 %v3034
        %3453 = vmatprep.subr.mxu0 0.0
        %3454 = vmatpush1.msra.mxu0 %v3035
        %3455 = vmatprep.subr.mxu0 0.0
        %3456 = vmatpush1.msra.mxu0 %v3036
        %3457 = vmatprep.subr.mxu0 0.0
        %3458 = vmatpush1.msra.mxu0 %v3037
        %3459 = vmatprep.subr.mxu0 0.0
        %3460 = vmatpush1.msra.mxu0 %v3038
        %3461 = vmatprep.subr.mxu0 0.0
        %3462 = vmatpush1.msra.mxu0 %v3039
        %3463 = vmatprep.subr.mxu0 0.0
        %3464 = vmatpush1.msra.mxu0 %v3040
        %3465 = vmatprep.subr.mxu0 0.0
        %3466 = vmatpush1.msra.mxu0 %v3041
        %3467 = vmatprep.subr.mxu0 0.0
        %3468 = vmatpush1.msra.mxu0 %v3042
        %3469 = vmatprep.subr.mxu0 0.0
        %3470 = vmatpush1.msra.mxu0 %v3043
        %3471 = vmatprep.subr.mxu0 0.0
        %3472 = vmatpush1.msra.mxu0 %v3044
        %3473 = vmatprep.subr.mxu0 0.0
        %3474 = vmatpush1.msra.mxu0 %v3045
        %3475 = vmatprep.subr.mxu0 0.0
        %3476 = vmatpush1.msra.mxu0 %v3046
        %3477 = vmatprep.subr.mxu0 0.0
        %3478 = vmatpush1.msra.mxu0 %v3047
        %3479 = vmatprep.subr.mxu0 0.0
        %3480 = vmatpush1.msra.mxu0 %v3048
        %3481 = vmatprep.subr.mxu0 0.0
        %3482 = vmatpush1.msra.mxu0 %v3049
        %3483 = vmatprep.subr.mxu0 0.0
        %3484 = vmatpush1.msra.mxu0 %v3050
        %3485 = vmatprep.subr.mxu0 0.0
        %3486 = vmatpush1.msra.mxu0 %v3051
        %3487 = vmatprep.subr.mxu0 0.0
        %3488 = vmatpush1.msra.mxu0 %v3052
        %3489 = vmatprep.subr.mxu0 0.0
        %3490 = vmatpush1.msra.mxu0 %v3053
        %3491 = vmatprep.subr.mxu0 0.0
        %3492 = vmatpush1.msra.mxu0 %v3054
        %3493 = vmatprep.subr.mxu0 0.0
        %3494 = vmatpush1.msra.mxu0 %v3055
        %3495 = vmatprep.subr.mxu0 0.0
        %3496 = vmatpush1.msra.mxu0 %v3056
        %3497 = vmatprep.subr.mxu0 0.0
        %3498 = vmatpush1.msra.mxu0 %v3057
        %3499 = vmatprep.subr.mxu0 0.0
        %3500 = vmatpush1.msra.mxu0 %v3058
        %3501 = vmatprep.subr.mxu0 0.0
        %3502 = vmatpush1.msra.mxu0 %v3059
        %3503 = vmatprep.mubr.f32.mxu0 %v2903
        %3504 = vmatmul.mubr.f32.gmra.mrb[0].mxu0 %v2902
        %v3505 = vpop.f32.mrb[0].mxu0
        %v3506 = vadd.f32 %v3401, %v3505
        %v3507 = vpop.f32.mrb[0].mxu0
        %3508 = vmatprep.mubr.f32.mxu0 %v2907
        %3509 = vmatmul.mubr.f32.gmra.mrb[0].mxu0 %v2906
        %v3510 = vpop.f32.mrb[0].mxu0
        %v3511 = vadd.f32 %v3406, %v3510
        %v3512 = vpop.f32.mrb[0].mxu0
        %3513 = vmatprep.mubr.f32.mxu0 %v2911
        %3514 = vmatmul.mubr.f32.gmra.mrb[0].mxu0 %v2910
        %v3515 = vpop.f32.mrb[0].mxu0
        %v3516 = vadd.f32 %v3411, %v3515
        %v3517 = vpop.f32.mrb[0].mxu0
        %3518 = vmatprep.mubr.f32.mxu0 %v2915
        %3519 = vmatmul.mubr.f32.gmra.mrb[0].mxu0 %v2914
        %v3520 = vpop.f32.mrb[0].mxu0
        %v3521 = vadd.f32 %v3416, %v3520
        %v3522 = vpop.f32.mrb[0].mxu0
        %3523 = vmatprep.mubr.f32.mxu0 %v2919
        %3524 = vmatmul.mubr.f32.gmra.mrb[0].mxu0 %v2918
        %v3525 = vpop.f32.mrb[0].mxu0
        %v3526 = vadd.f32 %v3421, %v3525
        %v3527 = vpop.f32.mrb[0].mxu0
        %3528 = vmatprep.mubr.f32.mxu0 %v2923
        %3529 = vmatmul.mubr.f32.gmra.mrb[0].mxu0 %v2922
        %v3530 = vpop.f32.mrb[0].mxu0
        %v3531 = vadd.f32 %v3426, %v3530
        %v3532 = vpop.f32.mrb[0].mxu0
        %3533 = vmatprep.mubr.f32.mxu0 %v2927
        %3534 = vmatmul.mubr.f32.gmra.mrb[0].mxu0 %v2926
        %v3535 = vpop.f32.mrb[0].mxu0
        %v3536 = vadd.f32 %v3431, %v3535
        %v3537 = vpop.f32.mrb[0].mxu0
        %3538 = vmatprep.mubr.f32.mxu0 %v2931
        %3539 = vmatmul.mubr.f32.gmra.mrb[0].mxu0 %v2930
        %v3540 = vpop.f32.mrb[0].mxu0
        %v3541 = vadd.f32 %v3436, %v3540
        %v3542 = vpop.f32.mrb[0].mxu0
        %3543 = vdwg.mxu0
        %3544 = vmatprep.subr.mxu0 0.0
        %3545 = vmatpush1.msra.mxu0 %v3060
        %3546 = vmatprep.subr.mxu0 0.0
        %3547 = vmatpush1.msra.mxu0 %v3061
        %3548 = vmatprep.subr.mxu0 0.0
        %3549 = vmatpush1.msra.mxu0 %v3062
        %3550 = vmatprep.subr.mxu0 0.0
        %3551 = vmatpush1.msra.mxu0 %v3063
        %3552 = vmatprep.subr.mxu0 0.0
        %3553 = vmatpush1.msra.mxu0 %v3064
        %3554 = vmatprep.subr.mxu0 0.0
        %3555 = vmatpush1.msra.mxu0 %v3065
        %3556 = vmatprep.subr.mxu0 0.0
        %3557 = vmatpush1.msra.mxu0 %v3066
        %3558 = vmatprep.subr.mxu0 0.0
        %3559 = vmatpush1.msra.mxu0 %v3067
        %3560 = vmatprep.subr.mxu0 0.0
        %3561 = vmatpush1.msra.mxu0 %v3068
        %3562 = vmatprep.subr.mxu0 0.0
        %3563 = vmatpush1.msra.mxu0 %v3069
        %3564 = vmatprep.subr.mxu0 0.0
        %3565 = vmatpush1.msra.mxu0 %v3070
        %3566 = vmatprep.subr.mxu0 0.0
        %3567 = vmatpush1.msra.mxu0 %v3071
        %3568 = vmatprep.subr.mxu0 0.0
        %3569 = vmatpush1.msra.mxu0 %v3072
        %3570 = vmatprep.subr.mxu0 0.0
        %3571 = vmatpush1.msra.mxu0 %v3073
        %3572 = vmatprep.subr.mxu0 0.0
        %3573 = vmatpush1.msra.mxu0 %v3074
        %3574 = vmatprep.subr.mxu0 0.0
        %3575 = vmatpush1.msra.mxu0 %v3075
        %3576 = vmatprep.subr.mxu0 0.0
        %3577 = vmatpush1.msra.mxu0 %v3076
        %3578 = vmatprep.subr.mxu0 0.0
        %3579 = vmatpush1.msra.mxu0 %v3077
        %3580 = vmatprep.subr.mxu0 0.0
        %3581 = vmatpush1.msra.mxu0 %v3078
        %3582 = vmatprep.subr.mxu0 0.0
        %3583 = vmatpush1.msra.mxu0 %v3079
        %3584 = vmatprep.subr.mxu0 0.0
        %3585 = vmatpush1.msra.mxu0 %v3080
        %3586 = vmatprep.subr.mxu0 0.0
        %3587 = vmatpush1.msra.mxu0 %v3081
        %3588 = vmatprep.subr.mxu0 0.0
        %3589 = vmatpush1.msra.mxu0 %v3082
        %3590 = vmatprep.subr.mxu0 0.0
        %3591 = vmatpush1.msra.mxu0 %v3083
        %3592 = vmatprep.subr.mxu0 0.0
        %3593 = vmatpush1.msra.mxu0 %v3084
        %3594 = vmatprep.subr.mxu0 0.0
        %3595 = vmatpush1.msra.mxu0 %v3085
        %3596 = vmatprep.subr.mxu0 0.0
        %3597 = vmatpush1.msra.mxu0 %v3086
        %3598 = vmatprep.subr.mxu0 0.0
        %3599 = vmatpush1.msra.mxu0 %v3087
        %3600 = vmatprep.subr.mxu0 0.0
        %3601 = vmatpush1.msra.mxu0 %v3088
        %3602 = vmatprep.subr.mxu0 0.0
        %3603 = vmatpush1.msra.mxu0 %v3089
        %3604 = vmatprep.subr.mxu0 0.0
        %3605 = vmatpush1.msra.mxu0 %v3090
        %3606 = vmatprep.subr.mxu0 0.0
        %3607 = vmatpush1.msra.mxu0 %v3091
        %3608 = vmatprep.mubr.f32.mxu0 %v2901
        %3609 = vmatmul.mubr.f32.gmra.mrb[0].mxu0 %v2900
        %v3610 = vpop.f32.mrb[0].mxu0
        %v3611 = vadd.f32 0.0, %v3610
        %v3612 = vpop.f32.mrb[0].mxu0
        %3613 = vmatprep.mubr.f32.mxu0 %v2905
        %3614 = vmatmul.mubr.f32.gmra.mrb[0].mxu0 %v2904
        %v3615 = vpop.f32.mrb[0].mxu0
        %v3616 = vadd.f32 0.0, %v3615
        %v3617 = vpop.f32.mrb[0].mxu0
        %3618 = vmatprep.mubr.f32.mxu0 %v2909
        %3619 = vmatmul.mubr.f32.gmra.mrb[0].mxu0 %v2908
        %v3620 = vpop.f32.mrb[0].mxu0
        %v3621 = vadd.f32 0.0, %v3620
        %v3622 = vpop.f32.mrb[0].mxu0
        %3623 = vmatprep.mubr.f32.mxu0 %v2913
        %3624 = vmatmul.mubr.f32.gmra.mrb[0].mxu0 %v2912
        %v3625 = vpop.f32.mrb[0].mxu0
        %v3626 = vadd.f32 0.0, %v3625
        %v3627 = vpop.f32.mrb[0].mxu0
        %3628 = vmatprep.mubr.f32.mxu0 %v2917
        %3629 = vmatmul.mubr.f32.gmra.mrb[0].mxu0 %v2916
        %v3630 = vpop.f32.mrb[0].mxu0
        %v3631 = vadd.f32 0.0, %v3630
        %v3632 = vpop.f32.mrb[0].mxu0
        %3633 = vmatprep.mubr.f32.mxu0 %v2921
        %3634 = vmatmul.mubr.f32.gmra.mrb[0].mxu0 %v2920
        %v3635 = vpop.f32.mrb[0].mxu0
        %v3636 = vadd.f32 0.0, %v3635
        %v3637 = vpop.f32.mrb[0].mxu0
        %3638 = vmatprep.mubr.f32.mxu0 %v2925
        %3639 = vmatmul.mubr.f32.gmra.mrb[0].mxu0 %v2924
        %v3640 = vpop.f32.mrb[0].mxu0
        %v3641 = vadd.f32 0.0, %v3640
        %v3642 = vpop.f32.mrb[0].mxu0
        %3643 = vmatprep.mubr.f32.mxu0 %v2929
        %3644 = vmatmul.mubr.f32.gmra.mrb[0].mxu0 %v2928
        %v3645 = vpop.f32.mrb[0].mxu0
        %v3646 = vadd.f32 0.0, %v3645
        %v3647 = vpop.f32.mrb[0].mxu0
        %3648 = vdwg.mxu0
        %3649 = vmatprep.subr.mxu0 0.0
        %3650 = vmatpush1.msra.mxu0 %v3092
        %3651 = vmatprep.subr.mxu0 0.0
        %3652 = vmatpush1.msra.mxu0 %v3093
        %3653 = vmatprep.subr.mxu0 0.0
        %3654 = vmatpush1.msra.mxu0 %v3094
        %3655 = vmatprep.subr.mxu0 0.0
        %3656 = vmatpush1.msra.mxu0 %v3095
        %3657 = vmatprep.subr.mxu0 0.0
        %3658 = vmatpush1.msra.mxu0 %v3096
        %3659 = vmatprep.subr.mxu0 0.0
        %3660 = vmatpush1.msra.mxu0 %v3097
        %3661 = vmatprep.subr.mxu0 0.0
        %3662 = vmatpush1.msra.mxu0 %v3098
        %3663 = vmatprep.subr.mxu0 0.0
        %3664 = vmatpush1.msra.mxu0 %v3099
        %3665 = vmatprep.subr.mxu0 0.0
        %3666 = vmatpush1.msra.mxu0 %v3100
        %3667 = vmatprep.subr.mxu0 0.0
        %3668 = vmatpush1.msra.mxu0 %v3101
        %3669 = vmatprep.subr.mxu0 0.0
        %3670 = vmatpush1.msra.mxu0 %v3102
        %3671 = vmatprep.subr.mxu0 0.0
        %3672 = vmatpush1.msra.mxu0 %v3103
        %3673 = vmatprep.subr.mxu0 0.0
        %3674 = vmatpush1.msra.mxu0 %v3104
        %3675 = vmatprep.subr.mxu0 0.0
        %3676 = vmatpush1.msra.mxu0 %v3105
        %3677 = vmatprep.subr.mxu0 0.0
        %3678 = vmatpush1.msra.mxu0 %v3106
        %3679 = vmatprep.subr.mxu0 0.0
        %3680 = vmatpush1.msra.mxu0 %v3107
        %3681 = vmatprep.subr.mxu0 0.0
        %3682 = vmatpush1.msra.mxu0 %v3108
        %3683 = vmatprep.subr.mxu0 0.0
        %3684 = vmatpush1.msra.mxu0 %v3109
        %3685 = vmatprep.subr.mxu0 0.0
        %3686 = vmatpush1.msra.mxu0 %v3110
        %3687 = vmatprep.subr.mxu0 0.0
        %3688 = vmatpush1.msra.mxu0 %v3111
        %3689 = vmatprep.subr.mxu0 0.0
        %3690 = vmatpush1.msra.mxu0 %v3112
        %3691 = vmatprep.subr.mxu0 0.0
        %3692 = vmatpush1.msra.mxu0 %v3113
        %3693 = vmatprep.subr.mxu0 0.0
        %3694 = vmatpush1.msra.mxu0 %v3114
        %3695 = vmatprep.subr.mxu0 0.0
        %3696 = vmatpush1.msra.mxu0 %v3115
        %3697 = vmatprep.subr.mxu0 0.0
        %3698 = vmatpush1.msra.mxu0 %v3116
        %3699 = vmatprep.subr.mxu0 0.0
        %3700 = vmatpush1.msra.mxu0 %v3117
        %3701 = vmatprep.subr.mxu0 0.0
        %3702 = vmatpush1.msra.mxu0 %v3118
        %3703 = vmatprep.subr.mxu0 0.0
        %3704 = vmatpush1.msra.mxu0 %v3119
        %3705 = vmatprep.subr.mxu0 0.0
        %3706 = vmatpush1.msra.mxu0 %v3120
        %3707 = vmatprep.subr.mxu0 0.0
        %3708 = vmatpush1.msra.mxu0 %v3121
        %3709 = vmatprep.subr.mxu0 0.0
        %3710 = vmatpush1.msra.mxu0 %v3122
        %3711 = vmatprep.subr.mxu0 0.0
        %3712 = vmatpush1.msra.mxu0 %v3123
        %3713 = vmatprep.mubr.f32.mxu0 %v2903
        %3714 = vmatmul.mubr.f32.gmra.mrb[0].mxu0 %v2902
        %v3715 = vpop.f32.mrb[0].mxu0
        %v3716 = vadd.f32 %v3611, %v3715
        %v3717 = vpop.f32.mrb[0].mxu0
        %3718 = vmatprep.mubr.f32.mxu0 %v2907
        %3719 = vmatmul.mubr.f32.gmra.mrb[0].mxu0 %v2906
        %v3720 = vpop.f32.mrb[0].mxu0
        %v3721 = vadd.f32 %v3616, %v3720
        %v3722 = vpop.f32.mrb[0].mxu0
        %3723 = vmatprep.mubr.f32.mxu0 %v2911
        %3724 = vmatmul.mubr.f32.gmra.mrb[0].mxu0 %v2910
        %v3725 = vpop.f32.mrb[0].mxu0
        %v3726 = vadd.f32 %v3621, %v3725
        %v3727 = vpop.f32.mrb[0].mxu0
        %3728 = vmatprep.mubr.f32.mxu0 %v2915
        %3729 = vmatmul.mubr.f32.gmra.mrb[0].mxu0 %v2914
        %v3730 = vpop.f32.mrb[0].mxu0
        %v3731 = vadd.f32 %v3626, %v3730
        %v3732 = vpop.f32.mrb[0].mxu0
        %3733 = vmatprep.mubr.f32.mxu0 %v2919
        %3734 = vmatmul.mubr.f32.gmra.mrb[0].mxu0 %v2918
        %v3735 = vpop.f32.mrb[0].mxu0
        %v3736 = vadd.f32 %v3631, %v3735
        %v3737 = vpop.f32.mrb[0].mxu0
        %3738 = vmatprep.mubr.f32.mxu0 %v2923
        %3739 = vmatmul.mubr.f32.gmra.mrb[0].mxu0 %v2922
        %v3740 = vpop.f32.mrb[0].mxu0
        %v3741 = vadd.f32 %v3636, %v3740
        %v3742 = vpop.f32.mrb[0].mxu0
        %3743 = vmatprep.mubr.f32.mxu0 %v2927
        %3744 = vmatmul.mubr.f32.gmra.mrb[0].mxu0 %v2926
        %v3745 = vpop.f32.mrb[0].mxu0
        %v3746 = vadd.f32 %v3641, %v3745
        %v3747 = vpop.f32.mrb[0].mxu0
        %3748 = vmatprep.mubr.f32.mxu0 %v2931
        %3749 = vmatmul.mubr.f32.gmra.mrb[0].mxu0 %v2930
        %v3750 = vpop.f32.mrb[0].mxu0
        %v3751 = vadd.f32 %v3646, %v3750
        %v3752 = vpop.f32.mrb[0].mxu0
        %3753 = vdwg.mxu0
        %v3754 = vadd.f32 %v3506, %v3716
        %v3755 = vadd.f32 %v3511, %v3721
        %v3756 = vadd.f32 %v3516, %v3726
        %v3757 = vadd.f32 %v3521, %v3731
        %v3758 = vadd.f32 %v3526, %v3736
        %v3759 = vadd.f32 %v3531, %v3741
        %v3760 = vadd.f32 %v3536, %v3746
        %v3761 = vadd.f32 %v3541, %v3751
        %p3762 = scmp.eq.s32.totalorder %s22, 0
        // Predicated region
        $region60: #{encoder_forward.2} parent=54 // pred_check
          %p3763 = pneg %p3762
        $region61: #{encoder_forward.2} parent=54 // pred_check_branch
          %3765 = sbr.rel (%p3763) target = $region63
        $region62: #{encoder_forward.2} parent=54 // pred_region
          %vm3766 = vcmask 7168
          %3767 = vst.msk [vmem:[#allocation2] sm:$0xff] %vm3766, 0.0
          %3768 = vst.msk [vmem:[#allocation2 + $0x8] sm:$0xff] %vm3766, 0.0
          %3769 = vst.msk [vmem:[#allocation2 + $0x10] sm:$0xff] %vm3766, 0.0
          %3770 = vst.msk [vmem:[#allocation2 + $0x18] sm:$0xff] %vm3766, 0.0
          %3771 = vst.msk [vmem:[#allocation2 + $0x20] sm:$0xff] %vm3766, 0.0
          %3772 = vst.msk [vmem:[#allocation2 + $0x28] sm:$0xff] %vm3766, 0.0
          %3773 = vst.msk [vmem:[#allocation2 + $0x30] sm:$0xff] %vm3766, 0.0
          %3774 = vst.msk [vmem:[#allocation2 + $0x38] sm:$0xff] %vm3766, 0.0
        $region63: #{encoder_forward.2} parent=54 // pred_fallthru
          _
        %v3775 = vld [vmem:[#allocation2] sm:$0xff]
        %v3776 = vld [vmem:[#allocation2 + $0x8] sm:$0xff]
        %v3777 = vld [vmem:[#allocation2 + $0x10] sm:$0xff]
        %v3778 = vld [vmem:[#allocation2 + $0x18] sm:$0xff]
        %v3779 = vld [vmem:[#allocation2 + $0x20] sm:$0xff]
        %v3780 = vld [vmem:[#allocation2 + $0x28] sm:$0xff]
        %v3781 = vld [vmem:[#allocation2 + $0x30] sm:$0xff]
        %v3782 = vld [vmem:[#allocation2 + $0x38] sm:$0xff]
        %v3783 = vadd.f32 %v3775, %v3754
        %v3784 = vadd.f32 %v3776, %v3755
        %v3785 = vadd.f32 %v3777, %v3756
        %v3786 = vadd.f32 %v3778, %v3757
        %v3787 = vadd.f32 %v3779, %v3758
        %v3788 = vadd.f32 %v3780, %v3759
        %v3789 = vadd.f32 %v3781, %v3760
        %v3790 = vadd.f32 %v3782, %v3761
        %vm3791 = vcmask 7168
        %3792 = vst.msk [vmem:[#allocation2] sm:$0xff] %vm3791, %v3783
        %3793 = vst.msk [vmem:[#allocation2 + $0x8] sm:$0xff] %vm3791, %v3784
        %3794 = vst.msk [vmem:[#allocation2 + $0x10] sm:$0xff] %vm3791, %v3785
        %3795 = vst.msk [vmem:[#allocation2 + $0x18] sm:$0xff] %vm3791, %v3786
        %3796 = vst.msk [vmem:[#allocation2 + $0x20] sm:$0xff] %vm3791, %v3787
        %3797 = vst.msk [vmem:[#allocation2 + $0x28] sm:$0xff] %vm3791, %v3788
        %3798 = vst.msk [vmem:[#allocation2 + $0x30] sm:$0xff] %vm3791, %v3789
        %3799 = vst.msk [vmem:[#allocation2 + $0x38] sm:$0xff] %vm3791, %v3790
        %p3800 = scmp.eq.s32.totalorder %s22, 3
        // Predicated region
        $region64: #{encoder_forward.2} parent=54 // pred_check
          %p3801 = pneg %p3800
        $region65: #{encoder_forward.2} parent=54 // pred_check_branch
          %3803 = sbr.rel (%p3801) target = $region67
        $region66: #{encoder_forward.2} parent=54 // pred_region
          %v3804 = vld [vmem:[#allocation2] sm:$0xff]
          %v3805 = vld [vmem:[#allocation2 + $0x8] sm:$0xff]
          %v3806 = vld [vmem:[#allocation2 + $0x10] sm:$0xff]
          %v3807 = vld [vmem:[#allocation2 + $0x18] sm:$0xff]
          %v3808 = vld [vmem:[#allocation2 + $0x20] sm:$0xff]
          %v3809 = vld [vmem:[#allocation2 + $0x28] sm:$0xff]
          %v3810 = vld [vmem:[#allocation2 + $0x30] sm:$0xff]
          %v3811 = vld [vmem:[#allocation2 + $0x38] sm:$0xff]
          %v3812 = vld [vmem:[%s3] sm:$0xff]
          %v3813 = vld [vmem:[%s3 + $0x8] sm:$0xff]
          %v3814 = vld [vmem:[%s3 + $0x10] sm:$0xff]
          %v3815 = vld [vmem:[%s3 + $0x18] sm:$0xff]
          %v3816 = vld [vmem:[%s3 + $0x20] sm:$0xff]
          %v3817 = vld [vmem:[%s3 + $0x28] sm:$0xff]
          %v3818 = vld [vmem:[%s3 + $0x30] sm:$0xff]
          %v3819 = vld [vmem:[%s3 + $0x38] sm:$0xff]
          %v3820 = vadd.f32 %v3804, %v3812
          %v3821 = vadd.f32 %v3805, %v3813
          %v3822 = vadd.f32 %v3806, %v3814
          %v3823 = vadd.f32 %v3807, %v3815
          %v3824 = vadd.f32 %v3808, %v3816
          %v3825 = vadd.f32 %v3809, %v3817
          %v3826 = vadd.f32 %v3810, %v3818
          %v3827 = vadd.f32 %v3811, %v3819
          %v3828 = vmax.f32 %v3820, 0.0
          %v3829 = vmax.f32 %v3821, 0.0
          %v3830 = vmax.f32 %v3822, 0.0
          %v3831 = vmax.f32 %v3823, 0.0
          %v3832 = vmax.f32 %v3824, 0.0
          %v3833 = vmax.f32 %v3825, 0.0
          %v3834 = vmax.f32 %v3826, 0.0
          %v3835 = vmax.f32 %v3827, 0.0
          %3836 = vst.msk [vmem:[%s382] sm:$0xff] %vm3791, %v3828
          %3837 = vst.msk [vmem:[%s382 + $0x8] sm:$0xff] %vm3791, %v3829
          %3838 = vst.msk [vmem:[%s382 + $0x10] sm:$0xff] %vm3791, %v3830
          %3839 = vst.msk [vmem:[%s382 + $0x18] sm:$0xff] %vm3791, %v3831
          %3840 = vst.msk [vmem:[%s382 + $0x20] sm:$0xff] %vm3791, %v3832
          %3841 = vst.msk [vmem:[%s382 + $0x28] sm:$0xff] %vm3791, %v3833
          %3842 = vst.msk [vmem:[%s382 + $0x30] sm:$0xff] %vm3791, %v3834
          %3843 = vst.msk [vmem:[%s382 + $0x38] sm:$0xff] %vm3791, %v3835
        $region67: #{encoder_forward.2} parent=54 // pred_fallthru
          _
        %s3844 = smul.u32 64, %s22
        %p3845 = scmp.lt.s32.totalorder %s21, 1
        %s3846 = scalar_select %p3845, %s21, 1
        %p3847 = scmp.lt.s32.totalorder %s3844, 255
        %s3848 = scalar_select %p3847, %s3844, 255
        %s3849 = smul.addr %s3846, 256
        %s3850 = sadd.s32 %s3848, %s3849
        %s3851 = smul.addr %s3850, 8
        %s3852 = scalar_lea.vmem %s4, %s3851
        %p3853 = scmp.lt.s32.totalorder %s21, 1
        %s3854 = scalar_select %p3853, %s21, 1
        %s3855 = smul.addr %s3854, 8
        %s3856 = smul.addr %s3855, 8
        %s3857 = scalar_lea.vmem %s5, %s3856
        // Predicated region
        $region68: #{encoder_forward.2} parent=54 // pred_check
          %p3858 = pneg %p145
        $region69: #{encoder_forward.2} parent=54 // pred_check_branch
          %3860 = sbr.rel (%p3858) target = $region71
        $region70: #{encoder_forward.2} parent=54 // pred_region
          %s3861 = smul.u32 64, %s22
        $region71: #{encoder_forward.2} parent=54 // pred_fallthru
          _
        // Predicated region
        $region72: #{encoder_forward.2} parent=54 // pred_check
          %p3862 = pneg %p171
        $region73: #{encoder_forward.2} parent=54 // pred_check_branch
          %3864 = sbr.rel (%p3862) target = $region75
        $region74: #{encoder_forward.2} parent=54 // pred_region
          _
        $region75: #{encoder_forward.2} parent=54 // pred_fallthru
          _
      $region55: #{encoder_forward.2} parent=5 // pred_fallthru
        _
      %p3865 = scmp.le.s32.totalorder 2, %s12
      // Predicated region
      $region76: #{encoder_forward.2} parent=5 // pred_check
        %p3866 = pneg %p3865
      $region77: #{encoder_forward.2} parent=5 // pred_check_branch
        %3868 = sbr.rel (%p3866) target = $region79
      $region78: #{encoder_forward.2} parent=5 // pred_region
        %s3869 = ssub.s32 %s12, 2
        // Predicated region
        $region80: #{encoder_forward.2} parent=78 // pred_check
          %p3870 = pneg %p151
        $region81: #{encoder_forward.2} parent=78 // pred_check_branch
          %3872 = sbr.rel (%p3870) target = $region83
        $region82: #{encoder_forward.2} parent=78 // pred_region
          %s3873 = smul.u32 64, %s24
          %p3874 = scmp.lt.s32.totalorder %s23, 1
          %s3875 = scalar_select %p3874, %s23, 1
          %p3876 = scmp.lt.s32.totalorder %s3873, 255
          %s3877 = scalar_select %p3876, %s3873, 255
          %s3878 = smul.addr %s3875, 256
          %s3879 = sadd.s32 %s3877, %s3878
          %s3880 = smul.addr %s3879, 8
          %s3881 = scalar_lea.vmem %s4, %s3880
        $region83: #{encoder_forward.2} parent=78 // pred_fallthru
          _
        // Predicated region
        $region84: #{encoder_forward.2} parent=78 // pred_check
          %p3882 = pneg %p177
        $region85: #{encoder_forward.2} parent=78 // pred_check_branch
          %3884 = sbr.rel (%p3882) target = $region87
        $region86: #{encoder_forward.2} parent=78 // pred_region
          %p3885 = scmp.lt.s32.totalorder %s23, 1
          %s3886 = scalar_select %p3885, %s23, 1
          %s3887 = smul.addr %s3886, 8
          %s3888 = smul.addr %s3887, 8
          %s3889 = scalar_lea.vmem %s5, %s3888
        $region87: #{encoder_forward.2} parent=78 // pred_fallthru
          _
      $region79: #{encoder_forward.2} parent=5 // pred_fallthru
        _
    $region6: #{encoder_forward.2} parent=1 // loop_footer
      %s16 = sadd.s32 1, %s12
    $region7: #{encoder_forward.2} parent=1 // loop_footer_branch
      %11 = sbr.rel target = $region3
    $region8: #{encoder_forward.2} parent=1 // loop_exit
      _

// kernel: encoder_forward.3
$region0: #{encoder_forward.3}
  #allocation0 [shape = 'u32[]', space=smem, size = 0x4, offset = 0x4, fixed_abs, tag = 'smem constant byte address 0x4 - core index']
  #allocation1 [shape = 'u32[144,128]{1,0:T(1,128)}', space=vmem, size = 0x12000, scoped, tag = 'internal scratch']
  %s0 = inlined_call_operand.vmem [shape: f32[2,49,2048], index: 0, kind: input, shape index: {}]
  %s1 = inlined_call_operand.vmem [shape: f32[2048,32], index: 1, kind: input, shape index: {}]
  %s2 = inlined_call_operand.vmem [shape: f32[1,32], index: 2, kind: input, shape index: {}]
  %s3 = inlined_call_operand.vmem [shape: f32[2,49,32], index: 3, kind: output, shape index: {}]
  %s4 = sld [smem:[#allocation0]]
  $region22: #{encoder_forward.3} parent=0
    _
  %s6 = ssub.s32 1, %s4
  %s7 = scalar_select 0, %s6, %s4
  // Predicated region
  $region2: #{encoder_forward.3} parent=0 // pred_check
    _
  $region3: #{encoder_forward.3} parent=0 // pred_check_branch
    %9 = sbr.rel (0) target = $region5
  $region4: #{encoder_forward.3} parent=0 // pred_region
    _
  $region5: #{encoder_forward.3} parent=0 // pred_fallthru
    _
  // Predicated region
  $region6: #{encoder_forward.3} parent=0 // pred_check
    _
  $region7: #{encoder_forward.3} parent=0 // pred_check_branch
    %11 = sbr.rel (0) target = $region9
  $region8: #{encoder_forward.3} parent=0 // pred_region
    _
  $region9: #{encoder_forward.3} parent=0 // pred_fallthru
    _
  // Predicated region
  $region10: #{encoder_forward.3} parent=0 // pred_check
    _
  $region11: #{encoder_forward.3} parent=0 // pred_check_branch
    %13 = sbr.rel (0) target = $region13
  $region12: #{encoder_forward.3} parent=0 // pred_region
    _
  $region13: #{encoder_forward.3} parent=0 // pred_fallthru
    _
  %v14 = vld [vmem:[%s1] sm:$0xff]
  %v15 = vld [vmem:[%s1 + $0x8] sm:$0xff]
  %v16 = vld [vmem:[%s1 + $0x10] sm:$0xff]
  %v17 = vld [vmem:[%s1 + $0x18] sm:$0xff]
  %v18 = vld [vmem:[%s1 + $0x20] sm:$0xff]
  %v19 = vld [vmem:[%s1 + $0x28] sm:$0xff]
  %v20 = vld [vmem:[%s1 + $0x30] sm:$0xff]
  %v21 = vld [vmem:[%s1 + $0x38] sm:$0xff]
  %v22 = vld [vmem:[%s1 + $0x40] sm:$0xff]
  %v23 = vld [vmem:[%s1 + $0x48] sm:$0xff]
  %v24 = vld [vmem:[%s1 + $0x50] sm:$0xff]
  %v25 = vld [vmem:[%s1 + $0x58] sm:$0xff]
  %v26 = vld [vmem:[%s1 + $0x60] sm:$0xff]
  %v27 = vld [vmem:[%s1 + $0x68] sm:$0xff]
  %v28 = vld [vmem:[%s1 + $0x70] sm:$0xff]
  %v29 = vld [vmem:[%s1 + $0x78] sm:$0xff]
  %v30 = vld [vmem:[%s1 + $0x80] sm:$0xff]
  %v31 = vld [vmem:[%s1 + $0x88] sm:$0xff]
  %v32 = vld [vmem:[%s1 + $0x90] sm:$0xff]
  %v33 = vld [vmem:[%s1 + $0x98] sm:$0xff]
  %v34 = vld [vmem:[%s1 + $0xa0] sm:$0xff]
  %v35 = vld [vmem:[%s1 + $0xa8] sm:$0xff]
  %v36 = vld [vmem:[%s1 + $0xb0] sm:$0xff]
  %v37 = vld [vmem:[%s1 + $0xb8] sm:$0xff]
  %v38 = vld [vmem:[%s1 + $0xc0] sm:$0xff]
  %v39 = vld [vmem:[%s1 + $0xc8] sm:$0xff]
  %v40 = vld [vmem:[%s1 + $0xd0] sm:$0xff]
  %v41 = vld [vmem:[%s1 + $0xd8] sm:$0xff]
  %v42 = vld [vmem:[%s1 + $0xe0] sm:$0xff]
  %v43 = vld [vmem:[%s1 + $0xe8] sm:$0xff]
  %v44 = vld [vmem:[%s1 + $0xf0] sm:$0xff]
  %v45 = vld [vmem:[%s1 + $0xf8] sm:$0xff]
  %v46 = vld [vmem:[%s1 + $0x100] sm:$0xff]
  %v47 = vld [vmem:[%s1 + $0x108] sm:$0xff]
  %v48 = vld [vmem:[%s1 + $0x110] sm:$0xff]
  %v49 = vld [vmem:[%s1 + $0x118] sm:$0xff]
  %v50 = vld [vmem:[%s1 + $0x120] sm:$0xff]
  %v51 = vld [vmem:[%s1 + $0x128] sm:$0xff]
  %v52 = vld [vmem:[%s1 + $0x130] sm:$0xff]
  %v53 = vld [vmem:[%s1 + $0x138] sm:$0xff]
  %v54 = vld [vmem:[%s1 + $0x140] sm:$0xff]
  %v55 = vld [vmem:[%s1 + $0x148] sm:$0xff]
  %v56 = vld [vmem:[%s1 + $0x150] sm:$0xff]
  %v57 = vld [vmem:[%s1 + $0x158] sm:$0xff]
  %v58 = vld [vmem:[%s1 + $0x160] sm:$0xff]
  %v59 = vld [vmem:[%s1 + $0x168] sm:$0xff]
  %v60 = vld [vmem:[%s1 + $0x170] sm:$0xff]
  %v61 = vld [vmem:[%s1 + $0x178] sm:$0xff]
  %v62 = vld [vmem:[%s1 + $0x180] sm:$0xff]
  %v63 = vld [vmem:[%s1 + $0x188] sm:$0xff]
  %v64 = vld [vmem:[%s1 + $0x190] sm:$0xff]
  %v65 = vld [vmem:[%s1 + $0x198] sm:$0xff]
  %v66 = vld [vmem:[%s1 + $0x1a0] sm:$0xff]
  %v67 = vld [vmem:[%s1 + $0x1a8] sm:$0xff]
  %v68 = vld [vmem:[%s1 + $0x1b0] sm:$0xff]
  %v69 = vld [vmem:[%s1 + $0x1b8] sm:$0xff]
  %v70 = vld [vmem:[%s1 + $0x1c0] sm:$0xff]
  %v71 = vld [vmem:[%s1 + $0x1c8] sm:$0xff]
  %v72 = vld [vmem:[%s1 + $0x1d0] sm:$0xff]
  %v73 = vld [vmem:[%s1 + $0x1d8] sm:$0xff]
  %v74 = vld [vmem:[%s1 + $0x1e0] sm:$0xff]
  %v75 = vld [vmem:[%s1 + $0x1e8] sm:$0xff]
  %v76 = vld [vmem:[%s1 + $0x1f0] sm:$0xff]
  %v77 = vld [vmem:[%s1 + $0x1f8] sm:$0xff]
  %v78 = vld [vmem:[%s1 + $0x200] sm:$0xff]
  %v79 = vld [vmem:[%s1 + $0x208] sm:$0xff]
  %v80 = vld [vmem:[%s1 + $0x210] sm:$0xff]
  %v81 = vld [vmem:[%s1 + $0x218] sm:$0xff]
  %v82 = vld [vmem:[%s1 + $0x220] sm:$0xff]
  %v83 = vld [vmem:[%s1 + $0x228] sm:$0xff]
  %v84 = vld [vmem:[%s1 + $0x230] sm:$0xff]
  %v85 = vld [vmem:[%s1 + $0x238] sm:$0xff]
  %v86 = vld [vmem:[%s1 + $0x240] sm:$0xff]
  %v87 = vld [vmem:[%s1 + $0x248] sm:$0xff]
  %v88 = vld [vmem:[%s1 + $0x250] sm:$0xff]
  %v89 = vld [vmem:[%s1 + $0x258] sm:$0xff]
  %v90 = vld [vmem:[%s1 + $0x260] sm:$0xff]
  %v91 = vld [vmem:[%s1 + $0x268] sm:$0xff]
  %v92 = vld [vmem:[%s1 + $0x270] sm:$0xff]
  %v93 = vld [vmem:[%s1 + $0x278] sm:$0xff]
  %v94 = vld [vmem:[%s1 + $0x280] sm:$0xff]
  %v95 = vld [vmem:[%s1 + $0x288] sm:$0xff]
  %v96 = vld [vmem:[%s1 + $0x290] sm:$0xff]
  %v97 = vld [vmem:[%s1 + $0x298] sm:$0xff]
  %v98 = vld [vmem:[%s1 + $0x2a0] sm:$0xff]
  %v99 = vld [vmem:[%s1 + $0x2a8] sm:$0xff]
  %v100 = vld [vmem:[%s1 + $0x2b0] sm:$0xff]
  %v101 = vld [vmem:[%s1 + $0x2b8] sm:$0xff]
  %v102 = vld [vmem:[%s1 + $0x2c0] sm:$0xff]
  %v103 = vld [vmem:[%s1 + $0x2c8] sm:$0xff]
  %v104 = vld [vmem:[%s1 + $0x2d0] sm:$0xff]
  %v105 = vld [vmem:[%s1 + $0x2d8] sm:$0xff]
  %v106 = vld [vmem:[%s1 + $0x2e0] sm:$0xff]
  %v107 = vld [vmem:[%s1 + $0x2e8] sm:$0xff]
  %v108 = vld [vmem:[%s1 + $0x2f0] sm:$0xff]
  %v109 = vld [vmem:[%s1 + $0x2f8] sm:$0xff]
  %v110 = vld [vmem:[%s1 + $0x300] sm:$0xff]
  %v111 = vld [vmem:[%s1 + $0x308] sm:$0xff]
  %v112 = vld [vmem:[%s1 + $0x310] sm:$0xff]
  %v113 = vld [vmem:[%s1 + $0x318] sm:$0xff]
  %v114 = vld [vmem:[%s1 + $0x320] sm:$0xff]
  %v115 = vld [vmem:[%s1 + $0x328] sm:$0xff]
  %v116 = vld [vmem:[%s1 + $0x330] sm:$0xff]
  %v117 = vld [vmem:[%s1 + $0x338] sm:$0xff]
  %v118 = vld [vmem:[%s1 + $0x340] sm:$0xff]
  %v119 = vld [vmem:[%s1 + $0x348] sm:$0xff]
  %v120 = vld [vmem:[%s1 + $0x350] sm:$0xff]
  %v121 = vld [vmem:[%s1 + $0x358] sm:$0xff]
  %v122 = vld [vmem:[%s1 + $0x360] sm:$0xff]
  %v123 = vld [vmem:[%s1 + $0x368] sm:$0xff]
  %v124 = vld [vmem:[%s1 + $0x370] sm:$0xff]
  %v125 = vld [vmem:[%s1 + $0x378] sm:$0xff]
  %v126 = vld [vmem:[%s1 + $0x380] sm:$0xff]
  %v127 = vld [vmem:[%s1 + $0x388] sm:$0xff]
  %v128 = vld [vmem:[%s1 + $0x390] sm:$0xff]
  %v129 = vld [vmem:[%s1 + $0x398] sm:$0xff]
  %v130 = vld [vmem:[%s1 + $0x3a0] sm:$0xff]
  %v131 = vld [vmem:[%s1 + $0x3a8] sm:$0xff]
  %v132 = vld [vmem:[%s1 + $0x3b0] sm:$0xff]
  %v133 = vld [vmem:[%s1 + $0x3b8] sm:$0xff]
  %v134 = vld [vmem:[%s1 + $0x3c0] sm:$0xff]
  %v135 = vld [vmem:[%s1 + $0x3c8] sm:$0xff]
  %v136 = vld [vmem:[%s1 + $0x3d0] sm:$0xff]
  %v137 = vld [vmem:[%s1 + $0x3d8] sm:$0xff]
  %v138 = vld [vmem:[%s1 + $0x3e0] sm:$0xff]
  %v139 = vld [vmem:[%s1 + $0x3e8] sm:$0xff]
  %v140 = vld [vmem:[%s1 + $0x3f0] sm:$0xff]
  %v141 = vld [vmem:[%s1 + $0x3f8] sm:$0xff]
  %v142 = vld [vmem:[%s1 + $0x400] sm:$0xff]
  %v143 = vld [vmem:[%s1 + $0x408] sm:$0xff]
  %v144 = vld [vmem:[%s1 + $0x410] sm:$0xff]
  %v145 = vld [vmem:[%s1 + $0x418] sm:$0xff]
  %v146 = vld [vmem:[%s1 + $0x420] sm:$0xff]
  %v147 = vld [vmem:[%s1 + $0x428] sm:$0xff]
  %v148 = vld [vmem:[%s1 + $0x430] sm:$0xff]
  %v149 = vld [vmem:[%s1 + $0x438] sm:$0xff]
  %v150 = vld [vmem:[%s1 + $0x440] sm:$0xff]
  %v151 = vld [vmem:[%s1 + $0x448] sm:$0xff]
  %v152 = vld [vmem:[%s1 + $0x450] sm:$0xff]
  %v153 = vld [vmem:[%s1 + $0x458] sm:$0xff]
  %v154 = vld [vmem:[%s1 + $0x460] sm:$0xff]
  %v155 = vld [vmem:[%s1 + $0x468] sm:$0xff]
  %v156 = vld [vmem:[%s1 + $0x470] sm:$0xff]
  %v157 = vld [vmem:[%s1 + $0x478] sm:$0xff]
  %v158 = vld [vmem:[%s1 + $0x480] sm:$0xff]
  %v159 = vld [vmem:[%s1 + $0x488] sm:$0xff]
  %v160 = vld [vmem:[%s1 + $0x490] sm:$0xff]
  %v161 = vld [vmem:[%s1 + $0x498] sm:$0xff]
  %v162 = vld [vmem:[%s1 + $0x4a0] sm:$0xff]
  %v163 = vld [vmem:[%s1 + $0x4a8] sm:$0xff]
  %v164 = vld [vmem:[%s1 + $0x4b0] sm:$0xff]
  %v165 = vld [vmem:[%s1 + $0x4b8] sm:$0xff]
  %v166 = vld [vmem:[%s1 + $0x4c0] sm:$0xff]
  %v167 = vld [vmem:[%s1 + $0x4c8] sm:$0xff]
  %v168 = vld [vmem:[%s1 + $0x4d0] sm:$0xff]
  %v169 = vld [vmem:[%s1 + $0x4d8] sm:$0xff]
  %v170 = vld [vmem:[%s1 + $0x4e0] sm:$0xff]
  %v171 = vld [vmem:[%s1 + $0x4e8] sm:$0xff]
  %v172 = vld [vmem:[%s1 + $0x4f0] sm:$0xff]
  %v173 = vld [vmem:[%s1 + $0x4f8] sm:$0xff]
  %v174 = vld [vmem:[%s1 + $0x500] sm:$0xff]
  %v175 = vld [vmem:[%s1 + $0x508] sm:$0xff]
  %v176 = vld [vmem:[%s1 + $0x510] sm:$0xff]
  %v177 = vld [vmem:[%s1 + $0x518] sm:$0xff]
  %v178 = vld [vmem:[%s1 + $0x520] sm:$0xff]
  %v179 = vld [vmem:[%s1 + $0x528] sm:$0xff]
  %v180 = vld [vmem:[%s1 + $0x530] sm:$0xff]
  %v181 = vld [vmem:[%s1 + $0x538] sm:$0xff]
  %v182 = vld [vmem:[%s1 + $0x540] sm:$0xff]
  %v183 = vld [vmem:[%s1 + $0x548] sm:$0xff]
  %v184 = vld [vmem:[%s1 + $0x550] sm:$0xff]
  %v185 = vld [vmem:[%s1 + $0x558] sm:$0xff]
  %v186 = vld [vmem:[%s1 + $0x560] sm:$0xff]
  %v187 = vld [vmem:[%s1 + $0x568] sm:$0xff]
  %v188 = vld [vmem:[%s1 + $0x570] sm:$0xff]
  %v189 = vld [vmem:[%s1 + $0x578] sm:$0xff]
  %v190 = vld [vmem:[%s1 + $0x580] sm:$0xff]
  %v191 = vld [vmem:[%s1 + $0x588] sm:$0xff]
  %v192 = vld [vmem:[%s1 + $0x590] sm:$0xff]
  %v193 = vld [vmem:[%s1 + $0x598] sm:$0xff]
  %v194 = vld [vmem:[%s1 + $0x5a0] sm:$0xff]
  %v195 = vld [vmem:[%s1 + $0x5a8] sm:$0xff]
  %v196 = vld [vmem:[%s1 + $0x5b0] sm:$0xff]
  %v197 = vld [vmem:[%s1 + $0x5b8] sm:$0xff]
  %v198 = vld [vmem:[%s1 + $0x5c0] sm:$0xff]
  %v199 = vld [vmem:[%s1 + $0x5c8] sm:$0xff]
  %v200 = vld [vmem:[%s1 + $0x5d0] sm:$0xff]
  %v201 = vld [vmem:[%s1 + $0x5d8] sm:$0xff]
  %v202 = vld [vmem:[%s1 + $0x5e0] sm:$0xff]
  %v203 = vld [vmem:[%s1 + $0x5e8] sm:$0xff]
  %v204 = vld [vmem:[%s1 + $0x5f0] sm:$0xff]
  %v205 = vld [vmem:[%s1 + $0x5f8] sm:$0xff]
  %v206 = vld [vmem:[%s1 + $0x600] sm:$0xff]
  %v207 = vld [vmem:[%s1 + $0x608] sm:$0xff]
  %v208 = vld [vmem:[%s1 + $0x610] sm:$0xff]
  %v209 = vld [vmem:[%s1 + $0x618] sm:$0xff]
  %v210 = vld [vmem:[%s1 + $0x620] sm:$0xff]
  %v211 = vld [vmem:[%s1 + $0x628] sm:$0xff]
  %v212 = vld [vmem:[%s1 + $0x630] sm:$0xff]
  %v213 = vld [vmem:[%s1 + $0x638] sm:$0xff]
  %v214 = vld [vmem:[%s1 + $0x640] sm:$0xff]
  %v215 = vld [vmem:[%s1 + $0x648] sm:$0xff]
  %v216 = vld [vmem:[%s1 + $0x650] sm:$0xff]
  %v217 = vld [vmem:[%s1 + $0x658] sm:$0xff]
  %v218 = vld [vmem:[%s1 + $0x660] sm:$0xff]
  %v219 = vld [vmem:[%s1 + $0x668] sm:$0xff]
  %v220 = vld [vmem:[%s1 + $0x670] sm:$0xff]
  %v221 = vld [vmem:[%s1 + $0x678] sm:$0xff]
  %v222 = vld [vmem:[%s1 + $0x680] sm:$0xff]
  %v223 = vld [vmem:[%s1 + $0x688] sm:$0xff]
  %v224 = vld [vmem:[%s1 + $0x690] sm:$0xff]
  %v225 = vld [vmem:[%s1 + $0x698] sm:$0xff]
  %v226 = vld [vmem:[%s1 + $0x6a0] sm:$0xff]
  %v227 = vld [vmem:[%s1 + $0x6a8] sm:$0xff]
  %v228 = vld [vmem:[%s1 + $0x6b0] sm:$0xff]
  %v229 = vld [vmem:[%s1 + $0x6b8] sm:$0xff]
  %v230 = vld [vmem:[%s1 + $0x6c0] sm:$0xff]
  %v231 = vld [vmem:[%s1 + $0x6c8] sm:$0xff]
  %v232 = vld [vmem:[%s1 + $0x6d0] sm:$0xff]
  %v233 = vld [vmem:[%s1 + $0x6d8] sm:$0xff]
  %v234 = vld [vmem:[%s1 + $0x6e0] sm:$0xff]
  %v235 = vld [vmem:[%s1 + $0x6e8] sm:$0xff]
  %v236 = vld [vmem:[%s1 + $0x6f0] sm:$0xff]
  %v237 = vld [vmem:[%s1 + $0x6f8] sm:$0xff]
  %v238 = vld [vmem:[%s1 + $0x700] sm:$0xff]
  %v239 = vld [vmem:[%s1 + $0x708] sm:$0xff]
  %v240 = vld [vmem:[%s1 + $0x710] sm:$0xff]
  %v241 = vld [vmem:[%s1 + $0x718] sm:$0xff]
  %v242 = vld [vmem:[%s1 + $0x720] sm:$0xff]
  %v243 = vld [vmem:[%s1 + $0x728] sm:$0xff]
  %v244 = vld [vmem:[%s1 + $0x730] sm:$0xff]
  %v245 = vld [vmem:[%s1 + $0x738] sm:$0xff]
  %v246 = vld [vmem:[%s1 + $0x740] sm:$0xff]
  %v247 = vld [vmem:[%s1 + $0x748] sm:$0xff]
  %v248 = vld [vmem:[%s1 + $0x750] sm:$0xff]
  %v249 = vld [vmem:[%s1 + $0x758] sm:$0xff]
  %v250 = vld [vmem:[%s1 + $0x760] sm:$0xff]
  %v251 = vld [vmem:[%s1 + $0x768] sm:$0xff]
  %v252 = vld [vmem:[%s1 + $0x770] sm:$0xff]
  %v253 = vld [vmem:[%s1 + $0x778] sm:$0xff]
  %v254 = vld [vmem:[%s1 + $0x780] sm:$0xff]
  %v255 = vld [vmem:[%s1 + $0x788] sm:$0xff]
  %v256 = vld [vmem:[%s1 + $0x790] sm:$0xff]
  %v257 = vld [vmem:[%s1 + $0x798] sm:$0xff]
  %v258 = vld [vmem:[%s1 + $0x7a0] sm:$0xff]
  %v259 = vld [vmem:[%s1 + $0x7a8] sm:$0xff]
  %v260 = vld [vmem:[%s1 + $0x7b0] sm:$0xff]
  %v261 = vld [vmem:[%s1 + $0x7b8] sm:$0xff]
  %v262 = vld [vmem:[%s1 + $0x7c0] sm:$0xff]
  %v263 = vld [vmem:[%s1 + $0x7c8] sm:$0xff]
  %v264 = vld [vmem:[%s1 + $0x7d0] sm:$0xff]
  %v265 = vld [vmem:[%s1 + $0x7d8] sm:$0xff]
  %v266 = vld [vmem:[%s1 + $0x7e0] sm:$0xff]
  %v267 = vld [vmem:[%s1 + $0x7e8] sm:$0xff]
  %v268 = vld [vmem:[%s1 + $0x7f0] sm:$0xff]
  %v269 = vld [vmem:[%s1 + $0x7f8] sm:$0xff]
  %v270 = vld [vmem:[%s2] sm:$0x1]
  %v271 = vld [vmem:[%s0] sm:$0xff]
  %v272 = vld [vmem:[%s0 + $0x8] sm:$0xff]
  %v273 = vld [vmem:[%s0 + $0x10] sm:$0xff]
  %v274 = vld [vmem:[%s0 + $0x18] sm:$0xff]
  %v275 = vld [vmem:[%s0 + $0x20] sm:$0xff]
  %v276 = vld [vmem:[%s0 + $0x28] sm:$0xff]
  %v277 = vld [vmem:[%s0 + $0x30] sm:$0xff]
  %v278 = vld [vmem:[%s0 + $0x38] sm:$0xff]
  %v279 = vld [vmem:[%s0 + $0x40] sm:$0xff]
  %v280 = vld [vmem:[%s0 + $0x48] sm:$0xff]
  %v281 = vld [vmem:[%s0 + $0x50] sm:$0xff]
  %v282 = vld [vmem:[%s0 + $0x58] sm:$0xff]
  %v283 = vld [vmem:[%s0 + $0x60] sm:$0xff]
  %v284 = vld [vmem:[%s0 + $0x68] sm:$0xff]
  %v285 = vld [vmem:[%s0 + $0x70] sm:$0xff]
  %v286 = vld [vmem:[%s0 + $0x78] sm:$0xff]
  %v287 = vld [vmem:[%s0 + $0x80] sm:$0xff]
  %v288 = vld [vmem:[%s0 + $0x88] sm:$0xff]
  %v289 = vld [vmem:[%s0 + $0x90] sm:$0xff]
  %v290 = vld [vmem:[%s0 + $0x98] sm:$0xff]
  %v291 = vld [vmem:[%s0 + $0xa0] sm:$0xff]
  %v292 = vld [vmem:[%s0 + $0xa8] sm:$0xff]
  %v293 = vld [vmem:[%s0 + $0xb0] sm:$0xff]
  %v294 = vld [vmem:[%s0 + $0xb8] sm:$0xff]
  %v295 = vld [vmem:[%s0 + $0xc0] sm:$0xff]
  %v296 = vld [vmem:[%s0 + $0xc8] sm:$0xff]
  %v297 = vld [vmem:[%s0 + $0xd0] sm:$0xff]
  %v298 = vld [vmem:[%s0 + $0xd8] sm:$0xff]
  %v299 = vld [vmem:[%s0 + $0xe0] sm:$0xff]
  %v300 = vld [vmem:[%s0 + $0xe8] sm:$0xff]
  %v301 = vld [vmem:[%s0 + $0xf0] sm:$0xff]
  %v302 = vld [vmem:[%s0 + $0xf8] sm:$0xff]
  %v303 = vld [vmem:[%s0 + $0x100] sm:$0xff]
  %v304 = vld [vmem:[%s0 + $0x108] sm:$0xff]
  %v305 = vld [vmem:[%s0 + $0x110] sm:$0xff]
  %v306 = vld [vmem:[%s0 + $0x118] sm:$0xff]
  %v307 = vld [vmem:[%s0 + $0x120] sm:$0xff]
  %v308 = vld [vmem:[%s0 + $0x128] sm:$0xff]
  %v309 = vld [vmem:[%s0 + $0x130] sm:$0xff]
  %v310 = vld [vmem:[%s0 + $0x138] sm:$0xff]
  %v311 = vld [vmem:[%s0 + $0x140] sm:$0xff]
  %v312 = vld [vmem:[%s0 + $0x148] sm:$0xff]
  %v313 = vld [vmem:[%s0 + $0x150] sm:$0xff]
  %v314 = vld [vmem:[%s0 + $0x158] sm:$0xff]
  %v315 = vld [vmem:[%s0 + $0x160] sm:$0xff]
  %v316 = vld [vmem:[%s0 + $0x168] sm:$0xff]
  %v317 = vld [vmem:[%s0 + $0x170] sm:$0xff]
  %v318 = vld [vmem:[%s0 + $0x178] sm:$0xff]
  %v319 = vld [vmem:[%s0 + $0x180] sm:$0xff]
  %v320 = vld [vmem:[%s0 + $0x188] sm:$0xff]
  %v321 = vld [vmem:[%s0 + $0x190] sm:$0xff]
  %v322 = vld [vmem:[%s0 + $0x198] sm:$0xff]
  %v323 = vld [vmem:[%s0 + $0x1a0] sm:$0xff]
  %v324 = vld [vmem:[%s0 + $0x1a8] sm:$0xff]
  %v325 = vld [vmem:[%s0 + $0x1b0] sm:$0xff]
  %v326 = vld [vmem:[%s0 + $0x1b8] sm:$0xff]
  %v327 = vld [vmem:[%s0 + $0x1c0] sm:$0xff]
  %v328 = vld [vmem:[%s0 + $0x1c8] sm:$0xff]
  %v329 = vld [vmem:[%s0 + $0x1d0] sm:$0xff]
  %v330 = vld [vmem:[%s0 + $0x1d8] sm:$0xff]
  %v331 = vld [vmem:[%s0 + $0x1e0] sm:$0xff]
  %v332 = vld [vmem:[%s0 + $0x1e8] sm:$0xff]
  %v333 = vld [vmem:[%s0 + $0x1f0] sm:$0xff]
  %v334 = vld [vmem:[%s0 + $0x1f8] sm:$0xff]
  %v335 = vld [vmem:[%s0 + $0x200] sm:$0xff]
  %v336 = vld [vmem:[%s0 + $0x208] sm:$0xff]
  %v337 = vld [vmem:[%s0 + $0x210] sm:$0xff]
  %v338 = vld [vmem:[%s0 + $0x218] sm:$0xff]
  %v339 = vld [vmem:[%s0 + $0x220] sm:$0xff]
  %v340 = vld [vmem:[%s0 + $0x228] sm:$0xff]
  %v341 = vld [vmem:[%s0 + $0x230] sm:$0xff]
  %v342 = vld [vmem:[%s0 + $0x238] sm:$0xff]
  %v343 = vld [vmem:[%s0 + $0x240] sm:$0xff]
  %v344 = vld [vmem:[%s0 + $0x248] sm:$0xff]
  %v345 = vld [vmem:[%s0 + $0x250] sm:$0xff]
  %v346 = vld [vmem:[%s0 + $0x258] sm:$0xff]
  %v347 = vld [vmem:[%s0 + $0x260] sm:$0xff]
  %v348 = vld [vmem:[%s0 + $0x268] sm:$0xff]
  %v349 = vld [vmem:[%s0 + $0x270] sm:$0xff]
  %v350 = vld [vmem:[%s0 + $0x278] sm:$0xff]
  %v351 = vld [vmem:[%s0 + $0x280] sm:$0xff]
  %v352 = vld [vmem:[%s0 + $0x288] sm:$0xff]
  %v353 = vld [vmem:[%s0 + $0x290] sm:$0xff]
  %v354 = vld [vmem:[%s0 + $0x298] sm:$0xff]
  %v355 = vld [vmem:[%s0 + $0x2a0] sm:$0xff]
  %v356 = vld [vmem:[%s0 + $0x2a8] sm:$0xff]
  %v357 = vld [vmem:[%s0 + $0x2b0] sm:$0xff]
  %v358 = vld [vmem:[%s0 + $0x2b8] sm:$0xff]
  %v359 = vld [vmem:[%s0 + $0x2c0] sm:$0xff]
  %v360 = vld [vmem:[%s0 + $0x2c8] sm:$0xff]
  %v361 = vld [vmem:[%s0 + $0x2d0] sm:$0xff]
  %v362 = vld [vmem:[%s0 + $0x2d8] sm:$0xff]
  %v363 = vld [vmem:[%s0 + $0x2e0] sm:$0xff]
  %v364 = vld [vmem:[%s0 + $0x2e8] sm:$0xff]
  %v365 = vld [vmem:[%s0 + $0x2f0] sm:$0xff]
  %v366 = vld [vmem:[%s0 + $0x2f8] sm:$0xff]
  %v367 = vld [vmem:[%s0 + $0x300] sm:$0x1]
  %v368 = vld [vmem:[%s0 + $0x308] sm:$0x1]
  %v369 = vld [vmem:[%s0 + $0x310] sm:$0x1]
  %v370 = vld [vmem:[%s0 + $0x318] sm:$0x1]
  %v371 = vld [vmem:[%s0 + $0x320] sm:$0x1]
  %v372 = vld [vmem:[%s0 + $0x328] sm:$0x1]
  %v373 = vld [vmem:[%s0 + $0x330] sm:$0x1]
  %v374 = vld [vmem:[%s0 + $0x338] sm:$0x1]
  %v375 = vld [vmem:[%s0 + $0x340] sm:$0x1]
  %v376 = vld [vmem:[%s0 + $0x348] sm:$0x1]
  %v377 = vld [vmem:[%s0 + $0x350] sm:$0x1]
  %v378 = vld [vmem:[%s0 + $0x358] sm:$0x1]
  %v379 = vld [vmem:[%s0 + $0x360] sm:$0x1]
  %v380 = vld [vmem:[%s0 + $0x368] sm:$0x1]
  %v381 = vld [vmem:[%s0 + $0x370] sm:$0x1]
  %v382 = vld [vmem:[%s0 + $0x378] sm:$0x1]
  %v383 = vpack.c.bf16 %v287, %v271
  %v384 = vpack.c.bf16 %v288, %v272
  %v385 = vpack.c.bf16 %v289, %v273
  %v386 = vpack.c.bf16 %v290, %v274
  %v387 = vpack.c.bf16 %v291, %v275
  %v388 = vpack.c.bf16 %v292, %v276
  %v389 = vpack.c.bf16 %v293, %v277
  %v390 = vpack.c.bf16 %v294, %v278
  %v391 = vpack.c.bf16 %v295, %v279
  %v392 = vpack.c.bf16 %v296, %v280
  %v393 = vpack.c.bf16 %v297, %v281
  %v394 = vpack.c.bf16 %v298, %v282
  %v395 = vpack.c.bf16 %v299, %v283
  %v396 = vpack.c.bf16 %v300, %v284
  %v397 = vpack.c.bf16 %v301, %v285
  %v398 = vpack.c.bf16 %v302, %v286
  %v399 = vpack.c.bf16 %v319, %v303
  %v400 = vpack.c.bf16 %v320, %v304
  %v401 = vpack.c.bf16 %v321, %v305
  %v402 = vpack.c.bf16 %v322, %v306
  %v403 = vpack.c.bf16 %v323, %v307
  %v404 = vpack.c.bf16 %v324, %v308
  %v405 = vpack.c.bf16 %v325, %v309
  %v406 = vpack.c.bf16 %v326, %v310
  %v407 = vpack.c.bf16 %v327, %v311
  %v408 = vpack.c.bf16 %v328, %v312
  %v409 = vpack.c.bf16 %v329, %v313
  %v410 = vpack.c.bf16 %v330, %v314
  %v411 = vpack.c.bf16 %v331, %v315
  %v412 = vpack.c.bf16 %v332, %v316
  %v413 = vpack.c.bf16 %v333, %v317
  %v414 = vpack.c.bf16 %v334, %v318
  %v415 = vpack.c.bf16 %v351, %v335
  %v416 = vpack.c.bf16 %v352, %v336
  %v417 = vpack.c.bf16 %v353, %v337
  %v418 = vpack.c.bf16 %v354, %v338
  %v419 = vpack.c.bf16 %v355, %v339
  %v420 = vpack.c.bf16 %v356, %v340
  %v421 = vpack.c.bf16 %v357, %v341
  %v422 = vpack.c.bf16 %v358, %v342
  %v423 = vpack.c.bf16 %v359, %v343
  %v424 = vpack.c.bf16 %v360, %v344
  %v425 = vpack.c.bf16 %v361, %v345
  %v426 = vpack.c.bf16 %v362, %v346
  %v427 = vpack.c.bf16 %v363, %v347
  %v428 = vpack.c.bf16 %v364, %v348
  %v429 = vpack.c.bf16 %v365, %v349
  %v430 = vpack.c.bf16 %v366, %v350
  %v431 = vpack.c.bf16 %v367, %v367
  %v432 = vpack.c.bf16 %v368, %v368
  %v433 = vpack.c.bf16 %v369, %v369
  %v434 = vpack.c.bf16 %v370, %v370
  %v435 = vpack.c.bf16 %v371, %v371
  %v436 = vpack.c.bf16 %v372, %v372
  %v437 = vpack.c.bf16 %v373, %v373
  %v438 = vpack.c.bf16 %v374, %v374
  %v439 = vpack.c.bf16 %v375, %v375
  %v440 = vpack.c.bf16 %v376, %v376
  %v441 = vpack.c.bf16 %v377, %v377
  %v442 = vpack.c.bf16 %v378, %v378
  %v443 = vpack.c.bf16 %v379, %v379
  %v444 = vpack.c.bf16 %v380, %v380
  %v445 = vpack.c.bf16 %v381, %v381
  %v446 = vpack.c.bf16 %v382, %v382
  %v447 = vunpack.c.l.bf16 %v383
  %v448 = vunpack.c.l.bf16 %v384
  %v449 = vunpack.c.l.bf16 %v385
  %v450 = vunpack.c.l.bf16 %v386
  %v451 = vunpack.c.l.bf16 %v387
  %v452 = vunpack.c.l.bf16 %v388
  %v453 = vunpack.c.l.bf16 %v389
  %v454 = vunpack.c.l.bf16 %v390
  %v455 = vunpack.c.l.bf16 %v391
  %v456 = vunpack.c.l.bf16 %v392
  %v457 = vunpack.c.l.bf16 %v393
  %v458 = vunpack.c.l.bf16 %v394
  %v459 = vunpack.c.l.bf16 %v395
  %v460 = vunpack.c.l.bf16 %v396
  %v461 = vunpack.c.l.bf16 %v397
  %v462 = vunpack.c.l.bf16 %v398
  %v463 = vunpack.c.h.bf16 %v383
  %v464 = vunpack.c.h.bf16 %v384
  %v465 = vunpack.c.h.bf16 %v385
  %v466 = vunpack.c.h.bf16 %v386
  %v467 = vunpack.c.h.bf16 %v387
  %v468 = vunpack.c.h.bf16 %v388
  %v469 = vunpack.c.h.bf16 %v389
  %v470 = vunpack.c.h.bf16 %v390
  %v471 = vunpack.c.h.bf16 %v391
  %v472 = vunpack.c.h.bf16 %v392
  %v473 = vunpack.c.h.bf16 %v393
  %v474 = vunpack.c.h.bf16 %v394
  %v475 = vunpack.c.h.bf16 %v395
  %v476 = vunpack.c.h.bf16 %v396
  %v477 = vunpack.c.h.bf16 %v397
  %v478 = vunpack.c.h.bf16 %v398
  %v479 = vunpack.c.l.bf16 %v399
  %v480 = vunpack.c.l.bf16 %v400
  %v481 = vunpack.c.l.bf16 %v401
  %v482 = vunpack.c.l.bf16 %v402
  %v483 = vunpack.c.l.bf16 %v403
  %v484 = vunpack.c.l.bf16 %v404
  %v485 = vunpack.c.l.bf16 %v405
  %v486 = vunpack.c.l.bf16 %v406
  %v487 = vunpack.c.l.bf16 %v407
  %v488 = vunpack.c.l.bf16 %v408
  %v489 = vunpack.c.l.bf16 %v409
  %v490 = vunpack.c.l.bf16 %v410
  %v491 = vunpack.c.l.bf16 %v411
  %v492 = vunpack.c.l.bf16 %v412
  %v493 = vunpack.c.l.bf16 %v413
  %v494 = vunpack.c.l.bf16 %v414
  %v495 = vunpack.c.h.bf16 %v399
  %v496 = vunpack.c.h.bf16 %v400
  %v497 = vunpack.c.h.bf16 %v401
  %v498 = vunpack.c.h.bf16 %v402
  %v499 = vunpack.c.h.bf16 %v403
  %v500 = vunpack.c.h.bf16 %v404
  %v501 = vunpack.c.h.bf16 %v405
  %v502 = vunpack.c.h.bf16 %v406
  %v503 = vunpack.c.h.bf16 %v407
  %v504 = vunpack.c.h.bf16 %v408
  %v505 = vunpack.c.h.bf16 %v409
  %v506 = vunpack.c.h.bf16 %v410
  %v507 = vunpack.c.h.bf16 %v411
  %v508 = vunpack.c.h.bf16 %v412
  %v509 = vunpack.c.h.bf16 %v413
  %v510 = vunpack.c.h.bf16 %v414
  %v511 = vunpack.c.l.bf16 %v415
  %v512 = vunpack.c.l.bf16 %v416
  %v513 = vunpack.c.l.bf16 %v417
  %v514 = vunpack.c.l.bf16 %v418
  %v515 = vunpack.c.l.bf16 %v419
  %v516 = vunpack.c.l.bf16 %v420
  %v517 = vunpack.c.l.bf16 %v421
  %v518 = vunpack.c.l.bf16 %v422
  %v519 = vunpack.c.l.bf16 %v423
  %v520 = vunpack.c.l.bf16 %v424
  %v521 = vunpack.c.l.bf16 %v425
  %v522 = vunpack.c.l.bf16 %v426
  %v523 = vunpack.c.l.bf16 %v427
  %v524 = vunpack.c.l.bf16 %v428
  %v525 = vunpack.c.l.bf16 %v429
  %v526 = vunpack.c.l.bf16 %v430
  %v527 = vunpack.c.h.bf16 %v415
  %v528 = vunpack.c.h.bf16 %v416
  %v529 = vunpack.c.h.bf16 %v417
  %v530 = vunpack.c.h.bf16 %v418
  %v531 = vunpack.c.h.bf16 %v419
  %v532 = vunpack.c.h.bf16 %v420
  %v533 = vunpack.c.h.bf16 %v421
  %v534 = vunpack.c.h.bf16 %v422
  %v535 = vunpack.c.h.bf16 %v423
  %v536 = vunpack.c.h.bf16 %v424
  %v537 = vunpack.c.h.bf16 %v425
  %v538 = vunpack.c.h.bf16 %v426
  %v539 = vunpack.c.h.bf16 %v427
  %v540 = vunpack.c.h.bf16 %v428
  %v541 = vunpack.c.h.bf16 %v429
  %v542 = vunpack.c.h.bf16 %v430
  %v543 = vunpack.c.l.bf16 %v431
  %v544 = vunpack.c.l.bf16 %v432
  %v545 = vunpack.c.l.bf16 %v433
  %v546 = vunpack.c.l.bf16 %v434
  %v547 = vunpack.c.l.bf16 %v435
  %v548 = vunpack.c.l.bf16 %v436
  %v549 = vunpack.c.l.bf16 %v437
  %v550 = vunpack.c.l.bf16 %v438
  %v551 = vunpack.c.l.bf16 %v439
  %v552 = vunpack.c.l.bf16 %v440
  %v553 = vunpack.c.l.bf16 %v441
  %v554 = vunpack.c.l.bf16 %v442
  %v555 = vunpack.c.l.bf16 %v443
  %v556 = vunpack.c.l.bf16 %v444
  %v557 = vunpack.c.l.bf16 %v445
  %v558 = vunpack.c.l.bf16 %v446
  %v559 = vsub.f32 %v271, %v447
  %v560 = vsub.f32 %v272, %v448
  %v561 = vsub.f32 %v273, %v449
  %v562 = vsub.f32 %v274, %v450
  %v563 = vsub.f32 %v275, %v451
  %v564 = vsub.f32 %v276, %v452
  %v565 = vsub.f32 %v277, %v453
  %v566 = vsub.f32 %v278, %v454
  %v567 = vsub.f32 %v279, %v455
  %v568 = vsub.f32 %v280, %v456
  %v569 = vsub.f32 %v281, %v457
  %v570 = vsub.f32 %v282, %v458
  %v571 = vsub.f32 %v283, %v459
  %v572 = vsub.f32 %v284, %v460
  %v573 = vsub.f32 %v285, %v461
  %v574 = vsub.f32 %v286, %v462
  %v575 = vsub.f32 %v287, %v463
  %v576 = vsub.f32 %v288, %v464
  %v577 = vsub.f32 %v289, %v465
  %v578 = vsub.f32 %v290, %v466
  %v579 = vsub.f32 %v291, %v467
  %v580 = vsub.f32 %v292, %v468
  %v581 = vsub.f32 %v293, %v469
  %v582 = vsub.f32 %v294, %v470
  %v583 = vsub.f32 %v295, %v471
  %v584 = vsub.f32 %v296, %v472
  %v585 = vsub.f32 %v297, %v473
  %v586 = vsub.f32 %v298, %v474
  %v587 = vsub.f32 %v299, %v475
  %v588 = vsub.f32 %v300, %v476
  %v589 = vsub.f32 %v301, %v477
  %v590 = vsub.f32 %v302, %v478
  %v591 = vsub.f32 %v303, %v479
  %v592 = vsub.f32 %v304, %v480
  %v593 = vsub.f32 %v305, %v481
  %v594 = vsub.f32 %v306, %v482
  %v595 = vsub.f32 %v307, %v483
  %v596 = vsub.f32 %v308, %v484
  %v597 = vsub.f32 %v309, %v485
  %v598 = vsub.f32 %v310, %v486
  %v599 = vsub.f32 %v311, %v487
  %v600 = vsub.f32 %v312, %v488
  %v601 = vsub.f32 %v313, %v489
  %v602 = vsub.f32 %v314, %v490
  %v603 = vsub.f32 %v315, %v491
  %v604 = vsub.f32 %v316, %v492
  %v605 = vsub.f32 %v317, %v493
  %v606 = vsub.f32 %v318, %v494
  %v607 = vsub.f32 %v319, %v495
  %v608 = vsub.f32 %v320, %v496
  %v609 = vsub.f32 %v321, %v497
  %v610 = vsub.f32 %v322, %v498
  %v611 = vsub.f32 %v323, %v499
  %v612 = vsub.f32 %v324, %v500
  %v613 = vsub.f32 %v325, %v501
  %v614 = vsub.f32 %v326, %v502
  %v615 = vsub.f32 %v327, %v503
  %v616 = vsub.f32 %v328, %v504
  %v617 = vsub.f32 %v329, %v505
  %v618 = vsub.f32 %v330, %v506
  %v619 = vsub.f32 %v331, %v507
  %v620 = vsub.f32 %v332, %v508
  %v621 = vsub.f32 %v333, %v509
  %v622 = vsub.f32 %v334, %v510
  %v623 = vsub.f32 %v335, %v511
  %v624 = vsub.f32 %v336, %v512
  %v625 = vsub.f32 %v337, %v513
  %v626 = vsub.f32 %v338, %v514
  %v627 = vsub.f32 %v339, %v515
  %v628 = vsub.f32 %v340, %v516
  %v629 = vsub.f32 %v341, %v517
  %v630 = vsub.f32 %v342, %v518
  %v631 = vsub.f32 %v343, %v519
  %v632 = vsub.f32 %v344, %v520
  %v633 = vsub.f32 %v345, %v521
  %v634 = vsub.f32 %v346, %v522
  %v635 = vsub.f32 %v347, %v523
  %v636 = vsub.f32 %v348, %v524
  %v637 = vsub.f32 %v349, %v525
  %v638 = vsub.f32 %v350, %v526
  %v639 = vsub.f32 %v351, %v527
  %v640 = vsub.f32 %v352, %v528
  %v641 = vsub.f32 %v353, %v529
  %v642 = vsub.f32 %v354, %v530
  %v643 = vsub.f32 %v355, %v531
  %v644 = vsub.f32 %v356, %v532
  %v645 = vsub.f32 %v357, %v533
  %v646 = vsub.f32 %v358, %v534
  %v647 = vsub.f32 %v359, %v535
  %v648 = vsub.f32 %v360, %v536
  %v649 = vsub.f32 %v361, %v537
  %v650 = vsub.f32 %v362, %v538
  %v651 = vsub.f32 %v363, %v539
  %v652 = vsub.f32 %v364, %v540
  %v653 = vsub.f32 %v365, %v541
  %v654 = vsub.f32 %v366, %v542
  %v655 = vsub.f32 %v367, %v543
  %v656 = vsub.f32 %v368, %v544
  %v657 = vsub.f32 %v369, %v545
  %v658 = vsub.f32 %v370, %v546
  %v659 = vsub.f32 %v371, %v547
  %v660 = vsub.f32 %v372, %v548
  %v661 = vsub.f32 %v373, %v549
  %v662 = vsub.f32 %v374, %v550
  %v663 = vsub.f32 %v375, %v551
  %v664 = vsub.f32 %v376, %v552
  %v665 = vsub.f32 %v377, %v553
  %v666 = vsub.f32 %v378, %v554
  %v667 = vsub.f32 %v379, %v555
  %v668 = vsub.f32 %v380, %v556
  %v669 = vsub.f32 %v381, %v557
  %v670 = vsub.f32 %v382, %v558
  %v671 = vpack.c.bf16 %v15, %v14
  %v672 = vpack.c.bf16 %v17, %v16
  %v673 = vpack.c.bf16 %v19, %v18
  %v674 = vpack.c.bf16 %v21, %v20
  %v675 = vpack.c.bf16 %v23, %v22
  %v676 = vpack.c.bf16 %v25, %v24
  %v677 = vpack.c.bf16 %v27, %v26
  %v678 = vpack.c.bf16 %v29, %v28
  %v679 = vpack.c.bf16 %v31, %v30
  %v680 = vpack.c.bf16 %v33, %v32
  %v681 = vpack.c.bf16 %v35, %v34
  %v682 = vpack.c.bf16 %v37, %v36
  %v683 = vpack.c.bf16 %v39, %v38
  %v684 = vpack.c.bf16 %v41, %v40
  %v685 = vpack.c.bf16 %v43, %v42
  %v686 = vpack.c.bf16 %v45, %v44
  %v687 = vpack.c.bf16 %v47, %v46
  %v688 = vpack.c.bf16 %v49, %v48
  %v689 = vpack.c.bf16 %v51, %v50
  %v690 = vpack.c.bf16 %v53, %v52
  %v691 = vpack.c.bf16 %v55, %v54
  %v692 = vpack.c.bf16 %v57, %v56
  %v693 = vpack.c.bf16 %v59, %v58
  %v694 = vpack.c.bf16 %v61, %v60
  %v695 = vpack.c.bf16 %v63, %v62
  %v696 = vpack.c.bf16 %v65, %v64
  %v697 = vpack.c.bf16 %v67, %v66
  %v698 = vpack.c.bf16 %v69, %v68
  %v699 = vpack.c.bf16 %v71, %v70
  %v700 = vpack.c.bf16 %v73, %v72
  %v701 = vpack.c.bf16 %v75, %v74
  %v702 = vpack.c.bf16 %v77, %v76
  %v703 = vpack.c.bf16 %v79, %v78
  %v704 = vpack.c.bf16 %v81, %v80
  %v705 = vpack.c.bf16 %v83, %v82
  %v706 = vpack.c.bf16 %v85, %v84
  %v707 = vpack.c.bf16 %v87, %v86
  %v708 = vpack.c.bf16 %v89, %v88
  %v709 = vpack.c.bf16 %v91, %v90
  %v710 = vpack.c.bf16 %v93, %v92
  %v711 = vpack.c.bf16 %v95, %v94
  %v712 = vpack.c.bf16 %v97, %v96
  %v713 = vpack.c.bf16 %v99, %v98
  %v714 = vpack.c.bf16 %v101, %v100
  %v715 = vpack.c.bf16 %v103, %v102
  %v716 = vpack.c.bf16 %v105, %v104
  %v717 = vpack.c.bf16 %v107, %v106
  %v718 = vpack.c.bf16 %v109, %v108
  %v719 = vpack.c.bf16 %v111, %v110
  %v720 = vpack.c.bf16 %v113, %v112
  %v721 = vpack.c.bf16 %v115, %v114
  %v722 = vpack.c.bf16 %v117, %v116
  %v723 = vpack.c.bf16 %v119, %v118
  %v724 = vpack.c.bf16 %v121, %v120
  %v725 = vpack.c.bf16 %v123, %v122
  %v726 = vpack.c.bf16 %v125, %v124
  %v727 = vpack.c.bf16 %v127, %v126
  %v728 = vpack.c.bf16 %v129, %v128
  %v729 = vpack.c.bf16 %v131, %v130
  %v730 = vpack.c.bf16 %v133, %v132
  %v731 = vpack.c.bf16 %v135, %v134
  %v732 = vpack.c.bf16 %v137, %v136
  %v733 = vpack.c.bf16 %v139, %v138
  %v734 = vpack.c.bf16 %v141, %v140
  %v735 = vpack.c.bf16 %v143, %v142
  %v736 = vpack.c.bf16 %v145, %v144
  %v737 = vpack.c.bf16 %v147, %v146
  %v738 = vpack.c.bf16 %v149, %v148
  %v739 = vpack.c.bf16 %v151, %v150
  %v740 = vpack.c.bf16 %v153, %v152
  %v741 = vpack.c.bf16 %v155, %v154
  %v742 = vpack.c.bf16 %v157, %v156
  %v743 = vpack.c.bf16 %v159, %v158
  %v744 = vpack.c.bf16 %v161, %v160
  %v745 = vpack.c.bf16 %v163, %v162
  %v746 = vpack.c.bf16 %v165, %v164
  %v747 = vpack.c.bf16 %v167, %v166
  %v748 = vpack.c.bf16 %v169, %v168
  %v749 = vpack.c.bf16 %v171, %v170
  %v750 = vpack.c.bf16 %v173, %v172
  %v751 = vpack.c.bf16 %v175, %v174
  %v752 = vpack.c.bf16 %v177, %v176
  %v753 = vpack.c.bf16 %v179, %v178
  %v754 = vpack.c.bf16 %v181, %v180
  %v755 = vpack.c.bf16 %v183, %v182
  %v756 = vpack.c.bf16 %v185, %v184
  %v757 = vpack.c.bf16 %v187, %v186
  %v758 = vpack.c.bf16 %v189, %v188
  %v759 = vpack.c.bf16 %v191, %v190
  %v760 = vpack.c.bf16 %v193, %v192
  %v761 = vpack.c.bf16 %v195, %v194
  %v762 = vpack.c.bf16 %v197, %v196
  %v763 = vpack.c.bf16 %v199, %v198
  %v764 = vpack.c.bf16 %v201, %v200
  %v765 = vpack.c.bf16 %v203, %v202
  %v766 = vpack.c.bf16 %v205, %v204
  %v767 = vpack.c.bf16 %v207, %v206
  %v768 = vpack.c.bf16 %v209, %v208
  %v769 = vpack.c.bf16 %v211, %v210
  %v770 = vpack.c.bf16 %v213, %v212
  %v771 = vpack.c.bf16 %v215, %v214
  %v772 = vpack.c.bf16 %v217, %v216
  %v773 = vpack.c.bf16 %v219, %v218
  %v774 = vpack.c.bf16 %v221, %v220
  %v775 = vpack.c.bf16 %v223, %v222
  %v776 = vpack.c.bf16 %v225, %v224
  %v777 = vpack.c.bf16 %v227, %v226
  %v778 = vpack.c.bf16 %v229, %v228
  %v779 = vpack.c.bf16 %v231, %v230
  %v780 = vpack.c.bf16 %v233, %v232
  %v781 = vpack.c.bf16 %v235, %v234
  %v782 = vpack.c.bf16 %v237, %v236
  %v783 = vpack.c.bf16 %v239, %v238
  %v784 = vpack.c.bf16 %v241, %v240
  %v785 = vpack.c.bf16 %v243, %v242
  %v786 = vpack.c.bf16 %v245, %v244
  %v787 = vpack.c.bf16 %v247, %v246
  %v788 = vpack.c.bf16 %v249, %v248
  %v789 = vpack.c.bf16 %v251, %v250
  %v790 = vpack.c.bf16 %v253, %v252
  %v791 = vpack.c.bf16 %v255, %v254
  %v792 = vpack.c.bf16 %v257, %v256
  %v793 = vpack.c.bf16 %v259, %v258
  %v794 = vpack.c.bf16 %v261, %v260
  %v795 = vpack.c.bf16 %v263, %v262
  %v796 = vpack.c.bf16 %v265, %v264
  %v797 = vpack.c.bf16 %v267, %v266
  %v798 = vpack.c.bf16 %v269, %v268
  %v799 = vunpack.c.l.bf16 %v671
  %v800 = vunpack.c.h.bf16 %v671
  %v801 = vunpack.c.l.bf16 %v672
  %v802 = vunpack.c.h.bf16 %v672
  %v803 = vunpack.c.l.bf16 %v673
  %v804 = vunpack.c.h.bf16 %v673
  %v805 = vunpack.c.l.bf16 %v674
  %v806 = vunpack.c.h.bf16 %v674
  %v807 = vunpack.c.l.bf16 %v675
  %v808 = vunpack.c.h.bf16 %v675
  %v809 = vunpack.c.l.bf16 %v676
  %v810 = vunpack.c.h.bf16 %v676
  %v811 = vunpack.c.l.bf16 %v677
  %v812 = vunpack.c.h.bf16 %v677
  %v813 = vunpack.c.l.bf16 %v678
  %v814 = vunpack.c.h.bf16 %v678
  %v815 = vunpack.c.l.bf16 %v679
  %v816 = vunpack.c.h.bf16 %v679
  %v817 = vunpack.c.l.bf16 %v680
  %v818 = vunpack.c.h.bf16 %v680
  %v819 = vunpack.c.l.bf16 %v681
  %v820 = vunpack.c.h.bf16 %v681
  %v821 = vunpack.c.l.bf16 %v682
  %v822 = vunpack.c.h.bf16 %v682
  %v823 = vunpack.c.l.bf16 %v683
  %v824 = vunpack.c.h.bf16 %v683
  %v825 = vunpack.c.l.bf16 %v684
  %v826 = vunpack.c.h.bf16 %v684
  %v827 = vunpack.c.l.bf16 %v685
  %v828 = vunpack.c.h.bf16 %v685
  %v829 = vunpack.c.l.bf16 %v686
  %v830 = vunpack.c.h.bf16 %v686
  %v831 = vunpack.c.l.bf16 %v687
  %v832 = vunpack.c.h.bf16 %v687
  %v833 = vunpack.c.l.bf16 %v688
  %v834 = vunpack.c.h.bf16 %v688
  %v835 = vunpack.c.l.bf16 %v689
  %v836 = vunpack.c.h.bf16 %v689
  %v837 = vunpack.c.l.bf16 %v690
  %v838 = vunpack.c.h.bf16 %v690
  %v839 = vunpack.c.l.bf16 %v691
  %v840 = vunpack.c.h.bf16 %v691
  %v841 = vunpack.c.l.bf16 %v692
  %v842 = vunpack.c.h.bf16 %v692
  %v843 = vunpack.c.l.bf16 %v693
  %v844 = vunpack.c.h.bf16 %v693
  %v845 = vunpack.c.l.bf16 %v694
  %v846 = vunpack.c.h.bf16 %v694
  %v847 = vunpack.c.l.bf16 %v695
  %v848 = vunpack.c.h.bf16 %v695
  %v849 = vunpack.c.l.bf16 %v696
  %v850 = vunpack.c.h.bf16 %v696
  %v851 = vunpack.c.l.bf16 %v697
  %v852 = vunpack.c.h.bf16 %v697
  %v853 = vunpack.c.l.bf16 %v698
  %v854 = vunpack.c.h.bf16 %v698
  %v855 = vunpack.c.l.bf16 %v699
  %v856 = vunpack.c.h.bf16 %v699
  %v857 = vunpack.c.l.bf16 %v700
  %v858 = vunpack.c.h.bf16 %v700
  %v859 = vunpack.c.l.bf16 %v701
  %v860 = vunpack.c.h.bf16 %v701
  %v861 = vunpack.c.l.bf16 %v702
  %v862 = vunpack.c.h.bf16 %v702
  %v863 = vunpack.c.l.bf16 %v703
  %v864 = vunpack.c.h.bf16 %v703
  %v865 = vunpack.c.l.bf16 %v704
  %v866 = vunpack.c.h.bf16 %v704
  %v867 = vunpack.c.l.bf16 %v705
  %v868 = vunpack.c.h.bf16 %v705
  %v869 = vunpack.c.l.bf16 %v706
  %v870 = vunpack.c.h.bf16 %v706
  %v871 = vunpack.c.l.bf16 %v707
  %v872 = vunpack.c.h.bf16 %v707
  %v873 = vunpack.c.l.bf16 %v708
  %v874 = vunpack.c.h.bf16 %v708
  %v875 = vunpack.c.l.bf16 %v709
  %v876 = vunpack.c.h.bf16 %v709
  %v877 = vunpack.c.l.bf16 %v710
  %v878 = vunpack.c.h.bf16 %v710
  %v879 = vunpack.c.l.bf16 %v711
  %v880 = vunpack.c.h.bf16 %v711
  %v881 = vunpack.c.l.bf16 %v712
  %v882 = vunpack.c.h.bf16 %v712
  %v883 = vunpack.c.l.bf16 %v713
  %v884 = vunpack.c.h.bf16 %v713
  %v885 = vunpack.c.l.bf16 %v714
  %v886 = vunpack.c.h.bf16 %v714
  %v887 = vunpack.c.l.bf16 %v715
  %v888 = vunpack.c.h.bf16 %v715
  %v889 = vunpack.c.l.bf16 %v716
  %v890 = vunpack.c.h.bf16 %v716
  %v891 = vunpack.c.l.bf16 %v717
  %v892 = vunpack.c.h.bf16 %v717
  %v893 = vunpack.c.l.bf16 %v718
  %v894 = vunpack.c.h.bf16 %v718
  %v895 = vunpack.c.l.bf16 %v719
  %v896 = vunpack.c.h.bf16 %v719
  %v897 = vunpack.c.l.bf16 %v720
  %v898 = vunpack.c.h.bf16 %v720
  %v899 = vunpack.c.l.bf16 %v721
  %v900 = vunpack.c.h.bf16 %v721
  %v901 = vunpack.c.l.bf16 %v722
  %v902 = vunpack.c.h.bf16 %v722
  %v903 = vunpack.c.l.bf16 %v723
  %v904 = vunpack.c.h.bf16 %v723
  %v905 = vunpack.c.l.bf16 %v724
  %v906 = vunpack.c.h.bf16 %v724
  %v907 = vunpack.c.l.bf16 %v725
  %v908 = vunpack.c.h.bf16 %v725
  %v909 = vunpack.c.l.bf16 %v726
  %v910 = vunpack.c.h.bf16 %v726
  %v911 = vunpack.c.l.bf16 %v727
  %v912 = vunpack.c.h.bf16 %v727
  %v913 = vunpack.c.l.bf16 %v728
  %v914 = vunpack.c.h.bf16 %v728
  %v915 = vunpack.c.l.bf16 %v729
  %v916 = vunpack.c.h.bf16 %v729
  %v917 = vunpack.c.l.bf16 %v730
  %v918 = vunpack.c.h.bf16 %v730
  %v919 = vunpack.c.l.bf16 %v731
  %v920 = vunpack.c.h.bf16 %v731
  %v921 = vunpack.c.l.bf16 %v732
  %v922 = vunpack.c.h.bf16 %v732
  %v923 = vunpack.c.l.bf16 %v733
  %v924 = vunpack.c.h.bf16 %v733
  %v925 = vunpack.c.l.bf16 %v734
  %v926 = vunpack.c.h.bf16 %v734
  %v927 = vunpack.c.l.bf16 %v735
  %v928 = vunpack.c.h.bf16 %v735
  %v929 = vunpack.c.l.bf16 %v736
  %v930 = vunpack.c.h.bf16 %v736
  %v931 = vunpack.c.l.bf16 %v737
  %v932 = vunpack.c.h.bf16 %v737
  %v933 = vunpack.c.l.bf16 %v738
  %v934 = vunpack.c.h.bf16 %v738
  %v935 = vunpack.c.l.bf16 %v739
  %v936 = vunpack.c.h.bf16 %v739
  %v937 = vunpack.c.l.bf16 %v740
  %v938 = vunpack.c.h.bf16 %v740
  %v939 = vunpack.c.l.bf16 %v741
  %v940 = vunpack.c.h.bf16 %v741
  %v941 = vunpack.c.l.bf16 %v742
  %v942 = vunpack.c.h.bf16 %v742
  %v943 = vunpack.c.l.bf16 %v743
  %v944 = vunpack.c.h.bf16 %v743
  %v945 = vunpack.c.l.bf16 %v744
  %v946 = vunpack.c.h.bf16 %v744
  %v947 = vunpack.c.l.bf16 %v745
  %v948 = vunpack.c.h.bf16 %v745
  %v949 = vunpack.c.l.bf16 %v746
  %v950 = vunpack.c.h.bf16 %v746
  %v951 = vunpack.c.l.bf16 %v747
  %v952 = vunpack.c.h.bf16 %v747
  %v953 = vunpack.c.l.bf16 %v748
  %v954 = vunpack.c.h.bf16 %v748
  %v955 = vunpack.c.l.bf16 %v749
  %v956 = vunpack.c.h.bf16 %v749
  %v957 = vunpack.c.l.bf16 %v750
  %v958 = vunpack.c.h.bf16 %v750
  %v959 = vunpack.c.l.bf16 %v751
  %v960 = vunpack.c.h.bf16 %v751
  %v961 = vunpack.c.l.bf16 %v752
  %v962 = vunpack.c.h.bf16 %v752
  %v963 = vunpack.c.l.bf16 %v753
  %v964 = vunpack.c.h.bf16 %v753
  %v965 = vunpack.c.l.bf16 %v754
  %v966 = vunpack.c.h.bf16 %v754
  %v967 = vunpack.c.l.bf16 %v755
  %v968 = vunpack.c.h.bf16 %v755
  %v969 = vunpack.c.l.bf16 %v756
  %v970 = vunpack.c.h.bf16 %v756
  %v971 = vunpack.c.l.bf16 %v757
  %v972 = vunpack.c.h.bf16 %v757
  %v973 = vunpack.c.l.bf16 %v758
  %v974 = vunpack.c.h.bf16 %v758
  %v975 = vunpack.c.l.bf16 %v759
  %v976 = vunpack.c.h.bf16 %v759
  %v977 = vunpack.c.l.bf16 %v760
  %v978 = vunpack.c.h.bf16 %v760
  %v979 = vunpack.c.l.bf16 %v761
  %v980 = vunpack.c.h.bf16 %v761
  %v981 = vunpack.c.l.bf16 %v762
  %v982 = vunpack.c.h.bf16 %v762
  %v983 = vunpack.c.l.bf16 %v763
  %v984 = vunpack.c.h.bf16 %v763
  %v985 = vunpack.c.l.bf16 %v764
  %v986 = vunpack.c.h.bf16 %v764
  %v987 = vunpack.c.l.bf16 %v765
  %v988 = vunpack.c.h.bf16 %v765
  %v989 = vunpack.c.l.bf16 %v766
  %v990 = vunpack.c.h.bf16 %v766
  %v991 = vunpack.c.l.bf16 %v767
  %v992 = vunpack.c.h.bf16 %v767
  %v993 = vunpack.c.l.bf16 %v768
  %v994 = vunpack.c.h.bf16 %v768
  %v995 = vunpack.c.l.bf16 %v769
  %v996 = vunpack.c.h.bf16 %v769
  %v997 = vunpack.c.l.bf16 %v770
  %v998 = vunpack.c.h.bf16 %v770
  %v999 = vunpack.c.l.bf16 %v771
  %v1000 = vunpack.c.h.bf16 %v771
  %v1001 = vunpack.c.l.bf16 %v772
  %v1002 = vunpack.c.h.bf16 %v772
  %v1003 = vunpack.c.l.bf16 %v773
  %v1004 = vunpack.c.h.bf16 %v773
  %v1005 = vunpack.c.l.bf16 %v774
  %v1006 = vunpack.c.h.bf16 %v774
  %v1007 = vunpack.c.l.bf16 %v775
  %v1008 = vunpack.c.h.bf16 %v775
  %v1009 = vunpack.c.l.bf16 %v776
  %v1010 = vunpack.c.h.bf16 %v776
  %v1011 = vunpack.c.l.bf16 %v777
  %v1012 = vunpack.c.h.bf16 %v777
  %v1013 = vunpack.c.l.bf16 %v778
  %v1014 = vunpack.c.h.bf16 %v778
  %v1015 = vunpack.c.l.bf16 %v779
  %v1016 = vunpack.c.h.bf16 %v779
  %v1017 = vunpack.c.l.bf16 %v780
  %v1018 = vunpack.c.h.bf16 %v780
  %v1019 = vunpack.c.l.bf16 %v781
  %v1020 = vunpack.c.h.bf16 %v781
  %v1021 = vunpack.c.l.bf16 %v782
  %v1022 = vunpack.c.h.bf16 %v782
  %v1023 = vunpack.c.l.bf16 %v783
  %v1024 = vunpack.c.h.bf16 %v783
  %v1025 = vunpack.c.l.bf16 %v784
  %v1026 = vunpack.c.h.bf16 %v784
  %v1027 = vunpack.c.l.bf16 %v785
  %v1028 = vunpack.c.h.bf16 %v785
  %v1029 = vunpack.c.l.bf16 %v786
  %v1030 = vunpack.c.h.bf16 %v786
  %v1031 = vunpack.c.l.bf16 %v787
  %v1032 = vunpack.c.h.bf16 %v787
  %v1033 = vunpack.c.l.bf16 %v788
  %v1034 = vunpack.c.h.bf16 %v788
  %v1035 = vunpack.c.l.bf16 %v789
  %v1036 = vunpack.c.h.bf16 %v789
  %v1037 = vunpack.c.l.bf16 %v790
  %v1038 = vunpack.c.h.bf16 %v790
  %v1039 = vunpack.c.l.bf16 %v791
  %v1040 = vunpack.c.h.bf16 %v791
  %v1041 = vunpack.c.l.bf16 %v792
  %v1042 = vunpack.c.h.bf16 %v792
  %v1043 = vunpack.c.l.bf16 %v793
  %v1044 = vunpack.c.h.bf16 %v793
  %v1045 = vunpack.c.l.bf16 %v794
  %v1046 = vunpack.c.h.bf16 %v794
  %v1047 = vunpack.c.l.bf16 %v795
  %v1048 = vunpack.c.h.bf16 %v795
  %v1049 = vunpack.c.l.bf16 %v796
  %v1050 = vunpack.c.h.bf16 %v796
  %v1051 = vunpack.c.l.bf16 %v797
  %v1052 = vunpack.c.h.bf16 %v797
  %v1053 = vunpack.c.l.bf16 %v798
  %v1054 = vunpack.c.h.bf16 %v798
  %v1055 = vsub.f32 %v14, %v799
  %v1056 = vsub.f32 %v15, %v800
  %v1057 = vsub.f32 %v16, %v801
  %v1058 = vsub.f32 %v17, %v802
  %v1059 = vsub.f32 %v18, %v803
  %v1060 = vsub.f32 %v19, %v804
  %v1061 = vsub.f32 %v20, %v805
  %v1062 = vsub.f32 %v21, %v806
  %v1063 = vsub.f32 %v22, %v807
  %v1064 = vsub.f32 %v23, %v808
  %v1065 = vsub.f32 %v24, %v809
  %v1066 = vsub.f32 %v25, %v810
  %v1067 = vsub.f32 %v26, %v811
  %v1068 = vsub.f32 %v27, %v812
  %v1069 = vsub.f32 %v28, %v813
  %v1070 = vsub.f32 %v29, %v814
  %v1071 = vsub.f32 %v30, %v815
  %v1072 = vsub.f32 %v31, %v816
  %v1073 = vsub.f32 %v32, %v817
  %v1074 = vsub.f32 %v33, %v818
  %v1075 = vsub.f32 %v34, %v819
  %v1076 = vsub.f32 %v35, %v820
  %v1077 = vsub.f32 %v36, %v821
  %v1078 = vsub.f32 %v37, %v822
  %v1079 = vsub.f32 %v38, %v823
  %v1080 = vsub.f32 %v39, %v824
  %v1081 = vsub.f32 %v40, %v825
  %v1082 = vsub.f32 %v41, %v826
  %v1083 = vsub.f32 %v42, %v827
  %v1084 = vsub.f32 %v43, %v828
  %v1085 = vsub.f32 %v44, %v829
  %v1086 = vsub.f32 %v45, %v830
  %v1087 = vsub.f32 %v46, %v831
  %v1088 = vsub.f32 %v47, %v832
  %v1089 = vsub.f32 %v48, %v833
  %v1090 = vsub.f32 %v49, %v834
  %v1091 = vsub.f32 %v50, %v835
  %v1092 = vsub.f32 %v51, %v836
  %v1093 = vsub.f32 %v52, %v837
  %v1094 = vsub.f32 %v53, %v838
  %v1095 = vsub.f32 %v54, %v839
  %v1096 = vsub.f32 %v55, %v840
  %v1097 = vsub.f32 %v56, %v841
  %v1098 = vsub.f32 %v57, %v842
  %v1099 = vsub.f32 %v58, %v843
  %v1100 = vsub.f32 %v59, %v844
  %v1101 = vsub.f32 %v60, %v845
  %v1102 = vsub.f32 %v61, %v846
  %v1103 = vsub.f32 %v62, %v847
  %v1104 = vsub.f32 %v63, %v848
  %v1105 = vsub.f32 %v64, %v849
  %v1106 = vsub.f32 %v65, %v850
  %v1107 = vsub.f32 %v66, %v851
  %v1108 = vsub.f32 %v67, %v852
  %v1109 = vsub.f32 %v68, %v853
  %v1110 = vsub.f32 %v69, %v854
  %v1111 = vsub.f32 %v70, %v855
  %v1112 = vsub.f32 %v71, %v856
  %v1113 = vsub.f32 %v72, %v857
  %v1114 = vsub.f32 %v73, %v858
  %v1115 = vsub.f32 %v74, %v859
  %v1116 = vsub.f32 %v75, %v860
  %v1117 = vsub.f32 %v76, %v861
  %v1118 = vsub.f32 %v77, %v862
  %v1119 = vsub.f32 %v78, %v863
  %v1120 = vsub.f32 %v79, %v864
  %v1121 = vsub.f32 %v80, %v865
  %v1122 = vsub.f32 %v81, %v866
  %v1123 = vsub.f32 %v82, %v867
  %v1124 = vsub.f32 %v83, %v868
  %v1125 = vsub.f32 %v84, %v869
  %v1126 = vsub.f32 %v85, %v870
  %v1127 = vsub.f32 %v86, %v871
  %v1128 = vsub.f32 %v87, %v872
  %v1129 = vsub.f32 %v88, %v873
  %v1130 = vsub.f32 %v89, %v874
  %v1131 = vsub.f32 %v90, %v875
  %v1132 = vsub.f32 %v91, %v876
  %v1133 = vsub.f32 %v92, %v877
  %v1134 = vsub.f32 %v93, %v878
  %v1135 = vsub.f32 %v94, %v879
  %v1136 = vsub.f32 %v95, %v880
  %v1137 = vsub.f32 %v96, %v881
  %v1138 = vsub.f32 %v97, %v882
  %v1139 = vsub.f32 %v98, %v883
  %v1140 = vsub.f32 %v99, %v884
  %v1141 = vsub.f32 %v100, %v885
  %v1142 = vsub.f32 %v101, %v886
  %v1143 = vsub.f32 %v102, %v887
  %v1144 = vsub.f32 %v103, %v888
  %v1145 = vsub.f32 %v104, %v889
  %v1146 = vsub.f32 %v105, %v890
  %v1147 = vsub.f32 %v106, %v891
  %v1148 = vsub.f32 %v107, %v892
  %v1149 = vsub.f32 %v108, %v893
  %v1150 = vsub.f32 %v109, %v894
  %v1151 = vsub.f32 %v110, %v895
  %v1152 = vsub.f32 %v111, %v896
  %v1153 = vsub.f32 %v112, %v897
  %v1154 = vsub.f32 %v113, %v898
  %v1155 = vsub.f32 %v114, %v899
  %v1156 = vsub.f32 %v115, %v900
  %v1157 = vsub.f32 %v116, %v901
  %v1158 = vsub.f32 %v117, %v902
  %v1159 = vsub.f32 %v118, %v903
  %v1160 = vsub.f32 %v119, %v904
  %v1161 = vsub.f32 %v120, %v905
  %v1162 = vsub.f32 %v121, %v906
  %v1163 = vsub.f32 %v122, %v907
  %v1164 = vsub.f32 %v123, %v908
  %v1165 = vsub.f32 %v124, %v909
  %v1166 = vsub.f32 %v125, %v910
  %v1167 = vsub.f32 %v126, %v911
  %v1168 = vsub.f32 %v127, %v912
  %v1169 = vsub.f32 %v128, %v913
  %v1170 = vsub.f32 %v129, %v914
  %v1171 = vsub.f32 %v130, %v915
  %v1172 = vsub.f32 %v131, %v916
  %v1173 = vsub.f32 %v132, %v917
  %v1174 = vsub.f32 %v133, %v918
  %v1175 = vsub.f32 %v134, %v919
  %v1176 = vsub.f32 %v135, %v920
  %v1177 = vsub.f32 %v136, %v921
  %v1178 = vsub.f32 %v137, %v922
  %v1179 = vsub.f32 %v138, %v923
  %v1180 = vsub.f32 %v139, %v924
  %v1181 = vsub.f32 %v140, %v925
  %v1182 = vsub.f32 %v141, %v926
  %v1183 = vsub.f32 %v142, %v927
  %v1184 = vsub.f32 %v143, %v928
  %v1185 = vsub.f32 %v144, %v929
  %v1186 = vsub.f32 %v145, %v930
  %v1187 = vsub.f32 %v146, %v931
  %v1188 = vsub.f32 %v147, %v932
  %v1189 = vsub.f32 %v148, %v933
  %v1190 = vsub.f32 %v149, %v934
  %v1191 = vsub.f32 %v150, %v935
  %v1192 = vsub.f32 %v151, %v936
  %v1193 = vsub.f32 %v152, %v937
  %v1194 = vsub.f32 %v153, %v938
  %v1195 = vsub.f32 %v154, %v939
  %v1196 = vsub.f32 %v155, %v940
  %v1197 = vsub.f32 %v156, %v941
  %v1198 = vsub.f32 %v157, %v942
  %v1199 = vsub.f32 %v158, %v943
  %v1200 = vsub.f32 %v159, %v944
  %v1201 = vsub.f32 %v160, %v945
  %v1202 = vsub.f32 %v161, %v946
  %v1203 = vsub.f32 %v162, %v947
  %v1204 = vsub.f32 %v163, %v948
  %v1205 = vsub.f32 %v164, %v949
  %v1206 = vsub.f32 %v165, %v950
  %v1207 = vsub.f32 %v166, %v951
  %v1208 = vsub.f32 %v167, %v952
  %v1209 = vsub.f32 %v168, %v953
  %v1210 = vsub.f32 %v169, %v954
  %v1211 = vsub.f32 %v170, %v955
  %v1212 = vsub.f32 %v171, %v956
  %v1213 = vsub.f32 %v172, %v957
  %v1214 = vsub.f32 %v173, %v958
  %v1215 = vsub.f32 %v174, %v959
  %v1216 = vsub.f32 %v175, %v960
  %v1217 = vsub.f32 %v176, %v961
  %v1218 = vsub.f32 %v177, %v962
  %v1219 = vsub.f32 %v178, %v963
  %v1220 = vsub.f32 %v179, %v964
  %v1221 = vsub.f32 %v180, %v965
  %v1222 = vsub.f32 %v181, %v966
  %v1223 = vsub.f32 %v182, %v967
  %v1224 = vsub.f32 %v183, %v968
  %v1225 = vsub.f32 %v184, %v969
  %v1226 = vsub.f32 %v185, %v970
  %v1227 = vsub.f32 %v186, %v971
  %v1228 = vsub.f32 %v187, %v972
  %v1229 = vsub.f32 %v188, %v973
  %v1230 = vsub.f32 %v189, %v974
  %v1231 = vsub.f32 %v190, %v975
  %v1232 = vsub.f32 %v191, %v976
  %v1233 = vsub.f32 %v192, %v977
  %v1234 = vsub.f32 %v193, %v978
  %v1235 = vsub.f32 %v194, %v979
  %v1236 = vsub.f32 %v195, %v980
  %v1237 = vsub.f32 %v196, %v981
  %v1238 = vsub.f32 %v197, %v982
  %v1239 = vsub.f32 %v198, %v983
  %v1240 = vsub.f32 %v199, %v984
  %v1241 = vsub.f32 %v200, %v985
  %v1242 = vsub.f32 %v201, %v986
  %v1243 = vsub.f32 %v202, %v987
  %v1244 = vsub.f32 %v203, %v988
  %v1245 = vsub.f32 %v204, %v989
  %v1246 = vsub.f32 %v205, %v990
  %v1247 = vsub.f32 %v206, %v991
  %v1248 = vsub.f32 %v207, %v992
  %v1249 = vsub.f32 %v208, %v993
  %v1250 = vsub.f32 %v209, %v994
  %v1251 = vsub.f32 %v210, %v995
  %v1252 = vsub.f32 %v211, %v996
  %v1253 = vsub.f32 %v212, %v997
  %v1254 = vsub.f32 %v213, %v998
  %v1255 = vsub.f32 %v214, %v999
  %v1256 = vsub.f32 %v215, %v1000
  %v1257 = vsub.f32 %v216, %v1001
  %v1258 = vsub.f32 %v217, %v1002
  %v1259 = vsub.f32 %v218, %v1003
  %v1260 = vsub.f32 %v219, %v1004
  %v1261 = vsub.f32 %v220, %v1005
  %v1262 = vsub.f32 %v221, %v1006
  %v1263 = vsub.f32 %v222, %v1007
  %v1264 = vsub.f32 %v223, %v1008
  %v1265 = vsub.f32 %v224, %v1009
  %v1266 = vsub.f32 %v225, %v1010
  %v1267 = vsub.f32 %v226, %v1011
  %v1268 = vsub.f32 %v227, %v1012
  %v1269 = vsub.f32 %v228, %v1013
  %v1270 = vsub.f32 %v229, %v1014
  %v1271 = vsub.f32 %v230, %v1015
  %v1272 = vsub.f32 %v231, %v1016
  %v1273 = vsub.f32 %v232, %v1017
  %v1274 = vsub.f32 %v233, %v1018
  %v1275 = vsub.f32 %v234, %v1019
  %v1276 = vsub.f32 %v235, %v1020
  %v1277 = vsub.f32 %v236, %v1021
  %v1278 = vsub.f32 %v237, %v1022
  %v1279 = vsub.f32 %v238, %v1023
  %v1280 = vsub.f32 %v239, %v1024
  %v1281 = vsub.f32 %v240, %v1025
  %v1282 = vsub.f32 %v241, %v1026
  %v1283 = vsub.f32 %v242, %v1027
  %v1284 = vsub.f32 %v243, %v1028
  %v1285 = vsub.f32 %v244, %v1029
  %v1286 = vsub.f32 %v245, %v1030
  %v1287 = vsub.f32 %v246, %v1031
  %v1288 = vsub.f32 %v247, %v1032
  %v1289 = vsub.f32 %v248, %v1033
  %v1290 = vsub.f32 %v249, %v1034
  %v1291 = vsub.f32 %v250, %v1035
  %v1292 = vsub.f32 %v251, %v1036
  %v1293 = vsub.f32 %v252, %v1037
  %v1294 = vsub.f32 %v253, %v1038
  %v1295 = vsub.f32 %v254, %v1039
  %v1296 = vsub.f32 %v255, %v1040
  %v1297 = vsub.f32 %v256, %v1041
  %v1298 = vsub.f32 %v257, %v1042
  %v1299 = vsub.f32 %v258, %v1043
  %v1300 = vsub.f32 %v259, %v1044
  %v1301 = vsub.f32 %v260, %v1045
  %v1302 = vsub.f32 %v261, %v1046
  %v1303 = vsub.f32 %v262, %v1047
  %v1304 = vsub.f32 %v263, %v1048
  %v1305 = vsub.f32 %v264, %v1049
  %v1306 = vsub.f32 %v265, %v1050
  %v1307 = vsub.f32 %v266, %v1051
  %v1308 = vsub.f32 %v267, %v1052
  %v1309 = vsub.f32 %v268, %v1053
  %v1310 = vsub.f32 %v269, %v1054
  %1311 = vmatprep.subr.mxu0 0.0
  %1312 = vmatpush1.msra.mxu0 %v799
  %1313 = vmatprep.subr.mxu0 0.0
  %1314 = vmatpush1.msra.mxu0 %v800
  %1315 = vmatprep.subr.mxu0 0.0
  %1316 = vmatpush1.msra.mxu0 %v801
  %1317 = vmatprep.subr.mxu0 0.0
  %1318 = vmatpush1.msra.mxu0 %v802
  %1319 = vmatprep.subr.mxu0 0.0
  %1320 = vmatpush1.msra.mxu0 %v803
  %1321 = vmatprep.subr.mxu0 0.0
  %1322 = vmatpush1.msra.mxu0 %v804
  %1323 = vmatprep.subr.mxu0 0.0
  %1324 = vmatpush1.msra.mxu0 %v805
  %1325 = vmatprep.subr.mxu0 0.0
  %1326 = vmatpush1.msra.mxu0 %v806
  %1327 = vmatprep.subr.mxu0 0.0
  %1328 = vmatpush1.msra.mxu0 %v807
  %1329 = vmatprep.subr.mxu0 0.0
  %1330 = vmatpush1.msra.mxu0 %v808
  %1331 = vmatprep.subr.mxu0 0.0
  %1332 = vmatpush1.msra.mxu0 %v809
  %1333 = vmatprep.subr.mxu0 0.0
  %1334 = vmatpush1.msra.mxu0 %v810
  %1335 = vmatprep.subr.mxu0 0.0
  %1336 = vmatpush1.msra.mxu0 %v811
  %1337 = vmatprep.subr.mxu0 0.0
  %1338 = vmatpush1.msra.mxu0 %v812
  %1339 = vmatprep.subr.mxu0 0.0
  %1340 = vmatpush1.msra.mxu0 %v813
  %1341 = vmatprep.subr.mxu0 0.0
  %1342 = vmatpush1.msra.mxu0 %v814
  %1343 = vmatprep.subr.mxu0 0.0
  %1344 = vmatpush1.msra.mxu0 %v815
  %1345 = vmatprep.subr.mxu0 0.0
  %1346 = vmatpush1.msra.mxu0 %v816
  %1347 = vmatprep.subr.mxu0 0.0
  %1348 = vmatpush1.msra.mxu0 %v817
  %1349 = vmatprep.subr.mxu0 0.0
  %1350 = vmatpush1.msra.mxu0 %v818
  %1351 = vmatprep.subr.mxu0 0.0
  %1352 = vmatpush1.msra.mxu0 %v819
  %1353 = vmatprep.subr.mxu0 0.0
  %1354 = vmatpush1.msra.mxu0 %v820
  %1355 = vmatprep.subr.mxu0 0.0
  %1356 = vmatpush1.msra.mxu0 %v821
  %1357 = vmatprep.subr.mxu0 0.0
  %1358 = vmatpush1.msra.mxu0 %v822
  %1359 = vmatprep.subr.mxu0 0.0
  %1360 = vmatpush1.msra.mxu0 %v823
  %1361 = vmatprep.subr.mxu0 0.0
  %1362 = vmatpush1.msra.mxu0 %v824
  %1363 = vmatprep.subr.mxu0 0.0
  %1364 = vmatpush1.msra.mxu0 %v825
  %1365 = vmatprep.subr.mxu0 0.0
  %1366 = vmatpush1.msra.mxu0 %v826
  %1367 = vmatprep.subr.mxu0 0.0
  %1368 = vmatpush1.msra.mxu0 %v827
  %1369 = vmatprep.subr.mxu0 0.0
  %1370 = vmatpush1.msra.mxu0 %v828
  %1371 = vmatprep.subr.mxu0 0.0
  %1372 = vmatpush1.msra.mxu0 %v829
  %1373 = vmatprep.subr.mxu0 0.0
  %1374 = vmatpush1.msra.mxu0 %v830
  %1375 = vmatprep.mubr.f32.mxu0 %v560
  %1376 = vmatmul.mubr.f32.gmra.mrb[0].mxu0 %v559
  %v1377 = vpop.f32.mrb[0].mxu0
  %v1378 = vadd.f32 0.0, %v1377
  %v1379 = vpop.f32.mrb[0].mxu0
  %1380 = vmatprep.mubr.f32.mxu0 %v576
  %1381 = vmatmul.mubr.f32.gmra.mrb[0].mxu0 %v575
  %v1382 = vpop.f32.mrb[0].mxu0
  %v1383 = vadd.f32 0.0, %v1382
  %v1384 = vpop.f32.mrb[0].mxu0
  %1385 = vmatprep.mubr.f32.mxu0 %v592
  %1386 = vmatmul.mubr.f32.gmra.mrb[0].mxu0 %v591
  %v1387 = vpop.f32.mrb[0].mxu0
  %v1388 = vadd.f32 0.0, %v1387
  %v1389 = vpop.f32.mrb[0].mxu0
  %1390 = vmatprep.mubr.f32.mxu0 %v608
  %1391 = vmatmul.mubr.f32.gmra.mrb[0].mxu0 %v607
  %v1392 = vpop.f32.mrb[0].mxu0
  %v1393 = vadd.f32 0.0, %v1392
  %v1394 = vpop.f32.mrb[0].mxu0
  %1395 = vmatprep.mubr.f32.mxu0 %v624
  %1396 = vmatmul.mubr.f32.gmra.mrb[0].mxu0 %v623
  %v1397 = vpop.f32.mrb[0].mxu0
  %v1398 = vadd.f32 0.0, %v1397
  %v1399 = vpop.f32.mrb[0].mxu0
  %1400 = vmatprep.mubr.f32.mxu0 %v640
  %1401 = vmatmul.mubr.f32.gmra.mrb[0].mxu0 %v639
  %v1402 = vpop.f32.mrb[0].mxu0
  %v1403 = vadd.f32 0.0, %v1402
  %v1404 = vpop.f32.mrb[0].mxu0
  %1405 = vmatprep.mubr.f32.mxu0 %v656
  %1406 = vmatmul.mubr.f32.gmra.mrb[0].mxu0 %v655
  %v1407 = vpop.f32.mrb[0].mxu0
  %v1408 = vadd.f32 0.0, %v1407
  %v1409 = vpop.f32.mrb[0].mxu0
  %1410 = vdwg.mxu0
  %1411 = vmatprep.subr.mxu0 0.0
  %1412 = vmatpush1.msra.mxu0 %v831
  %1413 = vmatprep.subr.mxu0 0.0
  %1414 = vmatpush1.msra.mxu0 %v832
  %1415 = vmatprep.subr.mxu0 0.0
  %1416 = vmatpush1.msra.mxu0 %v833
  %1417 = vmatprep.subr.mxu0 0.0
  %1418 = vmatpush1.msra.mxu0 %v834
  %1419 = vmatprep.subr.mxu0 0.0
  %1420 = vmatpush1.msra.mxu0 %v835
  %1421 = vmatprep.subr.mxu0 0.0
  %1422 = vmatpush1.msra.mxu0 %v836
  %1423 = vmatprep.subr.mxu0 0.0
  %1424 = vmatpush1.msra.mxu0 %v837
  %1425 = vmatprep.subr.mxu0 0.0
  %1426 = vmatpush1.msra.mxu0 %v838
  %1427 = vmatprep.subr.mxu0 0.0
  %1428 = vmatpush1.msra.mxu0 %v839
  %1429 = vmatprep.subr.mxu0 0.0
  %1430 = vmatpush1.msra.mxu0 %v840
  %1431 = vmatprep.subr.mxu0 0.0
  %1432 = vmatpush1.msra.mxu0 %v841
  %1433 = vmatprep.subr.mxu0 0.0
  %1434 = vmatpush1.msra.mxu0 %v842
  %1435 = vmatprep.subr.mxu0 0.0
  %1436 = vmatpush1.msra.mxu0 %v843
  %1437 = vmatprep.subr.mxu0 0.0
  %1438 = vmatpush1.msra.mxu0 %v844
  %1439 = vmatprep.subr.mxu0 0.0
  %1440 = vmatpush1.msra.mxu0 %v845
  %1441 = vmatprep.subr.mxu0 0.0
  %1442 = vmatpush1.msra.mxu0 %v846
  %1443 = vmatprep.subr.mxu0 0.0
  %1444 = vmatpush1.msra.mxu0 %v847
  %1445 = vmatprep.subr.mxu0 0.0
  %1446 = vmatpush1.msra.mxu0 %v848
  %1447 = vmatprep.subr.mxu0 0.0
  %1448 = vmatpush1.msra.mxu0 %v849
  %1449 = vmatprep.subr.mxu0 0.0
  %1450 = vmatpush1.msra.mxu0 %v850
  %1451 = vmatprep.subr.mxu0 0.0
  %1452 = vmatpush1.msra.mxu0 %v851
  %1453 = vmatprep.subr.mxu0 0.0
  %1454 = vmatpush1.msra.mxu0 %v852
  %1455 = vmatprep.subr.mxu0 0.0
  %1456 = vmatpush1.msra.mxu0 %v853
  %1457 = vmatprep.subr.mxu0 0.0
  %1458 = vmatpush1.msra.mxu0 %v854
  %1459 = vmatprep.subr.mxu0 0.0
  %1460 = vmatpush1.msra.mxu0 %v855
  %1461 = vmatprep.subr.mxu0 0.0
  %1462 = vmatpush1.msra.mxu0 %v856
  %1463 = vmatprep.subr.mxu0 0.0
  %1464 = vmatpush1.msra.mxu0 %v857
  %1465 = vmatprep.subr.mxu0 0.0
  %1466 = vmatpush1.msra.mxu0 %v858
  %1467 = vmatprep.subr.mxu0 0.0
  %1468 = vmatpush1.msra.mxu0 %v859
  %1469 = vmatprep.subr.mxu0 0.0
  %1470 = vmatpush1.msra.mxu0 %v860
  %1471 = vmatprep.subr.mxu0 0.0
  %1472 = vmatpush1.msra.mxu0 %v861
  %1473 = vmatprep.subr.mxu0 0.0
  %1474 = vmatpush1.msra.mxu0 %v862
  %1475 = vmatprep.mubr.f32.mxu0 %v562
  %1476 = vmatmul.mubr.f32.gmra.mrb[0].mxu0 %v561
  %v1477 = vpop.f32.mrb[0].mxu0
  %v1478 = vadd.f32 %v1378, %v1477
  %v1479 = vpop.f32.mrb[0].mxu0
  %1480 = vmatprep.mubr.f32.mxu0 %v578
  %1481 = vmatmul.mubr.f32.gmra.mrb[0].mxu0 %v577
  %v1482 = vpop.f32.mrb[0].mxu0
  %v1483 = vadd.f32 %v1383, %v1482
  %v1484 = vpop.f32.mrb[0].mxu0
  %1485 = vmatprep.mubr.f32.mxu0 %v594
  %1486 = vmatmul.mubr.f32.gmra.mrb[0].mxu0 %v593
  %v1487 = vpop.f32.mrb[0].mxu0
  %v1488 = vadd.f32 %v1388, %v1487
  %v1489 = vpop.f32.mrb[0].mxu0
  %1490 = vmatprep.mubr.f32.mxu0 %v610
  %1491 = vmatmul.mubr.f32.gmra.mrb[0].mxu0 %v609
  %v1492 = vpop.f32.mrb[0].mxu0
  %v1493 = vadd.f32 %v1393, %v1492
  %v1494 = vpop.f32.mrb[0].mxu0
  %1495 = vmatprep.mubr.f32.mxu0 %v626
  %1496 = vmatmul.mubr.f32.gmra.mrb[0].mxu0 %v625
  %v1497 = vpop.f32.mrb[0].mxu0
  %v1498 = vadd.f32 %v1398, %v1497
  %v1499 = vpop.f32.mrb[0].mxu0
  %1500 = vmatprep.mubr.f32.mxu0 %v642
  %1501 = vmatmul.mubr.f32.gmra.mrb[0].mxu0 %v641
  %v1502 = vpop.f32.mrb[0].mxu0
  %v1503 = vadd.f32 %v1403, %v1502
  %v1504 = vpop.f32.mrb[0].mxu0
  %1505 = vmatprep.mubr.f32.mxu0 %v658
  %1506 = vmatmul.mubr.f32.gmra.mrb[0].mxu0 %v657
  %v1507 = vpop.f32.mrb[0].mxu0
  %v1508 = vadd.f32 %v1408, %v1507
  %v1509 = vpop.f32.mrb[0].mxu0
  %1510 = vdwg.mxu0
  %1511 = vmatprep.subr.mxu0 0.0
  %1512 = vmatpush1.msra.mxu0 %v863
  %1513 = vmatprep.subr.mxu0 0.0
  %1514 = vmatpush1.msra.mxu0 %v864
  %1515 = vmatprep.subr.mxu0 0.0
  %1516 = vmatpush1.msra.mxu0 %v865
  %1517 = vmatprep.subr.mxu0 0.0
  %1518 = vmatpush1.msra.mxu0 %v866
  %1519 = vmatprep.subr.mxu0 0.0
  %1520 = vmatpush1.msra.mxu0 %v867
  %1521 = vmatprep.subr.mxu0 0.0
  %1522 = vmatpush1.msra.mxu0 %v868
  %1523 = vmatprep.subr.mxu0 0.0
  %1524 = vmatpush1.msra.mxu0 %v869
  %1525 = vmatprep.subr.mxu0 0.0
  %1526 = vmatpush1.msra.mxu0 %v870
  %1527 = vmatprep.subr.mxu0 0.0
  %1528 = vmatpush1.msra.mxu0 %v871
  %1529 = vmatprep.subr.mxu0 0.0
  %1530 = vmatpush1.msra.mxu0 %v872
  %1531 = vmatprep.subr.mxu0 0.0
  %1532 = vmatpush1.msra.mxu0 %v873
  %1533 = vmatprep.subr.mxu0 0.0
  %1534 = vmatpush1.msra.mxu0 %v874
  %1535 = vmatprep.subr.mxu0 0.0
  %1536 = vmatpush1.msra.mxu0 %v875
  %1537 = vmatprep.subr.mxu0 0.0
  %1538 = vmatpush1.msra.mxu0 %v876
  %1539 = vmatprep.subr.mxu0 0.0
  %1540 = vmatpush1.msra.mxu0 %v877
  %1541 = vmatprep.subr.mxu0 0.0
  %1542 = vmatpush1.msra.mxu0 %v878
  %1543 = vmatprep.subr.mxu0 0.0
  %1544 = vmatpush1.msra.mxu0 %v879
  %1545 = vmatprep.subr.mxu0 0.0
  %1546 = vmatpush1.msra.mxu0 %v880
  %1547 = vmatprep.subr.mxu0 0.0
  %1548 = vmatpush1.msra.mxu0 %v881
  %1549 = vmatprep.subr.mxu0 0.0
  %1550 = vmatpush1.msra.mxu0 %v882
  %1551 = vmatprep.subr.mxu0 0.0
  %1552 = vmatpush1.msra.mxu0 %v883
  %1553 = vmatprep.subr.mxu0 0.0
  %1554 = vmatpush1.msra.mxu0 %v884
  %1555 = vmatprep.subr.mxu0 0.0
  %1556 = vmatpush1.msra.mxu0 %v885
  %1557 = vmatprep.subr.mxu0 0.0
  %1558 = vmatpush1.msra.mxu0 %v886
  %1559 = vmatprep.subr.mxu0 0.0
  %1560 = vmatpush1.msra.mxu0 %v887
  %1561 = vmatprep.subr.mxu0 0.0
  %1562 = vmatpush1.msra.mxu0 %v888
  %1563 = vmatprep.subr.mxu0 0.0
  %1564 = vmatpush1.msra.mxu0 %v889
  %1565 = vmatprep.subr.mxu0 0.0
  %1566 = vmatpush1.msra.mxu0 %v890
  %1567 = vmatprep.subr.mxu0 0.0
  %1568 = vmatpush1.msra.mxu0 %v891
  %1569 = vmatprep.subr.mxu0 0.0
  %1570 = vmatpush1.msra.mxu0 %v892
  %1571 = vmatprep.subr.mxu0 0.0
  %1572 = vmatpush1.msra.mxu0 %v893
  %1573 = vmatprep.subr.mxu0 0.0
  %1574 = vmatpush1.msra.mxu0 %v894
  %1575 = vmatprep.mubr.f32.mxu0 %v564
  %1576 = vmatmul.mubr.f32.gmra.mrb[0].mxu0 %v563
  %v1577 = vpop.f32.mrb[0].mxu0
  %v1578 = vadd.f32 %v1478, %v1577
  %v1579 = vpop.f32.mrb[0].mxu0
  %1580 = vmatprep.mubr.f32.mxu0 %v580
  %1581 = vmatmul.mubr.f32.gmra.mrb[0].mxu0 %v579
  %v1582 = vpop.f32.mrb[0].mxu0
  %v1583 = vadd.f32 %v1483, %v1582
  %v1584 = vpop.f32.mrb[0].mxu0
  %1585 = vmatprep.mubr.f32.mxu0 %v596
  %1586 = vmatmul.mubr.f32.gmra.mrb[0].mxu0 %v595
  %v1587 = vpop.f32.mrb[0].mxu0
  %v1588 = vadd.f32 %v1488, %v1587
  %v1589 = vpop.f32.mrb[0].mxu0
  %1590 = vmatprep.mubr.f32.mxu0 %v612
  %1591 = vmatmul.mubr.f32.gmra.mrb[0].mxu0 %v611
  %v1592 = vpop.f32.mrb[0].mxu0
  %v1593 = vadd.f32 %v1493, %v1592
  %v1594 = vpop.f32.mrb[0].mxu0
  %1595 = vmatprep.mubr.f32.mxu0 %v628
  %1596 = vmatmul.mubr.f32.gmra.mrb[0].mxu0 %v627
  %v1597 = vpop.f32.mrb[0].mxu0
  %v1598 = vadd.f32 %v1498, %v1597
  %v1599 = vpop.f32.mrb[0].mxu0
  %1600 = vmatprep.mubr.f32.mxu0 %v644
  %1601 = vmatmul.mubr.f32.gmra.mrb[0].mxu0 %v643
  %v1602 = vpop.f32.mrb[0].mxu0
  %v1603 = vadd.f32 %v1503, %v1602
  %v1604 = vpop.f32.mrb[0].mxu0
  %1605 = vmatprep.mubr.f32.mxu0 %v660
  %1606 = vmatmul.mubr.f32.gmra.mrb[0].mxu0 %v659
  %v1607 = vpop.f32.mrb[0].mxu0
  %v1608 = vadd.f32 %v1508, %v1607
  %v1609 = vpop.f32.mrb[0].mxu0
  %1610 = vdwg.mxu0
  %1611 = vmatprep.subr.mxu0 0.0
  %1612 = vmatpush1.msra.mxu0 %v895
  %1613 = vmatprep.subr.mxu0 0.0
  %1614 = vmatpush1.msra.mxu0 %v896
  %1615 = vmatprep.subr.mxu0 0.0
  %1616 = vmatpush1.msra.mxu0 %v897
  %1617 = vmatprep.subr.mxu0 0.0
  %1618 = vmatpush1.msra.mxu0 %v898
  %1619 = vmatprep.subr.mxu0 0.0
  %1620 = vmatpush1.msra.mxu0 %v899
  %1621 = vmatprep.subr.mxu0 0.0
  %1622 = vmatpush1.msra.mxu0 %v900
  %1623 = vmatprep.subr.mxu0 0.0
  %1624 = vmatpush1.msra.mxu0 %v901
  %1625 = vmatprep.subr.mxu0 0.0
  %1626 = vmatpush1.msra.mxu0 %v902
  %1627 = vmatprep.subr.mxu0 0.0
  %1628 = vmatpush1.msra.mxu0 %v903
  %1629 = vmatprep.subr.mxu0 0.0
  %1630 = vmatpush1.msra.mxu0 %v904
  %1631 = vmatprep.subr.mxu0 0.0
  %1632 = vmatpush1.msra.mxu0 %v905
  %1633 = vmatprep.subr.mxu0 0.0
  %1634 = vmatpush1.msra.mxu0 %v906
  %1635 = vmatprep.subr.mxu0 0.0
  %1636 = vmatpush1.msra.mxu0 %v907
  %1637 = vmatprep.subr.mxu0 0.0
  %1638 = vmatpush1.msra.mxu0 %v908
  %1639 = vmatprep.subr.mxu0 0.0
  %1640 = vmatpush1.msra.mxu0 %v909
  %1641 = vmatprep.subr.mxu0 0.0
  %1642 = vmatpush1.msra.mxu0 %v910
  %1643 = vmatprep.subr.mxu0 0.0
  %1644 = vmatpush1.msra.mxu0 %v911
  %1645 = vmatprep.subr.mxu0 0.0
  %1646 = vmatpush1.msra.mxu0 %v912
  %1647 = vmatprep.subr.mxu0 0.0
  %1648 = vmatpush1.msra.mxu0 %v913
  %1649 = vmatprep.subr.mxu0 0.0
  %1650 = vmatpush1.msra.mxu0 %v914
  %1651 = vmatprep.subr.mxu0 0.0
  %1652 = vmatpush1.msra.mxu0 %v915
  %1653 = vmatprep.subr.mxu0 0.0
  %1654 = vmatpush1.msra.mxu0 %v916
  %1655 = vmatprep.subr.mxu0 0.0
  %1656 = vmatpush1.msra.mxu0 %v917
  %1657 = vmatprep.subr.mxu0 0.0
  %1658 = vmatpush1.msra.mxu0 %v918
  %1659 = vmatprep.subr.mxu0 0.0
  %1660 = vmatpush1.msra.mxu0 %v919
  %1661 = vmatprep.subr.mxu0 0.0
  %1662 = vmatpush1.msra.mxu0 %v920
  %1663 = vmatprep.subr.mxu0 0.0
  %1664 = vmatpush1.msra.mxu0 %v921
  %1665 = vmatprep.subr.mxu0 0.0
  %1666 = vmatpush1.msra.mxu0 %v922
  %1667 = vmatprep.subr.mxu0 0.0
  %1668 = vmatpush1.msra.mxu0 %v923
  %1669 = vmatprep.subr.mxu0 0.0
  %1670 = vmatpush1.msra.mxu0 %v924
  %1671 = vmatprep.subr.mxu0 0.0
  %1672 = vmatpush1.msra.mxu0 %v925
  %1673 = vmatprep.subr.mxu0 0.0
  %1674 = vmatpush1.msra.mxu0 %v926
  %1675 = vmatprep.mubr.f32.mxu0 %v566
  %1676 = vmatmul.mubr.f32.gmra.mrb[0].mxu0 %v565
  %v1677 = vpop.f32.mrb[0].mxu0
  %v1678 = vadd.f32 %v1578, %v1677
  %v1679 = vpop.f32.mrb[0].mxu0
  %1680 = vmatprep.mubr.f32.mxu0 %v582
  %1681 = vmatmul.mubr.f32.gmra.mrb[0].mxu0 %v581
  %v1682 = vpop.f32.mrb[0].mxu0
  %v1683 = vadd.f32 %v1583, %v1682
  %v1684 = vpop.f32.mrb[0].mxu0
  %1685 = vmatprep.mubr.f32.mxu0 %v598
  %1686 = vmatmul.mubr.f32.gmra.mrb[0].mxu0 %v597
  %v1687 = vpop.f32.mrb[0].mxu0
  %v1688 = vadd.f32 %v1588, %v1687
  %v1689 = vpop.f32.mrb[0].mxu0
  %1690 = vmatprep.mubr.f32.mxu0 %v614
  %1691 = vmatmul.mubr.f32.gmra.mrb[0].mxu0 %v613
  %v1692 = vpop.f32.mrb[0].mxu0
  %v1693 = vadd.f32 %v1593, %v1692
  %v1694 = vpop.f32.mrb[0].mxu0
  %1695 = vmatprep.mubr.f32.mxu0 %v630
  %1696 = vmatmul.mubr.f32.gmra.mrb[0].mxu0 %v629
  %v1697 = vpop.f32.mrb[0].mxu0
  %v1698 = vadd.f32 %v1598, %v1697
  %v1699 = vpop.f32.mrb[0].mxu0
  %1700 = vmatprep.mubr.f32.mxu0 %v646
  %1701 = vmatmul.mubr.f32.gmra.mrb[0].mxu0 %v645
  %v1702 = vpop.f32.mrb[0].mxu0
  %v1703 = vadd.f32 %v1603, %v1702
  %v1704 = vpop.f32.mrb[0].mxu0
  %1705 = vmatprep.mubr.f32.mxu0 %v662
  %1706 = vmatmul.mubr.f32.gmra.mrb[0].mxu0 %v661
  %v1707 = vpop.f32.mrb[0].mxu0
  %v1708 = vadd.f32 %v1608, %v1707
  %v1709 = vpop.f32.mrb[0].mxu0
  %1710 = vdwg.mxu0
  %1711 = vmatprep.subr.mxu0 0.0
  %1712 = vmatpush1.msra.mxu0 %v927
  %1713 = vmatprep.subr.mxu0 0.0
  %1714 = vmatpush1.msra.mxu0 %v928
  %1715 = vmatprep.subr.mxu0 0.0
  %1716 = vmatpush1.msra.mxu0 %v929
  %1717 = vmatprep.subr.mxu0 0.0
  %1718 = vmatpush1.msra.mxu0 %v930
  %1719 = vmatprep.subr.mxu0 0.0
  %1720 = vmatpush1.msra.mxu0 %v931
  %1721 = vmatprep.subr.mxu0 0.0
  %1722 = vmatpush1.msra.mxu0 %v932
  %1723 = vmatprep.subr.mxu0 0.0
  %1724 = vmatpush1.msra.mxu0 %v933
  %1725 = vmatprep.subr.mxu0 0.0
  %1726 = vmatpush1.msra.mxu0 %v934
  %1727 = vmatprep.subr.mxu0 0.0
  %1728 = vmatpush1.msra.mxu0 %v935
  %1729 = vmatprep.subr.mxu0 0.0
  %1730 = vmatpush1.msra.mxu0 %v936
  %1731 = vmatprep.subr.mxu0 0.0
  %1732 = vmatpush1.msra.mxu0 %v937
  %1733 = vmatprep.subr.mxu0 0.0
  %1734 = vmatpush1.msra.mxu0 %v938
  %1735 = vmatprep.subr.mxu0 0.0
  %1736 = vmatpush1.msra.mxu0 %v939
  %1737 = vmatprep.subr.mxu0 0.0
  %1738 = vmatpush1.msra.mxu0 %v940
  %1739 = vmatprep.subr.mxu0 0.0
  %1740 = vmatpush1.msra.mxu0 %v941
  %1741 = vmatprep.subr.mxu0 0.0
  %1742 = vmatpush1.msra.mxu0 %v942
  %1743 = vmatprep.subr.mxu0 0.0
  %1744 = vmatpush1.msra.mxu0 %v943
  %1745 = vmatprep.subr.mxu0 0.0
  %1746 = vmatpush1.msra.mxu0 %v944
  %1747 = vmatprep.subr.mxu0 0.0
  %1748 = vmatpush1.msra.mxu0 %v945
  %1749 = vmatprep.subr.mxu0 0.0
  %1750 = vmatpush1.msra.mxu0 %v946
  %1751 = vmatprep.subr.mxu0 0.0
  %1752 = vmatpush1.msra.mxu0 %v947
  %1753 = vmatprep.subr.mxu0 0.0
  %1754 = vmatpush1.msra.mxu0 %v948
  %1755 = vmatprep.subr.mxu0 0.0
  %1756 = vmatpush1.msra.mxu0 %v949
  %1757 = vmatprep.subr.mxu0 0.0
  %1758 = vmatpush1.msra.mxu0 %v950
  %1759 = vmatprep.subr.mxu0 0.0
  %1760 = vmatpush1.msra.mxu0 %v951
  %1761 = vmatprep.subr.mxu0 0.0
  %1762 = vmatpush1.msra.mxu0 %v952
  %1763 = vmatprep.subr.mxu0 0.0
  %1764 = vmatpush1.msra.mxu0 %v953
  %1765 = vmatprep.subr.mxu0 0.0
  %1766 = vmatpush1.msra.mxu0 %v954
  %1767 = vmatprep.subr.mxu0 0.0
  %1768 = vmatpush1.msra.mxu0 %v955
  %1769 = vmatprep.subr.mxu0 0.0
  %1770 = vmatpush1.msra.mxu0 %v956
  %1771 = vmatprep.subr.mxu0 0.0
  %1772 = vmatpush1.msra.mxu0 %v957
  %1773 = vmatprep.subr.mxu0 0.0
  %1774 = vmatpush1.msra.mxu0 %v958
  %1775 = vmatprep.mubr.f32.mxu0 %v568
  %1776 = vmatmul.mubr.f32.gmra.mrb[0].mxu0 %v567
  %v1777 = vpop.f32.mrb[0].mxu0
  %v1778 = vadd.f32 %v1678, %v1777
  %v1779 = vpop.f32.mrb[0].mxu0
  %1780 = vmatprep.mubr.f32.mxu0 %v584
  %1781 = vmatmul.mubr.f32.gmra.mrb[0].mxu0 %v583
  %v1782 = vpop.f32.mrb[0].mxu0
  %v1783 = vadd.f32 %v1683, %v1782
  %v1784 = vpop.f32.mrb[0].mxu0
  %1785 = vmatprep.mubr.f32.mxu0 %v600
  %1786 = vmatmul.mubr.f32.gmra.mrb[0].mxu0 %v599
  %v1787 = vpop.f32.mrb[0].mxu0
  %v1788 = vadd.f32 %v1688, %v1787
  %v1789 = vpop.f32.mrb[0].mxu0
  %1790 = vmatprep.mubr.f32.mxu0 %v616
  %1791 = vmatmul.mubr.f32.gmra.mrb[0].mxu0 %v615
  %v1792 = vpop.f32.mrb[0].mxu0
  %v1793 = vadd.f32 %v1693, %v1792
  %v1794 = vpop.f32.mrb[0].mxu0
  %1795 = vmatprep.mubr.f32.mxu0 %v632
  %1796 = vmatmul.mubr.f32.gmra.mrb[0].mxu0 %v631
  %v1797 = vpop.f32.mrb[0].mxu0
  %v1798 = vadd.f32 %v1698, %v1797
  %v1799 = vpop.f32.mrb[0].mxu0
  %1800 = vmatprep.mubr.f32.mxu0 %v648
  %1801 = vmatmul.mubr.f32.gmra.mrb[0].mxu0 %v647
  %v1802 = vpop.f32.mrb[0].mxu0
  %v1803 = vadd.f32 %v1703, %v1802
  %v1804 = vpop.f32.mrb[0].mxu0
  %1805 = vmatprep.mubr.f32.mxu0 %v664
  %1806 = vmatmul.mubr.f32.gmra.mrb[0].mxu0 %v663
  %v1807 = vpop.f32.mrb[0].mxu0
  %v1808 = vadd.f32 %v1708, %v1807
  %v1809 = vpop.f32.mrb[0].mxu0
  %1810 = vdwg.mxu0
  %1811 = vmatprep.subr.mxu0 0.0
  %1812 = vmatpush1.msra.mxu0 %v959
  %1813 = vmatprep.subr.mxu0 0.0
  %1814 = vmatpush1.msra.mxu0 %v960
  %1815 = vmatprep.subr.mxu0 0.0
  %1816 = vmatpush1.msra.mxu0 %v961
  %1817 = vmatprep.subr.mxu0 0.0
  %1818 = vmatpush1.msra.mxu0 %v962
  %1819 = vmatprep.subr.mxu0 0.0
  %1820 = vmatpush1.msra.mxu0 %v963
  %1821 = vmatprep.subr.mxu0 0.0
  %1822 = vmatpush1.msra.mxu0 %v964
  %1823 = vmatprep.subr.mxu0 0.0
  %1824 = vmatpush1.msra.mxu0 %v965
  %1825 = vmatprep.subr.mxu0 0.0
  %1826 = vmatpush1.msra.mxu0 %v966
  %1827 = vmatprep.subr.mxu0 0.0
  %1828 = vmatpush1.msra.mxu0 %v967
  %1829 = vmatprep.subr.mxu0 0.0
  %1830 = vmatpush1.msra.mxu0 %v968
  %1831 = vmatprep.subr.mxu0 0.0
  %1832 = vmatpush1.msra.mxu0 %v969
  %1833 = vmatprep.subr.mxu0 0.0
  %1834 = vmatpush1.msra.mxu0 %v970
  %1835 = vmatprep.subr.mxu0 0.0
  %1836 = vmatpush1.msra.mxu0 %v971
  %1837 = vmatprep.subr.mxu0 0.0
  %1838 = vmatpush1.msra.mxu0 %v972
  %1839 = vmatprep.subr.mxu0 0.0
  %1840 = vmatpush1.msra.mxu0 %v973
  %1841 = vmatprep.subr.mxu0 0.0
  %1842 = vmatpush1.msra.mxu0 %v974
  %1843 = vmatprep.subr.mxu0 0.0
  %1844 = vmatpush1.msra.mxu0 %v975
  %1845 = vmatprep.subr.mxu0 0.0
  %1846 = vmatpush1.msra.mxu0 %v976
  %1847 = vmatprep.subr.mxu0 0.0
  %1848 = vmatpush1.msra.mxu0 %v977
  %1849 = vmatprep.subr.mxu0 0.0
  %1850 = vmatpush1.msra.mxu0 %v978
  %1851 = vmatprep.subr.mxu0 0.0
  %1852 = vmatpush1.msra.mxu0 %v979
  %1853 = vmatprep.subr.mxu0 0.0
  %1854 = vmatpush1.msra.mxu0 %v980
  %1855 = vmatprep.subr.mxu0 0.0
  %1856 = vmatpush1.msra.mxu0 %v981
  %1857 = vmatprep.subr.mxu0 0.0
  %1858 = vmatpush1.msra.mxu0 %v982
  %1859 = vmatprep.subr.mxu0 0.0
  %1860 = vmatpush1.msra.mxu0 %v983
  %1861 = vmatprep.subr.mxu0 0.0
  %1862 = vmatpush1.msra.mxu0 %v984
  %1863 = vmatprep.subr.mxu0 0.0
  %1864 = vmatpush1.msra.mxu0 %v985
  %1865 = vmatprep.subr.mxu0 0.0
  %1866 = vmatpush1.msra.mxu0 %v986
  %1867 = vmatprep.subr.mxu0 0.0
  %1868 = vmatpush1.msra.mxu0 %v987
  %1869 = vmatprep.subr.mxu0 0.0
  %1870 = vmatpush1.msra.mxu0 %v988
  %1871 = vmatprep.subr.mxu0 0.0
  %1872 = vmatpush1.msra.mxu0 %v989
  %1873 = vmatprep.subr.mxu0 0.0
  %1874 = vmatpush1.msra.mxu0 %v990
  %1875 = vmatprep.mubr.f32.mxu0 %v570
  %1876 = vmatmul.mubr.f32.gmra.mrb[0].mxu0 %v569
  %v1877 = vpop.f32.mrb[0].mxu0
  %v1878 = vadd.f32 %v1778, %v1877
  %v1879 = vpop.f32.mrb[0].mxu0
  %1880 = vmatprep.mubr.f32.mxu0 %v586
  %1881 = vmatmul.mubr.f32.gmra.mrb[0].mxu0 %v585
  %v1882 = vpop.f32.mrb[0].mxu0
  %v1883 = vadd.f32 %v1783, %v1882
  %v1884 = vpop.f32.mrb[0].mxu0
  %1885 = vmatprep.mubr.f32.mxu0 %v602
  %1886 = vmatmul.mubr.f32.gmra.mrb[0].mxu0 %v601
  %v1887 = vpop.f32.mrb[0].mxu0
  %v1888 = vadd.f32 %v1788, %v1887
  %v1889 = vpop.f32.mrb[0].mxu0
  %1890 = vmatprep.mubr.f32.mxu0 %v618
  %1891 = vmatmul.mubr.f32.gmra.mrb[0].mxu0 %v617
  %v1892 = vpop.f32.mrb[0].mxu0
  %v1893 = vadd.f32 %v1793, %v1892
  %v1894 = vpop.f32.mrb[0].mxu0
  %1895 = vmatprep.mubr.f32.mxu0 %v634
  %1896 = vmatmul.mubr.f32.gmra.mrb[0].mxu0 %v633
  %v1897 = vpop.f32.mrb[0].mxu0
  %v1898 = vadd.f32 %v1798, %v1897
  %v1899 = vpop.f32.mrb[0].mxu0
  %1900 = vmatprep.mubr.f32.mxu0 %v650
  %1901 = vmatmul.mubr.f32.gmra.mrb[0].mxu0 %v649
  %v1902 = vpop.f32.mrb[0].mxu0
  %v1903 = vadd.f32 %v1803, %v1902
  %v1904 = vpop.f32.mrb[0].mxu0
  %1905 = vmatprep.mubr.f32.mxu0 %v666
  %1906 = vmatmul.mubr.f32.gmra.mrb[0].mxu0 %v665
  %v1907 = vpop.f32.mrb[0].mxu0
  %v1908 = vadd.f32 %v1808, %v1907
  %v1909 = vpop.f32.mrb[0].mxu0
  %1910 = vdwg.mxu0
  %1911 = vmatprep.subr.mxu0 0.0
  %1912 = vmatpush1.msra.mxu0 %v991
  %1913 = vmatprep.subr.mxu0 0.0
  %1914 = vmatpush1.msra.mxu0 %v992
  %1915 = vmatprep.subr.mxu0 0.0
  %1916 = vmatpush1.msra.mxu0 %v993
  %1917 = vmatprep.subr.mxu0 0.0
  %1918 = vmatpush1.msra.mxu0 %v994
  %1919 = vmatprep.subr.mxu0 0.0
  %1920 = vmatpush1.msra.mxu0 %v995
  %1921 = vmatprep.subr.mxu0 0.0
  %1922 = vmatpush1.msra.mxu0 %v996
  %1923 = vmatprep.subr.mxu0 0.0
  %1924 = vmatpush1.msra.mxu0 %v997
  %1925 = vmatprep.subr.mxu0 0.0
  %1926 = vmatpush1.msra.mxu0 %v998
  %1927 = vmatprep.subr.mxu0 0.0
  %1928 = vmatpush1.msra.mxu0 %v999
  %1929 = vmatprep.subr.mxu0 0.0
  %1930 = vmatpush1.msra.mxu0 %v1000
  %1931 = vmatprep.subr.mxu0 0.0
  %1932 = vmatpush1.msra.mxu0 %v1001
  %1933 = vmatprep.subr.mxu0 0.0
  %1934 = vmatpush1.msra.mxu0 %v1002
  %1935 = vmatprep.subr.mxu0 0.0
  %1936 = vmatpush1.msra.mxu0 %v1003
  %1937 = vmatprep.subr.mxu0 0.0
  %1938 = vmatpush1.msra.mxu0 %v1004
  %1939 = vmatprep.subr.mxu0 0.0
  %1940 = vmatpush1.msra.mxu0 %v1005
  %1941 = vmatprep.subr.mxu0 0.0
  %1942 = vmatpush1.msra.mxu0 %v1006
  %1943 = vmatprep.subr.mxu0 0.0
  %1944 = vmatpush1.msra.mxu0 %v1007
  %1945 = vmatprep.subr.mxu0 0.0
  %1946 = vmatpush1.msra.mxu0 %v1008
  %1947 = vmatprep.subr.mxu0 0.0
  %1948 = vmatpush1.msra.mxu0 %v1009
  %1949 = vmatprep.subr.mxu0 0.0
  %1950 = vmatpush1.msra.mxu0 %v1010
  %1951 = vmatprep.subr.mxu0 0.0
  %1952 = vmatpush1.msra.mxu0 %v1011
  %1953 = vmatprep.subr.mxu0 0.0
  %1954 = vmatpush1.msra.mxu0 %v1012
  %1955 = vmatprep.subr.mxu0 0.0
  %1956 = vmatpush1.msra.mxu0 %v1013
  %1957 = vmatprep.subr.mxu0 0.0
  %1958 = vmatpush1.msra.mxu0 %v1014
  %1959 = vmatprep.subr.mxu0 0.0
  %1960 = vmatpush1.msra.mxu0 %v1015
  %1961 = vmatprep.subr.mxu0 0.0
  %1962 = vmatpush1.msra.mxu0 %v1016
  %1963 = vmatprep.subr.mxu0 0.0
  %1964 = vmatpush1.msra.mxu0 %v1017
  %1965 = vmatprep.subr.mxu0 0.0
  %1966 = vmatpush1.msra.mxu0 %v1018
  %1967 = vmatprep.subr.mxu0 0.0
  %1968 = vmatpush1.msra.mxu0 %v1019
  %1969 = vmatprep.subr.mxu0 0.0
  %1970 = vmatpush1.msra.mxu0 %v1020
  %1971 = vmatprep.subr.mxu0 0.0
  %1972 = vmatpush1.msra.mxu0 %v1021
  %1973 = vmatprep.subr.mxu0 0.0
  %1974 = vmatpush1.msra.mxu0 %v1022
  %1975 = vmatprep.mubr.f32.mxu0 %v572
  %1976 = vmatmul.mubr.f32.gmra.mrb[0].mxu0 %v571
  %v1977 = vpop.f32.mrb[0].mxu0
  %v1978 = vadd.f32 %v1878, %v1977
  %v1979 = vpop.f32.mrb[0].mxu0
  %1980 = vmatprep.mubr.f32.mxu0 %v588
  %1981 = vmatmul.mubr.f32.gmra.mrb[0].mxu0 %v587
  %v1982 = vpop.f32.mrb[0].mxu0
  %v1983 = vadd.f32 %v1883, %v1982
  %v1984 = vpop.f32.mrb[0].mxu0
  %1985 = vmatprep.mubr.f32.mxu0 %v604
  %1986 = vmatmul.mubr.f32.gmra.mrb[0].mxu0 %v603
  %v1987 = vpop.f32.mrb[0].mxu0
  %v1988 = vadd.f32 %v1888, %v1987
  %v1989 = vpop.f32.mrb[0].mxu0
  %1990 = vmatprep.mubr.f32.mxu0 %v620
  %1991 = vmatmul.mubr.f32.gmra.mrb[0].mxu0 %v619
  %v1992 = vpop.f32.mrb[0].mxu0
  %v1993 = vadd.f32 %v1893, %v1992
  %v1994 = vpop.f32.mrb[0].mxu0
  %1995 = vmatprep.mubr.f32.mxu0 %v636
  %1996 = vmatmul.mubr.f32.gmra.mrb[0].mxu0 %v635
  %v1997 = vpop.f32.mrb[0].mxu0
  %v1998 = vadd.f32 %v1898, %v1997
  %v1999 = vpop.f32.mrb[0].mxu0
  %2000 = vmatprep.mubr.f32.mxu0 %v652
  %2001 = vmatmul.mubr.f32.gmra.mrb[0].mxu0 %v651
  %v2002 = vpop.f32.mrb[0].mxu0
  %v2003 = vadd.f32 %v1903, %v2002
  %v2004 = vpop.f32.mrb[0].mxu0
  %2005 = vmatprep.mubr.f32.mxu0 %v668
  %2006 = vmatmul.mubr.f32.gmra.mrb[0].mxu0 %v667
  %v2007 = vpop.f32.mrb[0].mxu0
  %v2008 = vadd.f32 %v1908, %v2007
  %v2009 = vpop.f32.mrb[0].mxu0
  %2010 = vdwg.mxu0
  %2011 = vmatprep.subr.mxu0 0.0
  %2012 = vmatpush1.msra.mxu0 %v1023
  %2013 = vmatprep.subr.mxu0 0.0
  %2014 = vmatpush1.msra.mxu0 %v1024
  %2015 = vmatprep.subr.mxu0 0.0
  %2016 = vmatpush1.msra.mxu0 %v1025
  %2017 = vmatprep.subr.mxu0 0.0
  %2018 = vmatpush1.msra.mxu0 %v1026
  %2019 = vmatprep.subr.mxu0 0.0
  %2020 = vmatpush1.msra.mxu0 %v1027
  %2021 = vmatprep.subr.mxu0 0.0
  %2022 = vmatpush1.msra.mxu0 %v1028
  %2023 = vmatprep.subr.mxu0 0.0
  %2024 = vmatpush1.msra.mxu0 %v1029
  %2025 = vmatprep.subr.mxu0 0.0
  %2026 = vmatpush1.msra.mxu0 %v1030
  %2027 = vmatprep.subr.mxu0 0.0
  %2028 = vmatpush1.msra.mxu0 %v1031
  %2029 = vmatprep.subr.mxu0 0.0
  %2030 = vmatpush1.msra.mxu0 %v1032
  %2031 = vmatprep.subr.mxu0 0.0
  %2032 = vmatpush1.msra.mxu0 %v1033
  %2033 = vmatprep.subr.mxu0 0.0
  %2034 = vmatpush1.msra.mxu0 %v1034
  %2035 = vmatprep.subr.mxu0 0.0
  %2036 = vmatpush1.msra.mxu0 %v1035
  %2037 = vmatprep.subr.mxu0 0.0
  %2038 = vmatpush1.msra.mxu0 %v1036
  %2039 = vmatprep.subr.mxu0 0.0
  %2040 = vmatpush1.msra.mxu0 %v1037
  %2041 = vmatprep.subr.mxu0 0.0
  %2042 = vmatpush1.msra.mxu0 %v1038
  %2043 = vmatprep.subr.mxu0 0.0
  %2044 = vmatpush1.msra.mxu0 %v1039
  %2045 = vmatprep.subr.mxu0 0.0
  %2046 = vmatpush1.msra.mxu0 %v1040
  %2047 = vmatprep.subr.mxu0 0.0
  %2048 = vmatpush1.msra.mxu0 %v1041
  %2049 = vmatprep.subr.mxu0 0.0
  %2050 = vmatpush1.msra.mxu0 %v1042
  %2051 = vmatprep.subr.mxu0 0.0
  %2052 = vmatpush1.msra.mxu0 %v1043
  %2053 = vmatprep.subr.mxu0 0.0
  %2054 = vmatpush1.msra.mxu0 %v1044
  %2055 = vmatprep.subr.mxu0 0.0
  %2056 = vmatpush1.msra.mxu0 %v1045
  %2057 = vmatprep.subr.mxu0 0.0
  %2058 = vmatpush1.msra.mxu0 %v1046
  %2059 = vmatprep.subr.mxu0 0.0
  %2060 = vmatpush1.msra.mxu0 %v1047
  %2061 = vmatprep.subr.mxu0 0.0
  %2062 = vmatpush1.msra.mxu0 %v1048
  %2063 = vmatprep.subr.mxu0 0.0
  %2064 = vmatpush1.msra.mxu0 %v1049
  %2065 = vmatprep.subr.mxu0 0.0
  %2066 = vmatpush1.msra.mxu0 %v1050
  %2067 = vmatprep.subr.mxu0 0.0
  %2068 = vmatpush1.msra.mxu0 %v1051
  %2069 = vmatprep.subr.mxu0 0.0
  %2070 = vmatpush1.msra.mxu0 %v1052
  %2071 = vmatprep.subr.mxu0 0.0
  %2072 = vmatpush1.msra.mxu0 %v1053
  %2073 = vmatprep.subr.mxu0 0.0
  %2074 = vmatpush1.msra.mxu0 %v1054
  %2075 = vmatprep.mubr.f32.mxu0 %v574
  %2076 = vmatmul.mubr.f32.gmra.mrb[0].mxu0 %v573
  %v2077 = vpop.f32.mrb[0].mxu0
  %v2078 = vadd.f32 %v1978, %v2077
  %v2079 = vpop.f32.mrb[0].mxu0
  %2080 = vmatprep.mubr.f32.mxu0 %v590
  %2081 = vmatmul.mubr.f32.gmra.mrb[0].mxu0 %v589
  %v2082 = vpop.f32.mrb[0].mxu0
  %v2083 = vadd.f32 %v1983, %v2082
  %v2084 = vpop.f32.mrb[0].mxu0
  %2085 = vmatprep.mubr.f32.mxu0 %v606
  %2086 = vmatmul.mubr.f32.gmra.mrb[0].mxu0 %v605
  %v2087 = vpop.f32.mrb[0].mxu0
  %v2088 = vadd.f32 %v1988, %v2087
  %v2089 = vpop.f32.mrb[0].mxu0
  %2090 = vmatprep.mubr.f32.mxu0 %v622
  %2091 = vmatmul.mubr.f32.gmra.mrb[0].mxu0 %v621
  %v2092 = vpop.f32.mrb[0].mxu0
  %v2093 = vadd.f32 %v1993, %v2092
  %v2094 = vpop.f32.mrb[0].mxu0
  %2095 = vmatprep.mubr.f32.mxu0 %v638
  %2096 = vmatmul.mubr.f32.gmra.mrb[0].mxu0 %v637
  %v2097 = vpop.f32.mrb[0].mxu0
  %v2098 = vadd.f32 %v1998, %v2097
  %v2099 = vpop.f32.mrb[0].mxu0
  %2100 = vmatprep.mubr.f32.mxu0 %v654
  %2101 = vmatmul.mubr.f32.gmra.mrb[0].mxu0 %v653
  %v2102 = vpop.f32.mrb[0].mxu0
  %v2103 = vadd.f32 %v2003, %v2102
  %v2104 = vpop.f32.mrb[0].mxu0
  %2105 = vmatprep.mubr.f32.mxu0 %v670
  %2106 = vmatmul.mubr.f32.gmra.mrb[0].mxu0 %v669
  %v2107 = vpop.f32.mrb[0].mxu0
  %v2108 = vadd.f32 %v2008, %v2107
  %v2109 = vpop.f32.mrb[0].mxu0
  %2110 = vdwg.mxu0
  %2111 = vmatprep.subr.mxu0 0.0
  %2112 = vmatpush1.msra.mxu0 %v799
  %2113 = vmatprep.subr.mxu0 0.0
  %2114 = vmatpush1.msra.mxu0 %v800
  %2115 = vmatprep.subr.mxu0 0.0
  %2116 = vmatpush1.msra.mxu0 %v801
  %2117 = vmatprep.subr.mxu0 0.0
  %2118 = vmatpush1.msra.mxu0 %v802
  %2119 = vmatprep.subr.mxu0 0.0
  %2120 = vmatpush1.msra.mxu0 %v803
  %2121 = vmatprep.subr.mxu0 0.0
  %2122 = vmatpush1.msra.mxu0 %v804
  %2123 = vmatprep.subr.mxu0 0.0
  %2124 = vmatpush1.msra.mxu0 %v805
  %2125 = vmatprep.subr.mxu0 0.0
  %2126 = vmatpush1.msra.mxu0 %v806
  %2127 = vmatprep.subr.mxu0 0.0
  %2128 = vmatpush1.msra.mxu0 %v807
  %2129 = vmatprep.subr.mxu0 0.0
  %2130 = vmatpush1.msra.mxu0 %v808
  %2131 = vmatprep.subr.mxu0 0.0
  %2132 = vmatpush1.msra.mxu0 %v809
  %2133 = vmatprep.subr.mxu0 0.0
  %2134 = vmatpush1.msra.mxu0 %v810
  %2135 = vmatprep.subr.mxu0 0.0
  %2136 = vmatpush1.msra.mxu0 %v811
  %2137 = vmatprep.subr.mxu0 0.0
  %2138 = vmatpush1.msra.mxu0 %v812
  %2139 = vmatprep.subr.mxu0 0.0
  %2140 = vmatpush1.msra.mxu0 %v813
  %2141 = vmatprep.subr.mxu0 0.0
  %2142 = vmatpush1.msra.mxu0 %v814
  %2143 = vmatprep.subr.mxu0 0.0
  %2144 = vmatpush1.msra.mxu0 %v815
  %2145 = vmatprep.subr.mxu0 0.0
  %2146 = vmatpush1.msra.mxu0 %v816
  %2147 = vmatprep.subr.mxu0 0.0
  %2148 = vmatpush1.msra.mxu0 %v817
  %2149 = vmatprep.subr.mxu0 0.0
  %2150 = vmatpush1.msra.mxu0 %v818
  %2151 = vmatprep.subr.mxu0 0.0
  %2152 = vmatpush1.msra.mxu0 %v819
  %2153 = vmatprep.subr.mxu0 0.0
  %2154 = vmatpush1.msra.mxu0 %v820
  %2155 = vmatprep.subr.mxu0 0.0
  %2156 = vmatpush1.msra.mxu0 %v821
  %2157 = vmatprep.subr.mxu0 0.0
  %2158 = vmatpush1.msra.mxu0 %v822
  %2159 = vmatprep.subr.mxu0 0.0
  %2160 = vmatpush1.msra.mxu0 %v823
  %2161 = vmatprep.subr.mxu0 0.0
  %2162 = vmatpush1.msra.mxu0 %v824
  %2163 = vmatprep.subr.mxu0 0.0
  %2164 = vmatpush1.msra.mxu0 %v825
  %2165 = vmatprep.subr.mxu0 0.0
  %2166 = vmatpush1.msra.mxu0 %v826
  %2167 = vmatprep.subr.mxu0 0.0
  %2168 = vmatpush1.msra.mxu0 %v827
  %2169 = vmatprep.subr.mxu0 0.0
  %2170 = vmatpush1.msra.mxu0 %v828
  %2171 = vmatprep.subr.mxu0 0.0
  %2172 = vmatpush1.msra.mxu0 %v829
  %2173 = vmatprep.subr.mxu0 0.0
  %2174 = vmatpush1.msra.mxu0 %v830
  %2175 = vmatprep.mubr.f32.mxu0 %v448
  %2176 = vmatmul.mubr.f32.gmra.mrb[0].mxu0 %v447
  %v2177 = vpop.f32.mrb[0].mxu0
  %v2178 = vadd.f32 %v2078, %v2177
  %v2179 = vpop.f32.mrb[0].mxu0
  %2180 = vmatprep.mubr.f32.mxu0 %v464
  %2181 = vmatmul.mubr.f32.gmra.mrb[0].mxu0 %v463
  %v2182 = vpop.f32.mrb[0].mxu0
  %v2183 = vadd.f32 %v2083, %v2182
  %v2184 = vpop.f32.mrb[0].mxu0
  %2185 = vmatprep.mubr.f32.mxu0 %v480
  %2186 = vmatmul.mubr.f32.gmra.mrb[0].mxu0 %v479
  %v2187 = vpop.f32.mrb[0].mxu0
  %v2188 = vadd.f32 %v2088, %v2187
  %v2189 = vpop.f32.mrb[0].mxu0
  %2190 = vmatprep.mubr.f32.mxu0 %v496
  %2191 = vmatmul.mubr.f32.gmra.mrb[0].mxu0 %v495
  %v2192 = vpop.f32.mrb[0].mxu0
  %v2193 = vadd.f32 %v2093, %v2192
  %v2194 = vpop.f32.mrb[0].mxu0
  %2195 = vmatprep.mubr.f32.mxu0 %v512
  %2196 = vmatmul.mubr.f32.gmra.mrb[0].mxu0 %v511
  %v2197 = vpop.f32.mrb[0].mxu0
  %v2198 = vadd.f32 %v2098, %v2197
  %v2199 = vpop.f32.mrb[0].mxu0
  %2200 = vmatprep.mubr.f32.mxu0 %v528
  %2201 = vmatmul.mubr.f32.gmra.mrb[0].mxu0 %v527
  %v2202 = vpop.f32.mrb[0].mxu0
  %v2203 = vadd.f32 %v2103, %v2202
  %v2204 = vpop.f32.mrb[0].mxu0
  %2205 = vmatprep.mubr.f32.mxu0 %v544
  %2206 = vmatmul.mubr.f32.gmra.mrb[0].mxu0 %v543
  %v2207 = vpop.f32.mrb[0].mxu0
  %v2208 = vadd.f32 %v2108, %v2207
  %v2209 = vpop.f32.mrb[0].mxu0
  %2210 = vdwg.mxu0
  %2211 = vmatprep.subr.mxu0 0.0
  %2212 = vmatpush1.msra.mxu0 %v831
  %2213 = vmatprep.subr.mxu0 0.0
  %2214 = vmatpush1.msra.mxu0 %v832
  %2215 = vmatprep.subr.mxu0 0.0
  %2216 = vmatpush1.msra.mxu0 %v833
  %2217 = vmatprep.subr.mxu0 0.0
  %2218 = vmatpush1.msra.mxu0 %v834
  %2219 = vmatprep.subr.mxu0 0.0
  %2220 = vmatpush1.msra.mxu0 %v835
  %2221 = vmatprep.subr.mxu0 0.0
  %2222 = vmatpush1.msra.mxu0 %v836
  %2223 = vmatprep.subr.mxu0 0.0
  %2224 = vmatpush1.msra.mxu0 %v837
  %2225 = vmatprep.subr.mxu0 0.0
  %2226 = vmatpush1.msra.mxu0 %v838
  %2227 = vmatprep.subr.mxu0 0.0
  %2228 = vmatpush1.msra.mxu0 %v839
  %2229 = vmatprep.subr.mxu0 0.0
  %2230 = vmatpush1.msra.mxu0 %v840
  %2231 = vmatprep.subr.mxu0 0.0
  %2232 = vmatpush1.msra.mxu0 %v841
  %2233 = vmatprep.subr.mxu0 0.0
  %2234 = vmatpush1.msra.mxu0 %v842
  %2235 = vmatprep.subr.mxu0 0.0
  %2236 = vmatpush1.msra.mxu0 %v843
  %2237 = vmatprep.subr.mxu0 0.0
  %2238 = vmatpush1.msra.mxu0 %v844
  %2239 = vmatprep.subr.mxu0 0.0
  %2240 = vmatpush1.msra.mxu0 %v845
  %2241 = vmatprep.subr.mxu0 0.0
  %2242 = vmatpush1.msra.mxu0 %v846
  %2243 = vmatprep.subr.mxu0 0.0
  %2244 = vmatpush1.msra.mxu0 %v847
  %2245 = vmatprep.subr.mxu0 0.0
  %2246 = vmatpush1.msra.mxu0 %v848
  %2247 = vmatprep.subr.mxu0 0.0
  %2248 = vmatpush1.msra.mxu0 %v849
  %2249 = vmatprep.subr.mxu0 0.0
  %2250 = vmatpush1.msra.mxu0 %v850
  %2251 = vmatprep.subr.mxu0 0.0
  %2252 = vmatpush1.msra.mxu0 %v851
  %2253 = vmatprep.subr.mxu0 0.0
  %2254 = vmatpush1.msra.mxu0 %v852
  %2255 = vmatprep.subr.mxu0 0.0
  %2256 = vmatpush1.msra.mxu0 %v853
  %2257 = vmatprep.subr.mxu0 0.0
  %2258 = vmatpush1.msra.mxu0 %v854
  %2259 = vmatprep.subr.mxu0 0.0
  %2260 = vmatpush1.msra.mxu0 %v855
  %2261 = vmatprep.subr.mxu0 0.0
  %2262 = vmatpush1.msra.mxu0 %v856
  %2263 = vmatprep.subr.mxu0 0.0
  %2264 = vmatpush1.msra.mxu0 %v857
  %2265 = vmatprep.subr.mxu0 0.0
  %2266 = vmatpush1.msra.mxu0 %v858
  %2267 = vmatprep.subr.mxu0 0.0
  %2268 = vmatpush1.msra.mxu0 %v859
  %2269 = vmatprep.subr.mxu0 0.0
  %2270 = vmatpush1.msra.mxu0 %v860
  %2271 = vmatprep.subr.mxu0 0.0
  %2272 = vmatpush1.msra.mxu0 %v861
  %2273 = vmatprep.subr.mxu0 0.0
  %2274 = vmatpush1.msra.mxu0 %v862
  %2275 = vmatprep.mubr.f32.mxu0 %v450
  %2276 = vmatmul.mubr.f32.gmra.mrb[0].mxu0 %v449
  %v2277 = vpop.f32.mrb[0].mxu0
  %v2278 = vadd.f32 %v2178, %v2277
  %v2279 = vpop.f32.mrb[0].mxu0
  %2280 = vmatprep.mubr.f32.mxu0 %v466
  %2281 = vmatmul.mubr.f32.gmra.mrb[0].mxu0 %v465
  %v2282 = vpop.f32.mrb[0].mxu0
  %v2283 = vadd.f32 %v2183, %v2282
  %v2284 = vpop.f32.mrb[0].mxu0
  %2285 = vmatprep.mubr.f32.mxu0 %v482
  %2286 = vmatmul.mubr.f32.gmra.mrb[0].mxu0 %v481
  %v2287 = vpop.f32.mrb[0].mxu0
  %v2288 = vadd.f32 %v2188, %v2287
  %v2289 = vpop.f32.mrb[0].mxu0
  %2290 = vmatprep.mubr.f32.mxu0 %v498
  %2291 = vmatmul.mubr.f32.gmra.mrb[0].mxu0 %v497
  %v2292 = vpop.f32.mrb[0].mxu0
  %v2293 = vadd.f32 %v2193, %v2292
  %v2294 = vpop.f32.mrb[0].mxu0
  %2295 = vmatprep.mubr.f32.mxu0 %v514
  %2296 = vmatmul.mubr.f32.gmra.mrb[0].mxu0 %v513
  %v2297 = vpop.f32.mrb[0].mxu0
  %v2298 = vadd.f32 %v2198, %v2297
  %v2299 = vpop.f32.mrb[0].mxu0
  %2300 = vmatprep.mubr.f32.mxu0 %v530
  %2301 = vmatmul.mubr.f32.gmra.mrb[0].mxu0 %v529
  %v2302 = vpop.f32.mrb[0].mxu0
  %v2303 = vadd.f32 %v2203, %v2302
  %v2304 = vpop.f32.mrb[0].mxu0
  %2305 = vmatprep.mubr.f32.mxu0 %v546
  %2306 = vmatmul.mubr.f32.gmra.mrb[0].mxu0 %v545
  %v2307 = vpop.f32.mrb[0].mxu0
  %v2308 = vadd.f32 %v2208, %v2307
  %v2309 = vpop.f32.mrb[0].mxu0
  %2310 = vdwg.mxu0
  %2311 = vmatprep.subr.mxu0 0.0
  %2312 = vmatpush1.msra.mxu0 %v863
  %2313 = vmatprep.subr.mxu0 0.0
  %2314 = vmatpush1.msra.mxu0 %v864
  %2315 = vmatprep.subr.mxu0 0.0
  %2316 = vmatpush1.msra.mxu0 %v865
  %2317 = vmatprep.subr.mxu0 0.0
  %2318 = vmatpush1.msra.mxu0 %v866
  %2319 = vmatprep.subr.mxu0 0.0
  %2320 = vmatpush1.msra.mxu0 %v867
  %2321 = vmatprep.subr.mxu0 0.0
  %2322 = vmatpush1.msra.mxu0 %v868
  %2323 = vmatprep.subr.mxu0 0.0
  %2324 = vmatpush1.msra.mxu0 %v869
  %2325 = vmatprep.subr.mxu0 0.0
  %2326 = vmatpush1.msra.mxu0 %v870
  %2327 = vmatprep.subr.mxu0 0.0
  %2328 = vmatpush1.msra.mxu0 %v871
  %2329 = vmatprep.subr.mxu0 0.0
  %2330 = vmatpush1.msra.mxu0 %v872
  %2331 = vmatprep.subr.mxu0 0.0
  %2332 = vmatpush1.msra.mxu0 %v873
  %2333 = vmatprep.subr.mxu0 0.0
  %2334 = vmatpush1.msra.mxu0 %v874
  %2335 = vmatprep.subr.mxu0 0.0
  %2336 = vmatpush1.msra.mxu0 %v875
  %2337 = vmatprep.subr.mxu0 0.0
  %2338 = vmatpush1.msra.mxu0 %v876
  %2339 = vmatprep.subr.mxu0 0.0
  %2340 = vmatpush1.msra.mxu0 %v877
  %2341 = vmatprep.subr.mxu0 0.0
  %2342 = vmatpush1.msra.mxu0 %v878
  %2343 = vmatprep.subr.mxu0 0.0
  %2344 = vmatpush1.msra.mxu0 %v879
  %2345 = vmatprep.subr.mxu0 0.0
  %2346 = vmatpush1.msra.mxu0 %v880
  %2347 = vmatprep.subr.mxu0 0.0
  %2348 = vmatpush1.msra.mxu0 %v881
  %2349 = vmatprep.subr.mxu0 0.0
  %2350 = vmatpush1.msra.mxu0 %v882
  %2351 = vmatprep.subr.mxu0 0.0
  %2352 = vmatpush1.msra.mxu0 %v883
  %2353 = vmatprep.subr.mxu0 0.0
  %2354 = vmatpush1.msra.mxu0 %v884
  %2355 = vmatprep.subr.mxu0 0.0
  %2356 = vmatpush1.msra.mxu0 %v885
  %2357 = vmatprep.subr.mxu0 0.0
  %2358 = vmatpush1.msra.mxu0 %v886
  %2359 = vmatprep.subr.mxu0 0.0
  %2360 = vmatpush1.msra.mxu0 %v887
  %2361 = vmatprep.subr.mxu0 0.0
  %2362 = vmatpush1.msra.mxu0 %v888
  %2363 = vmatprep.subr.mxu0 0.0
  %2364 = vmatpush1.msra.mxu0 %v889
  %2365 = vmatprep.subr.mxu0 0.0
  %2366 = vmatpush1.msra.mxu0 %v890
  %2367 = vmatprep.subr.mxu0 0.0
  %2368 = vmatpush1.msra.mxu0 %v891
  %2369 = vmatprep.subr.mxu0 0.0
  %2370 = vmatpush1.msra.mxu0 %v892
  %2371 = vmatprep.subr.mxu0 0.0
  %2372 = vmatpush1.msra.mxu0 %v893
  %2373 = vmatprep.subr.mxu0 0.0
  %2374 = vmatpush1.msra.mxu0 %v894
  %2375 = vmatprep.mubr.f32.mxu0 %v452
  %2376 = vmatmul.mubr.f32.gmra.mrb[0].mxu0 %v451
  %v2377 = vpop.f32.mrb[0].mxu0
  %v2378 = vadd.f32 %v2278, %v2377
  %v2379 = vpop.f32.mrb[0].mxu0
  %2380 = vmatprep.mubr.f32.mxu0 %v468
  %2381 = vmatmul.mubr.f32.gmra.mrb[0].mxu0 %v467
  %v2382 = vpop.f32.mrb[0].mxu0
  %v2383 = vadd.f32 %v2283, %v2382
  %v2384 = vpop.f32.mrb[0].mxu0
  %2385 = vmatprep.mubr.f32.mxu0 %v484
  %2386 = vmatmul.mubr.f32.gmra.mrb[0].mxu0 %v483
  %v2387 = vpop.f32.mrb[0].mxu0
  %v2388 = vadd.f32 %v2288, %v2387
  %v2389 = vpop.f32.mrb[0].mxu0
  %2390 = vmatprep.mubr.f32.mxu0 %v500
  %2391 = vmatmul.mubr.f32.gmra.mrb[0].mxu0 %v499
  %v2392 = vpop.f32.mrb[0].mxu0
  %v2393 = vadd.f32 %v2293, %v2392
  %v2394 = vpop.f32.mrb[0].mxu0
  %2395 = vmatprep.mubr.f32.mxu0 %v516
  %2396 = vmatmul.mubr.f32.gmra.mrb[0].mxu0 %v515
  %v2397 = vpop.f32.mrb[0].mxu0
  %v2398 = vadd.f32 %v2298, %v2397
  %v2399 = vpop.f32.mrb[0].mxu0
  %2400 = vmatprep.mubr.f32.mxu0 %v532
  %2401 = vmatmul.mubr.f32.gmra.mrb[0].mxu0 %v531
  %v2402 = vpop.f32.mrb[0].mxu0
  %v2403 = vadd.f32 %v2303, %v2402
  %v2404 = vpop.f32.mrb[0].mxu0
  %2405 = vmatprep.mubr.f32.mxu0 %v548
  %2406 = vmatmul.mubr.f32.gmra.mrb[0].mxu0 %v547
  %v2407 = vpop.f32.mrb[0].mxu0
  %v2408 = vadd.f32 %v2308, %v2407
  %v2409 = vpop.f32.mrb[0].mxu0
  %2410 = vdwg.mxu0
  %2411 = vmatprep.subr.mxu0 0.0
  %2412 = vmatpush1.msra.mxu0 %v895
  %2413 = vmatprep.subr.mxu0 0.0
  %2414 = vmatpush1.msra.mxu0 %v896
  %2415 = vmatprep.subr.mxu0 0.0
  %2416 = vmatpush1.msra.mxu0 %v897
  %2417 = vmatprep.subr.mxu0 0.0
  %2418 = vmatpush1.msra.mxu0 %v898
  %2419 = vmatprep.subr.mxu0 0.0
  %2420 = vmatpush1.msra.mxu0 %v899
  %2421 = vmatprep.subr.mxu0 0.0
  %2422 = vmatpush1.msra.mxu0 %v900
  %2423 = vmatprep.subr.mxu0 0.0
  %2424 = vmatpush1.msra.mxu0 %v901
  %2425 = vmatprep.subr.mxu0 0.0
  %2426 = vmatpush1.msra.mxu0 %v902
  %2427 = vmatprep.subr.mxu0 0.0
  %2428 = vmatpush1.msra.mxu0 %v903
  %2429 = vmatprep.subr.mxu0 0.0
  %2430 = vmatpush1.msra.mxu0 %v904
  %2431 = vmatprep.subr.mxu0 0.0
  %2432 = vmatpush1.msra.mxu0 %v905
  %2433 = vmatprep.subr.mxu0 0.0
  %2434 = vmatpush1.msra.mxu0 %v906
  %2435 = vmatprep.subr.mxu0 0.0
  %2436 = vmatpush1.msra.mxu0 %v907
  %2437 = vmatprep.subr.mxu0 0.0
  %2438 = vmatpush1.msra.mxu0 %v908
  %2439 = vmatprep.subr.mxu0 0.0
  %2440 = vmatpush1.msra.mxu0 %v909
  %2441 = vmatprep.subr.mxu0 0.0
  %2442 = vmatpush1.msra.mxu0 %v910
  %2443 = vmatprep.subr.mxu0 0.0
  %2444 = vmatpush1.msra.mxu0 %v911
  %2445 = vmatprep.subr.mxu0 0.0
  %2446 = vmatpush1.msra.mxu0 %v912
  %2447 = vmatprep.subr.mxu0 0.0
  %2448 = vmatpush1.msra.mxu0 %v913
  %2449 = vmatprep.subr.mxu0 0.0
  %2450 = vmatpush1.msra.mxu0 %v914
  %2451 = vmatprep.subr.mxu0 0.0
  %2452 = vmatpush1.msra.mxu0 %v915
  %2453 = vmatprep.subr.mxu0 0.0
  %2454 = vmatpush1.msra.mxu0 %v916
  %2455 = vmatprep.subr.mxu0 0.0
  %2456 = vmatpush1.msra.mxu0 %v917
  %2457 = vmatprep.subr.mxu0 0.0
  %2458 = vmatpush1.msra.mxu0 %v918
  %2459 = vmatprep.subr.mxu0 0.0
  %2460 = vmatpush1.msra.mxu0 %v919
  %2461 = vmatprep.subr.mxu0 0.0
  %2462 = vmatpush1.msra.mxu0 %v920
  %2463 = vmatprep.subr.mxu0 0.0
  %2464 = vmatpush1.msra.mxu0 %v921
  %2465 = vmatprep.subr.mxu0 0.0
  %2466 = vmatpush1.msra.mxu0 %v922
  %2467 = vmatprep.subr.mxu0 0.0
  %2468 = vmatpush1.msra.mxu0 %v923
  %2469 = vmatprep.subr.mxu0 0.0
  %2470 = vmatpush1.msra.mxu0 %v924
  %2471 = vmatprep.subr.mxu0 0.0
  %2472 = vmatpush1.msra.mxu0 %v925
  %2473 = vmatprep.subr.mxu0 0.0
  %2474 = vmatpush1.msra.mxu0 %v926
  %2475 = vmatprep.mubr.f32.mxu0 %v454
  %2476 = vmatmul.mubr.f32.gmra.mrb[0].mxu0 %v453
  %v2477 = vpop.f32.mrb[0].mxu0
  %v2478 = vadd.f32 %v2378, %v2477
  %v2479 = vpop.f32.mrb[0].mxu0
  %2480 = vmatprep.mubr.f32.mxu0 %v470
  %2481 = vmatmul.mubr.f32.gmra.mrb[0].mxu0 %v469
  %v2482 = vpop.f32.mrb[0].mxu0
  %v2483 = vadd.f32 %v2383, %v2482
  %v2484 = vpop.f32.mrb[0].mxu0
  %2485 = vmatprep.mubr.f32.mxu0 %v486
  %2486 = vmatmul.mubr.f32.gmra.mrb[0].mxu0 %v485
  %v2487 = vpop.f32.mrb[0].mxu0
  %v2488 = vadd.f32 %v2388, %v2487
  %v2489 = vpop.f32.mrb[0].mxu0
  %2490 = vmatprep.mubr.f32.mxu0 %v502
  %2491 = vmatmul.mubr.f32.gmra.mrb[0].mxu0 %v501
  %v2492 = vpop.f32.mrb[0].mxu0
  %v2493 = vadd.f32 %v2393, %v2492
  %v2494 = vpop.f32.mrb[0].mxu0
  %2495 = vmatprep.mubr.f32.mxu0 %v518
  %2496 = vmatmul.mubr.f32.gmra.mrb[0].mxu0 %v517
  %v2497 = vpop.f32.mrb[0].mxu0
  %v2498 = vadd.f32 %v2398, %v2497
  %v2499 = vpop.f32.mrb[0].mxu0
  %2500 = vmatprep.mubr.f32.mxu0 %v534
  %2501 = vmatmul.mubr.f32.gmra.mrb[0].mxu0 %v533
  %v2502 = vpop.f32.mrb[0].mxu0
  %v2503 = vadd.f32 %v2403, %v2502
  %v2504 = vpop.f32.mrb[0].mxu0
  %2505 = vmatprep.mubr.f32.mxu0 %v550
  %2506 = vmatmul.mubr.f32.gmra.mrb[0].mxu0 %v549
  %v2507 = vpop.f32.mrb[0].mxu0
  %v2508 = vadd.f32 %v2408, %v2507
  %v2509 = vpop.f32.mrb[0].mxu0
  %2510 = vdwg.mxu0
  %2511 = vmatprep.subr.mxu0 0.0
  %2512 = vmatpush1.msra.mxu0 %v927
  %2513 = vmatprep.subr.mxu0 0.0
  %2514 = vmatpush1.msra.mxu0 %v928
  %2515 = vmatprep.subr.mxu0 0.0
  %2516 = vmatpush1.msra.mxu0 %v929
  %2517 = vmatprep.subr.mxu0 0.0
  %2518 = vmatpush1.msra.mxu0 %v930
  %2519 = vmatprep.subr.mxu0 0.0
  %2520 = vmatpush1.msra.mxu0 %v931
  %2521 = vmatprep.subr.mxu0 0.0
  %2522 = vmatpush1.msra.mxu0 %v932
  %2523 = vmatprep.subr.mxu0 0.0
  %2524 = vmatpush1.msra.mxu0 %v933
  %2525 = vmatprep.subr.mxu0 0.0
  %2526 = vmatpush1.msra.mxu0 %v934
  %2527 = vmatprep.subr.mxu0 0.0
  %2528 = vmatpush1.msra.mxu0 %v935
  %2529 = vmatprep.subr.mxu0 0.0
  %2530 = vmatpush1.msra.mxu0 %v936
  %2531 = vmatprep.subr.mxu0 0.0
  %2532 = vmatpush1.msra.mxu0 %v937
  %2533 = vmatprep.subr.mxu0 0.0
  %2534 = vmatpush1.msra.mxu0 %v938
  %2535 = vmatprep.subr.mxu0 0.0
  %2536 = vmatpush1.msra.mxu0 %v939
  %2537 = vmatprep.subr.mxu0 0.0
  %2538 = vmatpush1.msra.mxu0 %v940
  %2539 = vmatprep.subr.mxu0 0.0
  %2540 = vmatpush1.msra.mxu0 %v941
  %2541 = vmatprep.subr.mxu0 0.0
  %2542 = vmatpush1.msra.mxu0 %v942
  %2543 = vmatprep.subr.mxu0 0.0
  %2544 = vmatpush1.msra.mxu0 %v943
  %2545 = vmatprep.subr.mxu0 0.0
  %2546 = vmatpush1.msra.mxu0 %v944
  %2547 = vmatprep.subr.mxu0 0.0
  %2548 = vmatpush1.msra.mxu0 %v945
  %2549 = vmatprep.subr.mxu0 0.0
  %2550 = vmatpush1.msra.mxu0 %v946
  %2551 = vmatprep.subr.mxu0 0.0
  %2552 = vmatpush1.msra.mxu0 %v947
  %2553 = vmatprep.subr.mxu0 0.0
  %2554 = vmatpush1.msra.mxu0 %v948
  %2555 = vmatprep.subr.mxu0 0.0
  %2556 = vmatpush1.msra.mxu0 %v949
  %2557 = vmatprep.subr.mxu0 0.0
  %2558 = vmatpush1.msra.mxu0 %v950
  %2559 = vmatprep.subr.mxu0 0.0
  %2560 = vmatpush1.msra.mxu0 %v951
  %2561 = vmatprep.subr.mxu0 0.0
  %2562 = vmatpush1.msra.mxu0 %v952
  %2563 = vmatprep.subr.mxu0 0.0
  %2564 = vmatpush1.msra.mxu0 %v953
  %2565 = vmatprep.subr.mxu0 0.0
  %2566 = vmatpush1.msra.mxu0 %v954
  %2567 = vmatprep.subr.mxu0 0.0
  %2568 = vmatpush1.msra.mxu0 %v955
  %2569 = vmatprep.subr.mxu0 0.0
  %2570 = vmatpush1.msra.mxu0 %v956
  %2571 = vmatprep.subr.mxu0 0.0
  %2572 = vmatpush1.msra.mxu0 %v957
  %2573 = vmatprep.subr.mxu0 0.0
  %2574 = vmatpush1.msra.mxu0 %v958
  %2575 = vmatprep.mubr.f32.mxu0 %v456
  %2576 = vmatmul.mubr.f32.gmra.mrb[0].mxu0 %v455
  %v2577 = vpop.f32.mrb[0].mxu0
  %v2578 = vadd.f32 %v2478, %v2577
  %v2579 = vpop.f32.mrb[0].mxu0
  %2580 = vmatprep.mubr.f32.mxu0 %v472
  %2581 = vmatmul.mubr.f32.gmra.mrb[0].mxu0 %v471
  %v2582 = vpop.f32.mrb[0].mxu0
  %v2583 = vadd.f32 %v2483, %v2582
  %v2584 = vpop.f32.mrb[0].mxu0
  %2585 = vmatprep.mubr.f32.mxu0 %v488
  %2586 = vmatmul.mubr.f32.gmra.mrb[0].mxu0 %v487
  %v2587 = vpop.f32.mrb[0].mxu0
  %v2588 = vadd.f32 %v2488, %v2587
  %v2589 = vpop.f32.mrb[0].mxu0
  %2590 = vmatprep.mubr.f32.mxu0 %v504
  %2591 = vmatmul.mubr.f32.gmra.mrb[0].mxu0 %v503
  %v2592 = vpop.f32.mrb[0].mxu0
  %v2593 = vadd.f32 %v2493, %v2592
  %v2594 = vpop.f32.mrb[0].mxu0
  %2595 = vmatprep.mubr.f32.mxu0 %v520
  %2596 = vmatmul.mubr.f32.gmra.mrb[0].mxu0 %v519
  %v2597 = vpop.f32.mrb[0].mxu0
  %v2598 = vadd.f32 %v2498, %v2597
  %v2599 = vpop.f32.mrb[0].mxu0
  %2600 = vmatprep.mubr.f32.mxu0 %v536
  %2601 = vmatmul.mubr.f32.gmra.mrb[0].mxu0 %v535
  %v2602 = vpop.f32.mrb[0].mxu0
  %v2603 = vadd.f32 %v2503, %v2602
  %v2604 = vpop.f32.mrb[0].mxu0
  %2605 = vmatprep.mubr.f32.mxu0 %v552
  %2606 = vmatmul.mubr.f32.gmra.mrb[0].mxu0 %v551
  %v2607 = vpop.f32.mrb[0].mxu0
  %v2608 = vadd.f32 %v2508, %v2607
  %v2609 = vpop.f32.mrb[0].mxu0
  %2610 = vdwg.mxu0
  %2611 = vmatprep.subr.mxu0 0.0
  %2612 = vmatpush1.msra.mxu0 %v959
  %2613 = vmatprep.subr.mxu0 0.0
  %2614 = vmatpush1.msra.mxu0 %v960
  %2615 = vmatprep.subr.mxu0 0.0
  %2616 = vmatpush1.msra.mxu0 %v961
  %2617 = vmatprep.subr.mxu0 0.0
  %2618 = vmatpush1.msra.mxu0 %v962
  %2619 = vmatprep.subr.mxu0 0.0
  %2620 = vmatpush1.msra.mxu0 %v963
  %2621 = vmatprep.subr.mxu0 0.0
  %2622 = vmatpush1.msra.mxu0 %v964
  %2623 = vmatprep.subr.mxu0 0.0
  %2624 = vmatpush1.msra.mxu0 %v965
  %2625 = vmatprep.subr.mxu0 0.0
  %2626 = vmatpush1.msra.mxu0 %v966
  %2627 = vmatprep.subr.mxu0 0.0
  %2628 = vmatpush1.msra.mxu0 %v967
  %2629 = vmatprep.subr.mxu0 0.0
  %2630 = vmatpush1.msra.mxu0 %v968
  %2631 = vmatprep.subr.mxu0 0.0
  %2632 = vmatpush1.msra.mxu0 %v969
  %2633 = vmatprep.subr.mxu0 0.0
  %2634 = vmatpush1.msra.mxu0 %v970
  %2635 = vmatprep.subr.mxu0 0.0
  %2636 = vmatpush1.msra.mxu0 %v971
  %2637 = vmatprep.subr.mxu0 0.0
  %2638 = vmatpush1.msra.mxu0 %v972
  %2639 = vmatprep.subr.mxu0 0.0
  %2640 = vmatpush1.msra.mxu0 %v973
  %2641 = vmatprep.subr.mxu0 0.0
  %2642 = vmatpush1.msra.mxu0 %v974
  %2643 = vmatprep.subr.mxu0 0.0
  %2644 = vmatpush1.msra.mxu0 %v975
  %2645 = vmatprep.subr.mxu0 0.0
  %2646 = vmatpush1.msra.mxu0 %v976
  %2647 = vmatprep.subr.mxu0 0.0
  %2648 = vmatpush1.msra.mxu0 %v977
  %2649 = vmatprep.subr.mxu0 0.0
  %2650 = vmatpush1.msra.mxu0 %v978
  %2651 = vmatprep.subr.mxu0 0.0
  %2652 = vmatpush1.msra.mxu0 %v979
  %2653 = vmatprep.subr.mxu0 0.0
  %2654 = vmatpush1.msra.mxu0 %v980
  %2655 = vmatprep.subr.mxu0 0.0
  %2656 = vmatpush1.msra.mxu0 %v981
  %2657 = vmatprep.subr.mxu0 0.0
  %2658 = vmatpush1.msra.mxu0 %v982
  %2659 = vmatprep.subr.mxu0 0.0
  %2660 = vmatpush1.msra.mxu0 %v983
  %2661 = vmatprep.subr.mxu0 0.0
  %2662 = vmatpush1.msra.mxu0 %v984
  %2663 = vmatprep.subr.mxu0 0.0
  %2664 = vmatpush1.msra.mxu0 %v985
  %2665 = vmatprep.subr.mxu0 0.0
  %2666 = vmatpush1.msra.mxu0 %v986
  %2667 = vmatprep.subr.mxu0 0.0
  %2668 = vmatpush1.msra.mxu0 %v987
  %2669 = vmatprep.subr.mxu0 0.0
  %2670 = vmatpush1.msra.mxu0 %v988
  %2671 = vmatprep.subr.mxu0 0.0
  %2672 = vmatpush1.msra.mxu0 %v989
  %2673 = vmatprep.subr.mxu0 0.0
  %2674 = vmatpush1.msra.mxu0 %v990
  %2675 = vmatprep.mubr.f32.mxu0 %v458
  %2676 = vmatmul.mubr.f32.gmra.mrb[0].mxu0 %v457
  %v2677 = vpop.f32.mrb[0].mxu0
  %v2678 = vadd.f32 %v2578, %v2677
  %v2679 = vpop.f32.mrb[0].mxu0
  %2680 = vmatprep.mubr.f32.mxu0 %v474
  %2681 = vmatmul.mubr.f32.gmra.mrb[0].mxu0 %v473
  %v2682 = vpop.f32.mrb[0].mxu0
  %v2683 = vadd.f32 %v2583, %v2682
  %v2684 = vpop.f32.mrb[0].mxu0
  %2685 = vmatprep.mubr.f32.mxu0 %v490
  %2686 = vmatmul.mubr.f32.gmra.mrb[0].mxu0 %v489
  %v2687 = vpop.f32.mrb[0].mxu0
  %v2688 = vadd.f32 %v2588, %v2687
  %v2689 = vpop.f32.mrb[0].mxu0
  %2690 = vmatprep.mubr.f32.mxu0 %v506
  %2691 = vmatmul.mubr.f32.gmra.mrb[0].mxu0 %v505
  %v2692 = vpop.f32.mrb[0].mxu0
  %v2693 = vadd.f32 %v2593, %v2692
  %v2694 = vpop.f32.mrb[0].mxu0
  %2695 = vmatprep.mubr.f32.mxu0 %v522
  %2696 = vmatmul.mubr.f32.gmra.mrb[0].mxu0 %v521
  %v2697 = vpop.f32.mrb[0].mxu0
  %v2698 = vadd.f32 %v2598, %v2697
  %v2699 = vpop.f32.mrb[0].mxu0
  %2700 = vmatprep.mubr.f32.mxu0 %v538
  %2701 = vmatmul.mubr.f32.gmra.mrb[0].mxu0 %v537
  %v2702 = vpop.f32.mrb[0].mxu0
  %v2703 = vadd.f32 %v2603, %v2702
  %v2704 = vpop.f32.mrb[0].mxu0
  %2705 = vmatprep.mubr.f32.mxu0 %v554
  %2706 = vmatmul.mubr.f32.gmra.mrb[0].mxu0 %v553
  %v2707 = vpop.f32.mrb[0].mxu0
  %v2708 = vadd.f32 %v2608, %v2707
  %v2709 = vpop.f32.mrb[0].mxu0
  %2710 = vdwg.mxu0
  %2711 = vmatprep.subr.mxu0 0.0
  %2712 = vmatpush1.msra.mxu0 %v991
  %2713 = vmatprep.subr.mxu0 0.0
  %2714 = vmatpush1.msra.mxu0 %v992
  %2715 = vmatprep.subr.mxu0 0.0
  %2716 = vmatpush1.msra.mxu0 %v993
  %2717 = vmatprep.subr.mxu0 0.0
  %2718 = vmatpush1.msra.mxu0 %v994
  %2719 = vmatprep.subr.mxu0 0.0
  %2720 = vmatpush1.msra.mxu0 %v995
  %2721 = vmatprep.subr.mxu0 0.0
  %2722 = vmatpush1.msra.mxu0 %v996
  %2723 = vmatprep.subr.mxu0 0.0
  %2724 = vmatpush1.msra.mxu0 %v997
  %2725 = vmatprep.subr.mxu0 0.0
  %2726 = vmatpush1.msra.mxu0 %v998
  %2727 = vmatprep.subr.mxu0 0.0
  %2728 = vmatpush1.msra.mxu0 %v999
  %2729 = vmatprep.subr.mxu0 0.0
  %2730 = vmatpush1.msra.mxu0 %v1000
  %2731 = vmatprep.subr.mxu0 0.0
  %2732 = vmatpush1.msra.mxu0 %v1001
  %2733 = vmatprep.subr.mxu0 0.0
  %2734 = vmatpush1.msra.mxu0 %v1002
  %2735 = vmatprep.subr.mxu0 0.0
  %2736 = vmatpush1.msra.mxu0 %v1003
  %2737 = vmatprep.subr.mxu0 0.0
  %2738 = vmatpush1.msra.mxu0 %v1004
  %2739 = vmatprep.subr.mxu0 0.0
  %2740 = vmatpush1.msra.mxu0 %v1005
  %2741 = vmatprep.subr.mxu0 0.0
  %2742 = vmatpush1.msra.mxu0 %v1006
  %2743 = vmatprep.subr.mxu0 0.0
  %2744 = vmatpush1.msra.mxu0 %v1007
  %2745 = vmatprep.subr.mxu0 0.0
  %2746 = vmatpush1.msra.mxu0 %v1008
  %2747 = vmatprep.subr.mxu0 0.0
  %2748 = vmatpush1.msra.mxu0 %v1009
  %2749 = vmatprep.subr.mxu0 0.0
  %2750 = vmatpush1.msra.mxu0 %v1010
  %2751 = vmatprep.subr.mxu0 0.0
  %2752 = vmatpush1.msra.mxu0 %v1011
  %2753 = vmatprep.subr.mxu0 0.0
  %2754 = vmatpush1.msra.mxu0 %v1012
  %2755 = vmatprep.subr.mxu0 0.0
  %2756 = vmatpush1.msra.mxu0 %v1013
  %2757 = vmatprep.subr.mxu0 0.0
  %2758 = vmatpush1.msra.mxu0 %v1014
  %2759 = vmatprep.subr.mxu0 0.0
  %2760 = vmatpush1.msra.mxu0 %v1015
  %2761 = vmatprep.subr.mxu0 0.0
  %2762 = vmatpush1.msra.mxu0 %v1016
  %2763 = vmatprep.subr.mxu0 0.0
  %2764 = vmatpush1.msra.mxu0 %v1017
  %2765 = vmatprep.subr.mxu0 0.0
  %2766 = vmatpush1.msra.mxu0 %v1018
  %2767 = vmatprep.subr.mxu0 0.0
  %2768 = vmatpush1.msra.mxu0 %v1019
  %2769 = vmatprep.subr.mxu0 0.0
  %2770 = vmatpush1.msra.mxu0 %v1020
  %2771 = vmatprep.subr.mxu0 0.0
  %2772 = vmatpush1.msra.mxu0 %v1021
  %2773 = vmatprep.subr.mxu0 0.0
  %2774 = vmatpush1.msra.mxu0 %v1022
  %2775 = vmatprep.mubr.f32.mxu0 %v460
  %2776 = vmatmul.mubr.f32.gmra.mrb[0].mxu0 %v459
  %v2777 = vpop.f32.mrb[0].mxu0
  %v2778 = vadd.f32 %v2678, %v2777
  %v2779 = vpop.f32.mrb[0].mxu0
  %2780 = vmatprep.mubr.f32.mxu0 %v476
  %2781 = vmatmul.mubr.f32.gmra.mrb[0].mxu0 %v475
  %v2782 = vpop.f32.mrb[0].mxu0
  %v2783 = vadd.f32 %v2683, %v2782
  %v2784 = vpop.f32.mrb[0].mxu0
  %2785 = vmatprep.mubr.f32.mxu0 %v492
  %2786 = vmatmul.mubr.f32.gmra.mrb[0].mxu0 %v491
  %v2787 = vpop.f32.mrb[0].mxu0
  %v2788 = vadd.f32 %v2688, %v2787
  %v2789 = vpop.f32.mrb[0].mxu0
  %2790 = vmatprep.mubr.f32.mxu0 %v508
  %2791 = vmatmul.mubr.f32.gmra.mrb[0].mxu0 %v507
  %v2792 = vpop.f32.mrb[0].mxu0
  %v2793 = vadd.f32 %v2693, %v2792
  %v2794 = vpop.f32.mrb[0].mxu0
  %2795 = vmatprep.mubr.f32.mxu0 %v524
  %2796 = vmatmul.mubr.f32.gmra.mrb[0].mxu0 %v523
  %v2797 = vpop.f32.mrb[0].mxu0
  %v2798 = vadd.f32 %v2698, %v2797
  %v2799 = vpop.f32.mrb[0].mxu0
  %2800 = vmatprep.mubr.f32.mxu0 %v540
  %2801 = vmatmul.mubr.f32.gmra.mrb[0].mxu0 %v539
  %v2802 = vpop.f32.mrb[0].mxu0
  %v2803 = vadd.f32 %v2703, %v2802
  %v2804 = vpop.f32.mrb[0].mxu0
  %2805 = vmatprep.mubr.f32.mxu0 %v556
  %2806 = vmatmul.mubr.f32.gmra.mrb[0].mxu0 %v555
  %v2807 = vpop.f32.mrb[0].mxu0
  %v2808 = vadd.f32 %v2708, %v2807
  %v2809 = vpop.f32.mrb[0].mxu0
  %2810 = vdwg.mxu0
  %2811 = vmatprep.subr.mxu0 0.0
  %2812 = vmatpush1.msra.mxu0 %v1023
  %2813 = vmatprep.subr.mxu0 0.0
  %2814 = vmatpush1.msra.mxu0 %v1024
  %2815 = vmatprep.subr.mxu0 0.0
  %2816 = vmatpush1.msra.mxu0 %v1025
  %2817 = vmatprep.subr.mxu0 0.0
  %2818 = vmatpush1.msra.mxu0 %v1026
  %2819 = vmatprep.subr.mxu0 0.0
  %2820 = vmatpush1.msra.mxu0 %v1027
  %2821 = vmatprep.subr.mxu0 0.0
  %2822 = vmatpush1.msra.mxu0 %v1028
  %2823 = vmatprep.subr.mxu0 0.0
  %2824 = vmatpush1.msra.mxu0 %v1029
  %2825 = vmatprep.subr.mxu0 0.0
  %2826 = vmatpush1.msra.mxu0 %v1030
  %2827 = vmatprep.subr.mxu0 0.0
  %2828 = vmatpush1.msra.mxu0 %v1031
  %2829 = vmatprep.subr.mxu0 0.0
  %2830 = vmatpush1.msra.mxu0 %v1032
  %2831 = vmatprep.subr.mxu0 0.0
  %2832 = vmatpush1.msra.mxu0 %v1033
  %2833 = vmatprep.subr.mxu0 0.0
  %2834 = vmatpush1.msra.mxu0 %v1034
  %2835 = vmatprep.subr.mxu0 0.0
  %2836 = vmatpush1.msra.mxu0 %v1035
  %2837 = vmatprep.subr.mxu0 0.0
  %2838 = vmatpush1.msra.mxu0 %v1036
  %2839 = vmatprep.subr.mxu0 0.0
  %2840 = vmatpush1.msra.mxu0 %v1037
  %2841 = vmatprep.subr.mxu0 0.0
  %2842 = vmatpush1.msra.mxu0 %v1038
  %2843 = vmatprep.subr.mxu0 0.0
  %2844 = vmatpush1.msra.mxu0 %v1039
  %2845 = vmatprep.subr.mxu0 0.0
  %2846 = vmatpush1.msra.mxu0 %v1040
  %2847 = vmatprep.subr.mxu0 0.0
  %2848 = vmatpush1.msra.mxu0 %v1041
  %2849 = vmatprep.subr.mxu0 0.0
  %2850 = vmatpush1.msra.mxu0 %v1042
  %2851 = vmatprep.subr.mxu0 0.0
  %2852 = vmatpush1.msra.mxu0 %v1043
  %2853 = vmatprep.subr.mxu0 0.0
  %2854 = vmatpush1.msra.mxu0 %v1044
  %2855 = vmatprep.subr.mxu0 0.0
  %2856 = vmatpush1.msra.mxu0 %v1045
  %2857 = vmatprep.subr.mxu0 0.0
  %2858 = vmatpush1.msra.mxu0 %v1046
  %2859 = vmatprep.subr.mxu0 0.0
  %2860 = vmatpush1.msra.mxu0 %v1047
  %2861 = vmatprep.subr.mxu0 0.0
  %2862 = vmatpush1.msra.mxu0 %v1048
  %2863 = vmatprep.subr.mxu0 0.0
  %2864 = vmatpush1.msra.mxu0 %v1049
  %2865 = vmatprep.subr.mxu0 0.0
  %2866 = vmatpush1.msra.mxu0 %v1050
  %2867 = vmatprep.subr.mxu0 0.0
  %2868 = vmatpush1.msra.mxu0 %v1051
  %2869 = vmatprep.subr.mxu0 0.0
  %2870 = vmatpush1.msra.mxu0 %v1052
  %2871 = vmatprep.subr.mxu0 0.0
  %2872 = vmatpush1.msra.mxu0 %v1053
  %2873 = vmatprep.subr.mxu0 0.0
  %2874 = vmatpush1.msra.mxu0 %v1054
  %2875 = vmatprep.mubr.f32.mxu0 %v462
  %2876 = vmatmul.mubr.f32.gmra.mrb[0].mxu0 %v461
  %v2877 = vpop.f32.mrb[0].mxu0
  %v2878 = vadd.f32 %v2778, %v2877
  %v2879 = vpop.f32.mrb[0].mxu0
  %2880 = vmatprep.mubr.f32.mxu0 %v478
  %2881 = vmatmul.mubr.f32.gmra.mrb[0].mxu0 %v477
  %v2882 = vpop.f32.mrb[0].mxu0
  %v2883 = vadd.f32 %v2783, %v2882
  %v2884 = vpop.f32.mrb[0].mxu0
  %2885 = vmatprep.mubr.f32.mxu0 %v494
  %2886 = vmatmul.mubr.f32.gmra.mrb[0].mxu0 %v493
  %v2887 = vpop.f32.mrb[0].mxu0
  %v2888 = vadd.f32 %v2788, %v2887
  %v2889 = vpop.f32.mrb[0].mxu0
  %2890 = vmatprep.mubr.f32.mxu0 %v510
  %2891 = vmatmul.mubr.f32.gmra.mrb[0].mxu0 %v509
  %v2892 = vpop.f32.mrb[0].mxu0
  %v2893 = vadd.f32 %v2793, %v2892
  %v2894 = vpop.f32.mrb[0].mxu0
  %2895 = vmatprep.mubr.f32.mxu0 %v526
  %2896 = vmatmul.mubr.f32.gmra.mrb[0].mxu0 %v525
  %v2897 = vpop.f32.mrb[0].mxu0
  %v2898 = vadd.f32 %v2798, %v2897
  %v2899 = vpop.f32.mrb[0].mxu0
  %2900 = vmatprep.mubr.f32.mxu0 %v542
  %2901 = vmatmul.mubr.f32.gmra.mrb[0].mxu0 %v541
  %v2902 = vpop.f32.mrb[0].mxu0
  %v2903 = vadd.f32 %v2803, %v2902
  %v2904 = vpop.f32.mrb[0].mxu0
  %2905 = vmatprep.mubr.f32.mxu0 %v558
  %2906 = vmatmul.mubr.f32.gmra.mrb[0].mxu0 %v557
  %v2907 = vpop.f32.mrb[0].mxu0
  %v2908 = vadd.f32 %v2808, %v2907
  %v2909 = vpop.f32.mrb[0].mxu0
  %2910 = vdwg.mxu0
  %2911 = vmatprep.subr.mxu0 0.0
  %2912 = vmatpush1.msra.mxu0 %v1055
  %2913 = vmatprep.subr.mxu0 0.0
  %2914 = vmatpush1.msra.mxu0 %v1056
  %2915 = vmatprep.subr.mxu0 0.0
  %2916 = vmatpush1.msra.mxu0 %v1057
  %2917 = vmatprep.subr.mxu0 0.0
  %2918 = vmatpush1.msra.mxu0 %v1058
  %2919 = vmatprep.subr.mxu0 0.0
  %2920 = vmatpush1.msra.mxu0 %v1059
  %2921 = vmatprep.subr.mxu0 0.0
  %2922 = vmatpush1.msra.mxu0 %v1060
  %2923 = vmatprep.subr.mxu0 0.0
  %2924 = vmatpush1.msra.mxu0 %v1061
  %2925 = vmatprep.subr.mxu0 0.0
  %2926 = vmatpush1.msra.mxu0 %v1062
  %2927 = vmatprep.subr.mxu0 0.0
  %2928 = vmatpush1.msra.mxu0 %v1063
  %2929 = vmatprep.subr.mxu0 0.0
  %2930 = vmatpush1.msra.mxu0 %v1064
  %2931 = vmatprep.subr.mxu0 0.0
  %2932 = vmatpush1.msra.mxu0 %v1065
  %2933 = vmatprep.subr.mxu0 0.0
  %2934 = vmatpush1.msra.mxu0 %v1066
  %2935 = vmatprep.subr.mxu0 0.0
  %2936 = vmatpush1.msra.mxu0 %v1067
  %2937 = vmatprep.subr.mxu0 0.0
  %2938 = vmatpush1.msra.mxu0 %v1068
  %2939 = vmatprep.subr.mxu0 0.0
  %2940 = vmatpush1.msra.mxu0 %v1069
  %2941 = vmatprep.subr.mxu0 0.0
  %2942 = vmatpush1.msra.mxu0 %v1070
  %2943 = vmatprep.subr.mxu0 0.0
  %2944 = vmatpush1.msra.mxu0 %v1071
  %2945 = vmatprep.subr.mxu0 0.0
  %2946 = vmatpush1.msra.mxu0 %v1072
  %2947 = vmatprep.subr.mxu0 0.0
  %2948 = vmatpush1.msra.mxu0 %v1073
  %2949 = vmatprep.subr.mxu0 0.0
  %2950 = vmatpush1.msra.mxu0 %v1074
  %2951 = vmatprep.subr.mxu0 0.0
  %2952 = vmatpush1.msra.mxu0 %v1075
  %2953 = vmatprep.subr.mxu0 0.0
  %2954 = vmatpush1.msra.mxu0 %v1076
  %2955 = vmatprep.subr.mxu0 0.0
  %2956 = vmatpush1.msra.mxu0 %v1077
  %2957 = vmatprep.subr.mxu0 0.0
  %2958 = vmatpush1.msra.mxu0 %v1078
  %2959 = vmatprep.subr.mxu0 0.0
  %2960 = vmatpush1.msra.mxu0 %v1079
  %2961 = vmatprep.subr.mxu0 0.0
  %2962 = vmatpush1.msra.mxu0 %v1080
  %2963 = vmatprep.subr.mxu0 0.0
  %2964 = vmatpush1.msra.mxu0 %v1081
  %2965 = vmatprep.subr.mxu0 0.0
  %2966 = vmatpush1.msra.mxu0 %v1082
  %2967 = vmatprep.subr.mxu0 0.0
  %2968 = vmatpush1.msra.mxu0 %v1083
  %2969 = vmatprep.subr.mxu0 0.0
  %2970 = vmatpush1.msra.mxu0 %v1084
  %2971 = vmatprep.subr.mxu0 0.0
  %2972 = vmatpush1.msra.mxu0 %v1085
  %2973 = vmatprep.subr.mxu0 0.0
  %2974 = vmatpush1.msra.mxu0 %v1086
  %2975 = vmatprep.mubr.f32.mxu0 %v448
  %2976 = vmatmul.mubr.f32.gmra.mrb[0].mxu0 %v447
  %v2977 = vpop.f32.mrb[0].mxu0
  %v2978 = vadd.f32 0.0, %v2977
  %v2979 = vpop.f32.mrb[0].mxu0
  %2980 = vmatprep.mubr.f32.mxu0 %v464
  %2981 = vmatmul.mubr.f32.gmra.mrb[0].mxu0 %v463
  %v2982 = vpop.f32.mrb[0].mxu0
  %v2983 = vadd.f32 0.0, %v2982
  %v2984 = vpop.f32.mrb[0].mxu0
  %2985 = vmatprep.mubr.f32.mxu0 %v480
  %2986 = vmatmul.mubr.f32.gmra.mrb[0].mxu0 %v479
  %v2987 = vpop.f32.mrb[0].mxu0
  %v2988 = vadd.f32 0.0, %v2987
  %v2989 = vpop.f32.mrb[0].mxu0
  %2990 = vmatprep.mubr.f32.mxu0 %v496
  %2991 = vmatmul.mubr.f32.gmra.mrb[0].mxu0 %v495
  %v2992 = vpop.f32.mrb[0].mxu0
  %v2993 = vadd.f32 0.0, %v2992
  %v2994 = vpop.f32.mrb[0].mxu0
  %2995 = vmatprep.mubr.f32.mxu0 %v512
  %2996 = vmatmul.mubr.f32.gmra.mrb[0].mxu0 %v511
  %v2997 = vpop.f32.mrb[0].mxu0
  %v2998 = vadd.f32 0.0, %v2997
  %v2999 = vpop.f32.mrb[0].mxu0
  %3000 = vmatprep.mubr.f32.mxu0 %v528
  %3001 = vmatmul.mubr.f32.gmra.mrb[0].mxu0 %v527
  %v3002 = vpop.f32.mrb[0].mxu0
  %v3003 = vadd.f32 0.0, %v3002
  %v3004 = vpop.f32.mrb[0].mxu0
  %3005 = vmatprep.mubr.f32.mxu0 %v544
  %3006 = vmatmul.mubr.f32.gmra.mrb[0].mxu0 %v543
  %v3007 = vpop.f32.mrb[0].mxu0
  %v3008 = vadd.f32 0.0, %v3007
  %v3009 = vpop.f32.mrb[0].mxu0
  %3010 = vdwg.mxu0
  %3011 = vmatprep.subr.mxu0 0.0
  %3012 = vmatpush1.msra.mxu0 %v1087
  %3013 = vmatprep.subr.mxu0 0.0
  %3014 = vmatpush1.msra.mxu0 %v1088
  %3015 = vmatprep.subr.mxu0 0.0
  %3016 = vmatpush1.msra.mxu0 %v1089
  %3017 = vmatprep.subr.mxu0 0.0
  %3018 = vmatpush1.msra.mxu0 %v1090
  %3019 = vmatprep.subr.mxu0 0.0
  %3020 = vmatpush1.msra.mxu0 %v1091
  %3021 = vmatprep.subr.mxu0 0.0
  %3022 = vmatpush1.msra.mxu0 %v1092
  %3023 = vmatprep.subr.mxu0 0.0
  %3024 = vmatpush1.msra.mxu0 %v1093
  %3025 = vmatprep.subr.mxu0 0.0
  %3026 = vmatpush1.msra.mxu0 %v1094
  %3027 = vmatprep.subr.mxu0 0.0
  %3028 = vmatpush1.msra.mxu0 %v1095
  %3029 = vmatprep.subr.mxu0 0.0
  %3030 = vmatpush1.msra.mxu0 %v1096
  %3031 = vmatprep.subr.mxu0 0.0
  %3032 = vmatpush1.msra.mxu0 %v1097
  %3033 = vmatprep.subr.mxu0 0.0
  %3034 = vmatpush1.msra.mxu0 %v1098
  %3035 = vmatprep.subr.mxu0 0.0
  %3036 = vmatpush1.msra.mxu0 %v1099
  %3037 = vmatprep.subr.mxu0 0.0
  %3038 = vmatpush1.msra.mxu0 %v1100
  %3039 = vmatprep.subr.mxu0 0.0
  %3040 = vmatpush1.msra.mxu0 %v1101
  %3041 = vmatprep.subr.mxu0 0.0
  %3042 = vmatpush1.msra.mxu0 %v1102
  %3043 = vmatprep.subr.mxu0 0.0
  %3044 = vmatpush1.msra.mxu0 %v1103
  %3045 = vmatprep.subr.mxu0 0.0
  %3046 = vmatpush1.msra.mxu0 %v1104
  %3047 = vmatprep.subr.mxu0 0.0
  %3048 = vmatpush1.msra.mxu0 %v1105
  %3049 = vmatprep.subr.mxu0 0.0
  %3050 = vmatpush1.msra.mxu0 %v1106
  %3051 = vmatprep.subr.mxu0 0.0
  %3052 = vmatpush1.msra.mxu0 %v1107
  %3053 = vmatprep.subr.mxu0 0.0
  %3054 = vmatpush1.msra.mxu0 %v1108
  %3055 = vmatprep.subr.mxu0 0.0
  %3056 = vmatpush1.msra.mxu0 %v1109
  %3057 = vmatprep.subr.mxu0 0.0
  %3058 = vmatpush1.msra.mxu0 %v1110
  %3059 = vmatprep.subr.mxu0 0.0
  %3060 = vmatpush1.msra.mxu0 %v1111
  %3061 = vmatprep.subr.mxu0 0.0
  %3062 = vmatpush1.msra.mxu0 %v1112
  %3063 = vmatprep.subr.mxu0 0.0
  %3064 = vmatpush1.msra.mxu0 %v1113
  %3065 = vmatprep.subr.mxu0 0.0
  %3066 = vmatpush1.msra.mxu0 %v1114
  %3067 = vmatprep.subr.mxu0 0.0
  %3068 = vmatpush1.msra.mxu0 %v1115
  %3069 = vmatprep.subr.mxu0 0.0
  %3070 = vmatpush1.msra.mxu0 %v1116
  %3071 = vmatprep.subr.mxu0 0.0
  %3072 = vmatpush1.msra.mxu0 %v1117
  %3073 = vmatprep.subr.mxu0 0.0
  %3074 = vmatpush1.msra.mxu0 %v1118
  %3075 = vmatprep.mubr.f32.mxu0 %v450
  %3076 = vmatmul.mubr.f32.gmra.mrb[0].mxu0 %v449
  %v3077 = vpop.f32.mrb[0].mxu0
  %v3078 = vadd.f32 %v2978, %v3077
  %v3079 = vpop.f32.mrb[0].mxu0
  %3080 = vmatprep.mubr.f32.mxu0 %v466
  %3081 = vmatmul.mubr.f32.gmra.mrb[0].mxu0 %v465
  %v3082 = vpop.f32.mrb[0].mxu0
  %v3083 = vadd.f32 %v2983, %v3082
  %v3084 = vpop.f32.mrb[0].mxu0
  %3085 = vmatprep.mubr.f32.mxu0 %v482
  %3086 = vmatmul.mubr.f32.gmra.mrb[0].mxu0 %v481
  %v3087 = vpop.f32.mrb[0].mxu0
  %v3088 = vadd.f32 %v2988, %v3087
  %v3089 = vpop.f32.mrb[0].mxu0
  %3090 = vmatprep.mubr.f32.mxu0 %v498
  %3091 = vmatmul.mubr.f32.gmra.mrb[0].mxu0 %v497
  %v3092 = vpop.f32.mrb[0].mxu0
  %v3093 = vadd.f32 %v2993, %v3092
  %v3094 = vpop.f32.mrb[0].mxu0
  %3095 = vmatprep.mubr.f32.mxu0 %v514
  %3096 = vmatmul.mubr.f32.gmra.mrb[0].mxu0 %v513
  %v3097 = vpop.f32.mrb[0].mxu0
  %v3098 = vadd.f32 %v2998, %v3097
  %v3099 = vpop.f32.mrb[0].mxu0
  %3100 = vmatprep.mubr.f32.mxu0 %v530
  %3101 = vmatmul.mubr.f32.gmra.mrb[0].mxu0 %v529
  %v3102 = vpop.f32.mrb[0].mxu0
  %v3103 = vadd.f32 %v3003, %v3102
  %v3104 = vpop.f32.mrb[0].mxu0
  %3105 = vmatprep.mubr.f32.mxu0 %v546
  %3106 = vmatmul.mubr.f32.gmra.mrb[0].mxu0 %v545
  %v3107 = vpop.f32.mrb[0].mxu0
  %v3108 = vadd.f32 %v3008, %v3107
  %v3109 = vpop.f32.mrb[0].mxu0
  %3110 = vdwg.mxu0
  %3111 = vmatprep.subr.mxu0 0.0
  %3112 = vmatpush1.msra.mxu0 %v1119
  %3113 = vmatprep.subr.mxu0 0.0
  %3114 = vmatpush1.msra.mxu0 %v1120
  %3115 = vmatprep.subr.mxu0 0.0
  %3116 = vmatpush1.msra.mxu0 %v1121
  %3117 = vmatprep.subr.mxu0 0.0
  %3118 = vmatpush1.msra.mxu0 %v1122
  %3119 = vmatprep.subr.mxu0 0.0
  %3120 = vmatpush1.msra.mxu0 %v1123
  %3121 = vmatprep.subr.mxu0 0.0
  %3122 = vmatpush1.msra.mxu0 %v1124
  %3123 = vmatprep.subr.mxu0 0.0
  %3124 = vmatpush1.msra.mxu0 %v1125
  %3125 = vmatprep.subr.mxu0 0.0
  %3126 = vmatpush1.msra.mxu0 %v1126
  %3127 = vmatprep.subr.mxu0 0.0
  %3128 = vmatpush1.msra.mxu0 %v1127
  %3129 = vmatprep.subr.mxu0 0.0
  %3130 = vmatpush1.msra.mxu0 %v1128
  %3131 = vmatprep.subr.mxu0 0.0
  %3132 = vmatpush1.msra.mxu0 %v1129
  %3133 = vmatprep.subr.mxu0 0.0
  %3134 = vmatpush1.msra.mxu0 %v1130
  %3135 = vmatprep.subr.mxu0 0.0
  %3136 = vmatpush1.msra.mxu0 %v1131
  %3137 = vmatprep.subr.mxu0 0.0
  %3138 = vmatpush1.msra.mxu0 %v1132
  %3139 = vmatprep.subr.mxu0 0.0
  %3140 = vmatpush1.msra.mxu0 %v1133
  %3141 = vmatprep.subr.mxu0 0.0
  %3142 = vmatpush1.msra.mxu0 %v1134
  %3143 = vmatprep.subr.mxu0 0.0
  %3144 = vmatpush1.msra.mxu0 %v1135
  %3145 = vmatprep.subr.mxu0 0.0
  %3146 = vmatpush1.msra.mxu0 %v1136
  %3147 = vmatprep.subr.mxu0 0.0
  %3148 = vmatpush1.msra.mxu0 %v1137
  %3149 = vmatprep.subr.mxu0 0.0
  %3150 = vmatpush1.msra.mxu0 %v1138
  %3151 = vmatprep.subr.mxu0 0.0
  %3152 = vmatpush1.msra.mxu0 %v1139
  %3153 = vmatprep.subr.mxu0 0.0
  %3154 = vmatpush1.msra.mxu0 %v1140
  %3155 = vmatprep.subr.mxu0 0.0
  %3156 = vmatpush1.msra.mxu0 %v1141
  %3157 = vmatprep.subr.mxu0 0.0
  %3158 = vmatpush1.msra.mxu0 %v1142
  %3159 = vmatprep.subr.mxu0 0.0
  %3160 = vmatpush1.msra.mxu0 %v1143
  %3161 = vmatprep.subr.mxu0 0.0
  %3162 = vmatpush1.msra.mxu0 %v1144
  %3163 = vmatprep.subr.mxu0 0.0
  %3164 = vmatpush1.msra.mxu0 %v1145
  %3165 = vmatprep.subr.mxu0 0.0
  %3166 = vmatpush1.msra.mxu0 %v1146
  %3167 = vmatprep.subr.mxu0 0.0
  %3168 = vmatpush1.msra.mxu0 %v1147
  %3169 = vmatprep.subr.mxu0 0.0
  %3170 = vmatpush1.msra.mxu0 %v1148
  %3171 = vmatprep.subr.mxu0 0.0
  %3172 = vmatpush1.msra.mxu0 %v1149
  %3173 = vmatprep.subr.mxu0 0.0
  %3174 = vmatpush1.msra.mxu0 %v1150
  %3175 = vmatprep.mubr.f32.mxu0 %v452
  %3176 = vmatmul.mubr.f32.gmra.mrb[0].mxu0 %v451
  %v3177 = vpop.f32.mrb[0].mxu0
  %v3178 = vadd.f32 %v3078, %v3177
  %v3179 = vpop.f32.mrb[0].mxu0
  %3180 = vmatprep.mubr.f32.mxu0 %v468
  %3181 = vmatmul.mubr.f32.gmra.mrb[0].mxu0 %v467
  %v3182 = vpop.f32.mrb[0].mxu0
  %v3183 = vadd.f32 %v3083, %v3182
  %v3184 = vpop.f32.mrb[0].mxu0
  %3185 = vmatprep.mubr.f32.mxu0 %v484
  %3186 = vmatmul.mubr.f32.gmra.mrb[0].mxu0 %v483
  %v3187 = vpop.f32.mrb[0].mxu0
  %v3188 = vadd.f32 %v3088, %v3187
  %v3189 = vpop.f32.mrb[0].mxu0
  %3190 = vmatprep.mubr.f32.mxu0 %v500
  %3191 = vmatmul.mubr.f32.gmra.mrb[0].mxu0 %v499
  %v3192 = vpop.f32.mrb[0].mxu0
  %v3193 = vadd.f32 %v3093, %v3192
  %v3194 = vpop.f32.mrb[0].mxu0
  %3195 = vmatprep.mubr.f32.mxu0 %v516
  %3196 = vmatmul.mubr.f32.gmra.mrb[0].mxu0 %v515
  %v3197 = vpop.f32.mrb[0].mxu0
  %v3198 = vadd.f32 %v3098, %v3197
  %v3199 = vpop.f32.mrb[0].mxu0
  %3200 = vmatprep.mubr.f32.mxu0 %v532
  %3201 = vmatmul.mubr.f32.gmra.mrb[0].mxu0 %v531
  %v3202 = vpop.f32.mrb[0].mxu0
  %v3203 = vadd.f32 %v3103, %v3202
  %v3204 = vpop.f32.mrb[0].mxu0
  %3205 = vmatprep.mubr.f32.mxu0 %v548
  %3206 = vmatmul.mubr.f32.gmra.mrb[0].mxu0 %v547
  %v3207 = vpop.f32.mrb[0].mxu0
  %v3208 = vadd.f32 %v3108, %v3207
  %v3209 = vpop.f32.mrb[0].mxu0
  %3210 = vdwg.mxu0
  %3211 = vmatprep.subr.mxu0 0.0
  %3212 = vmatpush1.msra.mxu0 %v1151
  %3213 = vmatprep.subr.mxu0 0.0
  %3214 = vmatpush1.msra.mxu0 %v1152
  %3215 = vmatprep.subr.mxu0 0.0
  %3216 = vmatpush1.msra.mxu0 %v1153
  %3217 = vmatprep.subr.mxu0 0.0
  %3218 = vmatpush1.msra.mxu0 %v1154
  %3219 = vmatprep.subr.mxu0 0.0
  %3220 = vmatpush1.msra.mxu0 %v1155
  %3221 = vmatprep.subr.mxu0 0.0
  %3222 = vmatpush1.msra.mxu0 %v1156
  %3223 = vmatprep.subr.mxu0 0.0
  %3224 = vmatpush1.msra.mxu0 %v1157
  %3225 = vmatprep.subr.mxu0 0.0
  %3226 = vmatpush1.msra.mxu0 %v1158
  %3227 = vmatprep.subr.mxu0 0.0
  %3228 = vmatpush1.msra.mxu0 %v1159
  %3229 = vmatprep.subr.mxu0 0.0
  %3230 = vmatpush1.msra.mxu0 %v1160
  %3231 = vmatprep.subr.mxu0 0.0
  %3232 = vmatpush1.msra.mxu0 %v1161
  %3233 = vmatprep.subr.mxu0 0.0
  %3234 = vmatpush1.msra.mxu0 %v1162
  %3235 = vmatprep.subr.mxu0 0.0
  %3236 = vmatpush1.msra.mxu0 %v1163
  %3237 = vmatprep.subr.mxu0 0.0
  %3238 = vmatpush1.msra.mxu0 %v1164
  %3239 = vmatprep.subr.mxu0 0.0
  %3240 = vmatpush1.msra.mxu0 %v1165
  %3241 = vmatprep.subr.mxu0 0.0
  %3242 = vmatpush1.msra.mxu0 %v1166
  %3243 = vmatprep.subr.mxu0 0.0
  %3244 = vmatpush1.msra.mxu0 %v1167
  %3245 = vmatprep.subr.mxu0 0.0
  %3246 = vmatpush1.msra.mxu0 %v1168
  %3247 = vmatprep.subr.mxu0 0.0
  %3248 = vmatpush1.msra.mxu0 %v1169
  %3249 = vmatprep.subr.mxu0 0.0
  %3250 = vmatpush1.msra.mxu0 %v1170
  %3251 = vmatprep.subr.mxu0 0.0
  %3252 = vmatpush1.msra.mxu0 %v1171
  %3253 = vmatprep.subr.mxu0 0.0
  %3254 = vmatpush1.msra.mxu0 %v1172
  %3255 = vmatprep.subr.mxu0 0.0
  %3256 = vmatpush1.msra.mxu0 %v1173
  %3257 = vmatprep.subr.mxu0 0.0
  %3258 = vmatpush1.msra.mxu0 %v1174
  %3259 = vmatprep.subr.mxu0 0.0
  %3260 = vmatpush1.msra.mxu0 %v1175
  %3261 = vmatprep.subr.mxu0 0.0
  %3262 = vmatpush1.msra.mxu0 %v1176
  %3263 = vmatprep.subr.mxu0 0.0
  %3264 = vmatpush1.msra.mxu0 %v1177
  %3265 = vmatprep.subr.mxu0 0.0
  %3266 = vmatpush1.msra.mxu0 %v1178
  %3267 = vmatprep.subr.mxu0 0.0
  %3268 = vmatpush1.msra.mxu0 %v1179
  %3269 = vmatprep.subr.mxu0 0.0
  %3270 = vmatpush1.msra.mxu0 %v1180
  %3271 = vmatprep.subr.mxu0 0.0
  %3272 = vmatpush1.msra.mxu0 %v1181
  %3273 = vmatprep.subr.mxu0 0.0
  %3274 = vmatpush1.msra.mxu0 %v1182
  %3275 = vmatprep.mubr.f32.mxu0 %v454
  %3276 = vmatmul.mubr.f32.gmra.mrb[0].mxu0 %v453
  %v3277 = vpop.f32.mrb[0].mxu0
  %v3278 = vadd.f32 %v3178, %v3277
  %v3279 = vpop.f32.mrb[0].mxu0
  %3280 = vmatprep.mubr.f32.mxu0 %v470
  %3281 = vmatmul.mubr.f32.gmra.mrb[0].mxu0 %v469
  %v3282 = vpop.f32.mrb[0].mxu0
  %v3283 = vadd.f32 %v3183, %v3282
  %v3284 = vpop.f32.mrb[0].mxu0
  %3285 = vmatprep.mubr.f32.mxu0 %v486
  %3286 = vmatmul.mubr.f32.gmra.mrb[0].mxu0 %v485
  %v3287 = vpop.f32.mrb[0].mxu0
  %v3288 = vadd.f32 %v3188, %v3287
  %v3289 = vpop.f32.mrb[0].mxu0
  %3290 = vmatprep.mubr.f32.mxu0 %v502
  %3291 = vmatmul.mubr.f32.gmra.mrb[0].mxu0 %v501
  %v3292 = vpop.f32.mrb[0].mxu0
  %v3293 = vadd.f32 %v3193, %v3292
  %v3294 = vpop.f32.mrb[0].mxu0
  %3295 = vmatprep.mubr.f32.mxu0 %v518
  %3296 = vmatmul.mubr.f32.gmra.mrb[0].mxu0 %v517
  %v3297 = vpop.f32.mrb[0].mxu0
  %v3298 = vadd.f32 %v3198, %v3297
  %v3299 = vpop.f32.mrb[0].mxu0
  %3300 = vmatprep.mubr.f32.mxu0 %v534
  %3301 = vmatmul.mubr.f32.gmra.mrb[0].mxu0 %v533
  %v3302 = vpop.f32.mrb[0].mxu0
  %v3303 = vadd.f32 %v3203, %v3302
  %v3304 = vpop.f32.mrb[0].mxu0
  %3305 = vmatprep.mubr.f32.mxu0 %v550
  %3306 = vmatmul.mubr.f32.gmra.mrb[0].mxu0 %v549
  %v3307 = vpop.f32.mrb[0].mxu0
  %v3308 = vadd.f32 %v3208, %v3307
  %v3309 = vpop.f32.mrb[0].mxu0
  %3310 = vdwg.mxu0
  %3311 = vmatprep.subr.mxu0 0.0
  %3312 = vmatpush1.msra.mxu0 %v1183
  %3313 = vmatprep.subr.mxu0 0.0
  %3314 = vmatpush1.msra.mxu0 %v1184
  %3315 = vmatprep.subr.mxu0 0.0
  %3316 = vmatpush1.msra.mxu0 %v1185
  %3317 = vmatprep.subr.mxu0 0.0
  %3318 = vmatpush1.msra.mxu0 %v1186
  %3319 = vmatprep.subr.mxu0 0.0
  %3320 = vmatpush1.msra.mxu0 %v1187
  %3321 = vmatprep.subr.mxu0 0.0
  %3322 = vmatpush1.msra.mxu0 %v1188
  %3323 = vmatprep.subr.mxu0 0.0
  %3324 = vmatpush1.msra.mxu0 %v1189
  %3325 = vmatprep.subr.mxu0 0.0
  %3326 = vmatpush1.msra.mxu0 %v1190
  %3327 = vmatprep.subr.mxu0 0.0
  %3328 = vmatpush1.msra.mxu0 %v1191
  %3329 = vmatprep.subr.mxu0 0.0
  %3330 = vmatpush1.msra.mxu0 %v1192
  %3331 = vmatprep.subr.mxu0 0.0
  %3332 = vmatpush1.msra.mxu0 %v1193
  %3333 = vmatprep.subr.mxu0 0.0
  %3334 = vmatpush1.msra.mxu0 %v1194
  %3335 = vmatprep.subr.mxu0 0.0
  %3336 = vmatpush1.msra.mxu0 %v1195
  %3337 = vmatprep.subr.mxu0 0.0
  %3338 = vmatpush1.msra.mxu0 %v1196
  %3339 = vmatprep.subr.mxu0 0.0
  %3340 = vmatpush1.msra.mxu0 %v1197
  %3341 = vmatprep.subr.mxu0 0.0
  %3342 = vmatpush1.msra.mxu0 %v1198
  %3343 = vmatprep.subr.mxu0 0.0
  %3344 = vmatpush1.msra.mxu0 %v1199
  %3345 = vmatprep.subr.mxu0 0.0
  %3346 = vmatpush1.msra.mxu0 %v1200
  %3347 = vmatprep.subr.mxu0 0.0
  %3348 = vmatpush1.msra.mxu0 %v1201
  %3349 = vmatprep.subr.mxu0 0.0
  %3350 = vmatpush1.msra.mxu0 %v1202
  %3351 = vmatprep.subr.mxu0 0.0
  %3352 = vmatpush1.msra.mxu0 %v1203
  %3353 = vmatprep.subr.mxu0 0.0
  %3354 = vmatpush1.msra.mxu0 %v1204
  %3355 = vmatprep.subr.mxu0 0.0
  %3356 = vmatpush1.msra.mxu0 %v1205
  %3357 = vmatprep.subr.mxu0 0.0
  %3358 = vmatpush1.msra.mxu0 %v1206
  %3359 = vmatprep.subr.mxu0 0.0
  %3360 = vmatpush1.msra.mxu0 %v1207
  %3361 = vmatprep.subr.mxu0 0.0
  %3362 = vmatpush1.msra.mxu0 %v1208
  %3363 = vmatprep.subr.mxu0 0.0
  %3364 = vmatpush1.msra.mxu0 %v1209
  %3365 = vmatprep.subr.mxu0 0.0
  %3366 = vmatpush1.msra.mxu0 %v1210
  %3367 = vmatprep.subr.mxu0 0.0
  %3368 = vmatpush1.msra.mxu0 %v1211
  %3369 = vmatprep.subr.mxu0 0.0
  %3370 = vmatpush1.msra.mxu0 %v1212
  %3371 = vmatprep.subr.mxu0 0.0
  %3372 = vmatpush1.msra.mxu0 %v1213
  %3373 = vmatprep.subr.mxu0 0.0
  %3374 = vmatpush1.msra.mxu0 %v1214
  %3375 = vmatprep.mubr.f32.mxu0 %v456
  %3376 = vmatmul.mubr.f32.gmra.mrb[0].mxu0 %v455
  %v3377 = vpop.f32.mrb[0].mxu0
  %v3378 = vadd.f32 %v3278, %v3377
  %v3379 = vpop.f32.mrb[0].mxu0
  %3380 = vmatprep.mubr.f32.mxu0 %v472
  %3381 = vmatmul.mubr.f32.gmra.mrb[0].mxu0 %v471
  %v3382 = vpop.f32.mrb[0].mxu0
  %v3383 = vadd.f32 %v3283, %v3382
  %v3384 = vpop.f32.mrb[0].mxu0
  %3385 = vmatprep.mubr.f32.mxu0 %v488
  %3386 = vmatmul.mubr.f32.gmra.mrb[0].mxu0 %v487
  %v3387 = vpop.f32.mrb[0].mxu0
  %v3388 = vadd.f32 %v3288, %v3387
  %v3389 = vpop.f32.mrb[0].mxu0
  %3390 = vmatprep.mubr.f32.mxu0 %v504
  %3391 = vmatmul.mubr.f32.gmra.mrb[0].mxu0 %v503
  %v3392 = vpop.f32.mrb[0].mxu0
  %v3393 = vadd.f32 %v3293, %v3392
  %v3394 = vpop.f32.mrb[0].mxu0
  %3395 = vmatprep.mubr.f32.mxu0 %v520
  %3396 = vmatmul.mubr.f32.gmra.mrb[0].mxu0 %v519
  %v3397 = vpop.f32.mrb[0].mxu0
  %v3398 = vadd.f32 %v3298, %v3397
  %v3399 = vpop.f32.mrb[0].mxu0
  %3400 = vmatprep.mubr.f32.mxu0 %v536
  %3401 = vmatmul.mubr.f32.gmra.mrb[0].mxu0 %v535
  %v3402 = vpop.f32.mrb[0].mxu0
  %v3403 = vadd.f32 %v3303, %v3402
  %v3404 = vpop.f32.mrb[0].mxu0
  %3405 = vmatprep.mubr.f32.mxu0 %v552
  %3406 = vmatmul.mubr.f32.gmra.mrb[0].mxu0 %v551
  %v3407 = vpop.f32.mrb[0].mxu0
  %v3408 = vadd.f32 %v3308, %v3407
  %v3409 = vpop.f32.mrb[0].mxu0
  %3410 = vdwg.mxu0
  %3411 = vmatprep.subr.mxu0 0.0
  %3412 = vmatpush1.msra.mxu0 %v1215
  %3413 = vmatprep.subr.mxu0 0.0
  %3414 = vmatpush1.msra.mxu0 %v1216
  %3415 = vmatprep.subr.mxu0 0.0
  %3416 = vmatpush1.msra.mxu0 %v1217
  %3417 = vmatprep.subr.mxu0 0.0
  %3418 = vmatpush1.msra.mxu0 %v1218
  %3419 = vmatprep.subr.mxu0 0.0
  %3420 = vmatpush1.msra.mxu0 %v1219
  %3421 = vmatprep.subr.mxu0 0.0
  %3422 = vmatpush1.msra.mxu0 %v1220
  %3423 = vmatprep.subr.mxu0 0.0
  %3424 = vmatpush1.msra.mxu0 %v1221
  %3425 = vmatprep.subr.mxu0 0.0
  %3426 = vmatpush1.msra.mxu0 %v1222
  %3427 = vmatprep.subr.mxu0 0.0
  %3428 = vmatpush1.msra.mxu0 %v1223
  %3429 = vmatprep.subr.mxu0 0.0
  %3430 = vmatpush1.msra.mxu0 %v1224
  %3431 = vmatprep.subr.mxu0 0.0
  %3432 = vmatpush1.msra.mxu0 %v1225
  %3433 = vmatprep.subr.mxu0 0.0
  %3434 = vmatpush1.msra.mxu0 %v1226
  %3435 = vmatprep.subr.mxu0 0.0
  %3436 = vmatpush1.msra.mxu0 %v1227
  %3437 = vmatprep.subr.mxu0 0.0
  %3438 = vmatpush1.msra.mxu0 %v1228
  %3439 = vmatprep.subr.mxu0 0.0
  %3440 = vmatpush1.msra.mxu0 %v1229
  %3441 = vmatprep.subr.mxu0 0.0
  %3442 = vmatpush1.msra.mxu0 %v1230
  %3443 = vmatprep.subr.mxu0 0.0
  %3444 = vmatpush1.msra.mxu0 %v1231
  %3445 = vmatprep.subr.mxu0 0.0
  %3446 = vmatpush1.msra.mxu0 %v1232
  %3447 = vmatprep.subr.mxu0 0.0
  %3448 = vmatpush1.msra.mxu0 %v1233
  %3449 = vmatprep.subr.mxu0 0.0
  %3450 = vmatpush1.msra.mxu0 %v1234
  %3451 = vmatprep.subr.mxu0 0.0
  %3452 = vmatpush1.msra.mxu0 %v1235
  %3453 = vmatprep.subr.mxu0 0.0
  %3454 = vmatpush1.msra.mxu0 %v1236
  %3455 = vmatprep.subr.mxu0 0.0
  %3456 = vmatpush1.msra.mxu0 %v1237
  %3457 = vmatprep.subr.mxu0 0.0
  %3458 = vmatpush1.msra.mxu0 %v1238
  %3459 = vmatprep.subr.mxu0 0.0
  %3460 = vmatpush1.msra.mxu0 %v1239
  %3461 = vmatprep.subr.mxu0 0.0
  %3462 = vmatpush1.msra.mxu0 %v1240
  %3463 = vmatprep.subr.mxu0 0.0
  %3464 = vmatpush1.msra.mxu0 %v1241
  %3465 = vmatprep.subr.mxu0 0.0
  %3466 = vmatpush1.msra.mxu0 %v1242
  %3467 = vmatprep.subr.mxu0 0.0
  %3468 = vmatpush1.msra.mxu0 %v1243
  %3469 = vmatprep.subr.mxu0 0.0
  %3470 = vmatpush1.msra.mxu0 %v1244
  %3471 = vmatprep.subr.mxu0 0.0
  %3472 = vmatpush1.msra.mxu0 %v1245
  %3473 = vmatprep.subr.mxu0 0.0
  %3474 = vmatpush1.msra.mxu0 %v1246
  %3475 = vmatprep.mubr.f32.mxu0 %v458
  %3476 = vmatmul.mubr.f32.gmra.mrb[0].mxu0 %v457
  %v3477 = vpop.f32.mrb[0].mxu0
  %v3478 = vadd.f32 %v3378, %v3477
  %v3479 = vpop.f32.mrb[0].mxu0
  %3480 = vmatprep.mubr.f32.mxu0 %v474
  %3481 = vmatmul.mubr.f32.gmra.mrb[0].mxu0 %v473
  %v3482 = vpop.f32.mrb[0].mxu0
  %v3483 = vadd.f32 %v3383, %v3482
  %v3484 = vpop.f32.mrb[0].mxu0
  %3485 = vmatprep.mubr.f32.mxu0 %v490
  %3486 = vmatmul.mubr.f32.gmra.mrb[0].mxu0 %v489
  %v3487 = vpop.f32.mrb[0].mxu0
  %v3488 = vadd.f32 %v3388, %v3487
  %v3489 = vpop.f32.mrb[0].mxu0
  %3490 = vmatprep.mubr.f32.mxu0 %v506
  %3491 = vmatmul.mubr.f32.gmra.mrb[0].mxu0 %v505
  %v3492 = vpop.f32.mrb[0].mxu0
  %v3493 = vadd.f32 %v3393, %v3492
  %v3494 = vpop.f32.mrb[0].mxu0
  %3495 = vmatprep.mubr.f32.mxu0 %v522
  %3496 = vmatmul.mubr.f32.gmra.mrb[0].mxu0 %v521
  %v3497 = vpop.f32.mrb[0].mxu0
  %v3498 = vadd.f32 %v3398, %v3497
  %v3499 = vpop.f32.mrb[0].mxu0
  %3500 = vmatprep.mubr.f32.mxu0 %v538
  %3501 = vmatmul.mubr.f32.gmra.mrb[0].mxu0 %v537
  %v3502 = vpop.f32.mrb[0].mxu0
  %v3503 = vadd.f32 %v3403, %v3502
  %v3504 = vpop.f32.mrb[0].mxu0
  %3505 = vmatprep.mubr.f32.mxu0 %v554
  %3506 = vmatmul.mubr.f32.gmra.mrb[0].mxu0 %v553
  %v3507 = vpop.f32.mrb[0].mxu0
  %v3508 = vadd.f32 %v3408, %v3507
  %v3509 = vpop.f32.mrb[0].mxu0
  %3510 = vdwg.mxu0
  %3511 = vmatprep.subr.mxu0 0.0
  %3512 = vmatpush1.msra.mxu0 %v1247
  %3513 = vmatprep.subr.mxu0 0.0
  %3514 = vmatpush1.msra.mxu0 %v1248
  %3515 = vmatprep.subr.mxu0 0.0
  %3516 = vmatpush1.msra.mxu0 %v1249
  %3517 = vmatprep.subr.mxu0 0.0
  %3518 = vmatpush1.msra.mxu0 %v1250
  %3519 = vmatprep.subr.mxu0 0.0
  %3520 = vmatpush1.msra.mxu0 %v1251
  %3521 = vmatprep.subr.mxu0 0.0
  %3522 = vmatpush1.msra.mxu0 %v1252
  %3523 = vmatprep.subr.mxu0 0.0
  %3524 = vmatpush1.msra.mxu0 %v1253
  %3525 = vmatprep.subr.mxu0 0.0
  %3526 = vmatpush1.msra.mxu0 %v1254
  %3527 = vmatprep.subr.mxu0 0.0
  %3528 = vmatpush1.msra.mxu0 %v1255
  %3529 = vmatprep.subr.mxu0 0.0
  %3530 = vmatpush1.msra.mxu0 %v1256
  %3531 = vmatprep.subr.mxu0 0.0
  %3532 = vmatpush1.msra.mxu0 %v1257
  %3533 = vmatprep.subr.mxu0 0.0
  %3534 = vmatpush1.msra.mxu0 %v1258
  %3535 = vmatprep.subr.mxu0 0.0
  %3536 = vmatpush1.msra.mxu0 %v1259
  %3537 = vmatprep.subr.mxu0 0.0
  %3538 = vmatpush1.msra.mxu0 %v1260
  %3539 = vmatprep.subr.mxu0 0.0
  %3540 = vmatpush1.msra.mxu0 %v1261
  %3541 = vmatprep.subr.mxu0 0.0
  %3542 = vmatpush1.msra.mxu0 %v1262
  %3543 = vmatprep.subr.mxu0 0.0
  %3544 = vmatpush1.msra.mxu0 %v1263
  %3545 = vmatprep.subr.mxu0 0.0
  %3546 = vmatpush1.msra.mxu0 %v1264
  %3547 = vmatprep.subr.mxu0 0.0
  %3548 = vmatpush1.msra.mxu0 %v1265
  %3549 = vmatprep.subr.mxu0 0.0
  %3550 = vmatpush1.msra.mxu0 %v1266
  %3551 = vmatprep.subr.mxu0 0.0
  %3552 = vmatpush1.msra.mxu0 %v1267
  %3553 = vmatprep.subr.mxu0 0.0
  %3554 = vmatpush1.msra.mxu0 %v1268
  %3555 = vmatprep.subr.mxu0 0.0
  %3556 = vmatpush1.msra.mxu0 %v1269
  %3557 = vmatprep.subr.mxu0 0.0
  %3558 = vmatpush1.msra.mxu0 %v1270
  %3559 = vmatprep.subr.mxu0 0.0
  %3560 = vmatpush1.msra.mxu0 %v1271
  %3561 = vmatprep.subr.mxu0 0.0
  %3562 = vmatpush1.msra.mxu0 %v1272
  %3563 = vmatprep.subr.mxu0 0.0
  %3564 = vmatpush1.msra.mxu0 %v1273
  %3565 = vmatprep.subr.mxu0 0.0
  %3566 = vmatpush1.msra.mxu0 %v1274
  %3567 = vmatprep.subr.mxu0 0.0
  %3568 = vmatpush1.msra.mxu0 %v1275
  %3569 = vmatprep.subr.mxu0 0.0
  %3570 = vmatpush1.msra.mxu0 %v1276
  %3571 = vmatprep.subr.mxu0 0.0
  %3572 = vmatpush1.msra.mxu0 %v1277
  %3573 = vmatprep.subr.mxu0 0.0
  %3574 = vmatpush1.msra.mxu0 %v1278
  %3575 = vmatprep.mubr.f32.mxu0 %v460
  %3576 = vmatmul.mubr.f32.gmra.mrb[0].mxu0 %v459
  %v3577 = vpop.f32.mrb[0].mxu0
  %v3578 = vadd.f32 %v3478, %v3577
  %v3579 = vpop.f32.mrb[0].mxu0
  %3580 = vmatprep.mubr.f32.mxu0 %v476
  %3581 = vmatmul.mubr.f32.gmra.mrb[0].mxu0 %v475
  %v3582 = vpop.f32.mrb[0].mxu0
  %v3583 = vadd.f32 %v3483, %v3582
  %v3584 = vpop.f32.mrb[0].mxu0
  %3585 = vmatprep.mubr.f32.mxu0 %v492
  %3586 = vmatmul.mubr.f32.gmra.mrb[0].mxu0 %v491
  %v3587 = vpop.f32.mrb[0].mxu0
  %v3588 = vadd.f32 %v3488, %v3587
  %v3589 = vpop.f32.mrb[0].mxu0
  %3590 = vmatprep.mubr.f32.mxu0 %v508
  %3591 = vmatmul.mubr.f32.gmra.mrb[0].mxu0 %v507
  %v3592 = vpop.f32.mrb[0].mxu0
  %v3593 = vadd.f32 %v3493, %v3592
  %v3594 = vpop.f32.mrb[0].mxu0
  %3595 = vmatprep.mubr.f32.mxu0 %v524
  %3596 = vmatmul.mubr.f32.gmra.mrb[0].mxu0 %v523
  %v3597 = vpop.f32.mrb[0].mxu0
  %v3598 = vadd.f32 %v3498, %v3597
  %v3599 = vpop.f32.mrb[0].mxu0
  %3600 = vmatprep.mubr.f32.mxu0 %v540
  %3601 = vmatmul.mubr.f32.gmra.mrb[0].mxu0 %v539
  %v3602 = vpop.f32.mrb[0].mxu0
  %v3603 = vadd.f32 %v3503, %v3602
  %v3604 = vpop.f32.mrb[0].mxu0
  %3605 = vmatprep.mubr.f32.mxu0 %v556
  %3606 = vmatmul.mubr.f32.gmra.mrb[0].mxu0 %v555
  %v3607 = vpop.f32.mrb[0].mxu0
  %v3608 = vadd.f32 %v3508, %v3607
  %v3609 = vpop.f32.mrb[0].mxu0
  %3610 = vdwg.mxu0
  %3611 = vmatprep.subr.mxu0 0.0
  %3612 = vmatpush1.msra.mxu0 %v1279
  %3613 = vmatprep.subr.mxu0 0.0
  %3614 = vmatpush1.msra.mxu0 %v1280
  %3615 = vmatprep.subr.mxu0 0.0
  %3616 = vmatpush1.msra.mxu0 %v1281
  %3617 = vmatprep.subr.mxu0 0.0
  %3618 = vmatpush1.msra.mxu0 %v1282
  %3619 = vmatprep.subr.mxu0 0.0
  %3620 = vmatpush1.msra.mxu0 %v1283
  %3621 = vmatprep.subr.mxu0 0.0
  %3622 = vmatpush1.msra.mxu0 %v1284
  %3623 = vmatprep.subr.mxu0 0.0
  %3624 = vmatpush1.msra.mxu0 %v1285
  %3625 = vmatprep.subr.mxu0 0.0
  %3626 = vmatpush1.msra.mxu0 %v1286
  %3627 = vmatprep.subr.mxu0 0.0
  %3628 = vmatpush1.msra.mxu0 %v1287
  %3629 = vmatprep.subr.mxu0 0.0
  %3630 = vmatpush1.msra.mxu0 %v1288
  %3631 = vmatprep.subr.mxu0 0.0
  %3632 = vmatpush1.msra.mxu0 %v1289
  %3633 = vmatprep.subr.mxu0 0.0
  %3634 = vmatpush1.msra.mxu0 %v1290
  %3635 = vmatprep.subr.mxu0 0.0
  %3636 = vmatpush1.msra.mxu0 %v1291
  %3637 = vmatprep.subr.mxu0 0.0
  %3638 = vmatpush1.msra.mxu0 %v1292
  %3639 = vmatprep.subr.mxu0 0.0
  %3640 = vmatpush1.msra.mxu0 %v1293
  %3641 = vmatprep.subr.mxu0 0.0
  %3642 = vmatpush1.msra.mxu0 %v1294
  %3643 = vmatprep.subr.mxu0 0.0
  %3644 = vmatpush1.msra.mxu0 %v1295
  %3645 = vmatprep.subr.mxu0 0.0
  %3646 = vmatpush1.msra.mxu0 %v1296
  %3647 = vmatprep.subr.mxu0 0.0
  %3648 = vmatpush1.msra.mxu0 %v1297
  %3649 = vmatprep.subr.mxu0 0.0
  %3650 = vmatpush1.msra.mxu0 %v1298
  %3651 = vmatprep.subr.mxu0 0.0
  %3652 = vmatpush1.msra.mxu0 %v1299
  %3653 = vmatprep.subr.mxu0 0.0
  %3654 = vmatpush1.msra.mxu0 %v1300
  %3655 = vmatprep.subr.mxu0 0.0
  %3656 = vmatpush1.msra.mxu0 %v1301
  %3657 = vmatprep.subr.mxu0 0.0
  %3658 = vmatpush1.msra.mxu0 %v1302
  %3659 = vmatprep.subr.mxu0 0.0
  %3660 = vmatpush1.msra.mxu0 %v1303
  %3661 = vmatprep.subr.mxu0 0.0
  %3662 = vmatpush1.msra.mxu0 %v1304
  %3663 = vmatprep.subr.mxu0 0.0
  %3664 = vmatpush1.msra.mxu0 %v1305
  %3665 = vmatprep.subr.mxu0 0.0
  %3666 = vmatpush1.msra.mxu0 %v1306
  %3667 = vmatprep.subr.mxu0 0.0
  %3668 = vmatpush1.msra.mxu0 %v1307
  %3669 = vmatprep.subr.mxu0 0.0
  %3670 = vmatpush1.msra.mxu0 %v1308
  %3671 = vmatprep.subr.mxu0 0.0
  %3672 = vmatpush1.msra.mxu0 %v1309
  %3673 = vmatprep.subr.mxu0 0.0
  %3674 = vmatpush1.msra.mxu0 %v1310
  %3675 = vmatprep.mubr.f32.mxu0 %v462
  %3676 = vmatmul.mubr.f32.gmra.mrb[0].mxu0 %v461
  %v3677 = vpop.f32.mrb[0].mxu0
  %v3678 = vadd.f32 %v3578, %v3677
  %v3679 = vpop.f32.mrb[0].mxu0
  %3680 = vmatprep.mubr.f32.mxu0 %v478
  %3681 = vmatmul.mubr.f32.gmra.mrb[0].mxu0 %v477
  %v3682 = vpop.f32.mrb[0].mxu0
  %v3683 = vadd.f32 %v3583, %v3682
  %v3684 = vpop.f32.mrb[0].mxu0
  %3685 = vmatprep.mubr.f32.mxu0 %v494
  %3686 = vmatmul.mubr.f32.gmra.mrb[0].mxu0 %v493
  %v3687 = vpop.f32.mrb[0].mxu0
  %v3688 = vadd.f32 %v3588, %v3687
  %v3689 = vpop.f32.mrb[0].mxu0
  %3690 = vmatprep.mubr.f32.mxu0 %v510
  %3691 = vmatmul.mubr.f32.gmra.mrb[0].mxu0 %v509
  %v3692 = vpop.f32.mrb[0].mxu0
  %v3693 = vadd.f32 %v3593, %v3692
  %v3694 = vpop.f32.mrb[0].mxu0
  %3695 = vmatprep.mubr.f32.mxu0 %v526
  %3696 = vmatmul.mubr.f32.gmra.mrb[0].mxu0 %v525
  %v3697 = vpop.f32.mrb[0].mxu0
  %v3698 = vadd.f32 %v3598, %v3697
  %v3699 = vpop.f32.mrb[0].mxu0
  %3700 = vmatprep.mubr.f32.mxu0 %v542
  %3701 = vmatmul.mubr.f32.gmra.mrb[0].mxu0 %v541
  %v3702 = vpop.f32.mrb[0].mxu0
  %v3703 = vadd.f32 %v3603, %v3702
  %v3704 = vpop.f32.mrb[0].mxu0
  %3705 = vmatprep.mubr.f32.mxu0 %v558
  %3706 = vmatmul.mubr.f32.gmra.mrb[0].mxu0 %v557
  %v3707 = vpop.f32.mrb[0].mxu0
  %v3708 = vadd.f32 %v3608, %v3707
  %v3709 = vpop.f32.mrb[0].mxu0
  %3710 = vdwg.mxu0
  %v3711 = vadd.f32 %v2878, %v3678
  %v3712 = vadd.f32 %v2883, %v3683
  %v3713 = vadd.f32 %v2888, %v3688
  %v3714 = vadd.f32 %v2893, %v3693
  %v3715 = vadd.f32 %v2898, %v3698
  %v3716 = vadd.f32 %v2903, %v3703
  %v3717 = vadd.f32 %v2908, %v3708
  %v3719 = vlaneseq
  %v3720 = vshrl.u32 %v3719, 7
  %v3721 = vsub.s32 0, %v3720
  %v3722 = vrot.slane %v270, %v3721
  %v3724 = vadd.f32 %v3711, %v3722
  %v3725 = vadd.f32 %v3712, %v3722
  %v3726 = vadd.f32 %v3713, %v3722
  %v3727 = vadd.f32 %v3714, %v3722
  %v3728 = vadd.f32 %v3715, %v3722
  %v3729 = vadd.f32 %v3716, %v3722
  %v3730 = vadd.f32 %v3717, %v3722
  %v3731 = vmax.f32 %v3724, 0.0
  %v3732 = vmax.f32 %v3725, 0.0
  %v3733 = vmax.f32 %v3726, 0.0
  %v3734 = vmax.f32 %v3727, 0.0
  %v3735 = vmax.f32 %v3728, 0.0
  %v3736 = vmax.f32 %v3729, 0.0
  %v3737 = vmax.f32 %v3730, 0.0
  %vm3738 = vcmask 261120
  %3739 = vst.msk [vmem:[%s3] sm:$0xff] %vm3738, %v3731
  %3740 = vst.msk [vmem:[%s3 + $0x8] sm:$0xff] %vm3738, %v3732
  %3741 = vst.msk [vmem:[%s3 + $0x10] sm:$0xff] %vm3738, %v3733
  %3742 = vst.msk [vmem:[%s3 + $0x18] sm:$0xff] %vm3738, %v3734
  %3743 = vst.msk [vmem:[%s3 + $0x20] sm:$0xff] %vm3738, %v3735
  %3744 = vst.msk [vmem:[%s3 + $0x28] sm:$0xff] %vm3738, %v3736
  %vm3745 = vcmask 253952
  %3746 = vst.msk [vmem:[%s3 + $0x30] sm:$0x1] %vm3745, %v3737
  %s3747 = scalar_lea.vmem %s0, 896
  %v3748 = vld [vmem:[%s3747] sm:$0xff]
  %v3749 = vld [vmem:[%s3747 + $0x8] sm:$0xff]
  %v3750 = vld [vmem:[%s3747 + $0x10] sm:$0xff]
  %v3751 = vld [vmem:[%s3747 + $0x18] sm:$0xff]
  %v3752 = vld [vmem:[%s3747 + $0x20] sm:$0xff]
  %v3753 = vld [vmem:[%s3747 + $0x28] sm:$0xff]
  %v3754 = vld [vmem:[%s3747 + $0x30] sm:$0xff]
  %v3755 = vld [vmem:[%s3747 + $0x38] sm:$0xff]
  %v3756 = vld [vmem:[%s3747 + $0x40] sm:$0xff]
  %v3757 = vld [vmem:[%s3747 + $0x48] sm:$0xff]
  %v3758 = vld [vmem:[%s3747 + $0x50] sm:$0xff]
  %v3759 = vld [vmem:[%s3747 + $0x58] sm:$0xff]
  %v3760 = vld [vmem:[%s3747 + $0x60] sm:$0xff]
  %v3761 = vld [vmem:[%s3747 + $0x68] sm:$0xff]
  %v3762 = vld [vmem:[%s3747 + $0x70] sm:$0xff]
  %v3763 = vld [vmem:[%s3747 + $0x78] sm:$0xff]
  %v3764 = vld [vmem:[%s3747 + $0x80] sm:$0xff]
  %v3765 = vld [vmem:[%s3747 + $0x88] sm:$0xff]
  %v3766 = vld [vmem:[%s3747 + $0x90] sm:$0xff]
  %v3767 = vld [vmem:[%s3747 + $0x98] sm:$0xff]
  %v3768 = vld [vmem:[%s3747 + $0xa0] sm:$0xff]
  %v3769 = vld [vmem:[%s3747 + $0xa8] sm:$0xff]
  %v3770 = vld [vmem:[%s3747 + $0xb0] sm:$0xff]
  %v3771 = vld [vmem:[%s3747 + $0xb8] sm:$0xff]
  %v3772 = vld [vmem:[%s3747 + $0xc0] sm:$0xff]
  %v3773 = vld [vmem:[%s3747 + $0xc8] sm:$0xff]
  %v3774 = vld [vmem:[%s3747 + $0xd0] sm:$0xff]
  %v3775 = vld [vmem:[%s3747 + $0xd8] sm:$0xff]
  %v3776 = vld [vmem:[%s3747 + $0xe0] sm:$0xff]
  %v3777 = vld [vmem:[%s3747 + $0xe8] sm:$0xff]
  %v3778 = vld [vmem:[%s3747 + $0xf0] sm:$0xff]
  %v3779 = vld [vmem:[%s3747 + $0xf8] sm:$0xff]
  %v3780 = vld [vmem:[%s3747 + $0x100] sm:$0xff]
  %v3781 = vld [vmem:[%s3747 + $0x108] sm:$0xff]
  %v3782 = vld [vmem:[%s3747 + $0x110] sm:$0xff]
  %v3783 = vld [vmem:[%s3747 + $0x118] sm:$0xff]
  %v3784 = vld [vmem:[%s3747 + $0x120] sm:$0xff]
  %v3785 = vld [vmem:[%s3747 + $0x128] sm:$0xff]
  %v3786 = vld [vmem:[%s3747 + $0x130] sm:$0xff]
  %v3787 = vld [vmem:[%s3747 + $0x138] sm:$0xff]
  %v3788 = vld [vmem:[%s3747 + $0x140] sm:$0xff]
  %v3789 = vld [vmem:[%s3747 + $0x148] sm:$0xff]
  %v3790 = vld [vmem:[%s3747 + $0x150] sm:$0xff]
  %v3791 = vld [vmem:[%s3747 + $0x158] sm:$0xff]
  %v3792 = vld [vmem:[%s3747 + $0x160] sm:$0xff]
  %v3793 = vld [vmem:[%s3747 + $0x168] sm:$0xff]
  %v3794 = vld [vmem:[%s3747 + $0x170] sm:$0xff]
  %v3795 = vld [vmem:[%s3747 + $0x178] sm:$0xff]
  %v3796 = vld [vmem:[%s3747 + $0x180] sm:$0xff]
  %v3797 = vld [vmem:[%s3747 + $0x188] sm:$0xff]
  %v3798 = vld [vmem:[%s3747 + $0x190] sm:$0xff]
  %v3799 = vld [vmem:[%s3747 + $0x198] sm:$0xff]
  %v3800 = vld [vmem:[%s3747 + $0x1a0] sm:$0xff]
  %v3801 = vld [vmem:[%s3747 + $0x1a8] sm:$0xff]
  %v3802 = vld [vmem:[%s3747 + $0x1b0] sm:$0xff]
  %v3803 = vld [vmem:[%s3747 + $0x1b8] sm:$0xff]
  %v3804 = vld [vmem:[%s3747 + $0x1c0] sm:$0xff]
  %v3805 = vld [vmem:[%s3747 + $0x1c8] sm:$0xff]
  %v3806 = vld [vmem:[%s3747 + $0x1d0] sm:$0xff]
  %v3807 = vld [vmem:[%s3747 + $0x1d8] sm:$0xff]
  %v3808 = vld [vmem:[%s3747 + $0x1e0] sm:$0xff]
  %v3809 = vld [vmem:[%s3747 + $0x1e8] sm:$0xff]
  %v3810 = vld [vmem:[%s3747 + $0x1f0] sm:$0xff]
  %v3811 = vld [vmem:[%s3747 + $0x1f8] sm:$0xff]
  %v3812 = vld [vmem:[%s3747 + $0x200] sm:$0xff]
  %v3813 = vld [vmem:[%s3747 + $0x208] sm:$0xff]
  %v3814 = vld [vmem:[%s3747 + $0x210] sm:$0xff]
  %v3815 = vld [vmem:[%s3747 + $0x218] sm:$0xff]
  %v3816 = vld [vmem:[%s3747 + $0x220] sm:$0xff]
  %v3817 = vld [vmem:[%s3747 + $0x228] sm:$0xff]
  %v3818 = vld [vmem:[%s3747 + $0x230] sm:$0xff]
  %v3819 = vld [vmem:[%s3747 + $0x238] sm:$0xff]
  %v3820 = vld [vmem:[%s3747 + $0x240] sm:$0xff]
  %v3821 = vld [vmem:[%s3747 + $0x248] sm:$0xff]
  %v3822 = vld [vmem:[%s3747 + $0x250] sm:$0xff]
  %v3823 = vld [vmem:[%s3747 + $0x258] sm:$0xff]
  %v3824 = vld [vmem:[%s3747 + $0x260] sm:$0xff]
  %v3825 = vld [vmem:[%s3747 + $0x268] sm:$0xff]
  %v3826 = vld [vmem:[%s3747 + $0x270] sm:$0xff]
  %v3827 = vld [vmem:[%s3747 + $0x278] sm:$0xff]
  %v3828 = vld [vmem:[%s3747 + $0x280] sm:$0xff]
  %v3829 = vld [vmem:[%s3747 + $0x288] sm:$0xff]
  %v3830 = vld [vmem:[%s3747 + $0x290] sm:$0xff]
  %v3831 = vld [vmem:[%s3747 + $0x298] sm:$0xff]
  %v3832 = vld [vmem:[%s3747 + $0x2a0] sm:$0xff]
  %v3833 = vld [vmem:[%s3747 + $0x2a8] sm:$0xff]
  %v3834 = vld [vmem:[%s3747 + $0x2b0] sm:$0xff]
  %v3835 = vld [vmem:[%s3747 + $0x2b8] sm:$0xff]
  %v3836 = vld [vmem:[%s3747 + $0x2c0] sm:$0xff]
  %v3837 = vld [vmem:[%s3747 + $0x2c8] sm:$0xff]
  %v3838 = vld [vmem:[%s3747 + $0x2d0] sm:$0xff]
  %v3839 = vld [vmem:[%s3747 + $0x2d8] sm:$0xff]
  %v3840 = vld [vmem:[%s3747 + $0x2e0] sm:$0xff]
  %v3841 = vld [vmem:[%s3747 + $0x2e8] sm:$0xff]
  %v3842 = vld [vmem:[%s3747 + $0x2f0] sm:$0xff]
  %v3843 = vld [vmem:[%s3747 + $0x2f8] sm:$0xff]
  %v3844 = vld [vmem:[%s3747 + $0x300] sm:$0x1]
  %v3845 = vld [vmem:[%s3747 + $0x308] sm:$0x1]
  %v3846 = vld [vmem:[%s3747 + $0x310] sm:$0x1]
  %v3847 = vld [vmem:[%s3747 + $0x318] sm:$0x1]
  %v3848 = vld [vmem:[%s3747 + $0x320] sm:$0x1]
  %v3849 = vld [vmem:[%s3747 + $0x328] sm:$0x1]
  %v3850 = vld [vmem:[%s3747 + $0x330] sm:$0x1]
  %v3851 = vld [vmem:[%s3747 + $0x338] sm:$0x1]
  %v3852 = vld [vmem:[%s3747 + $0x340] sm:$0x1]
  %v3853 = vld [vmem:[%s3747 + $0x348] sm:$0x1]
  %v3854 = vld [vmem:[%s3747 + $0x350] sm:$0x1]
  %v3855 = vld [vmem:[%s3747 + $0x358] sm:$0x1]
  %v3856 = vld [vmem:[%s3747 + $0x360] sm:$0x1]
  %v3857 = vld [vmem:[%s3747 + $0x368] sm:$0x1]
  %v3858 = vld [vmem:[%s3747 + $0x370] sm:$0x1]
  %v3859 = vld [vmem:[%s3747 + $0x378] sm:$0x1]
  %v3860 = vpack.c.bf16 %v3764, %v3748
  %v3861 = vpack.c.bf16 %v3765, %v3749
  %v3862 = vpack.c.bf16 %v3766, %v3750
  %v3863 = vpack.c.bf16 %v3767, %v3751
  %v3864 = vpack.c.bf16 %v3768, %v3752
  %v3865 = vpack.c.bf16 %v3769, %v3753
  %v3866 = vpack.c.bf16 %v3770, %v3754
  %v3867 = vpack.c.bf16 %v3771, %v3755
  %v3868 = vpack.c.bf16 %v3772, %v3756
  %v3869 = vpack.c.bf16 %v3773, %v3757
  %v3870 = vpack.c.bf16 %v3774, %v3758
  %v3871 = vpack.c.bf16 %v3775, %v3759
  %v3872 = vpack.c.bf16 %v3776, %v3760
  %v3873 = vpack.c.bf16 %v3777, %v3761
  %v3874 = vpack.c.bf16 %v3778, %v3762
  %v3875 = vpack.c.bf16 %v3779, %v3763
  %v3876 = vpack.c.bf16 %v3796, %v3780
  %v3877 = vpack.c.bf16 %v3797, %v3781
  %v3878 = vpack.c.bf16 %v3798, %v3782
  %v3879 = vpack.c.bf16 %v3799, %v3783
  %v3880 = vpack.c.bf16 %v3800, %v3784
  %v3881 = vpack.c.bf16 %v3801, %v3785
  %v3882 = vpack.c.bf16 %v3802, %v3786
  %v3883 = vpack.c.bf16 %v3803, %v3787
  %v3884 = vpack.c.bf16 %v3804, %v3788
  %v3885 = vpack.c.bf16 %v3805, %v3789
  %v3886 = vpack.c.bf16 %v3806, %v3790
  %v3887 = vpack.c.bf16 %v3807, %v3791
  %v3888 = vpack.c.bf16 %v3808, %v3792
  %v3889 = vpack.c.bf16 %v3809, %v3793
  %v3890 = vpack.c.bf16 %v3810, %v3794
  %v3891 = vpack.c.bf16 %v3811, %v3795
  %v3892 = vpack.c.bf16 %v3828, %v3812
  %v3893 = vpack.c.bf16 %v3829, %v3813
  %v3894 = vpack.c.bf16 %v3830, %v3814
  %v3895 = vpack.c.bf16 %v3831, %v3815
  %v3896 = vpack.c.bf16 %v3832, %v3816
  %v3897 = vpack.c.bf16 %v3833, %v3817
  %v3898 = vpack.c.bf16 %v3834, %v3818
  %v3899 = vpack.c.bf16 %v3835, %v3819
  %v3900 = vpack.c.bf16 %v3836, %v3820
  %v3901 = vpack.c.bf16 %v3837, %v3821
  %v3902 = vpack.c.bf16 %v3838, %v3822
  %v3903 = vpack.c.bf16 %v3839, %v3823
  %v3904 = vpack.c.bf16 %v3840, %v3824
  %v3905 = vpack.c.bf16 %v3841, %v3825
  %v3906 = vpack.c.bf16 %v3842, %v3826
  %v3907 = vpack.c.bf16 %v3843, %v3827
  %v3908 = vpack.c.bf16 %v3844, %v3844
  %v3909 = vpack.c.bf16 %v3845, %v3845
  %v3910 = vpack.c.bf16 %v3846, %v3846
  %v3911 = vpack.c.bf16 %v3847, %v3847
  %v3912 = vpack.c.bf16 %v3848, %v3848
  %v3913 = vpack.c.bf16 %v3849, %v3849
  %v3914 = vpack.c.bf16 %v3850, %v3850
  %v3915 = vpack.c.bf16 %v3851, %v3851
  %v3916 = vpack.c.bf16 %v3852, %v3852
  %v3917 = vpack.c.bf16 %v3853, %v3853
  %v3918 = vpack.c.bf16 %v3854, %v3854
  %v3919 = vpack.c.bf16 %v3855, %v3855
  %v3920 = vpack.c.bf16 %v3856, %v3856
  %v3921 = vpack.c.bf16 %v3857, %v3857
  %v3922 = vpack.c.bf16 %v3858, %v3858
  %v3923 = vpack.c.bf16 %v3859, %v3859
  %v3924 = vunpack.c.l.bf16 %v3860
  %v3925 = vunpack.c.l.bf16 %v3861
  %v3926 = vunpack.c.l.bf16 %v3862
  %v3927 = vunpack.c.l.bf16 %v3863
  %v3928 = vunpack.c.l.bf16 %v3864
  %v3929 = vunpack.c.l.bf16 %v3865
  %v3930 = vunpack.c.l.bf16 %v3866
  %v3931 = vunpack.c.l.bf16 %v3867
  %v3932 = vunpack.c.l.bf16 %v3868
  %v3933 = vunpack.c.l.bf16 %v3869
  %v3934 = vunpack.c.l.bf16 %v3870
  %v3935 = vunpack.c.l.bf16 %v3871
  %v3936 = vunpack.c.l.bf16 %v3872
  %v3937 = vunpack.c.l.bf16 %v3873
  %v3938 = vunpack.c.l.bf16 %v3874
  %v3939 = vunpack.c.l.bf16 %v3875
  %v3940 = vunpack.c.h.bf16 %v3860
  %v3941 = vunpack.c.h.bf16 %v3861
  %v3942 = vunpack.c.h.bf16 %v3862
  %v3943 = vunpack.c.h.bf16 %v3863
  %v3944 = vunpack.c.h.bf16 %v3864
  %v3945 = vunpack.c.h.bf16 %v3865
  %v3946 = vunpack.c.h.bf16 %v3866
  %v3947 = vunpack.c.h.bf16 %v3867
  %v3948 = vunpack.c.h.bf16 %v3868
  %v3949 = vunpack.c.h.bf16 %v3869
  %v3950 = vunpack.c.h.bf16 %v3870
  %v3951 = vunpack.c.h.bf16 %v3871
  %v3952 = vunpack.c.h.bf16 %v3872
  %v3953 = vunpack.c.h.bf16 %v3873
  %v3954 = vunpack.c.h.bf16 %v3874
  %v3955 = vunpack.c.h.bf16 %v3875
  %v3956 = vunpack.c.l.bf16 %v3876
  %v3957 = vunpack.c.l.bf16 %v3877
  %v3958 = vunpack.c.l.bf16 %v3878
  %v3959 = vunpack.c.l.bf16 %v3879
  %v3960 = vunpack.c.l.bf16 %v3880
  %v3961 = vunpack.c.l.bf16 %v3881
  %v3962 = vunpack.c.l.bf16 %v3882
  %v3963 = vunpack.c.l.bf16 %v3883
  %v3964 = vunpack.c.l.bf16 %v3884
  %v3965 = vunpack.c.l.bf16 %v3885
  %v3966 = vunpack.c.l.bf16 %v3886
  %v3967 = vunpack.c.l.bf16 %v3887
  %v3968 = vunpack.c.l.bf16 %v3888
  %v3969 = vunpack.c.l.bf16 %v3889
  %v3970 = vunpack.c.l.bf16 %v3890
  %v3971 = vunpack.c.l.bf16 %v3891
  %v3972 = vunpack.c.h.bf16 %v3876
  %v3973 = vunpack.c.h.bf16 %v3877
  %v3974 = vunpack.c.h.bf16 %v3878
  %v3975 = vunpack.c.h.bf16 %v3879
  %v3976 = vunpack.c.h.bf16 %v3880
  %v3977 = vunpack.c.h.bf16 %v3881
  %v3978 = vunpack.c.h.bf16 %v3882
  %v3979 = vunpack.c.h.bf16 %v3883
  %v3980 = vunpack.c.h.bf16 %v3884
  %v3981 = vunpack.c.h.bf16 %v3885
  %v3982 = vunpack.c.h.bf16 %v3886
  %v3983 = vunpack.c.h.bf16 %v3887
  %v3984 = vunpack.c.h.bf16 %v3888
  %v3985 = vunpack.c.h.bf16 %v3889
  %v3986 = vunpack.c.h.bf16 %v3890
  %v3987 = vunpack.c.h.bf16 %v3891
  %v3988 = vunpack.c.l.bf16 %v3892
  %v3989 = vunpack.c.l.bf16 %v3893
  %v3990 = vunpack.c.l.bf16 %v3894
  %v3991 = vunpack.c.l.bf16 %v3895
  %v3992 = vunpack.c.l.bf16 %v3896
  %v3993 = vunpack.c.l.bf16 %v3897
  %v3994 = vunpack.c.l.bf16 %v3898
  %v3995 = vunpack.c.l.bf16 %v3899
  %v3996 = vunpack.c.l.bf16 %v3900
  %v3997 = vunpack.c.l.bf16 %v3901
  %v3998 = vunpack.c.l.bf16 %v3902
  %v3999 = vunpack.c.l.bf16 %v3903
  %v4000 = vunpack.c.l.bf16 %v3904
  %v4001 = vunpack.c.l.bf16 %v3905
  %v4002 = vunpack.c.l.bf16 %v3906
  %v4003 = vunpack.c.l.bf16 %v3907
  %v4004 = vunpack.c.h.bf16 %v3892
  %v4005 = vunpack.c.h.bf16 %v3893
  %v4006 = vunpack.c.h.bf16 %v3894
  %v4007 = vunpack.c.h.bf16 %v3895
  %v4008 = vunpack.c.h.bf16 %v3896
  %v4009 = vunpack.c.h.bf16 %v3897
  %v4010 = vunpack.c.h.bf16 %v3898
  %v4011 = vunpack.c.h.bf16 %v3899
  %v4012 = vunpack.c.h.bf16 %v3900
  %v4013 = vunpack.c.h.bf16 %v3901
  %v4014 = vunpack.c.h.bf16 %v3902
  %v4015 = vunpack.c.h.bf16 %v3903
  %v4016 = vunpack.c.h.bf16 %v3904
  %v4017 = vunpack.c.h.bf16 %v3905
  %v4018 = vunpack.c.h.bf16 %v3906
  %v4019 = vunpack.c.h.bf16 %v3907
  %v4020 = vunpack.c.l.bf16 %v3908
  %v4021 = vunpack.c.l.bf16 %v3909
  %v4022 = vunpack.c.l.bf16 %v3910
  %v4023 = vunpack.c.l.bf16 %v3911
  %v4024 = vunpack.c.l.bf16 %v3912
  %v4025 = vunpack.c.l.bf16 %v3913
  %v4026 = vunpack.c.l.bf16 %v3914
  %v4027 = vunpack.c.l.bf16 %v3915
  %v4028 = vunpack.c.l.bf16 %v3916
  %v4029 = vunpack.c.l.bf16 %v3917
  %v4030 = vunpack.c.l.bf16 %v3918
  %v4031 = vunpack.c.l.bf16 %v3919
  %v4032 = vunpack.c.l.bf16 %v3920
  %v4033 = vunpack.c.l.bf16 %v3921
  %v4034 = vunpack.c.l.bf16 %v3922
  %v4035 = vunpack.c.l.bf16 %v3923
  %v4036 = vsub.f32 %v3748, %v3924
  %v4037 = vsub.f32 %v3749, %v3925
  %v4038 = vsub.f32 %v3750, %v3926
  %v4039 = vsub.f32 %v3751, %v3927
  %v4040 = vsub.f32 %v3752, %v3928
  %v4041 = vsub.f32 %v3753, %v3929
  %v4042 = vsub.f32 %v3754, %v3930
  %v4043 = vsub.f32 %v3755, %v3931
  %v4044 = vsub.f32 %v3756, %v3932
  %v4045 = vsub.f32 %v3757, %v3933
  %v4046 = vsub.f32 %v3758, %v3934
  %v4047 = vsub.f32 %v3759, %v3935
  %v4048 = vsub.f32 %v3760, %v3936
  %v4049 = vsub.f32 %v3761, %v3937
  %v4050 = vsub.f32 %v3762, %v3938
  %v4051 = vsub.f32 %v3763, %v3939
  %v4052 = vsub.f32 %v3764, %v3940
  %v4053 = vsub.f32 %v3765, %v3941
  %v4054 = vsub.f32 %v3766, %v3942
  %v4055 = vsub.f32 %v3767, %v3943
  %v4056 = vsub.f32 %v3768, %v3944
  %v4057 = vsub.f32 %v3769, %v3945
  %v4058 = vsub.f32 %v3770, %v3946
  %v4059 = vsub.f32 %v3771, %v3947
  %v4060 = vsub.f32 %v3772, %v3948
  %v4061 = vsub.f32 %v3773, %v3949
  %v4062 = vsub.f32 %v3774, %v3950
  %v4063 = vsub.f32 %v3775, %v3951
  %v4064 = vsub.f32 %v3776, %v3952
  %v4065 = vsub.f32 %v3777, %v3953
  %v4066 = vsub.f32 %v3778, %v3954
  %v4067 = vsub.f32 %v3779, %v3955
  %v4068 = vsub.f32 %v3780, %v3956
  %v4069 = vsub.f32 %v3781, %v3957
  %v4070 = vsub.f32 %v3782, %v3958
  %v4071 = vsub.f32 %v3783, %v3959
  %v4072 = vsub.f32 %v3784, %v3960
  %v4073 = vsub.f32 %v3785, %v3961
  %v4074 = vsub.f32 %v3786, %v3962
  %v4075 = vsub.f32 %v3787, %v3963
  %v4076 = vsub.f32 %v3788, %v3964
  %v4077 = vsub.f32 %v3789, %v3965
  %v4078 = vsub.f32 %v3790, %v3966
  %v4079 = vsub.f32 %v3791, %v3967
  %v4080 = vsub.f32 %v3792, %v3968
  %v4081 = vsub.f32 %v3793, %v3969
  %v4082 = vsub.f32 %v3794, %v3970
  %v4083 = vsub.f32 %v3795, %v3971
  %v4084 = vsub.f32 %v3796, %v3972
  %v4085 = vsub.f32 %v3797, %v3973
  %v4086 = vsub.f32 %v3798, %v3974
  %v4087 = vsub.f32 %v3799, %v3975
  %v4088 = vsub.f32 %v3800, %v3976
  %v4089 = vsub.f32 %v3801, %v3977
  %v4090 = vsub.f32 %v3802, %v3978
  %v4091 = vsub.f32 %v3803, %v3979
  %v4092 = vsub.f32 %v3804, %v3980
  %v4093 = vsub.f32 %v3805, %v3981
  %v4094 = vsub.f32 %v3806, %v3982
  %v4095 = vsub.f32 %v3807, %v3983
  %v4096 = vsub.f32 %v3808, %v3984
  %v4097 = vsub.f32 %v3809, %v3985
  %v4098 = vsub.f32 %v3810, %v3986
  %v4099 = vsub.f32 %v3811, %v3987
  %v4100 = vsub.f32 %v3812, %v3988
  %v4101 = vsub.f32 %v3813, %v3989
  %v4102 = vsub.f32 %v3814, %v3990
  %v4103 = vsub.f32 %v3815, %v3991
  %v4104 = vsub.f32 %v3816, %v3992
  %v4105 = vsub.f32 %v3817, %v3993
  %v4106 = vsub.f32 %v3818, %v3994
  %v4107 = vsub.f32 %v3819, %v3995
  %v4108 = vsub.f32 %v3820, %v3996
  %v4109 = vsub.f32 %v3821, %v3997
  %v4110 = vsub.f32 %v3822, %v3998
  %v4111 = vsub.f32 %v3823, %v3999
  %v4112 = vsub.f32 %v3824, %v4000
  %v4113 = vsub.f32 %v3825, %v4001
  %v4114 = vsub.f32 %v3826, %v4002
  %v4115 = vsub.f32 %v3827, %v4003
  %v4116 = vsub.f32 %v3828, %v4004
  %v4117 = vsub.f32 %v3829, %v4005
  %v4118 = vsub.f32 %v3830, %v4006
  %v4119 = vsub.f32 %v3831, %v4007
  %v4120 = vsub.f32 %v3832, %v4008
  %v4121 = vsub.f32 %v3833, %v4009
  %v4122 = vsub.f32 %v3834, %v4010
  %v4123 = vsub.f32 %v3835, %v4011
  %v4124 = vsub.f32 %v3836, %v4012
  %v4125 = vsub.f32 %v3837, %v4013
  %v4126 = vsub.f32 %v3838, %v4014
  %v4127 = vsub.f32 %v3839, %v4015
  %v4128 = vsub.f32 %v3840, %v4016
  %v4129 = vsub.f32 %v3841, %v4017
  %v4130 = vsub.f32 %v3842, %v4018
  %v4131 = vsub.f32 %v3843, %v4019
  %v4132 = vsub.f32 %v3844, %v4020
  %v4133 = vsub.f32 %v3845, %v4021
  %v4134 = vsub.f32 %v3846, %v4022
  %v4135 = vsub.f32 %v3847, %v4023
  %v4136 = vsub.f32 %v3848, %v4024
  %v4137 = vsub.f32 %v3849, %v4025
  %v4138 = vsub.f32 %v3850, %v4026
  %v4139 = vsub.f32 %v3851, %v4027
  %v4140 = vsub.f32 %v3852, %v4028
  %v4141 = vsub.f32 %v3853, %v4029
  %v4142 = vsub.f32 %v3854, %v4030
  %v4143 = vsub.f32 %v3855, %v4031
  %v4144 = vsub.f32 %v3856, %v4032
  %v4145 = vsub.f32 %v3857, %v4033
  %v4146 = vsub.f32 %v3858, %v4034
  %v4147 = vsub.f32 %v3859, %v4035
  %4148 = vmatprep.subr.mxu0 0.0
  %4149 = vmatpush1.msra.mxu0 %v799
  %4150 = vmatprep.subr.mxu0 0.0
  %4151 = vmatpush1.msra.mxu0 %v800
  %4152 = vmatprep.subr.mxu0 0.0
  %4153 = vmatpush1.msra.mxu0 %v801
  %4154 = vmatprep.subr.mxu0 0.0
  %4155 = vmatpush1.msra.mxu0 %v802
  %4156 = vmatprep.subr.mxu0 0.0
  %4157 = vmatpush1.msra.mxu0 %v803
  %4158 = vmatprep.subr.mxu0 0.0
  %4159 = vmatpush1.msra.mxu0 %v804
  %4160 = vmatprep.subr.mxu0 0.0
  %4161 = vmatpush1.msra.mxu0 %v805
  %4162 = vmatprep.subr.mxu0 0.0
  %4163 = vmatpush1.msra.mxu0 %v806
  %4164 = vmatprep.subr.mxu0 0.0
  %4165 = vmatpush1.msra.mxu0 %v807
  %4166 = vmatprep.subr.mxu0 0.0
  %4167 = vmatpush1.msra.mxu0 %v808
  %4168 = vmatprep.subr.mxu0 0.0
  %4169 = vmatpush1.msra.mxu0 %v809
  %4170 = vmatprep.subr.mxu0 0.0
  %4171 = vmatpush1.msra.mxu0 %v810
  %4172 = vmatprep.subr.mxu0 0.0
  %4173 = vmatpush1.msra.mxu0 %v811
  %4174 = vmatprep.subr.mxu0 0.0
  %4175 = vmatpush1.msra.mxu0 %v812
  %4176 = vmatprep.subr.mxu0 0.0
  %4177 = vmatpush1.msra.mxu0 %v813
  %4178 = vmatprep.subr.mxu0 0.0
  %4179 = vmatpush1.msra.mxu0 %v814
  %4180 = vmatprep.subr.mxu0 0.0
  %4181 = vmatpush1.msra.mxu0 %v815
  %4182 = vmatprep.subr.mxu0 0.0
  %4183 = vmatpush1.msra.mxu0 %v816
  %4184 = vmatprep.subr.mxu0 0.0
  %4185 = vmatpush1.msra.mxu0 %v817
  %4186 = vmatprep.subr.mxu0 0.0
  %4187 = vmatpush1.msra.mxu0 %v818
  %4188 = vmatprep.subr.mxu0 0.0
  %4189 = vmatpush1.msra.mxu0 %v819
  %4190 = vmatprep.subr.mxu0 0.0
  %4191 = vmatpush1.msra.mxu0 %v820
  %4192 = vmatprep.subr.mxu0 0.0
  %4193 = vmatpush1.msra.mxu0 %v821
  %4194 = vmatprep.subr.mxu0 0.0
  %4195 = vmatpush1.msra.mxu0 %v822
  %4196 = vmatprep.subr.mxu0 0.0
  %4197 = vmatpush1.msra.mxu0 %v823
  %4198 = vmatprep.subr.mxu0 0.0
  %4199 = vmatpush1.msra.mxu0 %v824
  %4200 = vmatprep.subr.mxu0 0.0
  %4201 = vmatpush1.msra.mxu0 %v825
  %4202 = vmatprep.subr.mxu0 0.0
  %4203 = vmatpush1.msra.mxu0 %v826
  %4204 = vmatprep.subr.mxu0 0.0
  %4205 = vmatpush1.msra.mxu0 %v827
  %4206 = vmatprep.subr.mxu0 0.0
  %4207 = vmatpush1.msra.mxu0 %v828
  %4208 = vmatprep.subr.mxu0 0.0
  %4209 = vmatpush1.msra.mxu0 %v829
  %4210 = vmatprep.subr.mxu0 0.0
  %4211 = vmatpush1.msra.mxu0 %v830
  %4212 = vmatprep.mubr.f32.mxu0 %v4037
  %4213 = vmatmul.mubr.f32.gmra.mrb[0].mxu0 %v4036
  %v4214 = vpop.f32.mrb[0].mxu0
  %v4215 = vadd.f32 0.0, %v4214
  %v4216 = vpop.f32.mrb[0].mxu0
  %4217 = vmatprep.mubr.f32.mxu0 %v4053
  %4218 = vmatmul.mubr.f32.gmra.mrb[0].mxu0 %v4052
  %v4219 = vpop.f32.mrb[0].mxu0
  %v4220 = vadd.f32 0.0, %v4219
  %v4221 = vpop.f32.mrb[0].mxu0
  %4222 = vmatprep.mubr.f32.mxu0 %v4069
  %4223 = vmatmul.mubr.f32.gmra.mrb[0].mxu0 %v4068
  %v4224 = vpop.f32.mrb[0].mxu0
  %v4225 = vadd.f32 0.0, %v4224
  %v4226 = vpop.f32.mrb[0].mxu0
  %4227 = vmatprep.mubr.f32.mxu0 %v4085
  %4228 = vmatmul.mubr.f32.gmra.mrb[0].mxu0 %v4084
  %v4229 = vpop.f32.mrb[0].mxu0
  %v4230 = vadd.f32 0.0, %v4229
  %v4231 = vpop.f32.mrb[0].mxu0
  %4232 = vmatprep.mubr.f32.mxu0 %v4101
  %4233 = vmatmul.mubr.f32.gmra.mrb[0].mxu0 %v4100
  %v4234 = vpop.f32.mrb[0].mxu0
  %v4235 = vadd.f32 0.0, %v4234
  %v4236 = vpop.f32.mrb[0].mxu0
  %4237 = vmatprep.mubr.f32.mxu0 %v4117
  %4238 = vmatmul.mubr.f32.gmra.mrb[0].mxu0 %v4116
  %v4239 = vpop.f32.mrb[0].mxu0
  %v4240 = vadd.f32 0.0, %v4239
  %v4241 = vpop.f32.mrb[0].mxu0
  %4242 = vmatprep.mubr.f32.mxu0 %v4133
  %4243 = vmatmul.mubr.f32.gmra.mrb[0].mxu0 %v4132
  %v4244 = vpop.f32.mrb[0].mxu0
  %v4245 = vadd.f32 0.0, %v4244
  %v4246 = vpop.f32.mrb[0].mxu0
  %4247 = vdwg.mxu0
  %4248 = vmatprep.subr.mxu0 0.0
  %4249 = vmatpush1.msra.mxu0 %v831
  %4250 = vmatprep.subr.mxu0 0.0
  %4251 = vmatpush1.msra.mxu0 %v832
  %4252 = vmatprep.subr.mxu0 0.0
  %4253 = vmatpush1.msra.mxu0 %v833
  %4254 = vmatprep.subr.mxu0 0.0
  %4255 = vmatpush1.msra.mxu0 %v834
  %4256 = vmatprep.subr.mxu0 0.0
  %4257 = vmatpush1.msra.mxu0 %v835
  %4258 = vmatprep.subr.mxu0 0.0
  %4259 = vmatpush1.msra.mxu0 %v836
  %4260 = vmatprep.subr.mxu0 0.0
  %4261 = vmatpush1.msra.mxu0 %v837
  %4262 = vmatprep.subr.mxu0 0.0
  %4263 = vmatpush1.msra.mxu0 %v838
  %4264 = vmatprep.subr.mxu0 0.0
  %4265 = vmatpush1.msra.mxu0 %v839
  %4266 = vmatprep.subr.mxu0 0.0
  %4267 = vmatpush1.msra.mxu0 %v840
  %4268 = vmatprep.subr.mxu0 0.0
  %4269 = vmatpush1.msra.mxu0 %v841
  %4270 = vmatprep.subr.mxu0 0.0
  %4271 = vmatpush1.msra.mxu0 %v842
  %4272 = vmatprep.subr.mxu0 0.0
  %4273 = vmatpush1.msra.mxu0 %v843
  %4274 = vmatprep.subr.mxu0 0.0
  %4275 = vmatpush1.msra.mxu0 %v844
  %4276 = vmatprep.subr.mxu0 0.0
  %4277 = vmatpush1.msra.mxu0 %v845
  %4278 = vmatprep.subr.mxu0 0.0
  %4279 = vmatpush1.msra.mxu0 %v846
  %4280 = vmatprep.subr.mxu0 0.0
  %4281 = vmatpush1.msra.mxu0 %v847
  %4282 = vmatprep.subr.mxu0 0.0
  %4283 = vmatpush1.msra.mxu0 %v848
  %4284 = vmatprep.subr.mxu0 0.0
  %4285 = vmatpush1.msra.mxu0 %v849
  %4286 = vmatprep.subr.mxu0 0.0
  %4287 = vmatpush1.msra.mxu0 %v850
  %4288 = vmatprep.subr.mxu0 0.0
  %4289 = vmatpush1.msra.mxu0 %v851
  %4290 = vmatprep.subr.mxu0 0.0
  %4291 = vmatpush1.msra.mxu0 %v852
  %4292 = vmatprep.subr.mxu0 0.0
  %4293 = vmatpush1.msra.mxu0 %v853
  %4294 = vmatprep.subr.mxu0 0.0
  %4295 = vmatpush1.msra.mxu0 %v854
  %4296 = vmatprep.subr.mxu0 0.0
  %4297 = vmatpush1.msra.mxu0 %v855
  %4298 = vmatprep.subr.mxu0 0.0
  %4299 = vmatpush1.msra.mxu0 %v856
  %4300 = vmatprep.subr.mxu0 0.0
  %4301 = vmatpush1.msra.mxu0 %v857
  %4302 = vmatprep.subr.mxu0 0.0
  %4303 = vmatpush1.msra.mxu0 %v858
  %4304 = vmatprep.subr.mxu0 0.0
  %4305 = vmatpush1.msra.mxu0 %v859
  %4306 = vmatprep.subr.mxu0 0.0
  %4307 = vmatpush1.msra.mxu0 %v860
  %4308 = vmatprep.subr.mxu0 0.0
  %4309 = vmatpush1.msra.mxu0 %v861
  %4310 = vmatprep.subr.mxu0 0.0
  %4311 = vmatpush1.msra.mxu0 %v862
  %4312 = vmatprep.mubr.f32.mxu0 %v4039
  %4313 = vmatmul.mubr.f32.gmra.mrb[0].mxu0 %v4038
  %v4314 = vpop.f32.mrb[0].mxu0
  %v4315 = vadd.f32 %v4215, %v4314
  %v4316 = vpop.f32.mrb[0].mxu0
  %4317 = vmatprep.mubr.f32.mxu0 %v4055
  %4318 = vmatmul.mubr.f32.gmra.mrb[0].mxu0 %v4054
  %v4319 = vpop.f32.mrb[0].mxu0
  %v4320 = vadd.f32 %v4220, %v4319
  %v4321 = vpop.f32.mrb[0].mxu0
  %4322 = vmatprep.mubr.f32.mxu0 %v4071
  %4323 = vmatmul.mubr.f32.gmra.mrb[0].mxu0 %v4070
  %v4324 = vpop.f32.mrb[0].mxu0
  %v4325 = vadd.f32 %v4225, %v4324
  %v4326 = vpop.f32.mrb[0].mxu0
  %4327 = vmatprep.mubr.f32.mxu0 %v4087
  %4328 = vmatmul.mubr.f32.gmra.mrb[0].mxu0 %v4086
  %v4329 = vpop.f32.mrb[0].mxu0
  %v4330 = vadd.f32 %v4230, %v4329
  %v4331 = vpop.f32.mrb[0].mxu0
  %4332 = vmatprep.mubr.f32.mxu0 %v4103
  %4333 = vmatmul.mubr.f32.gmra.mrb[0].mxu0 %v4102
  %v4334 = vpop.f32.mrb[0].mxu0
  %v4335 = vadd.f32 %v4235, %v4334
  %v4336 = vpop.f32.mrb[0].mxu0
  %4337 = vmatprep.mubr.f32.mxu0 %v4119
  %4338 = vmatmul.mubr.f32.gmra.mrb[0].mxu0 %v4118
  %v4339 = vpop.f32.mrb[0].mxu0
  %v4340 = vadd.f32 %v4240, %v4339
  %v4341 = vpop.f32.mrb[0].mxu0
  %4342 = vmatprep.mubr.f32.mxu0 %v4135
  %4343 = vmatmul.mubr.f32.gmra.mrb[0].mxu0 %v4134
  %v4344 = vpop.f32.mrb[0].mxu0
  %v4345 = vadd.f32 %v4245, %v4344
  %v4346 = vpop.f32.mrb[0].mxu0
  %4347 = vdwg.mxu0
  %4348 = vmatprep.subr.mxu0 0.0
  %4349 = vmatpush1.msra.mxu0 %v863
  %4350 = vmatprep.subr.mxu0 0.0
  %4351 = vmatpush1.msra.mxu0 %v864
  %4352 = vmatprep.subr.mxu0 0.0
  %4353 = vmatpush1.msra.mxu0 %v865
  %4354 = vmatprep.subr.mxu0 0.0
  %4355 = vmatpush1.msra.mxu0 %v866
  %4356 = vmatprep.subr.mxu0 0.0
  %4357 = vmatpush1.msra.mxu0 %v867
  %4358 = vmatprep.subr.mxu0 0.0
  %4359 = vmatpush1.msra.mxu0 %v868
  %4360 = vmatprep.subr.mxu0 0.0
  %4361 = vmatpush1.msra.mxu0 %v869
  %4362 = vmatprep.subr.mxu0 0.0
  %4363 = vmatpush1.msra.mxu0 %v870
  %4364 = vmatprep.subr.mxu0 0.0
  %4365 = vmatpush1.msra.mxu0 %v871
  %4366 = vmatprep.subr.mxu0 0.0
  %4367 = vmatpush1.msra.mxu0 %v872
  %4368 = vmatprep.subr.mxu0 0.0
  %4369 = vmatpush1.msra.mxu0 %v873
  %4370 = vmatprep.subr.mxu0 0.0
  %4371 = vmatpush1.msra.mxu0 %v874
  %4372 = vmatprep.subr.mxu0 0.0
  %4373 = vmatpush1.msra.mxu0 %v875
  %4374 = vmatprep.subr.mxu0 0.0
  %4375 = vmatpush1.msra.mxu0 %v876
  %4376 = vmatprep.subr.mxu0 0.0
  %4377 = vmatpush1.msra.mxu0 %v877
  %4378 = vmatprep.subr.mxu0 0.0
  %4379 = vmatpush1.msra.mxu0 %v878
  %4380 = vmatprep.subr.mxu0 0.0
  %4381 = vmatpush1.msra.mxu0 %v879
  %4382 = vmatprep.subr.mxu0 0.0
  %4383 = vmatpush1.msra.mxu0 %v880
  %4384 = vmatprep.subr.mxu0 0.0
  %4385 = vmatpush1.msra.mxu0 %v881
  %4386 = vmatprep.subr.mxu0 0.0
  %4387 = vmatpush1.msra.mxu0 %v882
  %4388 = vmatprep.subr.mxu0 0.0
  %4389 = vmatpush1.msra.mxu0 %v883
  %4390 = vmatprep.subr.mxu0 0.0
  %4391 = vmatpush1.msra.mxu0 %v884
  %4392 = vmatprep.subr.mxu0 0.0
  %4393 = vmatpush1.msra.mxu0 %v885
  %4394 = vmatprep.subr.mxu0 0.0
  %4395 = vmatpush1.msra.mxu0 %v886
  %4396 = vmatprep.subr.mxu0 0.0
  %4397 = vmatpush1.msra.mxu0 %v887
  %4398 = vmatprep.subr.mxu0 0.0
  %4399 = vmatpush1.msra.mxu0 %v888
  %4400 = vmatprep.subr.mxu0 0.0
  %4401 = vmatpush1.msra.mxu0 %v889
  %4402 = vmatprep.subr.mxu0 0.0
  %4403 = vmatpush1.msra.mxu0 %v890
  %4404 = vmatprep.subr.mxu0 0.0
  %4405 = vmatpush1.msra.mxu0 %v891
  %4406 = vmatprep.subr.mxu0 0.0
  %4407 = vmatpush1.msra.mxu0 %v892
  %4408 = vmatprep.subr.mxu0 0.0
  %4409 = vmatpush1.msra.mxu0 %v893
  %4410 = vmatprep.subr.mxu0 0.0
  %4411 = vmatpush1.msra.mxu0 %v894
  %4412 = vmatprep.mubr.f32.mxu0 %v4041
  %4413 = vmatmul.mubr.f32.gmra.mrb[0].mxu0 %v4040
  %v4414 = vpop.f32.mrb[0].mxu0
  %v4415 = vadd.f32 %v4315, %v4414
  %v4416 = vpop.f32.mrb[0].mxu0
  %4417 = vmatprep.mubr.f32.mxu0 %v4057
  %4418 = vmatmul.mubr.f32.gmra.mrb[0].mxu0 %v4056
  %v4419 = vpop.f32.mrb[0].mxu0
  %v4420 = vadd.f32 %v4320, %v4419
  %v4421 = vpop.f32.mrb[0].mxu0
  %4422 = vmatprep.mubr.f32.mxu0 %v4073
  %4423 = vmatmul.mubr.f32.gmra.mrb[0].mxu0 %v4072
  %v4424 = vpop.f32.mrb[0].mxu0
  %v4425 = vadd.f32 %v4325, %v4424
  %v4426 = vpop.f32.mrb[0].mxu0
  %4427 = vmatprep.mubr.f32.mxu0 %v4089
  %4428 = vmatmul.mubr.f32.gmra.mrb[0].mxu0 %v4088
  %v4429 = vpop.f32.mrb[0].mxu0
  %v4430 = vadd.f32 %v4330, %v4429
  %v4431 = vpop.f32.mrb[0].mxu0
  %4432 = vmatprep.mubr.f32.mxu0 %v4105
  %4433 = vmatmul.mubr.f32.gmra.mrb[0].mxu0 %v4104
  %v4434 = vpop.f32.mrb[0].mxu0
  %v4435 = vadd.f32 %v4335, %v4434
  %v4436 = vpop.f32.mrb[0].mxu0
  %4437 = vmatprep.mubr.f32.mxu0 %v4121
  %4438 = vmatmul.mubr.f32.gmra.mrb[0].mxu0 %v4120
  %v4439 = vpop.f32.mrb[0].mxu0
  %v4440 = vadd.f32 %v4340, %v4439
  %v4441 = vpop.f32.mrb[0].mxu0
  %4442 = vmatprep.mubr.f32.mxu0 %v4137
  %4443 = vmatmul.mubr.f32.gmra.mrb[0].mxu0 %v4136
  %v4444 = vpop.f32.mrb[0].mxu0
  %v4445 = vadd.f32 %v4345, %v4444
  %v4446 = vpop.f32.mrb[0].mxu0
  %4447 = vdwg.mxu0
  %4448 = vmatprep.subr.mxu0 0.0
  %4449 = vmatpush1.msra.mxu0 %v895
  %4450 = vmatprep.subr.mxu0 0.0
  %4451 = vmatpush1.msra.mxu0 %v896
  %4452 = vmatprep.subr.mxu0 0.0
  %4453 = vmatpush1.msra.mxu0 %v897
  %4454 = vmatprep.subr.mxu0 0.0
  %4455 = vmatpush1.msra.mxu0 %v898
  %4456 = vmatprep.subr.mxu0 0.0
  %4457 = vmatpush1.msra.mxu0 %v899
  %4458 = vmatprep.subr.mxu0 0.0
  %4459 = vmatpush1.msra.mxu0 %v900
  %4460 = vmatprep.subr.mxu0 0.0
  %4461 = vmatpush1.msra.mxu0 %v901
  %4462 = vmatprep.subr.mxu0 0.0
  %4463 = vmatpush1.msra.mxu0 %v902
  %4464 = vmatprep.subr.mxu0 0.0
  %4465 = vmatpush1.msra.mxu0 %v903
  %4466 = vmatprep.subr.mxu0 0.0
  %4467 = vmatpush1.msra.mxu0 %v904
  %4468 = vmatprep.subr.mxu0 0.0
  %4469 = vmatpush1.msra.mxu0 %v905
  %4470 = vmatprep.subr.mxu0 0.0
  %4471 = vmatpush1.msra.mxu0 %v906
  %4472 = vmatprep.subr.mxu0 0.0
  %4473 = vmatpush1.msra.mxu0 %v907
  %4474 = vmatprep.subr.mxu0 0.0
  %4475 = vmatpush1.msra.mxu0 %v908
  %4476 = vmatprep.subr.mxu0 0.0
  %4477 = vmatpush1.msra.mxu0 %v909
  %4478 = vmatprep.subr.mxu0 0.0
  %4479 = vmatpush1.msra.mxu0 %v910
  %4480 = vmatprep.subr.mxu0 0.0
  %4481 = vmatpush1.msra.mxu0 %v911
  %4482 = vmatprep.subr.mxu0 0.0
  %4483 = vmatpush1.msra.mxu0 %v912
  %4484 = vmatprep.subr.mxu0 0.0
  %4485 = vmatpush1.msra.mxu0 %v913
  %4486 = vmatprep.subr.mxu0 0.0
  %4487 = vmatpush1.msra.mxu0 %v914
  %4488 = vmatprep.subr.mxu0 0.0
  %4489 = vmatpush1.msra.mxu0 %v915
  %4490 = vmatprep.subr.mxu0 0.0
  %4491 = vmatpush1.msra.mxu0 %v916
  %4492 = vmatprep.subr.mxu0 0.0
  %4493 = vmatpush1.msra.mxu0 %v917
  %4494 = vmatprep.subr.mxu0 0.0
  %4495 = vmatpush1.msra.mxu0 %v918
  %4496 = vmatprep.subr.mxu0 0.0
  %4497 = vmatpush1.msra.mxu0 %v919
  %4498 = vmatprep.subr.mxu0 0.0
  %4499 = vmatpush1.msra.mxu0 %v920
  %4500 = vmatprep.subr.mxu0 0.0
  %4501 = vmatpush1.msra.mxu0 %v921
  %4502 = vmatprep.subr.mxu0 0.0
  %4503 = vmatpush1.msra.mxu0 %v922
  %4504 = vmatprep.subr.mxu0 0.0
  %4505 = vmatpush1.msra.mxu0 %v923
  %4506 = vmatprep.subr.mxu0 0.0
  %4507 = vmatpush1.msra.mxu0 %v924
  %4508 = vmatprep.subr.mxu0 0.0
  %4509 = vmatpush1.msra.mxu0 %v925
  %4510 = vmatprep.subr.mxu0 0.0
  %4511 = vmatpush1.msra.mxu0 %v926
  %4512 = vmatprep.mubr.f32.mxu0 %v4043
  %4513 = vmatmul.mubr.f32.gmra.mrb[0].mxu0 %v4042
  %v4514 = vpop.f32.mrb[0].mxu0
  %v4515 = vadd.f32 %v4415, %v4514
  %v4516 = vpop.f32.mrb[0].mxu0
  %4517 = vmatprep.mubr.f32.mxu0 %v4059
  %4518 = vmatmul.mubr.f32.gmra.mrb[0].mxu0 %v4058
  %v4519 = vpop.f32.mrb[0].mxu0
  %v4520 = vadd.f32 %v4420, %v4519
  %v4521 = vpop.f32.mrb[0].mxu0
  %4522 = vmatprep.mubr.f32.mxu0 %v4075
  %4523 = vmatmul.mubr.f32.gmra.mrb[0].mxu0 %v4074
  %v4524 = vpop.f32.mrb[0].mxu0
  %v4525 = vadd.f32 %v4425, %v4524
  %v4526 = vpop.f32.mrb[0].mxu0
  %4527 = vmatprep.mubr.f32.mxu0 %v4091
  %4528 = vmatmul.mubr.f32.gmra.mrb[0].mxu0 %v4090
  %v4529 = vpop.f32.mrb[0].mxu0
  %v4530 = vadd.f32 %v4430, %v4529
  %v4531 = vpop.f32.mrb[0].mxu0
  %4532 = vmatprep.mubr.f32.mxu0 %v4107
  %4533 = vmatmul.mubr.f32.gmra.mrb[0].mxu0 %v4106
  %v4534 = vpop.f32.mrb[0].mxu0
  %v4535 = vadd.f32 %v4435, %v4534
  %v4536 = vpop.f32.mrb[0].mxu0
  %4537 = vmatprep.mubr.f32.mxu0 %v4123
  %4538 = vmatmul.mubr.f32.gmra.mrb[0].mxu0 %v4122
  %v4539 = vpop.f32.mrb[0].mxu0
  %v4540 = vadd.f32 %v4440, %v4539
  %v4541 = vpop.f32.mrb[0].mxu0
  %4542 = vmatprep.mubr.f32.mxu0 %v4139
  %4543 = vmatmul.mubr.f32.gmra.mrb[0].mxu0 %v4138
  %v4544 = vpop.f32.mrb[0].mxu0
  %v4545 = vadd.f32 %v4445, %v4544
  %v4546 = vpop.f32.mrb[0].mxu0
  %4547 = vdwg.mxu0
  %4548 = vmatprep.subr.mxu0 0.0
  %4549 = vmatpush1.msra.mxu0 %v927
  %4550 = vmatprep.subr.mxu0 0.0
  %4551 = vmatpush1.msra.mxu0 %v928
  %4552 = vmatprep.subr.mxu0 0.0
  %4553 = vmatpush1.msra.mxu0 %v929
  %4554 = vmatprep.subr.mxu0 0.0
  %4555 = vmatpush1.msra.mxu0 %v930
  %4556 = vmatprep.subr.mxu0 0.0
  %4557 = vmatpush1.msra.mxu0 %v931
  %4558 = vmatprep.subr.mxu0 0.0
  %4559 = vmatpush1.msra.mxu0 %v932
  %4560 = vmatprep.subr.mxu0 0.0
  %4561 = vmatpush1.msra.mxu0 %v933
  %4562 = vmatprep.subr.mxu0 0.0
  %4563 = vmatpush1.msra.mxu0 %v934
  %4564 = vmatprep.subr.mxu0 0.0
  %4565 = vmatpush1.msra.mxu0 %v935
  %4566 = vmatprep.subr.mxu0 0.0
  %4567 = vmatpush1.msra.mxu0 %v936
  %4568 = vmatprep.subr.mxu0 0.0
  %4569 = vmatpush1.msra.mxu0 %v937
  %4570 = vmatprep.subr.mxu0 0.0
  %4571 = vmatpush1.msra.mxu0 %v938
  %4572 = vmatprep.subr.mxu0 0.0
  %4573 = vmatpush1.msra.mxu0 %v939
  %4574 = vmatprep.subr.mxu0 0.0
  %4575 = vmatpush1.msra.mxu0 %v940
  %4576 = vmatprep.subr.mxu0 0.0
  %4577 = vmatpush1.msra.mxu0 %v941
  %4578 = vmatprep.subr.mxu0 0.0
  %4579 = vmatpush1.msra.mxu0 %v942
  %4580 = vmatprep.subr.mxu0 0.0
  %4581 = vmatpush1.msra.mxu0 %v943
  %4582 = vmatprep.subr.mxu0 0.0
  %4583 = vmatpush1.msra.mxu0 %v944
  %4584 = vmatprep.subr.mxu0 0.0
  %4585 = vmatpush1.msra.mxu0 %v945
  %4586 = vmatprep.subr.mxu0 0.0
  %4587 = vmatpush1.msra.mxu0 %v946
  %4588 = vmatprep.subr.mxu0 0.0
  %4589 = vmatpush1.msra.mxu0 %v947
  %4590 = vmatprep.subr.mxu0 0.0
  %4591 = vmatpush1.msra.mxu0 %v948
  %4592 = vmatprep.subr.mxu0 0.0
  %4593 = vmatpush1.msra.mxu0 %v949
  %4594 = vmatprep.subr.mxu0 0.0
  %4595 = vmatpush1.msra.mxu0 %v950
  %4596 = vmatprep.subr.mxu0 0.0
  %4597 = vmatpush1.msra.mxu0 %v951
  %4598 = vmatprep.subr.mxu0 0.0
  %4599 = vmatpush1.msra.mxu0 %v952
  %4600 = vmatprep.subr.mxu0 0.0
  %4601 = vmatpush1.msra.mxu0 %v953
  %4602 = vmatprep.subr.mxu0 0.0
  %4603 = vmatpush1.msra.mxu0 %v954
  %4604 = vmatprep.subr.mxu0 0.0
  %4605 = vmatpush1.msra.mxu0 %v955
  %4606 = vmatprep.subr.mxu0 0.0
  %4607 = vmatpush1.msra.mxu0 %v956
  %4608 = vmatprep.subr.mxu0 0.0
  %4609 = vmatpush1.msra.mxu0 %v957
  %4610 = vmatprep.subr.mxu0 0.0
  %4611 = vmatpush1.msra.mxu0 %v958
  %4612 = vmatprep.mubr.f32.mxu0 %v4045
  %4613 = vmatmul.mubr.f32.gmra.mrb[0].mxu0 %v4044
  %v4614 = vpop.f32.mrb[0].mxu0
  %v4615 = vadd.f32 %v4515, %v4614
  %v4616 = vpop.f32.mrb[0].mxu0
  %4617 = vmatprep.mubr.f32.mxu0 %v4061
  %4618 = vmatmul.mubr.f32.gmra.mrb[0].mxu0 %v4060
  %v4619 = vpop.f32.mrb[0].mxu0
  %v4620 = vadd.f32 %v4520, %v4619
  %v4621 = vpop.f32.mrb[0].mxu0
  %4622 = vmatprep.mubr.f32.mxu0 %v4077
  %4623 = vmatmul.mubr.f32.gmra.mrb[0].mxu0 %v4076
  %v4624 = vpop.f32.mrb[0].mxu0
  %v4625 = vadd.f32 %v4525, %v4624
  %v4626 = vpop.f32.mrb[0].mxu0
  %4627 = vmatprep.mubr.f32.mxu0 %v4093
  %4628 = vmatmul.mubr.f32.gmra.mrb[0].mxu0 %v4092
  %v4629 = vpop.f32.mrb[0].mxu0
  %v4630 = vadd.f32 %v4530, %v4629
  %v4631 = vpop.f32.mrb[0].mxu0
  %4632 = vmatprep.mubr.f32.mxu0 %v4109
  %4633 = vmatmul.mubr.f32.gmra.mrb[0].mxu0 %v4108
  %v4634 = vpop.f32.mrb[0].mxu0
  %v4635 = vadd.f32 %v4535, %v4634
  %v4636 = vpop.f32.mrb[0].mxu0
  %4637 = vmatprep.mubr.f32.mxu0 %v4125
  %4638 = vmatmul.mubr.f32.gmra.mrb[0].mxu0 %v4124
  %v4639 = vpop.f32.mrb[0].mxu0
  %v4640 = vadd.f32 %v4540, %v4639
  %v4641 = vpop.f32.mrb[0].mxu0
  %4642 = vmatprep.mubr.f32.mxu0 %v4141
  %4643 = vmatmul.mubr.f32.gmra.mrb[0].mxu0 %v4140
  %v4644 = vpop.f32.mrb[0].mxu0
  %v4645 = vadd.f32 %v4545, %v4644
  %v4646 = vpop.f32.mrb[0].mxu0
  %4647 = vdwg.mxu0
  %4648 = vmatprep.subr.mxu0 0.0
  %4649 = vmatpush1.msra.mxu0 %v959
  %4650 = vmatprep.subr.mxu0 0.0
  %4651 = vmatpush1.msra.mxu0 %v960
  %4652 = vmatprep.subr.mxu0 0.0
  %4653 = vmatpush1.msra.mxu0 %v961
  %4654 = vmatprep.subr.mxu0 0.0
  %4655 = vmatpush1.msra.mxu0 %v962
  %4656 = vmatprep.subr.mxu0 0.0
  %4657 = vmatpush1.msra.mxu0 %v963
  %4658 = vmatprep.subr.mxu0 0.0
  %4659 = vmatpush1.msra.mxu0 %v964
  %4660 = vmatprep.subr.mxu0 0.0
  %4661 = vmatpush1.msra.mxu0 %v965
  %4662 = vmatprep.subr.mxu0 0.0
  %4663 = vmatpush1.msra.mxu0 %v966
  %4664 = vmatprep.subr.mxu0 0.0
  %4665 = vmatpush1.msra.mxu0 %v967
  %4666 = vmatprep.subr.mxu0 0.0
  %4667 = vmatpush1.msra.mxu0 %v968
  %4668 = vmatprep.subr.mxu0 0.0
  %4669 = vmatpush1.msra.mxu0 %v969
  %4670 = vmatprep.subr.mxu0 0.0
  %4671 = vmatpush1.msra.mxu0 %v970
  %4672 = vmatprep.subr.mxu0 0.0
  %4673 = vmatpush1.msra.mxu0 %v971
  %4674 = vmatprep.subr.mxu0 0.0
  %4675 = vmatpush1.msra.mxu0 %v972
  %4676 = vmatprep.subr.mxu0 0.0
  %4677 = vmatpush1.msra.mxu0 %v973
  %4678 = vmatprep.subr.mxu0 0.0
  %4679 = vmatpush1.msra.mxu0 %v974
  %4680 = vmatprep.subr.mxu0 0.0
  %4681 = vmatpush1.msra.mxu0 %v975
  %4682 = vmatprep.subr.mxu0 0.0
  %4683 = vmatpush1.msra.mxu0 %v976
  %4684 = vmatprep.subr.mxu0 0.0
  %4685 = vmatpush1.msra.mxu0 %v977
  %4686 = vmatprep.subr.mxu0 0.0
  %4687 = vmatpush1.msra.mxu0 %v978
  %4688 = vmatprep.subr.mxu0 0.0
  %4689 = vmatpush1.msra.mxu0 %v979
  %4690 = vmatprep.subr.mxu0 0.0
  %4691 = vmatpush1.msra.mxu0 %v980
  %4692 = vmatprep.subr.mxu0 0.0
  %4693 = vmatpush1.msra.mxu0 %v981
  %4694 = vmatprep.subr.mxu0 0.0
  %4695 = vmatpush1.msra.mxu0 %v982
  %4696 = vmatprep.subr.mxu0 0.0
  %4697 = vmatpush1.msra.mxu0 %v983
  %4698 = vmatprep.subr.mxu0 0.0
  %4699 = vmatpush1.msra.mxu0 %v984
  %4700 = vmatprep.subr.mxu0 0.0
  %4701 = vmatpush1.msra.mxu0 %v985
  %4702 = vmatprep.subr.mxu0 0.0
  %4703 = vmatpush1.msra.mxu0 %v986
  %4704 = vmatprep.subr.mxu0 0.0
  %4705 = vmatpush1.msra.mxu0 %v987
  %4706 = vmatprep.subr.mxu0 0.0
  %4707 = vmatpush1.msra.mxu0 %v988
  %4708 = vmatprep.subr.mxu0 0.0
  %4709 = vmatpush1.msra.mxu0 %v989
  %4710 = vmatprep.subr.mxu0 0.0
  %4711 = vmatpush1.msra.mxu0 %v990
  %4712 = vmatprep.mubr.f32.mxu0 %v4047
  %4713 = vmatmul.mubr.f32.gmra.mrb[0].mxu0 %v4046
  %v4714 = vpop.f32.mrb[0].mxu0
  %v4715 = vadd.f32 %v4615, %v4714
  %v4716 = vpop.f32.mrb[0].mxu0
  %4717 = vmatprep.mubr.f32.mxu0 %v4063
  %4718 = vmatmul.mubr.f32.gmra.mrb[0].mxu0 %v4062
  %v4719 = vpop.f32.mrb[0].mxu0
  %v4720 = vadd.f32 %v4620, %v4719
  %v4721 = vpop.f32.mrb[0].mxu0
  %4722 = vmatprep.mubr.f32.mxu0 %v4079
  %4723 = vmatmul.mubr.f32.gmra.mrb[0].mxu0 %v4078
  %v4724 = vpop.f32.mrb[0].mxu0
  %v4725 = vadd.f32 %v4625, %v4724
  %v4726 = vpop.f32.mrb[0].mxu0
  %4727 = vmatprep.mubr.f32.mxu0 %v4095
  %4728 = vmatmul.mubr.f32.gmra.mrb[0].mxu0 %v4094
  %v4729 = vpop.f32.mrb[0].mxu0
  %v4730 = vadd.f32 %v4630, %v4729
  %v4731 = vpop.f32.mrb[0].mxu0
  %4732 = vmatprep.mubr.f32.mxu0 %v4111
  %4733 = vmatmul.mubr.f32.gmra.mrb[0].mxu0 %v4110
  %v4734 = vpop.f32.mrb[0].mxu0
  %v4735 = vadd.f32 %v4635, %v4734
  %v4736 = vpop.f32.mrb[0].mxu0
  %4737 = vmatprep.mubr.f32.mxu0 %v4127
  %4738 = vmatmul.mubr.f32.gmra.mrb[0].mxu0 %v4126
  %v4739 = vpop.f32.mrb[0].mxu0
  %v4740 = vadd.f32 %v4640, %v4739
  %v4741 = vpop.f32.mrb[0].mxu0
  %4742 = vmatprep.mubr.f32.mxu0 %v4143
  %4743 = vmatmul.mubr.f32.gmra.mrb[0].mxu0 %v4142
  %v4744 = vpop.f32.mrb[0].mxu0
  %v4745 = vadd.f32 %v4645, %v4744
  %v4746 = vpop.f32.mrb[0].mxu0
  %4747 = vdwg.mxu0
  %4748 = vmatprep.subr.mxu0 0.0
  %4749 = vmatpush1.msra.mxu0 %v991
  %4750 = vmatprep.subr.mxu0 0.0
  %4751 = vmatpush1.msra.mxu0 %v992
  %4752 = vmatprep.subr.mxu0 0.0
  %4753 = vmatpush1.msra.mxu0 %v993
  %4754 = vmatprep.subr.mxu0 0.0
  %4755 = vmatpush1.msra.mxu0 %v994
  %4756 = vmatprep.subr.mxu0 0.0
  %4757 = vmatpush1.msra.mxu0 %v995
  %4758 = vmatprep.subr.mxu0 0.0
  %4759 = vmatpush1.msra.mxu0 %v996
  %4760 = vmatprep.subr.mxu0 0.0
  %4761 = vmatpush1.msra.mxu0 %v997
  %4762 = vmatprep.subr.mxu0 0.0
  %4763 = vmatpush1.msra.mxu0 %v998
  %4764 = vmatprep.subr.mxu0 0.0
  %4765 = vmatpush1.msra.mxu0 %v999
  %4766 = vmatprep.subr.mxu0 0.0
  %4767 = vmatpush1.msra.mxu0 %v1000
  %4768 = vmatprep.subr.mxu0 0.0
  %4769 = vmatpush1.msra.mxu0 %v1001
  %4770 = vmatprep.subr.mxu0 0.0
  %4771 = vmatpush1.msra.mxu0 %v1002
  %4772 = vmatprep.subr.mxu0 0.0
  %4773 = vmatpush1.msra.mxu0 %v1003
  %4774 = vmatprep.subr.mxu0 0.0
  %4775 = vmatpush1.msra.mxu0 %v1004
  %4776 = vmatprep.subr.mxu0 0.0
  %4777 = vmatpush1.msra.mxu0 %v1005
  %4778 = vmatprep.subr.mxu0 0.0
  %4779 = vmatpush1.msra.mxu0 %v1006
  %4780 = vmatprep.subr.mxu0 0.0
  %4781 = vmatpush1.msra.mxu0 %v1007
  %4782 = vmatprep.subr.mxu0 0.0
  %4783 = vmatpush1.msra.mxu0 %v1008
  %4784 = vmatprep.subr.mxu0 0.0
  %4785 = vmatpush1.msra.mxu0 %v1009
  %4786 = vmatprep.subr.mxu0 0.0
  %4787 = vmatpush1.msra.mxu0 %v1010
  %4788 = vmatprep.subr.mxu0 0.0
  %4789 = vmatpush1.msra.mxu0 %v1011
  %4790 = vmatprep.subr.mxu0 0.0
  %4791 = vmatpush1.msra.mxu0 %v1012
  %4792 = vmatprep.subr.mxu0 0.0
  %4793 = vmatpush1.msra.mxu0 %v1013
  %4794 = vmatprep.subr.mxu0 0.0
  %4795 = vmatpush1.msra.mxu0 %v1014
  %4796 = vmatprep.subr.mxu0 0.0
  %4797 = vmatpush1.msra.mxu0 %v1015
  %4798 = vmatprep.subr.mxu0 0.0
  %4799 = vmatpush1.msra.mxu0 %v1016
  %4800 = vmatprep.subr.mxu0 0.0
  %4801 = vmatpush1.msra.mxu0 %v1017
  %4802 = vmatprep.subr.mxu0 0.0
  %4803 = vmatpush1.msra.mxu0 %v1018
  %4804 = vmatprep.subr.mxu0 0.0
  %4805 = vmatpush1.msra.mxu0 %v1019
  %4806 = vmatprep.subr.mxu0 0.0
  %4807 = vmatpush1.msra.mxu0 %v1020
  %4808 = vmatprep.subr.mxu0 0.0
  %4809 = vmatpush1.msra.mxu0 %v1021
  %4810 = vmatprep.subr.mxu0 0.0
  %4811 = vmatpush1.msra.mxu0 %v1022
  %4812 = vmatprep.mubr.f32.mxu0 %v4049
  %4813 = vmatmul.mubr.f32.gmra.mrb[0].mxu0 %v4048
  %v4814 = vpop.f32.mrb[0].mxu0
  %v4815 = vadd.f32 %v4715, %v4814
  %v4816 = vpop.f32.mrb[0].mxu0
  %4817 = vmatprep.mubr.f32.mxu0 %v4065
  %4818 = vmatmul.mubr.f32.gmra.mrb[0].mxu0 %v4064
  %v4819 = vpop.f32.mrb[0].mxu0
  %v4820 = vadd.f32 %v4720, %v4819
  %v4821 = vpop.f32.mrb[0].mxu0
  %4822 = vmatprep.mubr.f32.mxu0 %v4081
  %4823 = vmatmul.mubr.f32.gmra.mrb[0].mxu0 %v4080
  %v4824 = vpop.f32.mrb[0].mxu0
  %v4825 = vadd.f32 %v4725, %v4824
  %v4826 = vpop.f32.mrb[0].mxu0
  %4827 = vmatprep.mubr.f32.mxu0 %v4097
  %4828 = vmatmul.mubr.f32.gmra.mrb[0].mxu0 %v4096
  %v4829 = vpop.f32.mrb[0].mxu0
  %v4830 = vadd.f32 %v4730, %v4829
  %v4831 = vpop.f32.mrb[0].mxu0
  %4832 = vmatprep.mubr.f32.mxu0 %v4113
  %4833 = vmatmul.mubr.f32.gmra.mrb[0].mxu0 %v4112
  %v4834 = vpop.f32.mrb[0].mxu0
  %v4835 = vadd.f32 %v4735, %v4834
  %v4836 = vpop.f32.mrb[0].mxu0
  %4837 = vmatprep.mubr.f32.mxu0 %v4129
  %4838 = vmatmul.mubr.f32.gmra.mrb[0].mxu0 %v4128
  %v4839 = vpop.f32.mrb[0].mxu0
  %v4840 = vadd.f32 %v4740, %v4839
  %v4841 = vpop.f32.mrb[0].mxu0
  %4842 = vmatprep.mubr.f32.mxu0 %v4145
  %4843 = vmatmul.mubr.f32.gmra.mrb[0].mxu0 %v4144
  %v4844 = vpop.f32.mrb[0].mxu0
  %v4845 = vadd.f32 %v4745, %v4844
  %v4846 = vpop.f32.mrb[0].mxu0
  %4847 = vdwg.mxu0
  %4848 = vmatprep.subr.mxu0 0.0
  %4849 = vmatpush1.msra.mxu0 %v1023
  %4850 = vmatprep.subr.mxu0 0.0
  %4851 = vmatpush1.msra.mxu0 %v1024
  %4852 = vmatprep.subr.mxu0 0.0
  %4853 = vmatpush1.msra.mxu0 %v1025
  %4854 = vmatprep.subr.mxu0 0.0
  %4855 = vmatpush1.msra.mxu0 %v1026
  %4856 = vmatprep.subr.mxu0 0.0
  %4857 = vmatpush1.msra.mxu0 %v1027
  %4858 = vmatprep.subr.mxu0 0.0
  %4859 = vmatpush1.msra.mxu0 %v1028
  %4860 = vmatprep.subr.mxu0 0.0
  %4861 = vmatpush1.msra.mxu0 %v1029
  %4862 = vmatprep.subr.mxu0 0.0
  %4863 = vmatpush1.msra.mxu0 %v1030
  %4864 = vmatprep.subr.mxu0 0.0
  %4865 = vmatpush1.msra.mxu0 %v1031
  %4866 = vmatprep.subr.mxu0 0.0
  %4867 = vmatpush1.msra.mxu0 %v1032
  %4868 = vmatprep.subr.mxu0 0.0
  %4869 = vmatpush1.msra.mxu0 %v1033
  %4870 = vmatprep.subr.mxu0 0.0
  %4871 = vmatpush1.msra.mxu0 %v1034
  %4872 = vmatprep.subr.mxu0 0.0
  %4873 = vmatpush1.msra.mxu0 %v1035
  %4874 = vmatprep.subr.mxu0 0.0
  %4875 = vmatpush1.msra.mxu0 %v1036
  %4876 = vmatprep.subr.mxu0 0.0
  %4877 = vmatpush1.msra.mxu0 %v1037
  %4878 = vmatprep.subr.mxu0 0.0
  %4879 = vmatpush1.msra.mxu0 %v1038
  %4880 = vmatprep.subr.mxu0 0.0
  %4881 = vmatpush1.msra.mxu0 %v1039
  %4882 = vmatprep.subr.mxu0 0.0
  %4883 = vmatpush1.msra.mxu0 %v1040
  %4884 = vmatprep.subr.mxu0 0.0
  %4885 = vmatpush1.msra.mxu0 %v1041
  %4886 = vmatprep.subr.mxu0 0.0
  %4887 = vmatpush1.msra.mxu0 %v1042
  %4888 = vmatprep.subr.mxu0 0.0
  %4889 = vmatpush1.msra.mxu0 %v1043
  %4890 = vmatprep.subr.mxu0 0.0
  %4891 = vmatpush1.msra.mxu0 %v1044
  %4892 = vmatprep.subr.mxu0 0.0
  %4893 = vmatpush1.msra.mxu0 %v1045
  %4894 = vmatprep.subr.mxu0 0.0
  %4895 = vmatpush1.msra.mxu0 %v1046
  %4896 = vmatprep.subr.mxu0 0.0
  %4897 = vmatpush1.msra.mxu0 %v1047
  %4898 = vmatprep.subr.mxu0 0.0
  %4899 = vmatpush1.msra.mxu0 %v1048
  %4900 = vmatprep.subr.mxu0 0.0
  %4901 = vmatpush1.msra.mxu0 %v1049
  %4902 = vmatprep.subr.mxu0 0.0
  %4903 = vmatpush1.msra.mxu0 %v1050
  %4904 = vmatprep.subr.mxu0 0.0
  %4905 = vmatpush1.msra.mxu0 %v1051
  %4906 = vmatprep.subr.mxu0 0.0
  %4907 = vmatpush1.msra.mxu0 %v1052
  %4908 = vmatprep.subr.mxu0 0.0
  %4909 = vmatpush1.msra.mxu0 %v1053
  %4910 = vmatprep.subr.mxu0 0.0
  %4911 = vmatpush1.msra.mxu0 %v1054
  %4912 = vmatprep.mubr.f32.mxu0 %v4051
  %4913 = vmatmul.mubr.f32.gmra.mrb[0].mxu0 %v4050
  %v4914 = vpop.f32.mrb[0].mxu0
  %v4915 = vadd.f32 %v4815, %v4914
  %v4916 = vpop.f32.mrb[0].mxu0
  %4917 = vmatprep.mubr.f32.mxu0 %v4067
  %4918 = vmatmul.mubr.f32.gmra.mrb[0].mxu0 %v4066
  %v4919 = vpop.f32.mrb[0].mxu0
  %v4920 = vadd.f32 %v4820, %v4919
  %v4921 = vpop.f32.mrb[0].mxu0
  %4922 = vmatprep.mubr.f32.mxu0 %v4083
  %4923 = vmatmul.mubr.f32.gmra.mrb[0].mxu0 %v4082
  %v4924 = vpop.f32.mrb[0].mxu0
  %v4925 = vadd.f32 %v4825, %v4924
  %v4926 = vpop.f32.mrb[0].mxu0
  %4927 = vmatprep.mubr.f32.mxu0 %v4099
  %4928 = vmatmul.mubr.f32.gmra.mrb[0].mxu0 %v4098
  %v4929 = vpop.f32.mrb[0].mxu0
  %v4930 = vadd.f32 %v4830, %v4929
  %v4931 = vpop.f32.mrb[0].mxu0
  %4932 = vmatprep.mubr.f32.mxu0 %v4115
  %4933 = vmatmul.mubr.f32.gmra.mrb[0].mxu0 %v4114
  %v4934 = vpop.f32.mrb[0].mxu0
  %v4935 = vadd.f32 %v4835, %v4934
  %v4936 = vpop.f32.mrb[0].mxu0
  %4937 = vmatprep.mubr.f32.mxu0 %v4131
  %4938 = vmatmul.mubr.f32.gmra.mrb[0].mxu0 %v4130
  %v4939 = vpop.f32.mrb[0].mxu0
  %v4940 = vadd.f32 %v4840, %v4939
  %v4941 = vpop.f32.mrb[0].mxu0
  %4942 = vmatprep.mubr.f32.mxu0 %v4147
  %4943 = vmatmul.mubr.f32.gmra.mrb[0].mxu0 %v4146
  %v4944 = vpop.f32.mrb[0].mxu0
  %v4945 = vadd.f32 %v4845, %v4944
  %v4946 = vpop.f32.mrb[0].mxu0
  %4947 = vdwg.mxu0
  %4948 = vmatprep.subr.mxu0 0.0
  %4949 = vmatpush1.msra.mxu0 %v799
  %4950 = vmatprep.subr.mxu0 0.0
  %4951 = vmatpush1.msra.mxu0 %v800
  %4952 = vmatprep.subr.mxu0 0.0
  %4953 = vmatpush1.msra.mxu0 %v801
  %4954 = vmatprep.subr.mxu0 0.0
  %4955 = vmatpush1.msra.mxu0 %v802
  %4956 = vmatprep.subr.mxu0 0.0
  %4957 = vmatpush1.msra.mxu0 %v803
  %4958 = vmatprep.subr.mxu0 0.0
  %4959 = vmatpush1.msra.mxu0 %v804
  %4960 = vmatprep.subr.mxu0 0.0
  %4961 = vmatpush1.msra.mxu0 %v805
  %4962 = vmatprep.subr.mxu0 0.0
  %4963 = vmatpush1.msra.mxu0 %v806
  %4964 = vmatprep.subr.mxu0 0.0
  %4965 = vmatpush1.msra.mxu0 %v807
  %4966 = vmatprep.subr.mxu0 0.0
  %4967 = vmatpush1.msra.mxu0 %v808
  %4968 = vmatprep.subr.mxu0 0.0
  %4969 = vmatpush1.msra.mxu0 %v809
  %4970 = vmatprep.subr.mxu0 0.0
  %4971 = vmatpush1.msra.mxu0 %v810
  %4972 = vmatprep.subr.mxu0 0.0
  %4973 = vmatpush1.msra.mxu0 %v811
  %4974 = vmatprep.subr.mxu0 0.0
  %4975 = vmatpush1.msra.mxu0 %v812
  %4976 = vmatprep.subr.mxu0 0.0
  %4977 = vmatpush1.msra.mxu0 %v813
  %4978 = vmatprep.subr.mxu0 0.0
  %4979 = vmatpush1.msra.mxu0 %v814
  %4980 = vmatprep.subr.mxu0 0.0
  %4981 = vmatpush1.msra.mxu0 %v815
  %4982 = vmatprep.subr.mxu0 0.0
  %4983 = vmatpush1.msra.mxu0 %v816
  %4984 = vmatprep.subr.mxu0 0.0
  %4985 = vmatpush1.msra.mxu0 %v817
  %4986 = vmatprep.subr.mxu0 0.0
  %4987 = vmatpush1.msra.mxu0 %v818
  %4988 = vmatprep.subr.mxu0 0.0
  %4989 = vmatpush1.msra.mxu0 %v819
  %4990 = vmatprep.subr.mxu0 0.0
  %4991 = vmatpush1.msra.mxu0 %v820
  %4992 = vmatprep.subr.mxu0 0.0
  %4993 = vmatpush1.msra.mxu0 %v821
  %4994 = vmatprep.subr.mxu0 0.0
  %4995 = vmatpush1.msra.mxu0 %v822
  %4996 = vmatprep.subr.mxu0 0.0
  %4997 = vmatpush1.msra.mxu0 %v823
  %4998 = vmatprep.subr.mxu0 0.0
  %4999 = vmatpush1.msra.mxu0 %v824
  %5000 = vmatprep.subr.mxu0 0.0
  %5001 = vmatpush1.msra.mxu0 %v825
  %5002 = vmatprep.subr.mxu0 0.0
  %5003 = vmatpush1.msra.mxu0 %v826
  %5004 = vmatprep.subr.mxu0 0.0
  %5005 = vmatpush1.msra.mxu0 %v827
  %5006 = vmatprep.subr.mxu0 0.0
  %5007 = vmatpush1.msra.mxu0 %v828
  %5008 = vmatprep.subr.mxu0 0.0
  %5009 = vmatpush1.msra.mxu0 %v829
  %5010 = vmatprep.subr.mxu0 0.0
  %5011 = vmatpush1.msra.mxu0 %v830
  %5012 = vmatprep.mubr.f32.mxu0 %v3925
  %5013 = vmatmul.mubr.f32.gmra.mrb[0].mxu0 %v3924
  %v5014 = vpop.f32.mrb[0].mxu0
  %v5015 = vadd.f32 %v4915, %v5014
  %v5016 = vpop.f32.mrb[0].mxu0
  %5017 = vmatprep.mubr.f32.mxu0 %v3941
  %5018 = vmatmul.mubr.f32.gmra.mrb[0].mxu0 %v3940
  %v5019 = vpop.f32.mrb[0].mxu0
  %v5020 = vadd.f32 %v4920, %v5019
  %v5021 = vpop.f32.mrb[0].mxu0
  %5022 = vmatprep.mubr.f32.mxu0 %v3957
  %5023 = vmatmul.mubr.f32.gmra.mrb[0].mxu0 %v3956
  %v5024 = vpop.f32.mrb[0].mxu0
  %v5025 = vadd.f32 %v4925, %v5024
  %v5026 = vpop.f32.mrb[0].mxu0
  %5027 = vmatprep.mubr.f32.mxu0 %v3973
  %5028 = vmatmul.mubr.f32.gmra.mrb[0].mxu0 %v3972
  %v5029 = vpop.f32.mrb[0].mxu0
  %v5030 = vadd.f32 %v4930, %v5029
  %v5031 = vpop.f32.mrb[0].mxu0
  %5032 = vmatprep.mubr.f32.mxu0 %v3989
  %5033 = vmatmul.mubr.f32.gmra.mrb[0].mxu0 %v3988
  %v5034 = vpop.f32.mrb[0].mxu0
  %v5035 = vadd.f32 %v4935, %v5034
  %v5036 = vpop.f32.mrb[0].mxu0
  %5037 = vmatprep.mubr.f32.mxu0 %v4005
  %5038 = vmatmul.mubr.f32.gmra.mrb[0].mxu0 %v4004
  %v5039 = vpop.f32.mrb[0].mxu0
  %v5040 = vadd.f32 %v4940, %v5039
  %v5041 = vpop.f32.mrb[0].mxu0
  %5042 = vmatprep.mubr.f32.mxu0 %v4021
  %5043 = vmatmul.mubr.f32.gmra.mrb[0].mxu0 %v4020
  %v5044 = vpop.f32.mrb[0].mxu0
  %v5045 = vadd.f32 %v4945, %v5044
  %v5046 = vpop.f32.mrb[0].mxu0
  %5047 = vdwg.mxu0
  %5048 = vmatprep.subr.mxu0 0.0
  %5049 = vmatpush1.msra.mxu0 %v831
  %5050 = vmatprep.subr.mxu0 0.0
  %5051 = vmatpush1.msra.mxu0 %v832
  %5052 = vmatprep.subr.mxu0 0.0
  %5053 = vmatpush1.msra.mxu0 %v833
  %5054 = vmatprep.subr.mxu0 0.0
  %5055 = vmatpush1.msra.mxu0 %v834
  %5056 = vmatprep.subr.mxu0 0.0
  %5057 = vmatpush1.msra.mxu0 %v835
  %5058 = vmatprep.subr.mxu0 0.0
  %5059 = vmatpush1.msra.mxu0 %v836
  %5060 = vmatprep.subr.mxu0 0.0
  %5061 = vmatpush1.msra.mxu0 %v837
  %5062 = vmatprep.subr.mxu0 0.0
  %5063 = vmatpush1.msra.mxu0 %v838
  %5064 = vmatprep.subr.mxu0 0.0
  %5065 = vmatpush1.msra.mxu0 %v839
  %5066 = vmatprep.subr.mxu0 0.0
  %5067 = vmatpush1.msra.mxu0 %v840
  %5068 = vmatprep.subr.mxu0 0.0
  %5069 = vmatpush1.msra.mxu0 %v841
  %5070 = vmatprep.subr.mxu0 0.0
  %5071 = vmatpush1.msra.mxu0 %v842
  %5072 = vmatprep.subr.mxu0 0.0
  %5073 = vmatpush1.msra.mxu0 %v843
  %5074 = vmatprep.subr.mxu0 0.0
  %5075 = vmatpush1.msra.mxu0 %v844
  %5076 = vmatprep.subr.mxu0 0.0
  %5077 = vmatpush1.msra.mxu0 %v845
  %5078 = vmatprep.subr.mxu0 0.0
  %5079 = vmatpush1.msra.mxu0 %v846
  %5080 = vmatprep.subr.mxu0 0.0
  %5081 = vmatpush1.msra.mxu0 %v847
  %5082 = vmatprep.subr.mxu0 0.0
  %5083 = vmatpush1.msra.mxu0 %v848
  %5084 = vmatprep.subr.mxu0 0.0
  %5085 = vmatpush1.msra.mxu0 %v849
  %5086 = vmatprep.subr.mxu0 0.0
  %5087 = vmatpush1.msra.mxu0 %v850
  %5088 = vmatprep.subr.mxu0 0.0
  %5089 = vmatpush1.msra.mxu0 %v851
  %5090 = vmatprep.subr.mxu0 0.0
  %5091 = vmatpush1.msra.mxu0 %v852
  %5092 = vmatprep.subr.mxu0 0.0
  %5093 = vmatpush1.msra.mxu0 %v853
  %5094 = vmatprep.subr.mxu0 0.0
  %5095 = vmatpush1.msra.mxu0 %v854
  %5096 = vmatprep.subr.mxu0 0.0
  %5097 = vmatpush1.msra.mxu0 %v855
  %5098 = vmatprep.subr.mxu0 0.0
  %5099 = vmatpush1.msra.mxu0 %v856
  %5100 = vmatprep.subr.mxu0 0.0
  %5101 = vmatpush1.msra.mxu0 %v857
  %5102 = vmatprep.subr.mxu0 0.0
  %5103 = vmatpush1.msra.mxu0 %v858
  %5104 = vmatprep.subr.mxu0 0.0
  %5105 = vmatpush1.msra.mxu0 %v859
  %5106 = vmatprep.subr.mxu0 0.0
  %5107 = vmatpush1.msra.mxu0 %v860
  %5108 = vmatprep.subr.mxu0 0.0
  %5109 = vmatpush1.msra.mxu0 %v861
  %5110 = vmatprep.subr.mxu0 0.0
  %5111 = vmatpush1.msra.mxu0 %v862
  %5112 = vmatprep.mubr.f32.mxu0 %v3927
  %5113 = vmatmul.mubr.f32.gmra.mrb[0].mxu0 %v3926
  %v5114 = vpop.f32.mrb[0].mxu0
  %v5115 = vadd.f32 %v5015, %v5114
  %v5116 = vpop.f32.mrb[0].mxu0
  %5117 = vmatprep.mubr.f32.mxu0 %v3943
  %5118 = vmatmul.mubr.f32.gmra.mrb[0].mxu0 %v3942
  %v5119 = vpop.f32.mrb[0].mxu0
  %v5120 = vadd.f32 %v5020, %v5119
  %v5121 = vpop.f32.mrb[0].mxu0
  %5122 = vmatprep.mubr.f32.mxu0 %v3959
  %5123 = vmatmul.mubr.f32.gmra.mrb[0].mxu0 %v3958
  %v5124 = vpop.f32.mrb[0].mxu0
  %v5125 = vadd.f32 %v5025, %v5124
  %v5126 = vpop.f32.mrb[0].mxu0
  %5127 = vmatprep.mubr.f32.mxu0 %v3975
  %5128 = vmatmul.mubr.f32.gmra.mrb[0].mxu0 %v3974
  %v5129 = vpop.f32.mrb[0].mxu0
  %v5130 = vadd.f32 %v5030, %v5129
  %v5131 = vpop.f32.mrb[0].mxu0
  %5132 = vmatprep.mubr.f32.mxu0 %v3991
  %5133 = vmatmul.mubr.f32.gmra.mrb[0].mxu0 %v3990
  %v5134 = vpop.f32.mrb[0].mxu0
  %v5135 = vadd.f32 %v5035, %v5134
  %v5136 = vpop.f32.mrb[0].mxu0
  %5137 = vmatprep.mubr.f32.mxu0 %v4007
  %5138 = vmatmul.mubr.f32.gmra.mrb[0].mxu0 %v4006
  %v5139 = vpop.f32.mrb[0].mxu0
  %v5140 = vadd.f32 %v5040, %v5139
  %v5141 = vpop.f32.mrb[0].mxu0
  %5142 = vmatprep.mubr.f32.mxu0 %v4023
  %5143 = vmatmul.mubr.f32.gmra.mrb[0].mxu0 %v4022
  %v5144 = vpop.f32.mrb[0].mxu0
  %v5145 = vadd.f32 %v5045, %v5144
  %v5146 = vpop.f32.mrb[0].mxu0
  %5147 = vdwg.mxu0
  %5148 = vmatprep.subr.mxu0 0.0
  %5149 = vmatpush1.msra.mxu0 %v863
  %5150 = vmatprep.subr.mxu0 0.0
  %5151 = vmatpush1.msra.mxu0 %v864
  %5152 = vmatprep.subr.mxu0 0.0
  %5153 = vmatpush1.msra.mxu0 %v865
  %5154 = vmatprep.subr.mxu0 0.0
  %5155 = vmatpush1.msra.mxu0 %v866
  %5156 = vmatprep.subr.mxu0 0.0
  %5157 = vmatpush1.msra.mxu0 %v867
  %5158 = vmatprep.subr.mxu0 0.0
  %5159 = vmatpush1.msra.mxu0 %v868
  %5160 = vmatprep.subr.mxu0 0.0
  %5161 = vmatpush1.msra.mxu0 %v869
  %5162 = vmatprep.subr.mxu0 0.0
  %5163 = vmatpush1.msra.mxu0 %v870
  %5164 = vmatprep.subr.mxu0 0.0
  %5165 = vmatpush1.msra.mxu0 %v871
  %5166 = vmatprep.subr.mxu0 0.0
  %5167 = vmatpush1.msra.mxu0 %v872
  %5168 = vmatprep.subr.mxu0 0.0
  %5169 = vmatpush1.msra.mxu0 %v873
  %5170 = vmatprep.subr.mxu0 0.0
  %5171 = vmatpush1.msra.mxu0 %v874
  %5172 = vmatprep.subr.mxu0 0.0
  %5173 = vmatpush1.msra.mxu0 %v875
  %5174 = vmatprep.subr.mxu0 0.0
  %5175 = vmatpush1.msra.mxu0 %v876
  %5176 = vmatprep.subr.mxu0 0.0
  %5177 = vmatpush1.msra.mxu0 %v877
  %5178 = vmatprep.subr.mxu0 0.0
  %5179 = vmatpush1.msra.mxu0 %v878
  %5180 = vmatprep.subr.mxu0 0.0
  %5181 = vmatpush1.msra.mxu0 %v879
  %5182 = vmatprep.subr.mxu0 0.0
  %5183 = vmatpush1.msra.mxu0 %v880
  %5184 = vmatprep.subr.mxu0 0.0
  %5185 = vmatpush1.msra.mxu0 %v881
  %5186 = vmatprep.subr.mxu0 0.0
  %5187 = vmatpush1.msra.mxu0 %v882
  %5188 = vmatprep.subr.mxu0 0.0
  %5189 = vmatpush1.msra.mxu0 %v883
  %5190 = vmatprep.subr.mxu0 0.0
  %5191 = vmatpush1.msra.mxu0 %v884
  %5192 = vmatprep.subr.mxu0 0.0
  %5193 = vmatpush1.msra.mxu0 %v885
  %5194 = vmatprep.subr.mxu0 0.0
  %5195 = vmatpush1.msra.mxu0 %v886
  %5196 = vmatprep.subr.mxu0 0.0
  %5197 = vmatpush1.msra.mxu0 %v887
  %5198 = vmatprep.subr.mxu0 0.0
  %5199 = vmatpush1.msra.mxu0 %v888
  %5200 = vmatprep.subr.mxu0 0.0
  %5201 = vmatpush1.msra.mxu0 %v889
  %5202 = vmatprep.subr.mxu0 0.0
  %5203 = vmatpush1.msra.mxu0 %v890
  %5204 = vmatprep.subr.mxu0 0.0
  %5205 = vmatpush1.msra.mxu0 %v891
  %5206 = vmatprep.subr.mxu0 0.0
  %5207 = vmatpush1.msra.mxu0 %v892
  %5208 = vmatprep.subr.mxu0 0.0
  %5209 = vmatpush1.msra.mxu0 %v893
  %5210 = vmatprep.subr.mxu0 0.0
  %5211 = vmatpush1.msra.mxu0 %v894
  %5212 = vmatprep.mubr.f32.mxu0 %v3929
  %5213 = vmatmul.mubr.f32.gmra.mrb[0].mxu0 %v3928
  %v5214 = vpop.f32.mrb[0].mxu0
  %v5215 = vadd.f32 %v5115, %v5214
  %v5216 = vpop.f32.mrb[0].mxu0
  %5217 = vmatprep.mubr.f32.mxu0 %v3945
  %5218 = vmatmul.mubr.f32.gmra.mrb[0].mxu0 %v3944
  %v5219 = vpop.f32.mrb[0].mxu0
  %v5220 = vadd.f32 %v5120, %v5219
  %v5221 = vpop.f32.mrb[0].mxu0
  %5222 = vmatprep.mubr.f32.mxu0 %v3961
  %5223 = vmatmul.mubr.f32.gmra.mrb[0].mxu0 %v3960
  %v5224 = vpop.f32.mrb[0].mxu0
  %v5225 = vadd.f32 %v5125, %v5224
  %v5226 = vpop.f32.mrb[0].mxu0
  %5227 = vmatprep.mubr.f32.mxu0 %v3977
  %5228 = vmatmul.mubr.f32.gmra.mrb[0].mxu0 %v3976
  %v5229 = vpop.f32.mrb[0].mxu0
  %v5230 = vadd.f32 %v5130, %v5229
  %v5231 = vpop.f32.mrb[0].mxu0
  %5232 = vmatprep.mubr.f32.mxu0 %v3993
  %5233 = vmatmul.mubr.f32.gmra.mrb[0].mxu0 %v3992
  %v5234 = vpop.f32.mrb[0].mxu0
  %v5235 = vadd.f32 %v5135, %v5234
  %v5236 = vpop.f32.mrb[0].mxu0
  %5237 = vmatprep.mubr.f32.mxu0 %v4009
  %5238 = vmatmul.mubr.f32.gmra.mrb[0].mxu0 %v4008
  %v5239 = vpop.f32.mrb[0].mxu0
  %v5240 = vadd.f32 %v5140, %v5239
  %v5241 = vpop.f32.mrb[0].mxu0
  %5242 = vmatprep.mubr.f32.mxu0 %v4025
  %5243 = vmatmul.mubr.f32.gmra.mrb[0].mxu0 %v4024
  %v5244 = vpop.f32.mrb[0].mxu0
  %v5245 = vadd.f32 %v5145, %v5244
  %v5246 = vpop.f32.mrb[0].mxu0
  %5247 = vdwg.mxu0
  %5248 = vmatprep.subr.mxu0 0.0
  %5249 = vmatpush1.msra.mxu0 %v895
  %5250 = vmatprep.subr.mxu0 0.0
  %5251 = vmatpush1.msra.mxu0 %v896
  %5252 = vmatprep.subr.mxu0 0.0
  %5253 = vmatpush1.msra.mxu0 %v897
  %5254 = vmatprep.subr.mxu0 0.0
  %5255 = vmatpush1.msra.mxu0 %v898
  %5256 = vmatprep.subr.mxu0 0.0
  %5257 = vmatpush1.msra.mxu0 %v899
  %5258 = vmatprep.subr.mxu0 0.0
  %5259 = vmatpush1.msra.mxu0 %v900
  %5260 = vmatprep.subr.mxu0 0.0
  %5261 = vmatpush1.msra.mxu0 %v901
  %5262 = vmatprep.subr.mxu0 0.0
  %5263 = vmatpush1.msra.mxu0 %v902
  %5264 = vmatprep.subr.mxu0 0.0
  %5265 = vmatpush1.msra.mxu0 %v903
  %5266 = vmatprep.subr.mxu0 0.0
  %5267 = vmatpush1.msra.mxu0 %v904
  %5268 = vmatprep.subr.mxu0 0.0
  %5269 = vmatpush1.msra.mxu0 %v905
  %5270 = vmatprep.subr.mxu0 0.0
  %5271 = vmatpush1.msra.mxu0 %v906
  %5272 = vmatprep.subr.mxu0 0.0
  %5273 = vmatpush1.msra.mxu0 %v907
  %5274 = vmatprep.subr.mxu0 0.0
  %5275 = vmatpush1.msra.mxu0 %v908
  %5276 = vmatprep.subr.mxu0 0.0
  %5277 = vmatpush1.msra.mxu0 %v909
  %5278 = vmatprep.subr.mxu0 0.0
  %5279 = vmatpush1.msra.mxu0 %v910
  %5280 = vmatprep.subr.mxu0 0.0
  %5281 = vmatpush1.msra.mxu0 %v911
  %5282 = vmatprep.subr.mxu0 0.0
  %5283 = vmatpush1.msra.mxu0 %v912
  %5284 = vmatprep.subr.mxu0 0.0
  %5285 = vmatpush1.msra.mxu0 %v913
  %5286 = vmatprep.subr.mxu0 0.0
  %5287 = vmatpush1.msra.mxu0 %v914
  %5288 = vmatprep.subr.mxu0 0.0
  %5289 = vmatpush1.msra.mxu0 %v915
  %5290 = vmatprep.subr.mxu0 0.0
  %5291 = vmatpush1.msra.mxu0 %v916
  %5292 = vmatprep.subr.mxu0 0.0
  %5293 = vmatpush1.msra.mxu0 %v917
  %5294 = vmatprep.subr.mxu0 0.0
  %5295 = vmatpush1.msra.mxu0 %v918
  %5296 = vmatprep.subr.mxu0 0.0
  %5297 = vmatpush1.msra.mxu0 %v919
  %5298 = vmatprep.subr.mxu0 0.0
  %5299 = vmatpush1.msra.mxu0 %v920
  %5300 = vmatprep.subr.mxu0 0.0
  %5301 = vmatpush1.msra.mxu0 %v921
  %5302 = vmatprep.subr.mxu0 0.0
  %5303 = vmatpush1.msra.mxu0 %v922
  %5304 = vmatprep.subr.mxu0 0.0
  %5305 = vmatpush1.msra.mxu0 %v923
  %5306 = vmatprep.subr.mxu0 0.0
  %5307 = vmatpush1.msra.mxu0 %v924
  %5308 = vmatprep.subr.mxu0 0.0
  %5309 = vmatpush1.msra.mxu0 %v925
  %5310 = vmatprep.subr.mxu0 0.0
  %5311 = vmatpush1.msra.mxu0 %v926
  %5312 = vmatprep.mubr.f32.mxu0 %v3931
  %5313 = vmatmul.mubr.f32.gmra.mrb[0].mxu0 %v3930
  %v5314 = vpop.f32.mrb[0].mxu0
  %v5315 = vadd.f32 %v5215, %v5314
  %v5316 = vpop.f32.mrb[0].mxu0
  %5317 = vmatprep.mubr.f32.mxu0 %v3947
  %5318 = vmatmul.mubr.f32.gmra.mrb[0].mxu0 %v3946
  %v5319 = vpop.f32.mrb[0].mxu0
  %v5320 = vadd.f32 %v5220, %v5319
  %v5321 = vpop.f32.mrb[0].mxu0
  %5322 = vmatprep.mubr.f32.mxu0 %v3963
  %5323 = vmatmul.mubr.f32.gmra.mrb[0].mxu0 %v3962
  %v5324 = vpop.f32.mrb[0].mxu0
  %v5325 = vadd.f32 %v5225, %v5324
  %v5326 = vpop.f32.mrb[0].mxu0
  %5327 = vmatprep.mubr.f32.mxu0 %v3979
  %5328 = vmatmul.mubr.f32.gmra.mrb[0].mxu0 %v3978
  %v5329 = vpop.f32.mrb[0].mxu0
  %v5330 = vadd.f32 %v5230, %v5329
  %v5331 = vpop.f32.mrb[0].mxu0
  %5332 = vmatprep.mubr.f32.mxu0 %v3995
  %5333 = vmatmul.mubr.f32.gmra.mrb[0].mxu0 %v3994
  %v5334 = vpop.f32.mrb[0].mxu0
  %v5335 = vadd.f32 %v5235, %v5334
  %v5336 = vpop.f32.mrb[0].mxu0
  %5337 = vmatprep.mubr.f32.mxu0 %v4011
  %5338 = vmatmul.mubr.f32.gmra.mrb[0].mxu0 %v4010
  %v5339 = vpop.f32.mrb[0].mxu0
  %v5340 = vadd.f32 %v5240, %v5339
  %v5341 = vpop.f32.mrb[0].mxu0
  %5342 = vmatprep.mubr.f32.mxu0 %v4027
  %5343 = vmatmul.mubr.f32.gmra.mrb[0].mxu0 %v4026
  %v5344 = vpop.f32.mrb[0].mxu0
  %v5345 = vadd.f32 %v5245, %v5344
  %v5346 = vpop.f32.mrb[0].mxu0
  %5347 = vdwg.mxu0
  %5348 = vmatprep.subr.mxu0 0.0
  %5349 = vmatpush1.msra.mxu0 %v927
  %5350 = vmatprep.subr.mxu0 0.0
  %5351 = vmatpush1.msra.mxu0 %v928
  %5352 = vmatprep.subr.mxu0 0.0
  %5353 = vmatpush1.msra.mxu0 %v929
  %5354 = vmatprep.subr.mxu0 0.0
  %5355 = vmatpush1.msra.mxu0 %v930
  %5356 = vmatprep.subr.mxu0 0.0
  %5357 = vmatpush1.msra.mxu0 %v931
  %5358 = vmatprep.subr.mxu0 0.0
  %5359 = vmatpush1.msra.mxu0 %v932
  %5360 = vmatprep.subr.mxu0 0.0
  %5361 = vmatpush1.msra.mxu0 %v933
  %5362 = vmatprep.subr.mxu0 0.0
  %5363 = vmatpush1.msra.mxu0 %v934
  %5364 = vmatprep.subr.mxu0 0.0
  %5365 = vmatpush1.msra.mxu0 %v935
  %5366 = vmatprep.subr.mxu0 0.0
  %5367 = vmatpush1.msra.mxu0 %v936
  %5368 = vmatprep.subr.mxu0 0.0
  %5369 = vmatpush1.msra.mxu0 %v937
  %5370 = vmatprep.subr.mxu0 0.0
  %5371 = vmatpush1.msra.mxu0 %v938
  %5372 = vmatprep.subr.mxu0 0.0
  %5373 = vmatpush1.msra.mxu0 %v939
  %5374 = vmatprep.subr.mxu0 0.0
  %5375 = vmatpush1.msra.mxu0 %v940
  %5376 = vmatprep.subr.mxu0 0.0
  %5377 = vmatpush1.msra.mxu0 %v941
  %5378 = vmatprep.subr.mxu0 0.0
  %5379 = vmatpush1.msra.mxu0 %v942
  %5380 = vmatprep.subr.mxu0 0.0
  %5381 = vmatpush1.msra.mxu0 %v943
  %5382 = vmatprep.subr.mxu0 0.0
  %5383 = vmatpush1.msra.mxu0 %v944
  %5384 = vmatprep.subr.mxu0 0.0
  %5385 = vmatpush1.msra.mxu0 %v945
  %5386 = vmatprep.subr.mxu0 0.0
  %5387 = vmatpush1.msra.mxu0 %v946
  %5388 = vmatprep.subr.mxu0 0.0
  %5389 = vmatpush1.msra.mxu0 %v947
  %5390 = vmatprep.subr.mxu0 0.0
  %5391 = vmatpush1.msra.mxu0 %v948
  %5392 = vmatprep.subr.mxu0 0.0
  %5393 = vmatpush1.msra.mxu0 %v949
  %5394 = vmatprep.subr.mxu0 0.0
  %5395 = vmatpush1.msra.mxu0 %v950
  %5396 = vmatprep.subr.mxu0 0.0
  %5397 = vmatpush1.msra.mxu0 %v951
  %5398 = vmatprep.subr.mxu0 0.0
  %5399 = vmatpush1.msra.mxu0 %v952
  %5400 = vmatprep.subr.mxu0 0.0
  %5401 = vmatpush1.msra.mxu0 %v953
  %5402 = vmatprep.subr.mxu0 0.0
  %5403 = vmatpush1.msra.mxu0 %v954
  %5404 = vmatprep.subr.mxu0 0.0
  %5405 = vmatpush1.msra.mxu0 %v955
  %5406 = vmatprep.subr.mxu0 0.0
  %5407 = vmatpush1.msra.mxu0 %v956
  %5408 = vmatprep.subr.mxu0 0.0
  %5409 = vmatpush1.msra.mxu0 %v957
  %5410 = vmatprep.subr.mxu0 0.0
  %5411 = vmatpush1.msra.mxu0 %v958
  %5412 = vmatprep.mubr.f32.mxu0 %v3933
  %5413 = vmatmul.mubr.f32.gmra.mrb[0].mxu0 %v3932
  %v5414 = vpop.f32.mrb[0].mxu0
  %v5415 = vadd.f32 %v5315, %v5414
  %v5416 = vpop.f32.mrb[0].mxu0
  %5417 = vmatprep.mubr.f32.mxu0 %v3949
  %5418 = vmatmul.mubr.f32.gmra.mrb[0].mxu0 %v3948
  %v5419 = vpop.f32.mrb[0].mxu0
  %v5420 = vadd.f32 %v5320, %v5419
  %v5421 = vpop.f32.mrb[0].mxu0
  %5422 = vmatprep.mubr.f32.mxu0 %v3965
  %5423 = vmatmul.mubr.f32.gmra.mrb[0].mxu0 %v3964
  %v5424 = vpop.f32.mrb[0].mxu0
  %v5425 = vadd.f32 %v5325, %v5424
  %v5426 = vpop.f32.mrb[0].mxu0
  %5427 = vmatprep.mubr.f32.mxu0 %v3981
  %5428 = vmatmul.mubr.f32.gmra.mrb[0].mxu0 %v3980
  %v5429 = vpop.f32.mrb[0].mxu0
  %v5430 = vadd.f32 %v5330, %v5429
  %v5431 = vpop.f32.mrb[0].mxu0
  %5432 = vmatprep.mubr.f32.mxu0 %v3997
  %5433 = vmatmul.mubr.f32.gmra.mrb[0].mxu0 %v3996
  %v5434 = vpop.f32.mrb[0].mxu0
  %v5435 = vadd.f32 %v5335, %v5434
  %v5436 = vpop.f32.mrb[0].mxu0
  %5437 = vmatprep.mubr.f32.mxu0 %v4013
  %5438 = vmatmul.mubr.f32.gmra.mrb[0].mxu0 %v4012
  %v5439 = vpop.f32.mrb[0].mxu0
  %v5440 = vadd.f32 %v5340, %v5439
  %v5441 = vpop.f32.mrb[0].mxu0
  %5442 = vmatprep.mubr.f32.mxu0 %v4029
  %5443 = vmatmul.mubr.f32.gmra.mrb[0].mxu0 %v4028
  %v5444 = vpop.f32.mrb[0].mxu0
  %v5445 = vadd.f32 %v5345, %v5444
  %v5446 = vpop.f32.mrb[0].mxu0
  %5447 = vdwg.mxu0
  %5448 = vmatprep.subr.mxu0 0.0
  %5449 = vmatpush1.msra.mxu0 %v959
  %5450 = vmatprep.subr.mxu0 0.0
  %5451 = vmatpush1.msra.mxu0 %v960
  %5452 = vmatprep.subr.mxu0 0.0
  %5453 = vmatpush1.msra.mxu0 %v961
  %5454 = vmatprep.subr.mxu0 0.0
  %5455 = vmatpush1.msra.mxu0 %v962
  %5456 = vmatprep.subr.mxu0 0.0
  %5457 = vmatpush1.msra.mxu0 %v963
  %5458 = vmatprep.subr.mxu0 0.0
  %5459 = vmatpush1.msra.mxu0 %v964
  %5460 = vmatprep.subr.mxu0 0.0
  %5461 = vmatpush1.msra.mxu0 %v965
  %5462 = vmatprep.subr.mxu0 0.0
  %5463 = vmatpush1.msra.mxu0 %v966
  %5464 = vmatprep.subr.mxu0 0.0
  %5465 = vmatpush1.msra.mxu0 %v967
  %5466 = vmatprep.subr.mxu0 0.0
  %5467 = vmatpush1.msra.mxu0 %v968
  %5468 = vmatprep.subr.mxu0 0.0
  %5469 = vmatpush1.msra.mxu0 %v969
  %5470 = vmatprep.subr.mxu0 0.0
  %5471 = vmatpush1.msra.mxu0 %v970
  %5472 = vmatprep.subr.mxu0 0.0
  %5473 = vmatpush1.msra.mxu0 %v971
  %5474 = vmatprep.subr.mxu0 0.0
  %5475 = vmatpush1.msra.mxu0 %v972
  %5476 = vmatprep.subr.mxu0 0.0
  %5477 = vmatpush1.msra.mxu0 %v973
  %5478 = vmatprep.subr.mxu0 0.0
  %5479 = vmatpush1.msra.mxu0 %v974
  %5480 = vmatprep.subr.mxu0 0.0
  %5481 = vmatpush1.msra.mxu0 %v975
  %5482 = vmatprep.subr.mxu0 0.0
  %5483 = vmatpush1.msra.mxu0 %v976
  %5484 = vmatprep.subr.mxu0 0.0
  %5485 = vmatpush1.msra.mxu0 %v977
  %5486 = vmatprep.subr.mxu0 0.0
  %5487 = vmatpush1.msra.mxu0 %v978
  %5488 = vmatprep.subr.mxu0 0.0
  %5489 = vmatpush1.msra.mxu0 %v979
  %5490 = vmatprep.subr.mxu0 0.0
  %5491 = vmatpush1.msra.mxu0 %v980
  %5492 = vmatprep.subr.mxu0 0.0
  %5493 = vmatpush1.msra.mxu0 %v981
  %5494 = vmatprep.subr.mxu0 0.0
  %5495 = vmatpush1.msra.mxu0 %v982
  %5496 = vmatprep.subr.mxu0 0.0
  %5497 = vmatpush1.msra.mxu0 %v983
  %5498 = vmatprep.subr.mxu0 0.0
  %5499 = vmatpush1.msra.mxu0 %v984
  %5500 = vmatprep.subr.mxu0 0.0
  %5501 = vmatpush1.msra.mxu0 %v985
  %5502 = vmatprep.subr.mxu0 0.0
  %5503 = vmatpush1.msra.mxu0 %v986
  %5504 = vmatprep.subr.mxu0 0.0
  %5505 = vmatpush1.msra.mxu0 %v987
  %5506 = vmatprep.subr.mxu0 0.0
  %5507 = vmatpush1.msra.mxu0 %v988
  %5508 = vmatprep.subr.mxu0 0.0
  %5509 = vmatpush1.msra.mxu0 %v989
  %5510 = vmatprep.subr.mxu0 0.0
  %5511 = vmatpush1.msra.mxu0 %v990
  %5512 = vmatprep.mubr.f32.mxu0 %v3935
  %5513 = vmatmul.mubr.f32.gmra.mrb[0].mxu0 %v3934
  %v5514 = vpop.f32.mrb[0].mxu0
  %v5515 = vadd.f32 %v5415, %v5514
  %v5516 = vpop.f32.mrb[0].mxu0
  %5517 = vmatprep.mubr.f32.mxu0 %v3951
  %5518 = vmatmul.mubr.f32.gmra.mrb[0].mxu0 %v3950
  %v5519 = vpop.f32.mrb[0].mxu0
  %v5520 = vadd.f32 %v5420, %v5519
  %v5521 = vpop.f32.mrb[0].mxu0
  %5522 = vmatprep.mubr.f32.mxu0 %v3967
  %5523 = vmatmul.mubr.f32.gmra.mrb[0].mxu0 %v3966
  %v5524 = vpop.f32.mrb[0].mxu0
  %v5525 = vadd.f32 %v5425, %v5524
  %v5526 = vpop.f32.mrb[0].mxu0
  %5527 = vmatprep.mubr.f32.mxu0 %v3983
  %5528 = vmatmul.mubr.f32.gmra.mrb[0].mxu0 %v3982
  %v5529 = vpop.f32.mrb[0].mxu0
  %v5530 = vadd.f32 %v5430, %v5529
  %v5531 = vpop.f32.mrb[0].mxu0
  %5532 = vmatprep.mubr.f32.mxu0 %v3999
  %5533 = vmatmul.mubr.f32.gmra.mrb[0].mxu0 %v3998
  %v5534 = vpop.f32.mrb[0].mxu0
  %v5535 = vadd.f32 %v5435, %v5534
  %v5536 = vpop.f32.mrb[0].mxu0
  %5537 = vmatprep.mubr.f32.mxu0 %v4015
  %5538 = vmatmul.mubr.f32.gmra.mrb[0].mxu0 %v4014
  %v5539 = vpop.f32.mrb[0].mxu0
  %v5540 = vadd.f32 %v5440, %v5539
  %v5541 = vpop.f32.mrb[0].mxu0
  %5542 = vmatprep.mubr.f32.mxu0 %v4031
  %5543 = vmatmul.mubr.f32.gmra.mrb[0].mxu0 %v4030
  %v5544 = vpop.f32.mrb[0].mxu0
  %v5545 = vadd.f32 %v5445, %v5544
  %v5546 = vpop.f32.mrb[0].mxu0
  %5547 = vdwg.mxu0
  %5548 = vmatprep.subr.mxu0 0.0
  %5549 = vmatpush1.msra.mxu0 %v991
  %5550 = vmatprep.subr.mxu0 0.0
  %5551 = vmatpush1.msra.mxu0 %v992
  %5552 = vmatprep.subr.mxu0 0.0
  %5553 = vmatpush1.msra.mxu0 %v993
  %5554 = vmatprep.subr.mxu0 0.0
  %5555 = vmatpush1.msra.mxu0 %v994
  %5556 = vmatprep.subr.mxu0 0.0
  %5557 = vmatpush1.msra.mxu0 %v995
  %5558 = vmatprep.subr.mxu0 0.0
  %5559 = vmatpush1.msra.mxu0 %v996
  %5560 = vmatprep.subr.mxu0 0.0
  %5561 = vmatpush1.msra.mxu0 %v997
  %5562 = vmatprep.subr.mxu0 0.0
  %5563 = vmatpush1.msra.mxu0 %v998
  %5564 = vmatprep.subr.mxu0 0.0
  %5565 = vmatpush1.msra.mxu0 %v999
  %5566 = vmatprep.subr.mxu0 0.0
  %5567 = vmatpush1.msra.mxu0 %v1000
  %5568 = vmatprep.subr.mxu0 0.0
  %5569 = vmatpush1.msra.mxu0 %v1001
  %5570 = vmatprep.subr.mxu0 0.0
  %5571 = vmatpush1.msra.mxu0 %v1002
  %5572 = vmatprep.subr.mxu0 0.0
  %5573 = vmatpush1.msra.mxu0 %v1003
  %5574 = vmatprep.subr.mxu0 0.0
  %5575 = vmatpush1.msra.mxu0 %v1004
  %5576 = vmatprep.subr.mxu0 0.0
  %5577 = vmatpush1.msra.mxu0 %v1005
  %5578 = vmatprep.subr.mxu0 0.0
  %5579 = vmatpush1.msra.mxu0 %v1006
  %5580 = vmatprep.subr.mxu0 0.0
  %5581 = vmatpush1.msra.mxu0 %v1007
  %5582 = vmatprep.subr.mxu0 0.0
  %5583 = vmatpush1.msra.mxu0 %v1008
  %5584 = vmatprep.subr.mxu0 0.0
  %5585 = vmatpush1.msra.mxu0 %v1009
  %5586 = vmatprep.subr.mxu0 0.0
  %5587 = vmatpush1.msra.mxu0 %v1010
  %5588 = vmatprep.subr.mxu0 0.0
  %5589 = vmatpush1.msra.mxu0 %v1011
  %5590 = vmatprep.subr.mxu0 0.0
  %5591 = vmatpush1.msra.mxu0 %v1012
  %5592 = vmatprep.subr.mxu0 0.0
  %5593 = vmatpush1.msra.mxu0 %v1013
  %5594 = vmatprep.subr.mxu0 0.0
  %5595 = vmatpush1.msra.mxu0 %v1014
  %5596 = vmatprep.subr.mxu0 0.0
  %5597 = vmatpush1.msra.mxu0 %v1015
  %5598 = vmatprep.subr.mxu0 0.0
  %5599 = vmatpush1.msra.mxu0 %v1016
  %5600 = vmatprep.subr.mxu0 0.0
  %5601 = vmatpush1.msra.mxu0 %v1017
  %5602 = vmatprep.subr.mxu0 0.0
  %5603 = vmatpush1.msra.mxu0 %v1018
  %5604 = vmatprep.subr.mxu0 0.0
  %5605 = vmatpush1.msra.mxu0 %v1019
  %5606 = vmatprep.subr.mxu0 0.0
  %5607 = vmatpush1.msra.mxu0 %v1020
  %5608 = vmatprep.subr.mxu0 0.0
  %5609 = vmatpush1.msra.mxu0 %v1021
  %5610 = vmatprep.subr.mxu0 0.0
  %5611 = vmatpush1.msra.mxu0 %v1022
  %5612 = vmatprep.mubr.f32.mxu0 %v3937
  %5613 = vmatmul.mubr.f32.gmra.mrb[0].mxu0 %v3936
  %v5614 = vpop.f32.mrb[0].mxu0
  %v5615 = vadd.f32 %v5515, %v5614
  %v5616 = vpop.f32.mrb[0].mxu0
  %5617 = vmatprep.mubr.f32.mxu0 %v3953
  %5618 = vmatmul.mubr.f32.gmra.mrb[0].mxu0 %v3952
  %v5619 = vpop.f32.mrb[0].mxu0
  %v5620 = vadd.f32 %v5520, %v5619
  %v5621 = vpop.f32.mrb[0].mxu0
  %5622 = vmatprep.mubr.f32.mxu0 %v3969
  %5623 = vmatmul.mubr.f32.gmra.mrb[0].mxu0 %v3968
  %v5624 = vpop.f32.mrb[0].mxu0
  %v5625 = vadd.f32 %v5525, %v5624
  %v5626 = vpop.f32.mrb[0].mxu0
  %5627 = vmatprep.mubr.f32.mxu0 %v3985
  %5628 = vmatmul.mubr.f32.gmra.mrb[0].mxu0 %v3984
  %v5629 = vpop.f32.mrb[0].mxu0
  %v5630 = vadd.f32 %v5530, %v5629
  %v5631 = vpop.f32.mrb[0].mxu0
  %5632 = vmatprep.mubr.f32.mxu0 %v4001
  %5633 = vmatmul.mubr.f32.gmra.mrb[0].mxu0 %v4000
  %v5634 = vpop.f32.mrb[0].mxu0
  %v5635 = vadd.f32 %v5535, %v5634
  %v5636 = vpop.f32.mrb[0].mxu0
  %5637 = vmatprep.mubr.f32.mxu0 %v4017
  %5638 = vmatmul.mubr.f32.gmra.mrb[0].mxu0 %v4016
  %v5639 = vpop.f32.mrb[0].mxu0
  %v5640 = vadd.f32 %v5540, %v5639
  %v5641 = vpop.f32.mrb[0].mxu0
  %5642 = vmatprep.mubr.f32.mxu0 %v4033
  %5643 = vmatmul.mubr.f32.gmra.mrb[0].mxu0 %v4032
  %v5644 = vpop.f32.mrb[0].mxu0
  %v5645 = vadd.f32 %v5545, %v5644
  %v5646 = vpop.f32.mrb[0].mxu0
  %5647 = vdwg.mxu0
  %5648 = vmatprep.subr.mxu0 0.0
  %5649 = vmatpush1.msra.mxu0 %v1023
  %5650 = vmatprep.subr.mxu0 0.0
  %5651 = vmatpush1.msra.mxu0 %v1024
  %5652 = vmatprep.subr.mxu0 0.0
  %5653 = vmatpush1.msra.mxu0 %v1025
  %5654 = vmatprep.subr.mxu0 0.0
  %5655 = vmatpush1.msra.mxu0 %v1026
  %5656 = vmatprep.subr.mxu0 0.0
  %5657 = vmatpush1.msra.mxu0 %v1027
  %5658 = vmatprep.subr.mxu0 0.0
  %5659 = vmatpush1.msra.mxu0 %v1028
  %5660 = vmatprep.subr.mxu0 0.0
  %5661 = vmatpush1.msra.mxu0 %v1029
  %5662 = vmatprep.subr.mxu0 0.0
  %5663 = vmatpush1.msra.mxu0 %v1030
  %5664 = vmatprep.subr.mxu0 0.0
  %5665 = vmatpush1.msra.mxu0 %v1031
  %5666 = vmatprep.subr.mxu0 0.0
  %5667 = vmatpush1.msra.mxu0 %v1032
  %5668 = vmatprep.subr.mxu0 0.0
  %5669 = vmatpush1.msra.mxu0 %v1033
  %5670 = vmatprep.subr.mxu0 0.0
  %5671 = vmatpush1.msra.mxu0 %v1034
  %5672 = vmatprep.subr.mxu0 0.0
  %5673 = vmatpush1.msra.mxu0 %v1035
  %5674 = vmatprep.subr.mxu0 0.0
  %5675 = vmatpush1.msra.mxu0 %v1036
  %5676 = vmatprep.subr.mxu0 0.0
  %5677 = vmatpush1.msra.mxu0 %v1037
  %5678 = vmatprep.subr.mxu0 0.0
  %5679 = vmatpush1.msra.mxu0 %v1038
  %5680 = vmatprep.subr.mxu0 0.0
  %5681 = vmatpush1.msra.mxu0 %v1039
  %5682 = vmatprep.subr.mxu0 0.0
  %5683 = vmatpush1.msra.mxu0 %v1040
  %5684 = vmatprep.subr.mxu0 0.0
  %5685 = vmatpush1.msra.mxu0 %v1041
  %5686 = vmatprep.subr.mxu0 0.0
  %5687 = vmatpush1.msra.mxu0 %v1042
  %5688 = vmatprep.subr.mxu0 0.0
  %5689 = vmatpush1.msra.mxu0 %v1043
  %5690 = vmatprep.subr.mxu0 0.0
  %5691 = vmatpush1.msra.mxu0 %v1044
  %5692 = vmatprep.subr.mxu0 0.0
  %5693 = vmatpush1.msra.mxu0 %v1045
  %5694 = vmatprep.subr.mxu0 0.0
  %5695 = vmatpush1.msra.mxu0 %v1046
  %5696 = vmatprep.subr.mxu0 0.0
  %5697 = vmatpush1.msra.mxu0 %v1047
  %5698 = vmatprep.subr.mxu0 0.0
  %5699 = vmatpush1.msra.mxu0 %v1048
  %5700 = vmatprep.subr.mxu0 0.0
  %5701 = vmatpush1.msra.mxu0 %v1049
  %5702 = vmatprep.subr.mxu0 0.0
  %5703 = vmatpush1.msra.mxu0 %v1050
  %5704 = vmatprep.subr.mxu0 0.0
  %5705 = vmatpush1.msra.mxu0 %v1051
  %5706 = vmatprep.subr.mxu0 0.0
  %5707 = vmatpush1.msra.mxu0 %v1052
  %5708 = vmatprep.subr.mxu0 0.0
  %5709 = vmatpush1.msra.mxu0 %v1053
  %5710 = vmatprep.subr.mxu0 0.0
  %5711 = vmatpush1.msra.mxu0 %v1054
  %5712 = vmatprep.mubr.f32.mxu0 %v3939
  %5713 = vmatmul.mubr.f32.gmra.mrb[0].mxu0 %v3938
  %v5714 = vpop.f32.mrb[0].mxu0
  %v5715 = vadd.f32 %v5615, %v5714
  %v5716 = vpop.f32.mrb[0].mxu0
  %5717 = vmatprep.mubr.f32.mxu0 %v3955
  %5718 = vmatmul.mubr.f32.gmra.mrb[0].mxu0 %v3954
  %v5719 = vpop.f32.mrb[0].mxu0
  %v5720 = vadd.f32 %v5620, %v5719
  %v5721 = vpop.f32.mrb[0].mxu0
  %5722 = vmatprep.mubr.f32.mxu0 %v3971
  %5723 = vmatmul.mubr.f32.gmra.mrb[0].mxu0 %v3970
  %v5724 = vpop.f32.mrb[0].mxu0
  %v5725 = vadd.f32 %v5625, %v5724
  %v5726 = vpop.f32.mrb[0].mxu0
  %5727 = vmatprep.mubr.f32.mxu0 %v3987
  %5728 = vmatmul.mubr.f32.gmra.mrb[0].mxu0 %v3986
  %v5729 = vpop.f32.mrb[0].mxu0
  %v5730 = vadd.f32 %v5630, %v5729
  %v5731 = vpop.f32.mrb[0].mxu0
  %5732 = vmatprep.mubr.f32.mxu0 %v4003
  %5733 = vmatmul.mubr.f32.gmra.mrb[0].mxu0 %v4002
  %v5734 = vpop.f32.mrb[0].mxu0
  %v5735 = vadd.f32 %v5635, %v5734
  %v5736 = vpop.f32.mrb[0].mxu0
  %5737 = vmatprep.mubr.f32.mxu0 %v4019
  %5738 = vmatmul.mubr.f32.gmra.mrb[0].mxu0 %v4018
  %v5739 = vpop.f32.mrb[0].mxu0
  %v5740 = vadd.f32 %v5640, %v5739
  %v5741 = vpop.f32.mrb[0].mxu0
  %5742 = vmatprep.mubr.f32.mxu0 %v4035
  %5743 = vmatmul.mubr.f32.gmra.mrb[0].mxu0 %v4034
  %v5744 = vpop.f32.mrb[0].mxu0
  %v5745 = vadd.f32 %v5645, %v5744
  %v5746 = vpop.f32.mrb[0].mxu0
  %5747 = vdwg.mxu0
  %5748 = vmatprep.subr.mxu0 0.0
  %5749 = vmatpush1.msra.mxu0 %v1055
  %5750 = vmatprep.subr.mxu0 0.0
  %5751 = vmatpush1.msra.mxu0 %v1056
  %5752 = vmatprep.subr.mxu0 0.0
  %5753 = vmatpush1.msra.mxu0 %v1057
  %5754 = vmatprep.subr.mxu0 0.0
  %5755 = vmatpush1.msra.mxu0 %v1058
  %5756 = vmatprep.subr.mxu0 0.0
  %5757 = vmatpush1.msra.mxu0 %v1059
  %5758 = vmatprep.subr.mxu0 0.0
  %5759 = vmatpush1.msra.mxu0 %v1060
  %5760 = vmatprep.subr.mxu0 0.0
  %5761 = vmatpush1.msra.mxu0 %v1061
  %5762 = vmatprep.subr.mxu0 0.0
  %5763 = vmatpush1.msra.mxu0 %v1062
  %5764 = vmatprep.subr.mxu0 0.0
  %5765 = vmatpush1.msra.mxu0 %v1063
  %5766 = vmatprep.subr.mxu0 0.0
  %5767 = vmatpush1.msra.mxu0 %v1064
  %5768 = vmatprep.subr.mxu0 0.0
  %5769 = vmatpush1.msra.mxu0 %v1065
  %5770 = vmatprep.subr.mxu0 0.0
  %5771 = vmatpush1.msra.mxu0 %v1066
  %5772 = vmatprep.subr.mxu0 0.0
  %5773 = vmatpush1.msra.mxu0 %v1067
  %5774 = vmatprep.subr.mxu0 0.0
  %5775 = vmatpush1.msra.mxu0 %v1068
  %5776 = vmatprep.subr.mxu0 0.0
  %5777 = vmatpush1.msra.mxu0 %v1069
  %5778 = vmatprep.subr.mxu0 0.0
  %5779 = vmatpush1.msra.mxu0 %v1070
  %5780 = vmatprep.subr.mxu0 0.0
  %5781 = vmatpush1.msra.mxu0 %v1071
  %5782 = vmatprep.subr.mxu0 0.0
  %5783 = vmatpush1.msra.mxu0 %v1072
  %5784 = vmatprep.subr.mxu0 0.0
  %5785 = vmatpush1.msra.mxu0 %v1073
  %5786 = vmatprep.subr.mxu0 0.0
  %5787 = vmatpush1.msra.mxu0 %v1074
  %5788 = vmatprep.subr.mxu0 0.0
  %5789 = vmatpush1.msra.mxu0 %v1075
  %5790 = vmatprep.subr.mxu0 0.0
  %5791 = vmatpush1.msra.mxu0 %v1076
  %5792 = vmatprep.subr.mxu0 0.0
  %5793 = vmatpush1.msra.mxu0 %v1077
  %5794 = vmatprep.subr.mxu0 0.0
  %5795 = vmatpush1.msra.mxu0 %v1078
  %5796 = vmatprep.subr.mxu0 0.0
  %5797 = vmatpush1.msra.mxu0 %v1079
  %5798 = vmatprep.subr.mxu0 0.0
  %5799 = vmatpush1.msra.mxu0 %v1080
  %5800 = vmatprep.subr.mxu0 0.0
  %5801 = vmatpush1.msra.mxu0 %v1081
  %5802 = vmatprep.subr.mxu0 0.0
  %5803 = vmatpush1.msra.mxu0 %v1082
  %5804 = vmatprep.subr.mxu0 0.0
  %5805 = vmatpush1.msra.mxu0 %v1083
  %5806 = vmatprep.subr.mxu0 0.0
  %5807 = vmatpush1.msra.mxu0 %v1084
  %5808 = vmatprep.subr.mxu0 0.0
  %5809 = vmatpush1.msra.mxu0 %v1085
  %5810 = vmatprep.subr.mxu0 0.0
  %5811 = vmatpush1.msra.mxu0 %v1086
  %5812 = vmatprep.mubr.f32.mxu0 %v3925
  %5813 = vmatmul.mubr.f32.gmra.mrb[0].mxu0 %v3924
  %v5814 = vpop.f32.mrb[0].mxu0
  %v5815 = vadd.f32 0.0, %v5814
  %v5816 = vpop.f32.mrb[0].mxu0
  %5817 = vmatprep.mubr.f32.mxu0 %v3941
  %5818 = vmatmul.mubr.f32.gmra.mrb[0].mxu0 %v3940
  %v5819 = vpop.f32.mrb[0].mxu0
  %v5820 = vadd.f32 0.0, %v5819
  %v5821 = vpop.f32.mrb[0].mxu0
  %5822 = vmatprep.mubr.f32.mxu0 %v3957
  %5823 = vmatmul.mubr.f32.gmra.mrb[0].mxu0 %v3956
  %v5824 = vpop.f32.mrb[0].mxu0
  %v5825 = vadd.f32 0.0, %v5824
  %v5826 = vpop.f32.mrb[0].mxu0
  %5827 = vmatprep.mubr.f32.mxu0 %v3973
  %5828 = vmatmul.mubr.f32.gmra.mrb[0].mxu0 %v3972
  %v5829 = vpop.f32.mrb[0].mxu0
  %v5830 = vadd.f32 0.0, %v5829
  %v5831 = vpop.f32.mrb[0].mxu0
  %5832 = vmatprep.mubr.f32.mxu0 %v3989
  %5833 = vmatmul.mubr.f32.gmra.mrb[0].mxu0 %v3988
  %v5834 = vpop.f32.mrb[0].mxu0
  %v5835 = vadd.f32 0.0, %v5834
  %v5836 = vpop.f32.mrb[0].mxu0
  %5837 = vmatprep.mubr.f32.mxu0 %v4005
  %5838 = vmatmul.mubr.f32.gmra.mrb[0].mxu0 %v4004
  %v5839 = vpop.f32.mrb[0].mxu0
  %v5840 = vadd.f32 0.0, %v5839
  %v5841 = vpop.f32.mrb[0].mxu0
  %5842 = vmatprep.mubr.f32.mxu0 %v4021
  %5843 = vmatmul.mubr.f32.gmra.mrb[0].mxu0 %v4020
  %v5844 = vpop.f32.mrb[0].mxu0
  %v5845 = vadd.f32 0.0, %v5844
  %v5846 = vpop.f32.mrb[0].mxu0
  %5847 = vdwg.mxu0
  %5848 = vmatprep.subr.mxu0 0.0
  %5849 = vmatpush1.msra.mxu0 %v1087
  %5850 = vmatprep.subr.mxu0 0.0
  %5851 = vmatpush1.msra.mxu0 %v1088
  %5852 = vmatprep.subr.mxu0 0.0
  %5853 = vmatpush1.msra.mxu0 %v1089
  %5854 = vmatprep.subr.mxu0 0.0
  %5855 = vmatpush1.msra.mxu0 %v1090
  %5856 = vmatprep.subr.mxu0 0.0
  %5857 = vmatpush1.msra.mxu0 %v1091
  %5858 = vmatprep.subr.mxu0 0.0
  %5859 = vmatpush1.msra.mxu0 %v1092
  %5860 = vmatprep.subr.mxu0 0.0
  %5861 = vmatpush1.msra.mxu0 %v1093
  %5862 = vmatprep.subr.mxu0 0.0
  %5863 = vmatpush1.msra.mxu0 %v1094
  %5864 = vmatprep.subr.mxu0 0.0
  %5865 = vmatpush1.msra.mxu0 %v1095
  %5866 = vmatprep.subr.mxu0 0.0
  %5867 = vmatpush1.msra.mxu0 %v1096
  %5868 = vmatprep.subr.mxu0 0.0
  %5869 = vmatpush1.msra.mxu0 %v1097
  %5870 = vmatprep.subr.mxu0 0.0
  %5871 = vmatpush1.msra.mxu0 %v1098
  %5872 = vmatprep.subr.mxu0 0.0
  %5873 = vmatpush1.msra.mxu0 %v1099
  %5874 = vmatprep.subr.mxu0 0.0
  %5875 = vmatpush1.msra.mxu0 %v1100
  %5876 = vmatprep.subr.mxu0 0.0
  %5877 = vmatpush1.msra.mxu0 %v1101
  %5878 = vmatprep.subr.mxu0 0.0
  %5879 = vmatpush1.msra.mxu0 %v1102
  %5880 = vmatprep.subr.mxu0 0.0
  %5881 = vmatpush1.msra.mxu0 %v1103
  %5882 = vmatprep.subr.mxu0 0.0
  %5883 = vmatpush1.msra.mxu0 %v1104
  %5884 = vmatprep.subr.mxu0 0.0
  %5885 = vmatpush1.msra.mxu0 %v1105
  %5886 = vmatprep.subr.mxu0 0.0
  %5887 = vmatpush1.msra.mxu0 %v1106
  %5888 = vmatprep.subr.mxu0 0.0
  %5889 = vmatpush1.msra.mxu0 %v1107
  %5890 = vmatprep.subr.mxu0 0.0
  %5891 = vmatpush1.msra.mxu0 %v1108
  %5892 = vmatprep.subr.mxu0 0.0
  %5893 = vmatpush1.msra.mxu0 %v1109
  %5894 = vmatprep.subr.mxu0 0.0
  %5895 = vmatpush1.msra.mxu0 %v1110
  %5896 = vmatprep.subr.mxu0 0.0
  %5897 = vmatpush1.msra.mxu0 %v1111
  %5898 = vmatprep.subr.mxu0 0.0
  %5899 = vmatpush1.msra.mxu0 %v1112
  %5900 = vmatprep.subr.mxu0 0.0
  %5901 = vmatpush1.msra.mxu0 %v1113
  %5902 = vmatprep.subr.mxu0 0.0
  %5903 = vmatpush1.msra.mxu0 %v1114
  %5904 = vmatprep.subr.mxu0 0.0
  %5905 = vmatpush1.msra.mxu0 %v1115
  %5906 = vmatprep.subr.mxu0 0.0
  %5907 = vmatpush1.msra.mxu0 %v1116
  %5908 = vmatprep.subr.mxu0 0.0
  %5909 = vmatpush1.msra.mxu0 %v1117
  %5910 = vmatprep.subr.mxu0 0.0
  %5911 = vmatpush1.msra.mxu0 %v1118
  %5912 = vmatprep.mubr.f32.mxu0 %v3927
  %5913 = vmatmul.mubr.f32.gmra.mrb[0].mxu0 %v3926
  %v5914 = vpop.f32.mrb[0].mxu0
  %v5915 = vadd.f32 %v5815, %v5914
  %v5916 = vpop.f32.mrb[0].mxu0
  %5917 = vmatprep.mubr.f32.mxu0 %v3943
  %5918 = vmatmul.mubr.f32.gmra.mrb[0].mxu0 %v3942
  %v5919 = vpop.f32.mrb[0].mxu0
  %v5920 = vadd.f32 %v5820, %v5919
  %v5921 = vpop.f32.mrb[0].mxu0
  %5922 = vmatprep.mubr.f32.mxu0 %v3959
  %5923 = vmatmul.mubr.f32.gmra.mrb[0].mxu0 %v3958
  %v5924 = vpop.f32.mrb[0].mxu0
  %v5925 = vadd.f32 %v5825, %v5924
  %v5926 = vpop.f32.mrb[0].mxu0
  %5927 = vmatprep.mubr.f32.mxu0 %v3975
  %5928 = vmatmul.mubr.f32.gmra.mrb[0].mxu0 %v3974
  %v5929 = vpop.f32.mrb[0].mxu0
  %v5930 = vadd.f32 %v5830, %v5929
  %v5931 = vpop.f32.mrb[0].mxu0
  %5932 = vmatprep.mubr.f32.mxu0 %v3991
  %5933 = vmatmul.mubr.f32.gmra.mrb[0].mxu0 %v3990
  %v5934 = vpop.f32.mrb[0].mxu0
  %v5935 = vadd.f32 %v5835, %v5934
  %v5936 = vpop.f32.mrb[0].mxu0
  %5937 = vmatprep.mubr.f32.mxu0 %v4007
  %5938 = vmatmul.mubr.f32.gmra.mrb[0].mxu0 %v4006
  %v5939 = vpop.f32.mrb[0].mxu0
  %v5940 = vadd.f32 %v5840, %v5939
  %v5941 = vpop.f32.mrb[0].mxu0
  %5942 = vmatprep.mubr.f32.mxu0 %v4023
  %5943 = vmatmul.mubr.f32.gmra.mrb[0].mxu0 %v4022
  %v5944 = vpop.f32.mrb[0].mxu0
  %v5945 = vadd.f32 %v5845, %v5944
  %v5946 = vpop.f32.mrb[0].mxu0
  %5947 = vdwg.mxu0
  %5948 = vmatprep.subr.mxu0 0.0
  %5949 = vmatpush1.msra.mxu0 %v1119
  %5950 = vmatprep.subr.mxu0 0.0
  %5951 = vmatpush1.msra.mxu0 %v1120
  %5952 = vmatprep.subr.mxu0 0.0
  %5953 = vmatpush1.msra.mxu0 %v1121
  %5954 = vmatprep.subr.mxu0 0.0
  %5955 = vmatpush1.msra.mxu0 %v1122
  %5956 = vmatprep.subr.mxu0 0.0
  %5957 = vmatpush1.msra.mxu0 %v1123
  %5958 = vmatprep.subr.mxu0 0.0
  %5959 = vmatpush1.msra.mxu0 %v1124
  %5960 = vmatprep.subr.mxu0 0.0
  %5961 = vmatpush1.msra.mxu0 %v1125
  %5962 = vmatprep.subr.mxu0 0.0
  %5963 = vmatpush1.msra.mxu0 %v1126
  %5964 = vmatprep.subr.mxu0 0.0
  %5965 = vmatpush1.msra.mxu0 %v1127
  %5966 = vmatprep.subr.mxu0 0.0
  %5967 = vmatpush1.msra.mxu0 %v1128
  %5968 = vmatprep.subr.mxu0 0.0
  %5969 = vmatpush1.msra.mxu0 %v1129
  %5970 = vmatprep.subr.mxu0 0.0
  %5971 = vmatpush1.msra.mxu0 %v1130
  %5972 = vmatprep.subr.mxu0 0.0
  %5973 = vmatpush1.msra.mxu0 %v1131
  %5974 = vmatprep.subr.mxu0 0.0
  %5975 = vmatpush1.msra.mxu0 %v1132
  %5976 = vmatprep.subr.mxu0 0.0
  %5977 = vmatpush1.msra.mxu0 %v1133
  %5978 = vmatprep.subr.mxu0 0.0
  %5979 = vmatpush1.msra.mxu0 %v1134
  %5980 = vmatprep.subr.mxu0 0.0
  %5981 = vmatpush1.msra.mxu0 %v1135
  %5982 = vmatprep.subr.mxu0 0.0
  %5983 = vmatpush1.msra.mxu0 %v1136
  %5984 = vmatprep.subr.mxu0 0.0
  %5985 = vmatpush1.msra.mxu0 %v1137
  %5986 = vmatprep.subr.mxu0 0.0
  %5987 = vmatpush1.msra.mxu0 %v1138
  %5988 = vmatprep.subr.mxu0 0.0
  %5989 = vmatpush1.msra.mxu0 %v1139
  %5990 = vmatprep.subr.mxu0 0.0
  %5991 = vmatpush1.msra.mxu0 %v1140
  %5992 = vmatprep.subr.mxu0 0.0
  %5993 = vmatpush1.msra.mxu0 %v1141
  %5994 = vmatprep.subr.mxu0 0.0
  %5995 = vmatpush1.msra.mxu0 %v1142
  %5996 = vmatprep.subr.mxu0 0.0
  %5997 = vmatpush1.msra.mxu0 %v1143
  %5998 = vmatprep.subr.mxu0 0.0
  %5999 = vmatpush1.msra.mxu0 %v1144
  %6000 = vmatprep.subr.mxu0 0.0
  %6001 = vmatpush1.msra.mxu0 %v1145
  %6002 = vmatprep.subr.mxu0 0.0
  %6003 = vmatpush1.msra.mxu0 %v1146
  %6004 = vmatprep.subr.mxu0 0.0
  %6005 = vmatpush1.msra.mxu0 %v1147
  %6006 = vmatprep.subr.mxu0 0.0
  %6007 = vmatpush1.msra.mxu0 %v1148
  %6008 = vmatprep.subr.mxu0 0.0
  %6009 = vmatpush1.msra.mxu0 %v1149
  %6010 = vmatprep.subr.mxu0 0.0
  %6011 = vmatpush1.msra.mxu0 %v1150
  %6012 = vmatprep.mubr.f32.mxu0 %v3929
  %6013 = vmatmul.mubr.f32.gmra.mrb[0].mxu0 %v3928
  %v6014 = vpop.f32.mrb[0].mxu0
  %v6015 = vadd.f32 %v5915, %v6014
  %v6016 = vpop.f32.mrb[0].mxu0
  %6017 = vmatprep.mubr.f32.mxu0 %v3945
  %6018 = vmatmul.mubr.f32.gmra.mrb[0].mxu0 %v3944
  %v6019 = vpop.f32.mrb[0].mxu0
  %v6020 = vadd.f32 %v5920, %v6019
  %v6021 = vpop.f32.mrb[0].mxu0
  %6022 = vmatprep.mubr.f32.mxu0 %v3961
  %6023 = vmatmul.mubr.f32.gmra.mrb[0].mxu0 %v3960
  %v6024 = vpop.f32.mrb[0].mxu0
  %v6025 = vadd.f32 %v5925, %v6024
  %v6026 = vpop.f32.mrb[0].mxu0
  %6027 = vmatprep.mubr.f32.mxu0 %v3977
  %6028 = vmatmul.mubr.f32.gmra.mrb[0].mxu0 %v3976
  %v6029 = vpop.f32.mrb[0].mxu0
  %v6030 = vadd.f32 %v5930, %v6029
  %v6031 = vpop.f32.mrb[0].mxu0
  %6032 = vmatprep.mubr.f32.mxu0 %v3993
  %6033 = vmatmul.mubr.f32.gmra.mrb[0].mxu0 %v3992
  %v6034 = vpop.f32.mrb[0].mxu0
  %v6035 = vadd.f32 %v5935, %v6034
  %v6036 = vpop.f32.mrb[0].mxu0
  %6037 = vmatprep.mubr.f32.mxu0 %v4009
  %6038 = vmatmul.mubr.f32.gmra.mrb[0].mxu0 %v4008
  %v6039 = vpop.f32.mrb[0].mxu0
  %v6040 = vadd.f32 %v5940, %v6039
  %v6041 = vpop.f32.mrb[0].mxu0
  %6042 = vmatprep.mubr.f32.mxu0 %v4025
  %6043 = vmatmul.mubr.f32.gmra.mrb[0].mxu0 %v4024
  %v6044 = vpop.f32.mrb[0].mxu0
  %v6045 = vadd.f32 %v5945, %v6044
  %v6046 = vpop.f32.mrb[0].mxu0
  %6047 = vdwg.mxu0
  %6048 = vmatprep.subr.mxu0 0.0
  %6049 = vmatpush1.msra.mxu0 %v1151
  %6050 = vmatprep.subr.mxu0 0.0
  %6051 = vmatpush1.msra.mxu0 %v1152
  %6052 = vmatprep.subr.mxu0 0.0
  %6053 = vmatpush1.msra.mxu0 %v1153
  %6054 = vmatprep.subr.mxu0 0.0
  %6055 = vmatpush1.msra.mxu0 %v1154
  %6056 = vmatprep.subr.mxu0 0.0
  %6057 = vmatpush1.msra.mxu0 %v1155
  %6058 = vmatprep.subr.mxu0 0.0
  %6059 = vmatpush1.msra.mxu0 %v1156
  %6060 = vmatprep.subr.mxu0 0.0
  %6061 = vmatpush1.msra.mxu0 %v1157
  %6062 = vmatprep.subr.mxu0 0.0
  %6063 = vmatpush1.msra.mxu0 %v1158
  %6064 = vmatprep.subr.mxu0 0.0
  %6065 = vmatpush1.msra.mxu0 %v1159
  %6066 = vmatprep.subr.mxu0 0.0
  %6067 = vmatpush1.msra.mxu0 %v1160
  %6068 = vmatprep.subr.mxu0 0.0
  %6069 = vmatpush1.msra.mxu0 %v1161
  %6070 = vmatprep.subr.mxu0 0.0
  %6071 = vmatpush1.msra.mxu0 %v1162
  %6072 = vmatprep.subr.mxu0 0.0
  %6073 = vmatpush1.msra.mxu0 %v1163
  %6074 = vmatprep.subr.mxu0 0.0
  %6075 = vmatpush1.msra.mxu0 %v1164
  %6076 = vmatprep.subr.mxu0 0.0
  %6077 = vmatpush1.msra.mxu0 %v1165
  %6078 = vmatprep.subr.mxu0 0.0
  %6079 = vmatpush1.msra.mxu0 %v1166
  %6080 = vmatprep.subr.mxu0 0.0
  %6081 = vmatpush1.msra.mxu0 %v1167
  %6082 = vmatprep.subr.mxu0 0.0
  %6083 = vmatpush1.msra.mxu0 %v1168
  %6084 = vmatprep.subr.mxu0 0.0
  %6085 = vmatpush1.msra.mxu0 %v1169
  %6086 = vmatprep.subr.mxu0 0.0
  %6087 = vmatpush1.msra.mxu0 %v1170
  %6088 = vmatprep.subr.mxu0 0.0
  %6089 = vmatpush1.msra.mxu0 %v1171
  %6090 = vmatprep.subr.mxu0 0.0
  %6091 = vmatpush1.msra.mxu0 %v1172
  %6092 = vmatprep.subr.mxu0 0.0
  %6093 = vmatpush1.msra.mxu0 %v1173
  %6094 = vmatprep.subr.mxu0 0.0
  %6095 = vmatpush1.msra.mxu0 %v1174
  %6096 = vmatprep.subr.mxu0 0.0
  %6097 = vmatpush1.msra.mxu0 %v1175
  %6098 = vmatprep.subr.mxu0 0.0
  %6099 = vmatpush1.msra.mxu0 %v1176
  %6100 = vmatprep.subr.mxu0 0.0
  %6101 = vmatpush1.msra.mxu0 %v1177
  %6102 = vmatprep.subr.mxu0 0.0
  %6103 = vmatpush1.msra.mxu0 %v1178
  %6104 = vmatprep.subr.mxu0 0.0
  %6105 = vmatpush1.msra.mxu0 %v1179
  %6106 = vmatprep.subr.mxu0 0.0
  %6107 = vmatpush1.msra.mxu0 %v1180
  %6108 = vmatprep.subr.mxu0 0.0
  %6109 = vmatpush1.msra.mxu0 %v1181
  %6110 = vmatprep.subr.mxu0 0.0
  %6111 = vmatpush1.msra.mxu0 %v1182
  %6112 = vmatprep.mubr.f32.mxu0 %v3931
  %6113 = vmatmul.mubr.f32.gmra.mrb[0].mxu0 %v3930
  %v6114 = vpop.f32.mrb[0].mxu0
  %v6115 = vadd.f32 %v6015, %v6114
  %v6116 = vpop.f32.mrb[0].mxu0
  %6117 = vmatprep.mubr.f32.mxu0 %v3947
  %6118 = vmatmul.mubr.f32.gmra.mrb[0].mxu0 %v3946
  %v6119 = vpop.f32.mrb[0].mxu0
  %v6120 = vadd.f32 %v6020, %v6119
  %v6121 = vpop.f32.mrb[0].mxu0
  %6122 = vmatprep.mubr.f32.mxu0 %v3963
  %6123 = vmatmul.mubr.f32.gmra.mrb[0].mxu0 %v3962
  %v6124 = vpop.f32.mrb[0].mxu0
  %v6125 = vadd.f32 %v6025, %v6124
  %v6126 = vpop.f32.mrb[0].mxu0
  %6127 = vmatprep.mubr.f32.mxu0 %v3979
  %6128 = vmatmul.mubr.f32.gmra.mrb[0].mxu0 %v3978
  %v6129 = vpop.f32.mrb[0].mxu0
  %v6130 = vadd.f32 %v6030, %v6129
  %v6131 = vpop.f32.mrb[0].mxu0
  %6132 = vmatprep.mubr.f32.mxu0 %v3995
  %6133 = vmatmul.mubr.f32.gmra.mrb[0].mxu0 %v3994
  %v6134 = vpop.f32.mrb[0].mxu0
  %v6135 = vadd.f32 %v6035, %v6134
  %v6136 = vpop.f32.mrb[0].mxu0
  %6137 = vmatprep.mubr.f32.mxu0 %v4011
  %6138 = vmatmul.mubr.f32.gmra.mrb[0].mxu0 %v4010
  %v6139 = vpop.f32.mrb[0].mxu0
  %v6140 = vadd.f32 %v6040, %v6139
  %v6141 = vpop.f32.mrb[0].mxu0
  %6142 = vmatprep.mubr.f32.mxu0 %v4027
  %6143 = vmatmul.mubr.f32.gmra.mrb[0].mxu0 %v4026
  %v6144 = vpop.f32.mrb[0].mxu0
  %v6145 = vadd.f32 %v6045, %v6144
  %v6146 = vpop.f32.mrb[0].mxu0
  %6147 = vdwg.mxu0
  %6148 = vmatprep.subr.mxu0 0.0
  %6149 = vmatpush1.msra.mxu0 %v1183
  %6150 = vmatprep.subr.mxu0 0.0
  %6151 = vmatpush1.msra.mxu0 %v1184
  %6152 = vmatprep.subr.mxu0 0.0
  %6153 = vmatpush1.msra.mxu0 %v1185
  %6154 = vmatprep.subr.mxu0 0.0
  %6155 = vmatpush1.msra.mxu0 %v1186
  %6156 = vmatprep.subr.mxu0 0.0
  %6157 = vmatpush1.msra.mxu0 %v1187
  %6158 = vmatprep.subr.mxu0 0.0
  %6159 = vmatpush1.msra.mxu0 %v1188
  %6160 = vmatprep.subr.mxu0 0.0
  %6161 = vmatpush1.msra.mxu0 %v1189
  %6162 = vmatprep.subr.mxu0 0.0
  %6163 = vmatpush1.msra.mxu0 %v1190
  %6164 = vmatprep.subr.mxu0 0.0
  %6165 = vmatpush1.msra.mxu0 %v1191
  %6166 = vmatprep.subr.mxu0 0.0
  %6167 = vmatpush1.msra.mxu0 %v1192
  %6168 = vmatprep.subr.mxu0 0.0
  %6169 = vmatpush1.msra.mxu0 %v1193
  %6170 = vmatprep.subr.mxu0 0.0
  %6171 = vmatpush1.msra.mxu0 %v1194
  %6172 = vmatprep.subr.mxu0 0.0
  %6173 = vmatpush1.msra.mxu0 %v1195
  %6174 = vmatprep.subr.mxu0 0.0
  %6175 = vmatpush1.msra.mxu0 %v1196
  %6176 = vmatprep.subr.mxu0 0.0
  %6177 = vmatpush1.msra.mxu0 %v1197
  %6178 = vmatprep.subr.mxu0 0.0
  %6179 = vmatpush1.msra.mxu0 %v1198
  %6180 = vmatprep.subr.mxu0 0.0
  %6181 = vmatpush1.msra.mxu0 %v1199
  %6182 = vmatprep.subr.mxu0 0.0
  %6183 = vmatpush1.msra.mxu0 %v1200
  %6184 = vmatprep.subr.mxu0 0.0
  %6185 = vmatpush1.msra.mxu0 %v1201
  %6186 = vmatprep.subr.mxu0 0.0
  %6187 = vmatpush1.msra.mxu0 %v1202
  %6188 = vmatprep.subr.mxu0 0.0
  %6189 = vmatpush1.msra.mxu0 %v1203
  %6190 = vmatprep.subr.mxu0 0.0
  %6191 = vmatpush1.msra.mxu0 %v1204
  %6192 = vmatprep.subr.mxu0 0.0
  %6193 = vmatpush1.msra.mxu0 %v1205
  %6194 = vmatprep.subr.mxu0 0.0
  %6195 = vmatpush1.msra.mxu0 %v1206
  %6196 = vmatprep.subr.mxu0 0.0
  %6197 = vmatpush1.msra.mxu0 %v1207
  %6198 = vmatprep.subr.mxu0 0.0
  %6199 = vmatpush1.msra.mxu0 %v1208
  %6200 = vmatprep.subr.mxu0 0.0
  %6201 = vmatpush1.msra.mxu0 %v1209
  %6202 = vmatprep.subr.mxu0 0.0
  %6203 = vmatpush1.msra.mxu0 %v1210
  %6204 = vmatprep.subr.mxu0 0.0
  %6205 = vmatpush1.msra.mxu0 %v1211
  %6206 = vmatprep.subr.mxu0 0.0
  %6207 = vmatpush1.msra.mxu0 %v1212
  %6208 = vmatprep.subr.mxu0 0.0
  %6209 = vmatpush1.msra.mxu0 %v1213
  %6210 = vmatprep.subr.mxu0 0.0
  %6211 = vmatpush1.msra.mxu0 %v1214
  %6212 = vmatprep.mubr.f32.mxu0 %v3933
  %6213 = vmatmul.mubr.f32.gmra.mrb[0].mxu0 %v3932
  %v6214 = vpop.f32.mrb[0].mxu0
  %v6215 = vadd.f32 %v6115, %v6214
  %v6216 = vpop.f32.mrb[0].mxu0
  %6217 = vmatprep.mubr.f32.mxu0 %v3949
  %6218 = vmatmul.mubr.f32.gmra.mrb[0].mxu0 %v3948
  %v6219 = vpop.f32.mrb[0].mxu0
  %v6220 = vadd.f32 %v6120, %v6219
  %v6221 = vpop.f32.mrb[0].mxu0
  %6222 = vmatprep.mubr.f32.mxu0 %v3965
  %6223 = vmatmul.mubr.f32.gmra.mrb[0].mxu0 %v3964
  %v6224 = vpop.f32.mrb[0].mxu0
  %v6225 = vadd.f32 %v6125, %v6224
  %v6226 = vpop.f32.mrb[0].mxu0
  %6227 = vmatprep.mubr.f32.mxu0 %v3981
  %6228 = vmatmul.mubr.f32.gmra.mrb[0].mxu0 %v3980
  %v6229 = vpop.f32.mrb[0].mxu0
  %v6230 = vadd.f32 %v6130, %v6229
  %v6231 = vpop.f32.mrb[0].mxu0
  %6232 = vmatprep.mubr.f32.mxu0 %v3997
  %6233 = vmatmul.mubr.f32.gmra.mrb[0].mxu0 %v3996
  %v6234 = vpop.f32.mrb[0].mxu0
  %v6235 = vadd.f32 %v6135, %v6234
  %v6236 = vpop.f32.mrb[0].mxu0
  %6237 = vmatprep.mubr.f32.mxu0 %v4013
  %6238 = vmatmul.mubr.f32.gmra.mrb[0].mxu0 %v4012
  %v6239 = vpop.f32.mrb[0].mxu0
  %v6240 = vadd.f32 %v6140, %v6239
  %v6241 = vpop.f32.mrb[0].mxu0
  %6242 = vmatprep.mubr.f32.mxu0 %v4029
  %6243 = vmatmul.mubr.f32.gmra.mrb[0].mxu0 %v4028
  %v6244 = vpop.f32.mrb[0].mxu0
  %v6245 = vadd.f32 %v6145, %v6244
  %v6246 = vpop.f32.mrb[0].mxu0
  %6247 = vdwg.mxu0
  %6248 = vmatprep.subr.mxu0 0.0
  %6249 = vmatpush1.msra.mxu0 %v1215
  %6250 = vmatprep.subr.mxu0 0.0
  %6251 = vmatpush1.msra.mxu0 %v1216
  %6252 = vmatprep.subr.mxu0 0.0
  %6253 = vmatpush1.msra.mxu0 %v1217
  %6254 = vmatprep.subr.mxu0 0.0
  %6255 = vmatpush1.msra.mxu0 %v1218
  %6256 = vmatprep.subr.mxu0 0.0
  %6257 = vmatpush1.msra.mxu0 %v1219
  %6258 = vmatprep.subr.mxu0 0.0
  %6259 = vmatpush1.msra.mxu0 %v1220
  %6260 = vmatprep.subr.mxu0 0.0
  %6261 = vmatpush1.msra.mxu0 %v1221
  %6262 = vmatprep.subr.mxu0 0.0
  %6263 = vmatpush1.msra.mxu0 %v1222
  %6264 = vmatprep.subr.mxu0 0.0
  %6265 = vmatpush1.msra.mxu0 %v1223
  %6266 = vmatprep.subr.mxu0 0.0
  %6267 = vmatpush1.msra.mxu0 %v1224
  %6268 = vmatprep.subr.mxu0 0.0
  %6269 = vmatpush1.msra.mxu0 %v1225
  %6270 = vmatprep.subr.mxu0 0.0
  %6271 = vmatpush1.msra.mxu0 %v1226
  %6272 = vmatprep.subr.mxu0 0.0
  %6273 = vmatpush1.msra.mxu0 %v1227
  %6274 = vmatprep.subr.mxu0 0.0
  %6275 = vmatpush1.msra.mxu0 %v1228
  %6276 = vmatprep.subr.mxu0 0.0
  %6277 = vmatpush1.msra.mxu0 %v1229
  %6278 = vmatprep.subr.mxu0 0.0
  %6279 = vmatpush1.msra.mxu0 %v1230
  %6280 = vmatprep.subr.mxu0 0.0
  %6281 = vmatpush1.msra.mxu0 %v1231
  %6282 = vmatprep.subr.mxu0 0.0
  %6283 = vmatpush1.msra.mxu0 %v1232
  %6284 = vmatprep.subr.mxu0 0.0
  %6285 = vmatpush1.msra.mxu0 %v1233
  %6286 = vmatprep.subr.mxu0 0.0
  %6287 = vmatpush1.msra.mxu0 %v1234
  %6288 = vmatprep.subr.mxu0 0.0
  %6289 = vmatpush1.msra.mxu0 %v1235
  %6290 = vmatprep.subr.mxu0 0.0
  %6291 = vmatpush1.msra.mxu0 %v1236
  %6292 = vmatprep.subr.mxu0 0.0
  %6293 = vmatpush1.msra.mxu0 %v1237
  %6294 = vmatprep.subr.mxu0 0.0
  %6295 = vmatpush1.msra.mxu0 %v1238
  %6296 = vmatprep.subr.mxu0 0.0
  %6297 = vmatpush1.msra.mxu0 %v1239
  %6298 = vmatprep.subr.mxu0 0.0
  %6299 = vmatpush1.msra.mxu0 %v1240
  %6300 = vmatprep.subr.mxu0 0.0
  %6301 = vmatpush1.msra.mxu0 %v1241
  %6302 = vmatprep.subr.mxu0 0.0
  %6303 = vmatpush1.msra.mxu0 %v1242
  %6304 = vmatprep.subr.mxu0 0.0
  %6305 = vmatpush1.msra.mxu0 %v1243
  %6306 = vmatprep.subr.mxu0 0.0
  %6307 = vmatpush1.msra.mxu0 %v1244
  %6308 = vmatprep.subr.mxu0 0.0
  %6309 = vmatpush1.msra.mxu0 %v1245
  %6310 = vmatprep.subr.mxu0 0.0
  %6311 = vmatpush1.msra.mxu0 %v1246
  %6312 = vmatprep.mubr.f32.mxu0 %v3935
  %6313 = vmatmul.mubr.f32.gmra.mrb[0].mxu0 %v3934
  %v6314 = vpop.f32.mrb[0].mxu0
  %v6315 = vadd.f32 %v6215, %v6314
  %v6316 = vpop.f32.mrb[0].mxu0
  %6317 = vmatprep.mubr.f32.mxu0 %v3951
  %6318 = vmatmul.mubr.f32.gmra.mrb[0].mxu0 %v3950
  %v6319 = vpop.f32.mrb[0].mxu0
  %v6320 = vadd.f32 %v6220, %v6319
  %v6321 = vpop.f32.mrb[0].mxu0
  %6322 = vmatprep.mubr.f32.mxu0 %v3967
  %6323 = vmatmul.mubr.f32.gmra.mrb[0].mxu0 %v3966
  %v6324 = vpop.f32.mrb[0].mxu0
  %v6325 = vadd.f32 %v6225, %v6324
  %v6326 = vpop.f32.mrb[0].mxu0
  %6327 = vmatprep.mubr.f32.mxu0 %v3983
  %6328 = vmatmul.mubr.f32.gmra.mrb[0].mxu0 %v3982
  %v6329 = vpop.f32.mrb[0].mxu0
  %v6330 = vadd.f32 %v6230, %v6329
  %v6331 = vpop.f32.mrb[0].mxu0
  %6332 = vmatprep.mubr.f32.mxu0 %v3999
  %6333 = vmatmul.mubr.f32.gmra.mrb[0].mxu0 %v3998
  %v6334 = vpop.f32.mrb[0].mxu0
  %v6335 = vadd.f32 %v6235, %v6334
  %v6336 = vpop.f32.mrb[0].mxu0
  %6337 = vmatprep.mubr.f32.mxu0 %v4015
  %6338 = vmatmul.mubr.f32.gmra.mrb[0].mxu0 %v4014
  %v6339 = vpop.f32.mrb[0].mxu0
  %v6340 = vadd.f32 %v6240, %v6339
  %v6341 = vpop.f32.mrb[0].mxu0
  %6342 = vmatprep.mubr.f32.mxu0 %v4031
  %6343 = vmatmul.mubr.f32.gmra.mrb[0].mxu0 %v4030
  %v6344 = vpop.f32.mrb[0].mxu0
  %v6345 = vadd.f32 %v6245, %v6344
  %v6346 = vpop.f32.mrb[0].mxu0
  %6347 = vdwg.mxu0
  %6348 = vmatprep.subr.mxu0 0.0
  %6349 = vmatpush1.msra.mxu0 %v1247
  %6350 = vmatprep.subr.mxu0 0.0
  %6351 = vmatpush1.msra.mxu0 %v1248
  %6352 = vmatprep.subr.mxu0 0.0
  %6353 = vmatpush1.msra.mxu0 %v1249
  %6354 = vmatprep.subr.mxu0 0.0
  %6355 = vmatpush1.msra.mxu0 %v1250
  %6356 = vmatprep.subr.mxu0 0.0
  %6357 = vmatpush1.msra.mxu0 %v1251
  %6358 = vmatprep.subr.mxu0 0.0
  %6359 = vmatpush1.msra.mxu0 %v1252
  %6360 = vmatprep.subr.mxu0 0.0
  %6361 = vmatpush1.msra.mxu0 %v1253
  %6362 = vmatprep.subr.mxu0 0.0
  %6363 = vmatpush1.msra.mxu0 %v1254
  %6364 = vmatprep.subr.mxu0 0.0
  %6365 = vmatpush1.msra.mxu0 %v1255
  %6366 = vmatprep.subr.mxu0 0.0
  %6367 = vmatpush1.msra.mxu0 %v1256
  %6368 = vmatprep.subr.mxu0 0.0
  %6369 = vmatpush1.msra.mxu0 %v1257
  %6370 = vmatprep.subr.mxu0 0.0
  %6371 = vmatpush1.msra.mxu0 %v1258
  %6372 = vmatprep.subr.mxu0 0.0
  %6373 = vmatpush1.msra.mxu0 %v1259
  %6374 = vmatprep.subr.mxu0 0.0
  %6375 = vmatpush1.msra.mxu0 %v1260
  %6376 = vmatprep.subr.mxu0 0.0
  %6377 = vmatpush1.msra.mxu0 %v1261
  %6378 = vmatprep.subr.mxu0 0.0
  %6379 = vmatpush1.msra.mxu0 %v1262
  %6380 = vmatprep.subr.mxu0 0.0
  %6381 = vmatpush1.msra.mxu0 %v1263
  %6382 = vmatprep.subr.mxu0 0.0
  %6383 = vmatpush1.msra.mxu0 %v1264
  %6384 = vmatprep.subr.mxu0 0.0
  %6385 = vmatpush1.msra.mxu0 %v1265
  %6386 = vmatprep.subr.mxu0 0.0
  %6387 = vmatpush1.msra.mxu0 %v1266
  %6388 = vmatprep.subr.mxu0 0.0
  %6389 = vmatpush1.msra.mxu0 %v1267
  %6390 = vmatprep.subr.mxu0 0.0
  %6391 = vmatpush1.msra.mxu0 %v1268
  %6392 = vmatprep.subr.mxu0 0.0
  %6393 = vmatpush1.msra.mxu0 %v1269
  %6394 = vmatprep.subr.mxu0 0.0
  %6395 = vmatpush1.msra.mxu0 %v1270
  %6396 = vmatprep.subr.mxu0 0.0
  %6397 = vmatpush1.msra.mxu0 %v1271
  %6398 = vmatprep.subr.mxu0 0.0
  %6399 = vmatpush1.msra.mxu0 %v1272
  %6400 = vmatprep.subr.mxu0 0.0
  %6401 = vmatpush1.msra.mxu0 %v1273
  %6402 = vmatprep.subr.mxu0 0.0
  %6403 = vmatpush1.msra.mxu0 %v1274
  %6404 = vmatprep.subr.mxu0 0.0
  %6405 = vmatpush1.msra.mxu0 %v1275
  %6406 = vmatprep.subr.mxu0 0.0
  %6407 = vmatpush1.msra.mxu0 %v1276
  %6408 = vmatprep.subr.mxu0 0.0
  %6409 = vmatpush1.msra.mxu0 %v1277
  %6410 = vmatprep.subr.mxu0 0.0
  %6411 = vmatpush1.msra.mxu0 %v1278
  %6412 = vmatprep.mubr.f32.mxu0 %v3937
  %6413 = vmatmul.mubr.f32.gmra.mrb[0].mxu0 %v3936
  %v6414 = vpop.f32.mrb[0].mxu0
  %v6415 = vadd.f32 %v6315, %v6414
  %v6416 = vpop.f32.mrb[0].mxu0
  %6417 = vmatprep.mubr.f32.mxu0 %v3953
  %6418 = vmatmul.mubr.f32.gmra.mrb[0].mxu0 %v3952
  %v6419 = vpop.f32.mrb[0].mxu0
  %v6420 = vadd.f32 %v6320, %v6419
  %v6421 = vpop.f32.mrb[0].mxu0
  %6422 = vmatprep.mubr.f32.mxu0 %v3969
  %6423 = vmatmul.mubr.f32.gmra.mrb[0].mxu0 %v3968
  %v6424 = vpop.f32.mrb[0].mxu0
  %v6425 = vadd.f32 %v6325, %v6424
  %v6426 = vpop.f32.mrb[0].mxu0
  %6427 = vmatprep.mubr.f32.mxu0 %v3985
  %6428 = vmatmul.mubr.f32.gmra.mrb[0].mxu0 %v3984
  %v6429 = vpop.f32.mrb[0].mxu0
  %v6430 = vadd.f32 %v6330, %v6429
  %v6431 = vpop.f32.mrb[0].mxu0
  %6432 = vmatprep.mubr.f32.mxu0 %v4001
  %6433 = vmatmul.mubr.f32.gmra.mrb[0].mxu0 %v4000
  %v6434 = vpop.f32.mrb[0].mxu0
  %v6435 = vadd.f32 %v6335, %v6434
  %v6436 = vpop.f32.mrb[0].mxu0
  %6437 = vmatprep.mubr.f32.mxu0 %v4017
  %6438 = vmatmul.mubr.f32.gmra.mrb[0].mxu0 %v4016
  %v6439 = vpop.f32.mrb[0].mxu0
  %v6440 = vadd.f32 %v6340, %v6439
  %v6441 = vpop.f32.mrb[0].mxu0
  %6442 = vmatprep.mubr.f32.mxu0 %v4033
  %6443 = vmatmul.mubr.f32.gmra.mrb[0].mxu0 %v4032
  %v6444 = vpop.f32.mrb[0].mxu0
  %v6445 = vadd.f32 %v6345, %v6444
  %v6446 = vpop.f32.mrb[0].mxu0
  %6447 = vdwg.mxu0
  %6448 = vmatprep.subr.mxu0 0.0
  %6449 = vmatpush1.msra.mxu0 %v1279
  %6450 = vmatprep.subr.mxu0 0.0
  %6451 = vmatpush1.msra.mxu0 %v1280
  %6452 = vmatprep.subr.mxu0 0.0
  %6453 = vmatpush1.msra.mxu0 %v1281
  %6454 = vmatprep.subr.mxu0 0.0
  %6455 = vmatpush1.msra.mxu0 %v1282
  %6456 = vmatprep.subr.mxu0 0.0
  %6457 = vmatpush1.msra.mxu0 %v1283
  %6458 = vmatprep.subr.mxu0 0.0
  %6459 = vmatpush1.msra.mxu0 %v1284
  %6460 = vmatprep.subr.mxu0 0.0
  %6461 = vmatpush1.msra.mxu0 %v1285
  %6462 = vmatprep.subr.mxu0 0.0
  %6463 = vmatpush1.msra.mxu0 %v1286
  %6464 = vmatprep.subr.mxu0 0.0
  %6465 = vmatpush1.msra.mxu0 %v1287
  %6466 = vmatprep.subr.mxu0 0.0
  %6467 = vmatpush1.msra.mxu0 %v1288
  %6468 = vmatprep.subr.mxu0 0.0
  %6469 = vmatpush1.msra.mxu0 %v1289
  %6470 = vmatprep.subr.mxu0 0.0
  %6471 = vmatpush1.msra.mxu0 %v1290
  %6472 = vmatprep.subr.mxu0 0.0
  %6473 = vmatpush1.msra.mxu0 %v1291
  %6474 = vmatprep.subr.mxu0 0.0
  %6475 = vmatpush1.msra.mxu0 %v1292
  %6476 = vmatprep.subr.mxu0 0.0
  %6477 = vmatpush1.msra.mxu0 %v1293
  %6478 = vmatprep.subr.mxu0 0.0
  %6479 = vmatpush1.msra.mxu0 %v1294
  %6480 = vmatprep.subr.mxu0 0.0
  %6481 = vmatpush1.msra.mxu0 %v1295
  %6482 = vmatprep.subr.mxu0 0.0
  %6483 = vmatpush1.msra.mxu0 %v1296
  %6484 = vmatprep.subr.mxu0 0.0
  %6485 = vmatpush1.msra.mxu0 %v1297
  %6486 = vmatprep.subr.mxu0 0.0
  %6487 = vmatpush1.msra.mxu0 %v1298
  %6488 = vmatprep.subr.mxu0 0.0
  %6489 = vmatpush1.msra.mxu0 %v1299
  %6490 = vmatprep.subr.mxu0 0.0
  %6491 = vmatpush1.msra.mxu0 %v1300
  %6492 = vmatprep.subr.mxu0 0.0
  %6493 = vmatpush1.msra.mxu0 %v1301
  %6494 = vmatprep.subr.mxu0 0.0
  %6495 = vmatpush1.msra.mxu0 %v1302
  %6496 = vmatprep.subr.mxu0 0.0
  %6497 = vmatpush1.msra.mxu0 %v1303
  %6498 = vmatprep.subr.mxu0 0.0
  %6499 = vmatpush1.msra.mxu0 %v1304
  %6500 = vmatprep.subr.mxu0 0.0
  %6501 = vmatpush1.msra.mxu0 %v1305
  %6502 = vmatprep.subr.mxu0 0.0
  %6503 = vmatpush1.msra.mxu0 %v1306
  %6504 = vmatprep.subr.mxu0 0.0
  %6505 = vmatpush1.msra.mxu0 %v1307
  %6506 = vmatprep.subr.mxu0 0.0
  %6507 = vmatpush1.msra.mxu0 %v1308
  %6508 = vmatprep.subr.mxu0 0.0
  %6509 = vmatpush1.msra.mxu0 %v1309
  %6510 = vmatprep.subr.mxu0 0.0
  %6511 = vmatpush1.msra.mxu0 %v1310
  %6512 = vmatprep.mubr.f32.mxu0 %v3939
  %6513 = vmatmul.mubr.f32.gmra.mrb[0].mxu0 %v3938
  %v6514 = vpop.f32.mrb[0].mxu0
  %v6515 = vadd.f32 %v6415, %v6514
  %v6516 = vpop.f32.mrb[0].mxu0
  %6517 = vmatprep.mubr.f32.mxu0 %v3955
  %6518 = vmatmul.mubr.f32.gmra.mrb[0].mxu0 %v3954
  %v6519 = vpop.f32.mrb[0].mxu0
  %v6520 = vadd.f32 %v6420, %v6519
  %v6521 = vpop.f32.mrb[0].mxu0
  %6522 = vmatprep.mubr.f32.mxu0 %v3971
  %6523 = vmatmul.mubr.f32.gmra.mrb[0].mxu0 %v3970
  %v6524 = vpop.f32.mrb[0].mxu0
  %v6525 = vadd.f32 %v6425, %v6524
  %v6526 = vpop.f32.mrb[0].mxu0
  %6527 = vmatprep.mubr.f32.mxu0 %v3987
  %6528 = vmatmul.mubr.f32.gmra.mrb[0].mxu0 %v3986
  %v6529 = vpop.f32.mrb[0].mxu0
  %v6530 = vadd.f32 %v6430, %v6529
  %v6531 = vpop.f32.mrb[0].mxu0
  %6532 = vmatprep.mubr.f32.mxu0 %v4003
  %6533 = vmatmul.mubr.f32.gmra.mrb[0].mxu0 %v4002
  %v6534 = vpop.f32.mrb[0].mxu0
  %v6535 = vadd.f32 %v6435, %v6534
  %v6536 = vpop.f32.mrb[0].mxu0
  %6537 = vmatprep.mubr.f32.mxu0 %v4019
  %6538 = vmatmul.mubr.f32.gmra.mrb[0].mxu0 %v4018
  %v6539 = vpop.f32.mrb[0].mxu0
  %v6540 = vadd.f32 %v6440, %v6539
  %v6541 = vpop.f32.mrb[0].mxu0
  %6542 = vmatprep.mubr.f32.mxu0 %v4035
  %6543 = vmatmul.mubr.f32.gmra.mrb[0].mxu0 %v4034
  %v6544 = vpop.f32.mrb[0].mxu0
  %v6545 = vadd.f32 %v6445, %v6544
  %v6546 = vpop.f32.mrb[0].mxu0
  %6547 = vdwg.mxu0
  %v6548 = vadd.f32 %v5715, %v6515
  %v6549 = vadd.f32 %v5720, %v6520
  %v6550 = vadd.f32 %v5725, %v6525
  %v6551 = vadd.f32 %v5730, %v6530
  %v6552 = vadd.f32 %v5735, %v6535
  %v6553 = vadd.f32 %v5740, %v6540
  %v6554 = vadd.f32 %v5745, %v6545
  %v6555 = vadd.f32 %v6548, %v3722
  %v6556 = vadd.f32 %v6549, %v3722
  %v6557 = vadd.f32 %v6550, %v3722
  %v6558 = vadd.f32 %v6551, %v3722
  %v6559 = vadd.f32 %v6552, %v3722
  %v6560 = vadd.f32 %v6553, %v3722
  %v6561 = vadd.f32 %v6554, %v3722
  %v6562 = vmax.f32 %v6555, 0.0
  %v6563 = vmax.f32 %v6556, 0.0
  %v6564 = vmax.f32 %v6557, 0.0
  %v6565 = vmax.f32 %v6558, 0.0
  %v6566 = vmax.f32 %v6559, 0.0
  %v6567 = vmax.f32 %v6560, 0.0
  %v6568 = vmax.f32 %v6561, 0.0
  %s6569 = scalar_lea.vmem %s3, 56
  %6570 = vst.msk [vmem:[%s6569] sm:$0xff] %vm3738, %v6562
  %6571 = vst.msk [vmem:[%s6569 + $0x8] sm:$0xff] %vm3738, %v6563
  %6572 = vst.msk [vmem:[%s6569 + $0x10] sm:$0xff] %vm3738, %v6564
  %6573 = vst.msk [vmem:[%s6569 + $0x18] sm:$0xff] %vm3738, %v6565
  %6574 = vst.msk [vmem:[%s6569 + $0x20] sm:$0xff] %vm3738, %v6566
  %6575 = vst.msk [vmem:[%s6569 + $0x28] sm:$0xff] %vm3738, %v6567
  %6576 = vst.msk [vmem:[%s6569 + $0x30] sm:$0x1] %vm3745, %v6568
  // Predicated region
  $region14: #{encoder_forward.3} parent=0 // pred_check
    _
  $region15: #{encoder_forward.3} parent=0 // pred_check_branch
    %6578 = sbr.rel (0) target = $region17
  $region16: #{encoder_forward.3} parent=0 // pred_region
    _
  $region17: #{encoder_forward.3} parent=0 // pred_fallthru
    _
  // Predicated region
  $region18: #{encoder_forward.3} parent=0 // pred_check
    _
  $region19: #{encoder_forward.3} parent=0 // pred_check_branch
    %6580 = sbr.rel (0) target = $region21
  $region20: #{encoder_forward.3} parent=0 // pred_region
    _
  $region21: #{encoder_forward.3} parent=0 // pred_fallthru
    _

</llo_original>
